<compile_context>
chip_gen: v7x
topology: tpu7x:2x2x1
jax: 0.10.0
libtpu: 0.0.40
codegen_flags: <defaults>
</compile_context>

<pallas_src>
import functools
import math

import jax
import jax.numpy as jnp
from jax import lax
from jax.experimental import pallas as pl
from jax.experimental.pallas import tpu as pltpu


# ----------------------------------------------------------------------------
# Fused per-feature-level kernel.
# ----------------------------------------------------------------------------
def _fused_prediction_kernel(*refs, n_shared, n_head, shifts, inv_cnt, eps,
                             folded, bf16_taps):
    it = iter(refs)
    x_ref = next(it)
    masks_ref = next(it)
    gmat_ref = next(it)
    if folded:
        sel_ref = next(it)
        selT_ref = next(it)

    def take(k):
        return [next(it) for _ in range(k)]

    shared_p = [take(4) for _ in range(n_shared)]       # (w, b, gamma, beta)
    head0_p = take(6)                                   # fused cls0+reg0 layer
    cls_rest = [take(4) for _ in range(n_head - 1)]
    cls_out_p = take(2)                                 # (w, b)
    reg_rest = [take(4) for _ in range(n_head - 1)]
    reg_out_p = take(2)
    scores_ref, boxes_ref = take(2)

    masks = masks_ref[...]                              # (9, L) bf16, 0/1
    gmat = gmat_ref[...]                                # (C, C) f32 block-diag
    if folded:
        sel = sel_ref[...]                              # (L, S) f32 one-hot
        selT = selT_ref[...]                            # (S, L) f32 one-hot

    def conv3x3(y, w_ref, b_ref):
        # y: (Cin, L) f32 ; w_ref: (Cout, 9*Cin) bf16 ; b_ref: (Cout, 1) f32
        src = y.astype(jnp.bfloat16) if bf16_taps else y
        pieces = []
        for t, off in enumerate(shifts):
            if off == 0:
                piece = src                              # center tap: mask == 1
            else:
                m = lax.slice_in_dim(masks, t, t + 1, axis=0)   # (1, L)
                piece = pltpu.roll(src, off, axis=1) * m
            pieces.append(piece.astype(jnp.bfloat16))
        packed = jnp.concatenate(pieces, axis=0)         # (9*Cin, L) bf16
        out = jnp.dot(w_ref[...], packed, preferred_element_type=jnp.float32)
        return out + b_ref[...]

    def gn_relu(y, gamma_ref, beta_ref):
        # y: (C, L) f32 ; gamma/beta: (C, 1) f32
        if folded:
            s1 = jnp.dot(y, sel, preferred_element_type=jnp.float32)       # (C,S)
            s2 = jnp.dot(y * y, sel, preferred_element_type=jnp.float32)   # (C,S)
        else:
            s1 = jnp.sum(y, axis=1, keepdims=True)                         # (C,1)
            s2 = jnp.sum(y * y, axis=1, keepdims=True)                     # (C,1)
        g1 = jnp.dot(gmat, s1, preferred_element_type=jnp.float32)         # group sums
        g2 = jnp.dot(gmat, s2, preferred_element_type=jnp.float32)
        mu = g1 * inv_cnt
        var = jnp.maximum(g2 * inv_cnt - mu * mu, 0.0)
        inv = lax.rsqrt(var + eps)
        scale = inv * gamma_ref[...]                     # (C, S)
        bias = beta_ref[...] - mu * scale                # (C, S)
        if folded:
            scale = jnp.dot(scale, selT, preferred_element_type=jnp.float32)  # (C,L)
            bias = jnp.dot(bias, selT, preferred_element_type=jnp.float32)    # (C,L)
        y = y * scale + bias
        # TODO(synk): Dropout2d omitted (identity for eval/inference).
        return jnp.maximum(y, 0.0)

    # --- shared trunk --------------------------------------------------------
    y = x_ref[...].astype(jnp.float32)                   # (Cin0, L)
    for w, b, g, be in shared_p:
        y = gn_relu(conv3x3(y, w, b), g, be)

    # --- fused first layer of cls & reg heads (one im2col, one matmul) ------
    w2, b2, cg, cb, rg, rb = head0_p
    z = conv3x3(y, w2, b2)                                # (2*hidden, L)
    hidden = z.shape[0] // 2
    yc = gn_relu(z[:hidden], cg, cb)
    yr = gn_relu(z[hidden:], rg, rb)

    # --- classification branch ----------------------------------------------
    for w, b, g, be in cls_rest:
        yc = gn_relu(conv3x3(yc, w, b), g, be)
    scores_ref[...] = conv3x3(yc, cls_out_p[0], cls_out_p[1]).astype(scores_ref.dtype)

    # --- regression branch ---------------------------------------------------
    for w, b, g, be in reg_rest:
        yr = gn_relu(conv3x3(yr, w, b), g, be)
    boxes_ref[...] = conv3x3(yr, reg_out_p[0], reg_out_p[1]).astype(boxes_ref.dtype)


# ----------------------------------------------------------------------------
# Wrapper for one feature level
# ----------------------------------------------------------------------------
def _level_forward(params, meta, feat_nchw):
    N, cin0, H, W = feat_nchw.shape
    HW = H * W
    hidden = params["shared"][0]["w"].shape[-1]
    groups = meta["groups"]
    A = meta["num_anchors"]
    Ct = meta["total_classes"]
    cls_out_ch = A * Ct
    reg_out_ch = A * 4
    n_head = len(params["cls"])

    # Fold small FPN levels into the lane axis so vregs / stores are lane-dense.
    folded = (HW < 128) and (N > 1)
    S = N if folded else 1
    L = HW * S

    # ---- host-precomputed constants (DMA'd once, never rebuilt per step) ----
    p = jnp.arange(L)
    q = p % HW
    hh = q // W
    ww = q % W
    mask_list, shifts = [], []
    for ky in range(3):
        for kx in range(3):
            dy, dx = ky - 1, kx - 1
            valid = ((hh + dy >= 0) & (hh + dy < H) &
                     (ww + dx >= 0) & (ww + dx < W))
            mask_list.append(valid)
            # shifted[:, p] == x[:, p + dy*W + dx]; masks kill cross-sample /
            # out-of-image wraparound.
            shifts.append((-(dy * W + dx)) % L)
    masks = jnp.stack(mask_list).astype(jnp.bfloat16)            # (9, L)

    cpg = hidden // groups
    ci = jnp.arange(hidden) // cpg
    gmat = (ci[:, None] == ci[None, :]).astype(jnp.float32)      # (C, C) block-diag
    inv_cnt = 1.0 / float(cpg * HW)

    if folded:
        x_in = feat_nchw.transpose(1, 0, 2, 3).reshape(cin0, L)  # (Cin, N*HW)
        sample = p // HW
        sel = (sample[:, None] == jnp.arange(S)[None, :]).astype(jnp.float32)  # (L,S)
        selT = jnp.transpose(sel)                                               # (S,L)
    else:
        x_in = feat_nchw.reshape(N, cin0, HW)

    # ---- input list (const arrays get constant-index, single-buffer specs) --
    inputs, const_flags = [], []

    def add(arr, const):
        inputs.append(arr)
        const_flags.append(const)

    def pack_w(w):
        # (3, 3, Cin, Cout) -> (Cout, 9*Cin) bf16, col index = (ky*3+kx)*Cin + ci
        k = w.shape[0] * w.shape[1] * w.shape[2]
        return w.reshape(k, w.shape[3]).T.astype(jnp.bfloat16)

    def col(v):
        return v.reshape(-1, 1).astype(jnp.float32)

    def add_gn_layer(pr):
        add(pack_w(pr["w"]), True)
        add(col(pr["b"]), True)
        add(col(pr["gamma"]), True)
        add(col(pr["beta"]), True)

    add(x_in, False)
    add(masks, True)
    add(gmat, True)
    if folded:
        add(sel, True)
        add(selT, True)

    for pr in params["shared"]:
        add_gn_layer(pr)

    # fused first head layer: stack cls[0] and reg[0] weights
    c0, r0 = params["cls"][0], params["reg"][0]
    add(jnp.concatenate([pack_w(c0["w"]), pack_w(r0["w"])], axis=0), True)
    add(col(jnp.concatenate([c0["b"], r0["b"]])), True)
    add(col(c0["gamma"]), True)
    add(col(c0["beta"]), True)
    add(col(r0["gamma"]), True)
    add(col(r0["beta"]), True)

    for pr in params["cls"][1:]:
        add_gn_layer(pr)
    add(pack_w(params["cls_out"]["w"]), True)
    add(col(params["cls_out"]["b"]), True)
    for pr in params["reg"][1:]:
        add_gn_layer(pr)
    add(pack_w(params["reg_out"]["w"]), True)
    add(col(params["reg_out"]["b"]), True)

    # ---- specs / out shapes --------------------------------------------------
    if folded:
        grid = (1,)
        out_shape = (jax.ShapeDtypeStruct((cls_out_ch, L), jnp.float32),
                     jax.ShapeDtypeStruct((reg_out_ch, L), jnp.float32))
        out_specs = [pl.BlockSpec((cls_out_ch, L), lambda n: (0, 0)),
                     pl.BlockSpec((reg_out_ch, L), lambda n: (0, 0))]
    else:
        grid = (N,)
        out_shape = (jax.ShapeDtypeStruct((N, cls_out_ch, HW), jnp.float32),
                     jax.ShapeDtypeStruct((N, reg_out_ch, HW), jnp.float32))
        out_specs = [pl.BlockSpec((None, cls_out_ch, HW), lambda n: (n, 0, 0)),
                     pl.BlockSpec((None, reg_out_ch, HW), lambda n: (n, 0, 0))]

    def build_in_specs(use_buffered):
        specs = []
        for arr, const in zip(inputs, const_flags):
            if not const:
                if folded:
                    specs.append(pl.BlockSpec((cin0, L), lambda n: (0, 0)))
                else:
                    specs.append(pl.BlockSpec((None, cin0, HW), lambda n: (n, 0, 0)))
            elif use_buffered:
                # Constant-index block: no second (dead) buffer.
                specs.append(pl.BlockSpec(arr.shape, lambda n: (0, 0),
                                          pipeline_mode=pl.Buffered(1)))
            else:
                specs.append(pl.BlockSpec(arr.shape, lambda n: (0, 0)))
        return specs

    # ---- explicit VMEM budget (conservative estimate, clamped) ---------------
    def nbytes(a):
        return a.size * a.dtype.itemsize

    const_bytes = sum(nbytes(a) for a, c in zip(inputs, const_flags) if c)
    io_bytes = 2 * 4 * (cin0 + cls_out_ch + reg_out_ch) * L
    max_cin = max(cin0, hidden)
    max_cout = max(2 * hidden, cls_out_ch, reg_out_ch)
    act_bytes = 9 * max_cin * L * 2 + 6 * max_cout * L * 4
    est = 2 * const_bytes + io_bytes + 2 * act_bytes + (4 << 20)
    vmem_limit = int(min(max(est, 32 << 20), 64 << 20))

    def run(use_buffered, bf16_taps):
        kernel = functools.partial(
            _fused_prediction_kernel,
            n_shared=len(params["shared"]), n_head=n_head,
            shifts=tuple(shifts), inv_cnt=inv_cnt, eps=1e-5,
            folded=folded, bf16_taps=bf16_taps)
        return pl.pallas_call(
            kernel,
            out_shape=out_shape,
            grid_spec=pltpu.PrefetchScalarGridSpec(
                num_scalar_prefetch=0,
                grid=grid,
                in_specs=build_in_specs(use_buffered),
                out_specs=out_specs,
            ),
            compiler_params=pltpu.CompilerParams(
                dimension_semantics=("parallel",),
                vmem_limit_bytes=vmem_limit),
        )(*inputs)

    # Primary path: single-buffered constants + bf16 taps.  Fall back gracefully
    # if this jax/libtpu build rejects Buffered(1) or bf16 lane rotates.
    scores_flat = boxes_flat = None
    last_err = None
    for use_buffered, bf16_taps in ((True, True), (False, True), (False, False)):
        try:
            scores_flat, boxes_flat = run(use_buffered, bf16_taps)
            break
        except Exception as e:          # noqa: BLE001 - config fallback only
            last_err = e
    if scores_flat is None:
        raise last_err

    # torch: view(N, A, C, H, W).permute(0, 1, 3, 4, 2).view(N, -1, C)
    if folded:
        sc = scores_flat.reshape(A, Ct, N, HW).transpose(2, 0, 3, 1).reshape(N, A * HW, Ct)
        bx = boxes_flat.reshape(A, 4, N, HW).transpose(2, 0, 3, 1).reshape(N, A * HW, 4)
    else:
        sc = scores_flat.reshape(N, A, Ct, HW).transpose(0, 1, 3, 2).reshape(N, A * HW, Ct)
        bx = boxes_flat.reshape(N, A, 4, HW).transpose(0, 1, 3, 2).reshape(N, A * HW, 4)
    return sc, bx


def prediction_head_forward(params, meta, features_nchw):
    scores, boxes = [], []
    for feat in features_nchw:
        sc, bx = _level_forward(params, meta, feat)
        scores.append(sc)
        boxes.append(bx)
    return {"scores": scores, "boxes": boxes}


# ----------------------------------------------------------------------------
# Parameter initialization (deterministic, mirrors the module's __init__ shapes)
# ----------------------------------------------------------------------------
def init_prediction_head(key, *, in_channels, hidden, num_classes, num_anchors,
                         groups, num_layers=4, prior_prob=0.01):
    total_classes = num_classes + 1          # use_objectness=True
    num_shared = max(1, num_layers // 2)     # shared_conv=True
    head_layers = max(1, num_layers - num_shared)
    keys = iter(jax.random.split(key, 64))

    def conv_params(k, cin, cout, std=None):
        if std is None:
            std = math.sqrt(2.0 / (cout * 9))   # kaiming normal, fan_out
        w = std * jax.random.normal(k, (3, 3, cin, cout), jnp.float32)
        b = jnp.zeros((cout,), jnp.float32)
        return {"w": w, "b": b}

    params = {"shared": [], "cls": [], "reg": []}
    cin = in_channels
    for _ in range(num_shared):
        p = conv_params(next(keys), cin, hidden)
        p["gamma"] = jnp.ones((hidden,), jnp.float32)
        p["beta"] = jnp.zeros((hidden,), jnp.float32)
        params["shared"].append(p)
        cin = hidden
    for name in ("cls", "reg"):
        cin_h = hidden
        for _ in range(head_layers):
            p = conv_params(next(keys), cin_h, hidden)
            p["gamma"] = jnp.ones((hidden,), jnp.float32)
            p["beta"] = jnp.zeros((hidden,), jnp.float32)
            params[name].append(p)
            cin_h = hidden

    cls_out_ch = num_anchors * total_classes
    reg_out_ch = num_anchors * 4             # use_centerness=False
    # focal init for the classification output conv
    w_cls = 0.01 * jax.random.normal(next(keys), (3, 3, hidden, cls_out_ch), jnp.float32)
    b_cls = jnp.full((cls_out_ch,), -math.log((1.0 - prior_prob) / prior_prob), jnp.float32)
    params["cls_out"] = {"w": w_cls, "b": b_cls}
    params["reg_out"] = conv_params(next(keys), hidden, reg_out_ch)
    meta = {"num_anchors": num_anchors, "total_classes": total_classes, "groups": groups}
    return params, meta


# ----------------------------------------------------------------------------
# Pure-JAX reference (f32) used to validate the fused kernel numerically.
# ----------------------------------------------------------------------------
def _ref_conv(x, w, b):
    y = lax.conv_general_dilated(
        x, w, window_strides=(1, 1), padding="SAME",
        dimension_numbers=("NCHW", "HWIO", "NCHW"),
        precision=lax.Precision.HIGHEST)
    return y + b.reshape(1, -1, 1, 1)


def _ref_gn_relu(x, gamma, beta, groups, eps=1e-5):
    N, C, H, W = x.shape
    xg = x.reshape(N, groups, C // groups, H * W)
    mu = jnp.mean(xg, axis=(2, 3), keepdims=True)
    var = jnp.mean((xg - mu) ** 2, axis=(2, 3), keepdims=True)
    xg = (xg - mu) * lax.rsqrt(var + eps)
    x = xg.reshape(N, C, H, W) * gamma.reshape(1, C, 1, 1) + beta.reshape(1, C, 1, 1)
    return jnp.maximum(x, 0.0)


def prediction_head_reference(params, meta, features):
    A, Ct, G = meta["num_anchors"], meta["total_classes"], meta["groups"]
    scores, boxes = [], []
    for x in features:
        for p in params["shared"]:
            x = _ref_gn_relu(_ref_conv(x, p["w"], p["b"]), p["gamma"], p["beta"], G)
        xc = x
        for p in params["cls"]:
            xc = _ref_gn_relu(_ref_conv(xc, p["w"], p["b"]), p["gamma"], p["beta"], G)
        pc = _ref_conv(xc, params["cls_out"]["w"], params["cls_out"]["b"])
        xr = x
        for p in params["reg"]:
            xr = _ref_gn_relu(_ref_conv(xr, p["w"], p["b"]), p["gamma"], p["beta"], G)
        pr = _ref_conv(xr, params["reg_out"]["w"], params["reg_out"]["b"])
        N, _, H, W = pc.shape
        sc = pc.reshape(N, A, Ct, H * W).transpose(0, 1, 3, 2).reshape(N, A * H * W, Ct)
        bx = pr.reshape(N, A, 4, H * W).transpose(0, 1, 3, 2).reshape(N, A * H * W, 4)
        scores.append(sc)
        boxes.append(bx)
    return {"scores": scores, "boxes": boxes}


if __name__ == "__main__":
    key = jax.random.PRNGKey(0)
    N, Cin, hidden = 2, 32, 32
    num_classes, num_anchors, groups = 6, 3, 8   # groups = min(group_norm_groups, hidden)

    kp, kf1, kf2 = jax.random.split(key, 3)
    params, meta = init_prediction_head(
        kp, in_channels=Cin, hidden=hidden, num_classes=num_classes,
        num_anchors=num_anchors, groups=groups, num_layers=4, prior_prob=0.01)

    # FPN-style multi-scale features in PyTorch NCHW convention.
    # 16x16 exercises the per-sample grid path; 8x8 exercises the batch-folded
    # lane-dense path.
    features = [
        jax.random.normal(kf1, (N, Cin, 16, 16), jnp.float32),
        jax.random.normal(kf2, (N, Cin, 8, 8), jnp.float32),
    ]

    out = prediction_head_forward(params, meta, features)
    out = jax.block_until_ready(out)

    total_classes = num_classes + 1
    assert out["scores"][0].shape == (N, num_anchors * 16 * 16, total_classes)
    assert out["scores"][1].shape == (N, num_anchors * 8 * 8, total_classes)
    assert out["boxes"][0].shape == (N, num_anchors * 16 * 16, 4)
    assert out["boxes"][1].shape == (N, num_anchors * 8 * 8, 4)

    # Numerical check against a pure-JAX f32 reference (tolerance accounts for
    # bf16 matmul operands in the kernel).
    ref = prediction_head_reference(params, meta, features)
    for got, want in zip(out["scores"] + out["boxes"], ref["scores"] + ref["boxes"]):
        assert bool(jnp.all(jnp.isfinite(got)))
        err = jnp.abs(got - want)
        tol = 0.2 + 0.05 * jnp.abs(want)
        assert bool(jnp.all(err <= tol)), float(jnp.max(err))
    print("KERNEL_OK")
</pallas_src>

<mosaic_0001>
module attributes {stable_mosaic.version = 11 : i64} {
  func.func @_fused_prediction_kernel(%arg0: i32, %arg1: memref<1x32x256xf32, #tpu.memory_space<vmem>>, %arg2: memref<9x256xbf16, #tpu.memory_space<vmem>>, %arg3: memref<32x32xf32, #tpu.memory_space<vmem>>, %arg4: memref<32x288xbf16, #tpu.memory_space<vmem>>, %arg5: memref<32x1xf32, #tpu.memory_space<vmem>>, %arg6: memref<32x1xf32, #tpu.memory_space<vmem>>, %arg7: memref<32x1xf32, #tpu.memory_space<vmem>>, %arg8: memref<32x288xbf16, #tpu.memory_space<vmem>>, %arg9: memref<32x1xf32, #tpu.memory_space<vmem>>, %arg10: memref<32x1xf32, #tpu.memory_space<vmem>>, %arg11: memref<32x1xf32, #tpu.memory_space<vmem>>, %arg12: memref<64x288xbf16, #tpu.memory_space<vmem>>, %arg13: memref<64x1xf32, #tpu.memory_space<vmem>>, %arg14: memref<32x1xf32, #tpu.memory_space<vmem>>, %arg15: memref<32x1xf32, #tpu.memory_space<vmem>>, %arg16: memref<32x1xf32, #tpu.memory_space<vmem>>, %arg17: memref<32x1xf32, #tpu.memory_space<vmem>>, %arg18: memref<32x288xbf16, #tpu.memory_space<vmem>>, %arg19: memref<32x1xf32, #tpu.memory_space<vmem>>, %arg20: memref<32x1xf32, #tpu.memory_space<vmem>>, %arg21: memref<32x1xf32, #tpu.memory_space<vmem>>, %arg22: memref<21x288xbf16, #tpu.memory_space<vmem>>, %arg23: memref<21x1xf32, #tpu.memory_space<vmem>>, %arg24: memref<32x288xbf16, #tpu.memory_space<vmem>>, %arg25: memref<32x1xf32, #tpu.memory_space<vmem>>, %arg26: memref<32x1xf32, #tpu.memory_space<vmem>>, %arg27: memref<32x1xf32, #tpu.memory_space<vmem>>, %arg28: memref<12x288xbf16, #tpu.memory_space<vmem>>, %arg29: memref<12x1xf32, #tpu.memory_space<vmem>>, %arg30: memref<1x21x256xf32, #tpu.memory_space<vmem>>, %arg31: memref<1x12x256xf32, #tpu.memory_space<vmem>>) attributes {dimension_semantics = [#tpu.dimension_semantics<parallel>], iteration_bounds = array<i64: 2>, scalar_prefetch = 0 : i64, scratch_operands = 0 : i64, tpu.core_type = #tpu.core_type<tc>, window_params = [{transform_indices = @transform_0, window_bounds = array<i64: 1, 32, 256>}, {pipeline_mode = #tpu.pipeline_mode<synchronous>, transform_indices = @transform_1, window_bounds = array<i64: 9, 256>}, {pipeline_mode = #tpu.pipeline_mode<synchronous>, transform_indices = @transform_2, window_bounds = array<i64: 32, 32>}, {pipeline_mode = #tpu.pipeline_mode<synchronous>, transform_indices = @transform_3, window_bounds = array<i64: 32, 288>}, {pipeline_mode = #tpu.pipeline_mode<synchronous>, transform_indices = @transform_4, window_bounds = array<i64: 32, 1>}, {pipeline_mode = #tpu.pipeline_mode<synchronous>, transform_indices = @transform_5, window_bounds = array<i64: 32, 1>}, {pipeline_mode = #tpu.pipeline_mode<synchronous>, transform_indices = @transform_6, window_bounds = array<i64: 32, 1>}, {pipeline_mode = #tpu.pipeline_mode<synchronous>, transform_indices = @transform_7, window_bounds = array<i64: 32, 288>}, {pipeline_mode = #tpu.pipeline_mode<synchronous>, transform_indices = @transform_8, window_bounds = array<i64: 32, 1>}, {pipeline_mode = #tpu.pipeline_mode<synchronous>, transform_indices = @transform_9, window_bounds = array<i64: 32, 1>}, {pipeline_mode = #tpu.pipeline_mode<synchronous>, transform_indices = @transform_10, window_bounds = array<i64: 32, 1>}, {pipeline_mode = #tpu.pipeline_mode<synchronous>, transform_indices = @transform_11, window_bounds = array<i64: 64, 288>}, {pipeline_mode = #tpu.pipeline_mode<synchronous>, transform_indices = @transform_12, window_bounds = array<i64: 64, 1>}, {pipeline_mode = #tpu.pipeline_mode<synchronous>, transform_indices = @transform_13, window_bounds = array<i64: 32, 1>}, {pipeline_mode = #tpu.pipeline_mode<synchronous>, transform_indices = @transform_14, window_bounds = array<i64: 32, 1>}, {pipeline_mode = #tpu.pipeline_mode<synchronous>, transform_indices = @transform_15, window_bounds = array<i64: 32, 1>}, {pipeline_mode = #tpu.pipeline_mode<synchronous>, transform_indices = @transform_16, window_bounds = array<i64: 32, 1>}, {pipeline_mode = #tpu.pipeline_mode<synchronous>, transform_indices = @transform_17, window_bounds = array<i64: 32, 288>}, {pipeline_mode = #tpu.pipeline_mode<synchronous>, transform_indices = @transform_18, window_bounds = array<i64: 32, 1>}, {pipeline_mode = #tpu.pipeline_mode<synchronous>, transform_indices = @transform_19, window_bounds = array<i64: 32, 1>}, {pipeline_mode = #tpu.pipeline_mode<synchronous>, transform_indices = @transform_20, window_bounds = array<i64: 32, 1>}, {pipeline_mode = #tpu.pipeline_mode<synchronous>, transform_indices = @transform_21, window_bounds = array<i64: 21, 288>}, {pipeline_mode = #tpu.pipeline_mode<synchronous>, transform_indices = @transform_22, window_bounds = array<i64: 21, 1>}, {pipeline_mode = #tpu.pipeline_mode<synchronous>, transform_indices = @transform_23, window_bounds = array<i64: 32, 288>}, {pipeline_mode = #tpu.pipeline_mode<synchronous>, transform_indices = @transform_24, window_bounds = array<i64: 32, 1>}, {pipeline_mode = #tpu.pipeline_mode<synchronous>, transform_indices = @transform_25, window_bounds = array<i64: 32, 1>}, {pipeline_mode = #tpu.pipeline_mode<synchronous>, transform_indices = @transform_26, window_bounds = array<i64: 32, 1>}, {pipeline_mode = #tpu.pipeline_mode<synchronous>, transform_indices = @transform_27, window_bounds = array<i64: 12, 288>}, {pipeline_mode = #tpu.pipeline_mode<synchronous>, transform_indices = @transform_28, window_bounds = array<i64: 12, 1>}, {transform_indices = @transform_29, window_bounds = array<i64: 1, 21, 256>}, {transform_indices = @transform_30, window_bounds = array<i64: 1, 12, 256>}]} {
    %c0 = arith.constant 0 : index
    %c0_0 = arith.constant 0 : index
    %0 = vector.load %arg2[%c0, %c0_0] : memref<9x256xbf16, #tpu.memory_space<vmem>>, vector<9x256xbf16>
    %c0_1 = arith.constant 0 : index
    %c0_2 = arith.constant 0 : index
    %1 = vector.load %arg3[%c0_1, %c0_2] : memref<32x32xf32, #tpu.memory_space<vmem>>, vector<32x32xf32>
    %c0_3 = arith.constant 0 : index
    %c0_4 = arith.constant 0 : index
    %c0_5 = arith.constant 0 : index
    %2 = vector.load %arg1[%c0_3, %c0_4, %c0_5] : memref<1x32x256xf32, #tpu.memory_space<vmem>>, vector<1x32x256xf32>
    %3 = vector.shape_cast %2 : vector<1x32x256xf32> to vector<32x256xf32>
    %4 = arith.truncf %3 : vector<32x256xf32> to vector<32x256xbf16>
    %5 = vector.extract_strided_slice %0 {offsets = [0, 0], sizes = [1, 256], strides = [1, 1]} : vector<9x256xbf16> to vector<1x256xbf16>
    %c17_i32 = arith.constant 17 : i32
    %6 = tpu.dynamic_rotate %4 by %c17_i32 dim 1 : vector<32x256xbf16>, i32 -> vector<32x256xbf16>
    %7 = vector.broadcast %5 : vector<1x256xbf16> to vector<32x256xbf16>
    %8 = arith.mulf %6, %7 : vector<32x256xbf16>
    %9 = vector.extract_strided_slice %0 {offsets = [1, 0], sizes = [1, 256], strides = [1, 1]} : vector<9x256xbf16> to vector<1x256xbf16>
    %c16_i32 = arith.constant 16 : i32
    %10 = tpu.dynamic_rotate %4 by %c16_i32 dim 1 : vector<32x256xbf16>, i32 -> vector<32x256xbf16>
    %11 = vector.broadcast %9 : vector<1x256xbf16> to vector<32x256xbf16>
    %12 = arith.mulf %10, %11 : vector<32x256xbf16>
    %13 = vector.extract_strided_slice %0 {offsets = [2, 0], sizes = [1, 256], strides = [1, 1]} : vector<9x256xbf16> to vector<1x256xbf16>
    %c15_i32 = arith.constant 15 : i32
    %14 = tpu.dynamic_rotate %4 by %c15_i32 dim 1 : vector<32x256xbf16>, i32 -> vector<32x256xbf16>
    %15 = vector.broadcast %13 : vector<1x256xbf16> to vector<32x256xbf16>
    %16 = arith.mulf %14, %15 : vector<32x256xbf16>
    %17 = vector.extract_strided_slice %0 {offsets = [3, 0], sizes = [1, 256], strides = [1, 1]} : vector<9x256xbf16> to vector<1x256xbf16>
    %c1_i32 = arith.constant 1 : i32
    %18 = tpu.dynamic_rotate %4 by %c1_i32 dim 1 : vector<32x256xbf16>, i32 -> vector<32x256xbf16>
    %19 = vector.broadcast %17 : vector<1x256xbf16> to vector<32x256xbf16>
    %20 = arith.mulf %18, %19 : vector<32x256xbf16>
    %21 = vector.extract_strided_slice %0 {offsets = [5, 0], sizes = [1, 256], strides = [1, 1]} : vector<9x256xbf16> to vector<1x256xbf16>
    %c255_i32 = arith.constant 255 : i32
    %22 = tpu.dynamic_rotate %4 by %c255_i32 dim 1 : vector<32x256xbf16>, i32 -> vector<32x256xbf16>
    %23 = vector.broadcast %21 : vector<1x256xbf16> to vector<32x256xbf16>
    %24 = arith.mulf %22, %23 : vector<32x256xbf16>
    %25 = vector.extract_strided_slice %0 {offsets = [6, 0], sizes = [1, 256], strides = [1, 1]} : vector<9x256xbf16> to vector<1x256xbf16>
    %c241_i32 = arith.constant 241 : i32
    %26 = tpu.dynamic_rotate %4 by %c241_i32 dim 1 : vector<32x256xbf16>, i32 -> vector<32x256xbf16>
    %27 = vector.broadcast %25 : vector<1x256xbf16> to vector<32x256xbf16>
    %28 = arith.mulf %26, %27 : vector<32x256xbf16>
    %29 = vector.extract_strided_slice %0 {offsets = [7, 0], sizes = [1, 256], strides = [1, 1]} : vector<9x256xbf16> to vector<1x256xbf16>
    %c240_i32 = arith.constant 240 : i32
    %30 = tpu.dynamic_rotate %4 by %c240_i32 dim 1 : vector<32x256xbf16>, i32 -> vector<32x256xbf16>
    %31 = vector.broadcast %29 : vector<1x256xbf16> to vector<32x256xbf16>
    %32 = arith.mulf %30, %31 : vector<32x256xbf16>
    %33 = vector.extract_strided_slice %0 {offsets = [8, 0], sizes = [1, 256], strides = [1, 1]} : vector<9x256xbf16> to vector<1x256xbf16>
    %c239_i32 = arith.constant 239 : i32
    %34 = tpu.dynamic_rotate %4 by %c239_i32 dim 1 : vector<32x256xbf16>, i32 -> vector<32x256xbf16>
    %35 = vector.broadcast %33 : vector<1x256xbf16> to vector<32x256xbf16>
    %36 = arith.mulf %34, %35 : vector<32x256xbf16>
    %37 = tpu.concatenate %8, %12, %16, %20, %4, %24, %28, %32, %36 in 0 : vector<32x256xbf16>, vector<32x256xbf16>, vector<32x256xbf16>, vector<32x256xbf16>, vector<32x256xbf16>, vector<32x256xbf16>, vector<32x256xbf16>, vector<32x256xbf16>, vector<32x256xbf16> -> vector<288x256xbf16>
    %c0_6 = arith.constant 0 : index
    %c0_7 = arith.constant 0 : index
    %38 = vector.load %arg4[%c0_6, %c0_7] : memref<32x288xbf16, #tpu.memory_space<vmem>>, vector<32x288xbf16>
    %cst = arith.constant dense<0.000000e+00> : vector<32x256xf32>
    %39 = tpu.matmul %38, %37, %cst {dimension_numbers = #tpu.dot_dimension_numbers<[1], [0], [0], [1], [0, 0, 1, 1], [], []>} : vector<32x288xbf16>, vector<288x256xbf16>, vector<32x256xf32> -> vector<32x256xf32>
    %c0_8 = arith.constant 0 : index
    %c0_9 = arith.constant 0 : index
    %40 = vector.load %arg5[%c0_8, %c0_9] : memref<32x1xf32, #tpu.memory_space<vmem>>, vector<32x1xf32>
    %41 = vector.broadcast %40 : vector<32x1xf32> to vector<32x256xf32>
    %42 = arith.addf %39, %41 : vector<32x256xf32>
    %cst_10 = arith.constant dense<0.000000e+00> : vector<32xf32>
    %43 = vector.multi_reduction <add>, %42, %cst_10 [1] : vector<32x256xf32> to vector<32xf32>
    %44 = vector.shape_cast %43 : vector<32xf32> to vector<32x1xf32>
    %45 = arith.mulf %42, %42 : vector<32x256xf32>
    %cst_11 = arith.constant dense<0.000000e+00> : vector<32xf32>
    %46 = vector.multi_reduction <add>, %45, %cst_11 [1] : vector<32x256xf32> to vector<32xf32>
    %47 = vector.shape_cast %46 : vector<32xf32> to vector<32x1xf32>
    %cst_12 = arith.constant dense<0.000000e+00> : vector<32x1xf32>
    %48 = tpu.matmul %1, %44, %cst_12 {dimension_numbers = #tpu.dot_dimension_numbers<[1], [0], [0], [1], [0, 0, 1, 1], [], []>} : vector<32x32xf32>, vector<32x1xf32>, vector<32x1xf32> -> vector<32x1xf32>
    %cst_13 = arith.constant dense<0.000000e+00> : vector<32x1xf32>
    %49 = tpu.matmul %1, %47, %cst_13 {dimension_numbers = #tpu.dot_dimension_numbers<[1], [0], [0], [1], [0, 0, 1, 1], [], []>} : vector<32x32xf32>, vector<32x1xf32>, vector<32x1xf32> -> vector<32x1xf32>
    %cst_14 = arith.constant 9.765625E-4 : f32
    %50 = vector.broadcast %cst_14 : f32 to vector<32x1xf32>
    %51 = arith.mulf %48, %50 : vector<32x1xf32>
    %cst_15 = arith.constant 9.765625E-4 : f32
    %52 = vector.broadcast %cst_15 : f32 to vector<32x1xf32>
    %53 = arith.mulf %49, %52 : vector<32x1xf32>
    %54 = arith.mulf %51, %51 : vector<32x1xf32>
    %55 = arith.subf %53, %54 : vector<32x1xf32>
    %cst_16 = arith.constant 0.000000e+00 : f32
    %56 = vector.broadcast %cst_16 : f32 to vector<32x1xf32>
    %57 = arith.maximumf %55, %56 : vector<32x1xf32>
    %cst_17 = arith.constant 9.99999974E-6 : f32
    %58 = vector.broadcast %cst_17 : f32 to vector<32x1xf32>
    %59 = arith.addf %57, %58 : vector<32x1xf32>
    %60 = math.rsqrt %59 : vector<32x1xf32>
    %c0_18 = arith.constant 0 : index
    %c0_19 = arith.constant 0 : index
    %61 = vector.load %arg6[%c0_18, %c0_19] : memref<32x1xf32, #tpu.memory_space<vmem>>, vector<32x1xf32>
    %62 = arith.mulf %60, %61 : vector<32x1xf32>
    %c0_20 = arith.constant 0 : index
    %c0_21 = arith.constant 0 : index
    %63 = vector.load %arg7[%c0_20, %c0_21] : memref<32x1xf32, #tpu.memory_space<vmem>>, vector<32x1xf32>
    %64 = arith.mulf %51, %62 : vector<32x1xf32>
    %65 = arith.subf %63, %64 : vector<32x1xf32>
    %66 = vector.broadcast %62 : vector<32x1xf32> to vector<32x256xf32>
    %67 = arith.mulf %42, %66 : vector<32x256xf32>
    %68 = vector.broadcast %65 : vector<32x1xf32> to vector<32x256xf32>
    %69 = arith.addf %67, %68 : vector<32x256xf32>
    %cst_22 = arith.constant 0.000000e+00 : f32
    %70 = vector.broadcast %cst_22 : f32 to vector<32x256xf32>
    %71 = arith.maximumf %69, %70 : vector<32x256xf32>
    %72 = arith.truncf %71 : vector<32x256xf32> to vector<32x256xbf16>
    %73 = vector.extract_strided_slice %0 {offsets = [0, 0], sizes = [1, 256], strides = [1, 1]} : vector<9x256xbf16> to vector<1x256xbf16>
    %c17_i32_23 = arith.constant 17 : i32
    %74 = tpu.dynamic_rotate %72 by %c17_i32_23 dim 1 : vector<32x256xbf16>, i32 -> vector<32x256xbf16>
    %75 = vector.broadcast %73 : vector<1x256xbf16> to vector<32x256xbf16>
    %76 = arith.mulf %74, %75 : vector<32x256xbf16>
    %77 = vector.extract_strided_slice %0 {offsets = [1, 0], sizes = [1, 256], strides = [1, 1]} : vector<9x256xbf16> to vector<1x256xbf16>
    %c16_i32_24 = arith.constant 16 : i32
    %78 = tpu.dynamic_rotate %72 by %c16_i32_24 dim 1 : vector<32x256xbf16>, i32 -> vector<32x256xbf16>
    %79 = vector.broadcast %77 : vector<1x256xbf16> to vector<32x256xbf16>
    %80 = arith.mulf %78, %79 : vector<32x256xbf16>
    %81 = vector.extract_strided_slice %0 {offsets = [2, 0], sizes = [1, 256], strides = [1, 1]} : vector<9x256xbf16> to vector<1x256xbf16>
    %c15_i32_25 = arith.constant 15 : i32
    %82 = tpu.dynamic_rotate %72 by %c15_i32_25 dim 1 : vector<32x256xbf16>, i32 -> vector<32x256xbf16>
    %83 = vector.broadcast %81 : vector<1x256xbf16> to vector<32x256xbf16>
    %84 = arith.mulf %82, %83 : vector<32x256xbf16>
    %85 = vector.extract_strided_slice %0 {offsets = [3, 0], sizes = [1, 256], strides = [1, 1]} : vector<9x256xbf16> to vector<1x256xbf16>
    %c1_i32_26 = arith.constant 1 : i32
    %86 = tpu.dynamic_rotate %72 by %c1_i32_26 dim 1 : vector<32x256xbf16>, i32 -> vector<32x256xbf16>
    %87 = vector.broadcast %85 : vector<1x256xbf16> to vector<32x256xbf16>
    %88 = arith.mulf %86, %87 : vector<32x256xbf16>
    %89 = vector.extract_strided_slice %0 {offsets = [5, 0], sizes = [1, 256], strides = [1, 1]} : vector<9x256xbf16> to vector<1x256xbf16>
    %c255_i32_27 = arith.constant 255 : i32
    %90 = tpu.dynamic_rotate %72 by %c255_i32_27 dim 1 : vector<32x256xbf16>, i32 -> vector<32x256xbf16>
    %91 = vector.broadcast %89 : vector<1x256xbf16> to vector<32x256xbf16>
    %92 = arith.mulf %90, %91 : vector<32x256xbf16>
    %93 = vector.extract_strided_slice %0 {offsets = [6, 0], sizes = [1, 256], strides = [1, 1]} : vector<9x256xbf16> to vector<1x256xbf16>
    %c241_i32_28 = arith.constant 241 : i32
    %94 = tpu.dynamic_rotate %72 by %c241_i32_28 dim 1 : vector<32x256xbf16>, i32 -> vector<32x256xbf16>
    %95 = vector.broadcast %93 : vector<1x256xbf16> to vector<32x256xbf16>
    %96 = arith.mulf %94, %95 : vector<32x256xbf16>
    %97 = vector.extract_strided_slice %0 {offsets = [7, 0], sizes = [1, 256], strides = [1, 1]} : vector<9x256xbf16> to vector<1x256xbf16>
    %c240_i32_29 = arith.constant 240 : i32
    %98 = tpu.dynamic_rotate %72 by %c240_i32_29 dim 1 : vector<32x256xbf16>, i32 -> vector<32x256xbf16>
    %99 = vector.broadcast %97 : vector<1x256xbf16> to vector<32x256xbf16>
    %100 = arith.mulf %98, %99 : vector<32x256xbf16>
    %101 = vector.extract_strided_slice %0 {offsets = [8, 0], sizes = [1, 256], strides = [1, 1]} : vector<9x256xbf16> to vector<1x256xbf16>
    %c239_i32_30 = arith.constant 239 : i32
    %102 = tpu.dynamic_rotate %72 by %c239_i32_30 dim 1 : vector<32x256xbf16>, i32 -> vector<32x256xbf16>
    %103 = vector.broadcast %101 : vector<1x256xbf16> to vector<32x256xbf16>
    %104 = arith.mulf %102, %103 : vector<32x256xbf16>
    %105 = tpu.concatenate %76, %80, %84, %88, %72, %92, %96, %100, %104 in 0 : vector<32x256xbf16>, vector<32x256xbf16>, vector<32x256xbf16>, vector<32x256xbf16>, vector<32x256xbf16>, vector<32x256xbf16>, vector<32x256xbf16>, vector<32x256xbf16>, vector<32x256xbf16> -> vector<288x256xbf16>
    %c0_31 = arith.constant 0 : index
    %c0_32 = arith.constant 0 : index
    %106 = vector.load %arg8[%c0_31, %c0_32] : memref<32x288xbf16, #tpu.memory_space<vmem>>, vector<32x288xbf16>
    %cst_33 = arith.constant dense<0.000000e+00> : vector<32x256xf32>
    %107 = tpu.matmul %106, %105, %cst_33 {dimension_numbers = #tpu.dot_dimension_numbers<[1], [0], [0], [1], [0, 0, 1, 1], [], []>} : vector<32x288xbf16>, vector<288x256xbf16>, vector<32x256xf32> -> vector<32x256xf32>
    %c0_34 = arith.constant 0 : index
    %c0_35 = arith.constant 0 : index
    %108 = vector.load %arg9[%c0_34, %c0_35] : memref<32x1xf32, #tpu.memory_space<vmem>>, vector<32x1xf32>
    %109 = vector.broadcast %108 : vector<32x1xf32> to vector<32x256xf32>
    %110 = arith.addf %107, %109 : vector<32x256xf32>
    %cst_36 = arith.constant dense<0.000000e+00> : vector<32xf32>
    %111 = vector.multi_reduction <add>, %110, %cst_36 [1] : vector<32x256xf32> to vector<32xf32>
    %112 = vector.shape_cast %111 : vector<32xf32> to vector<32x1xf32>
    %113 = arith.mulf %110, %110 : vector<32x256xf32>
    %cst_37 = arith.constant dense<0.000000e+00> : vector<32xf32>
    %114 = vector.multi_reduction <add>, %113, %cst_37 [1] : vector<32x256xf32> to vector<32xf32>
    %115 = vector.shape_cast %114 : vector<32xf32> to vector<32x1xf32>
    %cst_38 = arith.constant dense<0.000000e+00> : vector<32x1xf32>
    %116 = tpu.matmul %1, %112, %cst_38 {dimension_numbers = #tpu.dot_dimension_numbers<[1], [0], [0], [1], [0, 0, 1, 1], [], []>} : vector<32x32xf32>, vector<32x1xf32>, vector<32x1xf32> -> vector<32x1xf32>
    %cst_39 = arith.constant dense<0.000000e+00> : vector<32x1xf32>
    %117 = tpu.matmul %1, %115, %cst_39 {dimension_numbers = #tpu.dot_dimension_numbers<[1], [0], [0], [1], [0, 0, 1, 1], [], []>} : vector<32x32xf32>, vector<32x1xf32>, vector<32x1xf32> -> vector<32x1xf32>
    %cst_40 = arith.constant 9.765625E-4 : f32
    %118 = vector.broadcast %cst_40 : f32 to vector<32x1xf32>
    %119 = arith.mulf %116, %118 : vector<32x1xf32>
    %cst_41 = arith.constant 9.765625E-4 : f32
    %120 = vector.broadcast %cst_41 : f32 to vector<32x1xf32>
    %121 = arith.mulf %117, %120 : vector<32x1xf32>
    %122 = arith.mulf %119, %119 : vector<32x1xf32>
    %123 = arith.subf %121, %122 : vector<32x1xf32>
    %cst_42 = arith.constant 0.000000e+00 : f32
    %124 = vector.broadcast %cst_42 : f32 to vector<32x1xf32>
    %125 = arith.maximumf %123, %124 : vector<32x1xf32>
    %cst_43 = arith.constant 9.99999974E-6 : f32
    %126 = vector.broadcast %cst_43 : f32 to vector<32x1xf32>
    %127 = arith.addf %125, %126 : vector<32x1xf32>
    %128 = math.rsqrt %127 : vector<32x1xf32>
    %c0_44 = arith.constant 0 : index
    %c0_45 = arith.constant 0 : index
    %129 = vector.load %arg10[%c0_44, %c0_45] : memref<32x1xf32, #tpu.memory_space<vmem>>, vector<32x1xf32>
    %130 = arith.mulf %128, %129 : vector<32x1xf32>
    %c0_46 = arith.constant 0 : index
    %c0_47 = arith.constant 0 : index
    %131 = vector.load %arg11[%c0_46, %c0_47] : memref<32x1xf32, #tpu.memory_space<vmem>>, vector<32x1xf32>
    %132 = arith.mulf %119, %130 : vector<32x1xf32>
    %133 = arith.subf %131, %132 : vector<32x1xf32>
    %134 = vector.broadcast %130 : vector<32x1xf32> to vector<32x256xf32>
    %135 = arith.mulf %110, %134 : vector<32x256xf32>
    %136 = vector.broadcast %133 : vector<32x1xf32> to vector<32x256xf32>
    %137 = arith.addf %135, %136 : vector<32x256xf32>
    %cst_48 = arith.constant 0.000000e+00 : f32
    %138 = vector.broadcast %cst_48 : f32 to vector<32x256xf32>
    %139 = arith.maximumf %137, %138 : vector<32x256xf32>
    %140 = arith.truncf %139 : vector<32x256xf32> to vector<32x256xbf16>
    %141 = vector.extract_strided_slice %0 {offsets = [0, 0], sizes = [1, 256], strides = [1, 1]} : vector<9x256xbf16> to vector<1x256xbf16>
    %c17_i32_49 = arith.constant 17 : i32
    %142 = tpu.dynamic_rotate %140 by %c17_i32_49 dim 1 : vector<32x256xbf16>, i32 -> vector<32x256xbf16>
    %143 = vector.broadcast %141 : vector<1x256xbf16> to vector<32x256xbf16>
    %144 = arith.mulf %142, %143 : vector<32x256xbf16>
    %145 = vector.extract_strided_slice %0 {offsets = [1, 0], sizes = [1, 256], strides = [1, 1]} : vector<9x256xbf16> to vector<1x256xbf16>
    %c16_i32_50 = arith.constant 16 : i32
    %146 = tpu.dynamic_rotate %140 by %c16_i32_50 dim 1 : vector<32x256xbf16>, i32 -> vector<32x256xbf16>
    %147 = vector.broadcast %145 : vector<1x256xbf16> to vector<32x256xbf16>
    %148 = arith.mulf %146, %147 : vector<32x256xbf16>
    %149 = vector.extract_strided_slice %0 {offsets = [2, 0], sizes = [1, 256], strides = [1, 1]} : vector<9x256xbf16> to vector<1x256xbf16>
    %c15_i32_51 = arith.constant 15 : i32
    %150 = tpu.dynamic_rotate %140 by %c15_i32_51 dim 1 : vector<32x256xbf16>, i32 -> vector<32x256xbf16>
    %151 = vector.broadcast %149 : vector<1x256xbf16> to vector<32x256xbf16>
    %152 = arith.mulf %150, %151 : vector<32x256xbf16>
    %153 = vector.extract_strided_slice %0 {offsets = [3, 0], sizes = [1, 256], strides = [1, 1]} : vector<9x256xbf16> to vector<1x256xbf16>
    %c1_i32_52 = arith.constant 1 : i32
    %154 = tpu.dynamic_rotate %140 by %c1_i32_52 dim 1 : vector<32x256xbf16>, i32 -> vector<32x256xbf16>
    %155 = vector.broadcast %153 : vector<1x256xbf16> to vector<32x256xbf16>
    %156 = arith.mulf %154, %155 : vector<32x256xbf16>
    %157 = vector.extract_strided_slice %0 {offsets = [5, 0], sizes = [1, 256], strides = [1, 1]} : vector<9x256xbf16> to vector<1x256xbf16>
    %c255_i32_53 = arith.constant 255 : i32
    %158 = tpu.dynamic_rotate %140 by %c255_i32_53 dim 1 : vector<32x256xbf16>, i32 -> vector<32x256xbf16>
    %159 = vector.broadcast %157 : vector<1x256xbf16> to vector<32x256xbf16>
    %160 = arith.mulf %158, %159 : vector<32x256xbf16>
    %161 = vector.extract_strided_slice %0 {offsets = [6, 0], sizes = [1, 256], strides = [1, 1]} : vector<9x256xbf16> to vector<1x256xbf16>
    %c241_i32_54 = arith.constant 241 : i32
    %162 = tpu.dynamic_rotate %140 by %c241_i32_54 dim 1 : vector<32x256xbf16>, i32 -> vector<32x256xbf16>
    %163 = vector.broadcast %161 : vector<1x256xbf16> to vector<32x256xbf16>
    %164 = arith.mulf %162, %163 : vector<32x256xbf16>
    %165 = vector.extract_strided_slice %0 {offsets = [7, 0], sizes = [1, 256], strides = [1, 1]} : vector<9x256xbf16> to vector<1x256xbf16>
    %c240_i32_55 = arith.constant 240 : i32
    %166 = tpu.dynamic_rotate %140 by %c240_i32_55 dim 1 : vector<32x256xbf16>, i32 -> vector<32x256xbf16>
    %167 = vector.broadcast %165 : vector<1x256xbf16> to vector<32x256xbf16>
    %168 = arith.mulf %166, %167 : vector<32x256xbf16>
    %169 = vector.extract_strided_slice %0 {offsets = [8, 0], sizes = [1, 256], strides = [1, 1]} : vector<9x256xbf16> to vector<1x256xbf16>
    %c239_i32_56 = arith.constant 239 : i32
    %170 = tpu.dynamic_rotate %140 by %c239_i32_56 dim 1 : vector<32x256xbf16>, i32 -> vector<32x256xbf16>
    %171 = vector.broadcast %169 : vector<1x256xbf16> to vector<32x256xbf16>
    %172 = arith.mulf %170, %171 : vector<32x256xbf16>
    %173 = tpu.concatenate %144, %148, %152, %156, %140, %160, %164, %168, %172 in 0 : vector<32x256xbf16>, vector<32x256xbf16>, vector<32x256xbf16>, vector<32x256xbf16>, vector<32x256xbf16>, vector<32x256xbf16>, vector<32x256xbf16>, vector<32x256xbf16>, vector<32x256xbf16> -> vector<288x256xbf16>
    %c0_57 = arith.constant 0 : index
    %c0_58 = arith.constant 0 : index
    %174 = vector.load %arg12[%c0_57, %c0_58] : memref<64x288xbf16, #tpu.memory_space<vmem>>, vector<64x288xbf16>
    %cst_59 = arith.constant dense<0.000000e+00> : vector<64x256xf32>
    %175 = tpu.matmul %174, %173, %cst_59 {dimension_numbers = #tpu.dot_dimension_numbers<[1], [0], [0], [1], [0, 0, 1, 1], [], []>} : vector<64x288xbf16>, vector<288x256xbf16>, vector<64x256xf32> -> vector<64x256xf32>
    %c0_60 = arith.constant 0 : index
    %c0_61 = arith.constant 0 : index
    %176 = vector.load %arg13[%c0_60, %c0_61] : memref<64x1xf32, #tpu.memory_space<vmem>>, vector<64x1xf32>
    %177 = vector.broadcast %176 : vector<64x1xf32> to vector<64x256xf32>
    %178 = arith.addf %175, %177 : vector<64x256xf32>
    %179 = vector.extract_strided_slice %178 {offsets = [0, 0], sizes = [32, 256], strides = [1, 1]} : vector<64x256xf32> to vector<32x256xf32>
    %cst_62 = arith.constant dense<0.000000e+00> : vector<32xf32>
    %180 = vector.multi_reduction <add>, %179, %cst_62 [1] : vector<32x256xf32> to vector<32xf32>
    %181 = vector.shape_cast %180 : vector<32xf32> to vector<32x1xf32>
    %182 = arith.mulf %179, %179 : vector<32x256xf32>
    %cst_63 = arith.constant dense<0.000000e+00> : vector<32xf32>
    %183 = vector.multi_reduction <add>, %182, %cst_63 [1] : vector<32x256xf32> to vector<32xf32>
    %184 = vector.shape_cast %183 : vector<32xf32> to vector<32x1xf32>
    %cst_64 = arith.constant dense<0.000000e+00> : vector<32x1xf32>
    %185 = tpu.matmul %1, %181, %cst_64 {dimension_numbers = #tpu.dot_dimension_numbers<[1], [0], [0], [1], [0, 0, 1, 1], [], []>} : vector<32x32xf32>, vector<32x1xf32>, vector<32x1xf32> -> vector<32x1xf32>
    %cst_65 = arith.constant dense<0.000000e+00> : vector<32x1xf32>
    %186 = tpu.matmul %1, %184, %cst_65 {dimension_numbers = #tpu.dot_dimension_numbers<[1], [0], [0], [1], [0, 0, 1, 1], [], []>} : vector<32x32xf32>, vector<32x1xf32>, vector<32x1xf32> -> vector<32x1xf32>
    %cst_66 = arith.constant 9.765625E-4 : f32
    %187 = vector.broadcast %cst_66 : f32 to vector<32x1xf32>
    %188 = arith.mulf %185, %187 : vector<32x1xf32>
    %cst_67 = arith.constant 9.765625E-4 : f32
    %189 = vector.broadcast %cst_67 : f32 to vector<32x1xf32>
    %190 = arith.mulf %186, %189 : vector<32x1xf32>
    %191 = arith.mulf %188, %188 : vector<32x1xf32>
    %192 = arith.subf %190, %191 : vector<32x1xf32>
    %cst_68 = arith.constant 0.000000e+00 : f32
    %193 = vector.broadcast %cst_68 : f32 to vector<32x1xf32>
    %194 = arith.maximumf %192, %193 : vector<32x1xf32>
    %cst_69 = arith.constant 9.99999974E-6 : f32
    %195 = vector.broadcast %cst_69 : f32 to vector<32x1xf32>
    %196 = arith.addf %194, %195 : vector<32x1xf32>
    %197 = math.rsqrt %196 : vector<32x1xf32>
    %c0_70 = arith.constant 0 : index
    %c0_71 = arith.constant 0 : index
    %198 = vector.load %arg14[%c0_70, %c0_71] : memref<32x1xf32, #tpu.memory_space<vmem>>, vector<32x1xf32>
    %199 = arith.mulf %197, %198 : vector<32x1xf32>
    %c0_72 = arith.constant 0 : index
    %c0_73 = arith.constant 0 : index
    %200 = vector.load %arg15[%c0_72, %c0_73] : memref<32x1xf32, #tpu.memory_space<vmem>>, vector<32x1xf32>
    %201 = arith.mulf %188, %199 : vector<32x1xf32>
    %202 = arith.subf %200, %201 : vector<32x1xf32>
    %203 = vector.broadcast %199 : vector<32x1xf32> to vector<32x256xf32>
    %204 = arith.mulf %179, %203 : vector<32x256xf32>
    %205 = vector.broadcast %202 : vector<32x1xf32> to vector<32x256xf32>
    %206 = arith.addf %204, %205 : vector<32x256xf32>
    %cst_74 = arith.constant 0.000000e+00 : f32
    %207 = vector.broadcast %cst_74 : f32 to vector<32x256xf32>
    %208 = arith.maximumf %206, %207 : vector<32x256xf32>
    %209 = vector.extract_strided_slice %178 {offsets = [32, 0], sizes = [32, 256], strides = [1, 1]} : vector<64x256xf32> to vector<32x256xf32>
    %cst_75 = arith.constant dense<0.000000e+00> : vector<32xf32>
    %210 = vector.multi_reduction <add>, %209, %cst_75 [1] : vector<32x256xf32> to vector<32xf32>
    %211 = vector.shape_cast %210 : vector<32xf32> to vector<32x1xf32>
    %212 = arith.mulf %209, %209 : vector<32x256xf32>
    %cst_76 = arith.constant dense<0.000000e+00> : vector<32xf32>
    %213 = vector.multi_reduction <add>, %212, %cst_76 [1] : vector<32x256xf32> to vector<32xf32>
    %214 = vector.shape_cast %213 : vector<32xf32> to vector<32x1xf32>
    %cst_77 = arith.constant dense<0.000000e+00> : vector<32x1xf32>
    %215 = tpu.matmul %1, %211, %cst_77 {dimension_numbers = #tpu.dot_dimension_numbers<[1], [0], [0], [1], [0, 0, 1, 1], [], []>} : vector<32x32xf32>, vector<32x1xf32>, vector<32x1xf32> -> vector<32x1xf32>
    %cst_78 = arith.constant dense<0.000000e+00> : vector<32x1xf32>
    %216 = tpu.matmul %1, %214, %cst_78 {dimension_numbers = #tpu.dot_dimension_numbers<[1], [0], [0], [1], [0, 0, 1, 1], [], []>} : vector<32x32xf32>, vector<32x1xf32>, vector<32x1xf32> -> vector<32x1xf32>
    %cst_79 = arith.constant 9.765625E-4 : f32
    %217 = vector.broadcast %cst_79 : f32 to vector<32x1xf32>
    %218 = arith.mulf %215, %217 : vector<32x1xf32>
    %cst_80 = arith.constant 9.765625E-4 : f32
    %219 = vector.broadcast %cst_80 : f32 to vector<32x1xf32>
    %220 = arith.mulf %216, %219 : vector<32x1xf32>
    %221 = arith.mulf %218, %218 : vector<32x1xf32>
    %222 = arith.subf %220, %221 : vector<32x1xf32>
    %cst_81 = arith.constant 0.000000e+00 : f32
    %223 = vector.broadcast %cst_81 : f32 to vector<32x1xf32>
    %224 = arith.maximumf %222, %223 : vector<32x1xf32>
    %cst_82 = arith.constant 9.99999974E-6 : f32
    %225 = vector.broadcast %cst_82 : f32 to vector<32x1xf32>
    %226 = arith.addf %224, %225 : vector<32x1xf32>
    %227 = math.rsqrt %226 : vector<32x1xf32>
    %c0_83 = arith.constant 0 : index
    %c0_84 = arith.constant 0 : index
    %228 = vector.load %arg16[%c0_83, %c0_84] : memref<32x1xf32, #tpu.memory_space<vmem>>, vector<32x1xf32>
    %229 = arith.mulf %227, %228 : vector<32x1xf32>
    %c0_85 = arith.constant 0 : index
    %c0_86 = arith.constant 0 : index
    %230 = vector.load %arg17[%c0_85, %c0_86] : memref<32x1xf32, #tpu.memory_space<vmem>>, vector<32x1xf32>
    %231 = arith.mulf %218, %229 : vector<32x1xf32>
    %232 = arith.subf %230, %231 : vector<32x1xf32>
    %233 = vector.broadcast %229 : vector<32x1xf32> to vector<32x256xf32>
    %234 = arith.mulf %209, %233 : vector<32x256xf32>
    %235 = vector.broadcast %232 : vector<32x1xf32> to vector<32x256xf32>
    %236 = arith.addf %234, %235 : vector<32x256xf32>
    %cst_87 = arith.constant 0.000000e+00 : f32
    %237 = vector.broadcast %cst_87 : f32 to vector<32x256xf32>
    %238 = arith.maximumf %236, %237 : vector<32x256xf32>
    %239 = arith.truncf %208 : vector<32x256xf32> to vector<32x256xbf16>
    %240 = vector.extract_strided_slice %0 {offsets = [0, 0], sizes = [1, 256], strides = [1, 1]} : vector<9x256xbf16> to vector<1x256xbf16>
    %c17_i32_88 = arith.constant 17 : i32
    %241 = tpu.dynamic_rotate %239 by %c17_i32_88 dim 1 : vector<32x256xbf16>, i32 -> vector<32x256xbf16>
    %242 = vector.broadcast %240 : vector<1x256xbf16> to vector<32x256xbf16>
    %243 = arith.mulf %241, %242 : vector<32x256xbf16>
    %244 = vector.extract_strided_slice %0 {offsets = [1, 0], sizes = [1, 256], strides = [1, 1]} : vector<9x256xbf16> to vector<1x256xbf16>
    %c16_i32_89 = arith.constant 16 : i32
    %245 = tpu.dynamic_rotate %239 by %c16_i32_89 dim 1 : vector<32x256xbf16>, i32 -> vector<32x256xbf16>
    %246 = vector.broadcast %244 : vector<1x256xbf16> to vector<32x256xbf16>
    %247 = arith.mulf %245, %246 : vector<32x256xbf16>
    %248 = vector.extract_strided_slice %0 {offsets = [2, 0], sizes = [1, 256], strides = [1, 1]} : vector<9x256xbf16> to vector<1x256xbf16>
    %c15_i32_90 = arith.constant 15 : i32
    %249 = tpu.dynamic_rotate %239 by %c15_i32_90 dim 1 : vector<32x256xbf16>, i32 -> vector<32x256xbf16>
    %250 = vector.broadcast %248 : vector<1x256xbf16> to vector<32x256xbf16>
    %251 = arith.mulf %249, %250 : vector<32x256xbf16>
    %252 = vector.extract_strided_slice %0 {offsets = [3, 0], sizes = [1, 256], strides = [1, 1]} : vector<9x256xbf16> to vector<1x256xbf16>
    %c1_i32_91 = arith.constant 1 : i32
    %253 = tpu.dynamic_rotate %239 by %c1_i32_91 dim 1 : vector<32x256xbf16>, i32 -> vector<32x256xbf16>
    %254 = vector.broadcast %252 : vector<1x256xbf16> to vector<32x256xbf16>
    %255 = arith.mulf %253, %254 : vector<32x256xbf16>
    %256 = vector.extract_strided_slice %0 {offsets = [5, 0], sizes = [1, 256], strides = [1, 1]} : vector<9x256xbf16> to vector<1x256xbf16>
    %c255_i32_92 = arith.constant 255 : i32
    %257 = tpu.dynamic_rotate %239 by %c255_i32_92 dim 1 : vector<32x256xbf16>, i32 -> vector<32x256xbf16>
    %258 = vector.broadcast %256 : vector<1x256xbf16> to vector<32x256xbf16>
    %259 = arith.mulf %257, %258 : vector<32x256xbf16>
    %260 = vector.extract_strided_slice %0 {offsets = [6, 0], sizes = [1, 256], strides = [1, 1]} : vector<9x256xbf16> to vector<1x256xbf16>
    %c241_i32_93 = arith.constant 241 : i32
    %261 = tpu.dynamic_rotate %239 by %c241_i32_93 dim 1 : vector<32x256xbf16>, i32 -> vector<32x256xbf16>
    %262 = vector.broadcast %260 : vector<1x256xbf16> to vector<32x256xbf16>
    %263 = arith.mulf %261, %262 : vector<32x256xbf16>
    %264 = vector.extract_strided_slice %0 {offsets = [7, 0], sizes = [1, 256], strides = [1, 1]} : vector<9x256xbf16> to vector<1x256xbf16>
    %c240_i32_94 = arith.constant 240 : i32
    %265 = tpu.dynamic_rotate %239 by %c240_i32_94 dim 1 : vector<32x256xbf16>, i32 -> vector<32x256xbf16>
    %266 = vector.broadcast %264 : vector<1x256xbf16> to vector<32x256xbf16>
    %267 = arith.mulf %265, %266 : vector<32x256xbf16>
    %268 = vector.extract_strided_slice %0 {offsets = [8, 0], sizes = [1, 256], strides = [1, 1]} : vector<9x256xbf16> to vector<1x256xbf16>
    %c239_i32_95 = arith.constant 239 : i32
    %269 = tpu.dynamic_rotate %239 by %c239_i32_95 dim 1 : vector<32x256xbf16>, i32 -> vector<32x256xbf16>
    %270 = vector.broadcast %268 : vector<1x256xbf16> to vector<32x256xbf16>
    %271 = arith.mulf %269, %270 : vector<32x256xbf16>
    %272 = tpu.concatenate %243, %247, %251, %255, %239, %259, %263, %267, %271 in 0 : vector<32x256xbf16>, vector<32x256xbf16>, vector<32x256xbf16>, vector<32x256xbf16>, vector<32x256xbf16>, vector<32x256xbf16>, vector<32x256xbf16>, vector<32x256xbf16>, vector<32x256xbf16> -> vector<288x256xbf16>
    %c0_96 = arith.constant 0 : index
    %c0_97 = arith.constant 0 : index
    %273 = vector.load %arg18[%c0_96, %c0_97] : memref<32x288xbf16, #tpu.memory_space<vmem>>, vector<32x288xbf16>
    %cst_98 = arith.constant dense<0.000000e+00> : vector<32x256xf32>
    %274 = tpu.matmul %273, %272, %cst_98 {dimension_numbers = #tpu.dot_dimension_numbers<[1], [0], [0], [1], [0, 0, 1, 1], [], []>} : vector<32x288xbf16>, vector<288x256xbf16>, vector<32x256xf32> -> vector<32x256xf32>
    %c0_99 = arith.constant 0 : index
    %c0_100 = arith.constant 0 : index
    %275 = vector.load %arg19[%c0_99, %c0_100] : memref<32x1xf32, #tpu.memory_space<vmem>>, vector<32x1xf32>
    %276 = vector.broadcast %275 : vector<32x1xf32> to vector<32x256xf32>
    %277 = arith.addf %274, %276 : vector<32x256xf32>
    %cst_101 = arith.constant dense<0.000000e+00> : vector<32xf32>
    %278 = vector.multi_reduction <add>, %277, %cst_101 [1] : vector<32x256xf32> to vector<32xf32>
    %279 = vector.shape_cast %278 : vector<32xf32> to vector<32x1xf32>
    %280 = arith.mulf %277, %277 : vector<32x256xf32>
    %cst_102 = arith.constant dense<0.000000e+00> : vector<32xf32>
    %281 = vector.multi_reduction <add>, %280, %cst_102 [1] : vector<32x256xf32> to vector<32xf32>
    %282 = vector.shape_cast %281 : vector<32xf32> to vector<32x1xf32>
    %cst_103 = arith.constant dense<0.000000e+00> : vector<32x1xf32>
    %283 = tpu.matmul %1, %279, %cst_103 {dimension_numbers = #tpu.dot_dimension_numbers<[1], [0], [0], [1], [0, 0, 1, 1], [], []>} : vector<32x32xf32>, vector<32x1xf32>, vector<32x1xf32> -> vector<32x1xf32>
    %cst_104 = arith.constant dense<0.000000e+00> : vector<32x1xf32>
    %284 = tpu.matmul %1, %282, %cst_104 {dimension_numbers = #tpu.dot_dimension_numbers<[1], [0], [0], [1], [0, 0, 1, 1], [], []>} : vector<32x32xf32>, vector<32x1xf32>, vector<32x1xf32> -> vector<32x1xf32>
    %cst_105 = arith.constant 9.765625E-4 : f32
    %285 = vector.broadcast %cst_105 : f32 to vector<32x1xf32>
    %286 = arith.mulf %283, %285 : vector<32x1xf32>
    %cst_106 = arith.constant 9.765625E-4 : f32
    %287 = vector.broadcast %cst_106 : f32 to vector<32x1xf32>
    %288 = arith.mulf %284, %287 : vector<32x1xf32>
    %289 = arith.mulf %286, %286 : vector<32x1xf32>
    %290 = arith.subf %288, %289 : vector<32x1xf32>
    %cst_107 = arith.constant 0.000000e+00 : f32
    %291 = vector.broadcast %cst_107 : f32 to vector<32x1xf32>
    %292 = arith.maximumf %290, %291 : vector<32x1xf32>
    %cst_108 = arith.constant 9.99999974E-6 : f32
    %293 = vector.broadcast %cst_108 : f32 to vector<32x1xf32>
    %294 = arith.addf %292, %293 : vector<32x1xf32>
    %295 = math.rsqrt %294 : vector<32x1xf32>
    %c0_109 = arith.constant 0 : index
    %c0_110 = arith.constant 0 : index
    %296 = vector.load %arg20[%c0_109, %c0_110] : memref<32x1xf32, #tpu.memory_space<vmem>>, vector<32x1xf32>
    %297 = arith.mulf %295, %296 : vector<32x1xf32>
    %c0_111 = arith.constant 0 : index
    %c0_112 = arith.constant 0 : index
    %298 = vector.load %arg21[%c0_111, %c0_112] : memref<32x1xf32, #tpu.memory_space<vmem>>, vector<32x1xf32>
    %299 = arith.mulf %286, %297 : vector<32x1xf32>
    %300 = arith.subf %298, %299 : vector<32x1xf32>
    %301 = vector.broadcast %297 : vector<32x1xf32> to vector<32x256xf32>
    %302 = arith.mulf %277, %301 : vector<32x256xf32>
    %303 = vector.broadcast %300 : vector<32x1xf32> to vector<32x256xf32>
    %304 = arith.addf %302, %303 : vector<32x256xf32>
    %cst_113 = arith.constant 0.000000e+00 : f32
    %305 = vector.broadcast %cst_113 : f32 to vector<32x256xf32>
    %306 = arith.maximumf %304, %305 : vector<32x256xf32>
    %307 = arith.truncf %306 : vector<32x256xf32> to vector<32x256xbf16>
    %308 = vector.extract_strided_slice %0 {offsets = [0, 0], sizes = [1, 256], strides = [1, 1]} : vector<9x256xbf16> to vector<1x256xbf16>
    %c17_i32_114 = arith.constant 17 : i32
    %309 = tpu.dynamic_rotate %307 by %c17_i32_114 dim 1 : vector<32x256xbf16>, i32 -> vector<32x256xbf16>
    %310 = vector.broadcast %308 : vector<1x256xbf16> to vector<32x256xbf16>
    %311 = arith.mulf %309, %310 : vector<32x256xbf16>
    %312 = vector.extract_strided_slice %0 {offsets = [1, 0], sizes = [1, 256], strides = [1, 1]} : vector<9x256xbf16> to vector<1x256xbf16>
    %c16_i32_115 = arith.constant 16 : i32
    %313 = tpu.dynamic_rotate %307 by %c16_i32_115 dim 1 : vector<32x256xbf16>, i32 -> vector<32x256xbf16>
    %314 = vector.broadcast %312 : vector<1x256xbf16> to vector<32x256xbf16>
    %315 = arith.mulf %313, %314 : vector<32x256xbf16>
    %316 = vector.extract_strided_slice %0 {offsets = [2, 0], sizes = [1, 256], strides = [1, 1]} : vector<9x256xbf16> to vector<1x256xbf16>
    %c15_i32_116 = arith.constant 15 : i32
    %317 = tpu.dynamic_rotate %307 by %c15_i32_116 dim 1 : vector<32x256xbf16>, i32 -> vector<32x256xbf16>
    %318 = vector.broadcast %316 : vector<1x256xbf16> to vector<32x256xbf16>
    %319 = arith.mulf %317, %318 : vector<32x256xbf16>
    %320 = vector.extract_strided_slice %0 {offsets = [3, 0], sizes = [1, 256], strides = [1, 1]} : vector<9x256xbf16> to vector<1x256xbf16>
    %c1_i32_117 = arith.constant 1 : i32
    %321 = tpu.dynamic_rotate %307 by %c1_i32_117 dim 1 : vector<32x256xbf16>, i32 -> vector<32x256xbf16>
    %322 = vector.broadcast %320 : vector<1x256xbf16> to vector<32x256xbf16>
    %323 = arith.mulf %321, %322 : vector<32x256xbf16>
    %324 = vector.extract_strided_slice %0 {offsets = [5, 0], sizes = [1, 256], strides = [1, 1]} : vector<9x256xbf16> to vector<1x256xbf16>
    %c255_i32_118 = arith.constant 255 : i32
    %325 = tpu.dynamic_rotate %307 by %c255_i32_118 dim 1 : vector<32x256xbf16>, i32 -> vector<32x256xbf16>
    %326 = vector.broadcast %324 : vector<1x256xbf16> to vector<32x256xbf16>
    %327 = arith.mulf %325, %326 : vector<32x256xbf16>
    %328 = vector.extract_strided_slice %0 {offsets = [6, 0], sizes = [1, 256], strides = [1, 1]} : vector<9x256xbf16> to vector<1x256xbf16>
    %c241_i32_119 = arith.constant 241 : i32
    %329 = tpu.dynamic_rotate %307 by %c241_i32_119 dim 1 : vector<32x256xbf16>, i32 -> vector<32x256xbf16>
    %330 = vector.broadcast %328 : vector<1x256xbf16> to vector<32x256xbf16>
    %331 = arith.mulf %329, %330 : vector<32x256xbf16>
    %332 = vector.extract_strided_slice %0 {offsets = [7, 0], sizes = [1, 256], strides = [1, 1]} : vector<9x256xbf16> to vector<1x256xbf16>
    %c240_i32_120 = arith.constant 240 : i32
    %333 = tpu.dynamic_rotate %307 by %c240_i32_120 dim 1 : vector<32x256xbf16>, i32 -> vector<32x256xbf16>
    %334 = vector.broadcast %332 : vector<1x256xbf16> to vector<32x256xbf16>
    %335 = arith.mulf %333, %334 : vector<32x256xbf16>
    %336 = vector.extract_strided_slice %0 {offsets = [8, 0], sizes = [1, 256], strides = [1, 1]} : vector<9x256xbf16> to vector<1x256xbf16>
    %c239_i32_121 = arith.constant 239 : i32
    %337 = tpu.dynamic_rotate %307 by %c239_i32_121 dim 1 : vector<32x256xbf16>, i32 -> vector<32x256xbf16>
    %338 = vector.broadcast %336 : vector<1x256xbf16> to vector<32x256xbf16>
    %339 = arith.mulf %337, %338 : vector<32x256xbf16>
    %340 = tpu.concatenate %311, %315, %319, %323, %307, %327, %331, %335, %339 in 0 : vector<32x256xbf16>, vector<32x256xbf16>, vector<32x256xbf16>, vector<32x256xbf16>, vector<32x256xbf16>, vector<32x256xbf16>, vector<32x256xbf16>, vector<32x256xbf16>, vector<32x256xbf16> -> vector<288x256xbf16>
    %c0_122 = arith.constant 0 : index
    %c0_123 = arith.constant 0 : index
    %341 = vector.load %arg22[%c0_122, %c0_123] : memref<21x288xbf16, #tpu.memory_space<vmem>>, vector<21x288xbf16>
    %cst_124 = arith.constant dense<0.000000e+00> : vector<21x256xf32>
    %342 = tpu.matmul %341, %340, %cst_124 {dimension_numbers = #tpu.dot_dimension_numbers<[1], [0], [0], [1], [0, 0, 1, 1], [], []>} : vector<21x288xbf16>, vector<288x256xbf16>, vector<21x256xf32> -> vector<21x256xf32>
    %c0_125 = arith.constant 0 : index
    %c0_126 = arith.constant 0 : index
    %343 = vector.load %arg23[%c0_125, %c0_126] : memref<21x1xf32, #tpu.memory_space<vmem>>, vector<21x1xf32>
    %344 = vector.broadcast %343 : vector<21x1xf32> to vector<21x256xf32>
    %345 = arith.addf %342, %344 : vector<21x256xf32>
    %c0_127 = arith.constant 0 : index
    %c0_128 = arith.constant 0 : index
    %c0_129 = arith.constant 0 : index
    %346 = vector.load %arg30[%c0_127, %c0_128, %c0_129] : memref<1x21x256xf32, #tpu.memory_space<vmem>>, vector<1x21x256xf32>
    %347 = vector.shape_cast %346 : vector<1x21x256xf32> to vector<21x256xf32>
    %348 = vector.shape_cast %345 : vector<21x256xf32> to vector<1x21x256xf32>
    tpu.vector_store %arg30[%c0_127, %c0_128, %c0_129], %348 {strides = array<i32>} : memref<1x21x256xf32, #tpu.memory_space<vmem>>, vector<1x21x256xf32>,
    %349 = arith.truncf %238 : vector<32x256xf32> to vector<32x256xbf16>
    %350 = vector.extract_strided_slice %0 {offsets = [0, 0], sizes = [1, 256], strides = [1, 1]} : vector<9x256xbf16> to vector<1x256xbf16>
    %c17_i32_130 = arith.constant 17 : i32
    %351 = tpu.dynamic_rotate %349 by %c17_i32_130 dim 1 : vector<32x256xbf16>, i32 -> vector<32x256xbf16>
    %352 = vector.broadcast %350 : vector<1x256xbf16> to vector<32x256xbf16>
    %353 = arith.mulf %351, %352 : vector<32x256xbf16>
    %354 = vector.extract_strided_slice %0 {offsets = [1, 0], sizes = [1, 256], strides = [1, 1]} : vector<9x256xbf16> to vector<1x256xbf16>
    %c16_i32_131 = arith.constant 16 : i32
    %355 = tpu.dynamic_rotate %349 by %c16_i32_131 dim 1 : vector<32x256xbf16>, i32 -> vector<32x256xbf16>
    %356 = vector.broadcast %354 : vector<1x256xbf16> to vector<32x256xbf16>
    %357 = arith.mulf %355, %356 : vector<32x256xbf16>
    %358 = vector.extract_strided_slice %0 {offsets = [2, 0], sizes = [1, 256], strides = [1, 1]} : vector<9x256xbf16> to vector<1x256xbf16>
    %c15_i32_132 = arith.constant 15 : i32
    %359 = tpu.dynamic_rotate %349 by %c15_i32_132 dim 1 : vector<32x256xbf16>, i32 -> vector<32x256xbf16>
    %360 = vector.broadcast %358 : vector<1x256xbf16> to vector<32x256xbf16>
    %361 = arith.mulf %359, %360 : vector<32x256xbf16>
    %362 = vector.extract_strided_slice %0 {offsets = [3, 0], sizes = [1, 256], strides = [1, 1]} : vector<9x256xbf16> to vector<1x256xbf16>
    %c1_i32_133 = arith.constant 1 : i32
    %363 = tpu.dynamic_rotate %349 by %c1_i32_133 dim 1 : vector<32x256xbf16>, i32 -> vector<32x256xbf16>
    %364 = vector.broadcast %362 : vector<1x256xbf16> to vector<32x256xbf16>
    %365 = arith.mulf %363, %364 : vector<32x256xbf16>
    %366 = vector.extract_strided_slice %0 {offsets = [5, 0], sizes = [1, 256], strides = [1, 1]} : vector<9x256xbf16> to vector<1x256xbf16>
    %c255_i32_134 = arith.constant 255 : i32
    %367 = tpu.dynamic_rotate %349 by %c255_i32_134 dim 1 : vector<32x256xbf16>, i32 -> vector<32x256xbf16>
    %368 = vector.broadcast %366 : vector<1x256xbf16> to vector<32x256xbf16>
    %369 = arith.mulf %367, %368 : vector<32x256xbf16>
    %370 = vector.extract_strided_slice %0 {offsets = [6, 0], sizes = [1, 256], strides = [1, 1]} : vector<9x256xbf16> to vector<1x256xbf16>
    %c241_i32_135 = arith.constant 241 : i32
    %371 = tpu.dynamic_rotate %349 by %c241_i32_135 dim 1 : vector<32x256xbf16>, i32 -> vector<32x256xbf16>
    %372 = vector.broadcast %370 : vector<1x256xbf16> to vector<32x256xbf16>
    %373 = arith.mulf %371, %372 : vector<32x256xbf16>
    %374 = vector.extract_strided_slice %0 {offsets = [7, 0], sizes = [1, 256], strides = [1, 1]} : vector<9x256xbf16> to vector<1x256xbf16>
    %c240_i32_136 = arith.constant 240 : i32
    %375 = tpu.dynamic_rotate %349 by %c240_i32_136 dim 1 : vector<32x256xbf16>, i32 -> vector<32x256xbf16>
    %376 = vector.broadcast %374 : vector<1x256xbf16> to vector<32x256xbf16>
    %377 = arith.mulf %375, %376 : vector<32x256xbf16>
    %378 = vector.extract_strided_slice %0 {offsets = [8, 0], sizes = [1, 256], strides = [1, 1]} : vector<9x256xbf16> to vector<1x256xbf16>
    %c239_i32_137 = arith.constant 239 : i32
    %379 = tpu.dynamic_rotate %349 by %c239_i32_137 dim 1 : vector<32x256xbf16>, i32 -> vector<32x256xbf16>
    %380 = vector.broadcast %378 : vector<1x256xbf16> to vector<32x256xbf16>
    %381 = arith.mulf %379, %380 : vector<32x256xbf16>
    %382 = tpu.concatenate %353, %357, %361, %365, %349, %369, %373, %377, %381 in 0 : vector<32x256xbf16>, vector<32x256xbf16>, vector<32x256xbf16>, vector<32x256xbf16>, vector<32x256xbf16>, vector<32x256xbf16>, vector<32x256xbf16>, vector<32x256xbf16>, vector<32x256xbf16> -> vector<288x256xbf16>
    %c0_138 = arith.constant 0 : index
    %c0_139 = arith.constant 0 : index
    %383 = vector.load %arg24[%c0_138, %c0_139] : memref<32x288xbf16, #tpu.memory_space<vmem>>, vector<32x288xbf16>
    %cst_140 = arith.constant dense<0.000000e+00> : vector<32x256xf32>
    %384 = tpu.matmul %383, %382, %cst_140 {dimension_numbers = #tpu.dot_dimension_numbers<[1], [0], [0], [1], [0, 0, 1, 1], [], []>} : vector<32x288xbf16>, vector<288x256xbf16>, vector<32x256xf32> -> vector<32x256xf32>
    %c0_141 = arith.constant 0 : index
    %c0_142 = arith.constant 0 : index
    %385 = vector.load %arg25[%c0_141, %c0_142] : memref<32x1xf32, #tpu.memory_space<vmem>>, vector<32x1xf32>
    %386 = vector.broadcast %385 : vector<32x1xf32> to vector<32x256xf32>
    %387 = arith.addf %384, %386 : vector<32x256xf32>
    %cst_143 = arith.constant dense<0.000000e+00> : vector<32xf32>
    %388 = vector.multi_reduction <add>, %387, %cst_143 [1] : vector<32x256xf32> to vector<32xf32>
    %389 = vector.shape_cast %388 : vector<32xf32> to vector<32x1xf32>
    %390 = arith.mulf %387, %387 : vector<32x256xf32>
    %cst_144 = arith.constant dense<0.000000e+00> : vector<32xf32>
    %391 = vector.multi_reduction <add>, %390, %cst_144 [1] : vector<32x256xf32> to vector<32xf32>
    %392 = vector.shape_cast %391 : vector<32xf32> to vector<32x1xf32>
    %cst_145 = arith.constant dense<0.000000e+00> : vector<32x1xf32>
    %393 = tpu.matmul %1, %389, %cst_145 {dimension_numbers = #tpu.dot_dimension_numbers<[1], [0], [0], [1], [0, 0, 1, 1], [], []>} : vector<32x32xf32>, vector<32x1xf32>, vector<32x1xf32> -> vector<32x1xf32>
    %cst_146 = arith.constant dense<0.000000e+00> : vector<32x1xf32>
    %394 = tpu.matmul %1, %392, %cst_146 {dimension_numbers = #tpu.dot_dimension_numbers<[1], [0], [0], [1], [0, 0, 1, 1], [], []>} : vector<32x32xf32>, vector<32x1xf32>, vector<32x1xf32> -> vector<32x1xf32>
    %cst_147 = arith.constant 9.765625E-4 : f32
    %395 = vector.broadcast %cst_147 : f32 to vector<32x1xf32>
    %396 = arith.mulf %393, %395 : vector<32x1xf32>
    %cst_148 = arith.constant 9.765625E-4 : f32
    %397 = vector.broadcast %cst_148 : f32 to vector<32x1xf32>
    %398 = arith.mulf %394, %397 : vector<32x1xf32>
    %399 = arith.mulf %396, %396 : vector<32x1xf32>
    %400 = arith.subf %398, %399 : vector<32x1xf32>
    %cst_149 = arith.constant 0.000000e+00 : f32
    %401 = vector.broadcast %cst_149 : f32 to vector<32x1xf32>
    %402 = arith.maximumf %400, %401 : vector<32x1xf32>
    %cst_150 = arith.constant 9.99999974E-6 : f32
    %403 = vector.broadcast %cst_150 : f32 to vector<32x1xf32>
    %404 = arith.addf %402, %403 : vector<32x1xf32>
    %405 = math.rsqrt %404 : vector<32x1xf32>
    %c0_151 = arith.constant 0 : index
    %c0_152 = arith.constant 0 : index
    %406 = vector.load %arg26[%c0_151, %c0_152] : memref<32x1xf32, #tpu.memory_space<vmem>>, vector<32x1xf32>
    %407 = arith.mulf %405, %406 : vector<32x1xf32>
    %c0_153 = arith.constant 0 : index
    %c0_154 = arith.constant 0 : index
    %408 = vector.load %arg27[%c0_153, %c0_154] : memref<32x1xf32, #tpu.memory_space<vmem>>, vector<32x1xf32>
    %409 = arith.mulf %396, %407 : vector<32x1xf32>
    %410 = arith.subf %408, %409 : vector<32x1xf32>
    %411 = vector.broadcast %407 : vector<32x1xf32> to vector<32x256xf32>
    %412 = arith.mulf %387, %411 : vector<32x256xf32>
    %413 = vector.broadcast %410 : vector<32x1xf32> to vector<32x256xf32>
    %414 = arith.addf %412, %413 : vector<32x256xf32>
    %cst_155 = arith.constant 0.000000e+00 : f32
    %415 = vector.broadcast %cst_155 : f32 to vector<32x256xf32>
    %416 = arith.maximumf %414, %415 : vector<32x256xf32>
    %417 = arith.truncf %416 : vector<32x256xf32> to vector<32x256xbf16>
    %418 = vector.extract_strided_slice %0 {offsets = [0, 0], sizes = [1, 256], strides = [1, 1]} : vector<9x256xbf16> to vector<1x256xbf16>
    %c17_i32_156 = arith.constant 17 : i32
    %419 = tpu.dynamic_rotate %417 by %c17_i32_156 dim 1 : vector<32x256xbf16>, i32 -> vector<32x256xbf16>
    %420 = vector.broadcast %418 : vector<1x256xbf16> to vector<32x256xbf16>
    %421 = arith.mulf %419, %420 : vector<32x256xbf16>
    %422 = vector.extract_strided_slice %0 {offsets = [1, 0], sizes = [1, 256], strides = [1, 1]} : vector<9x256xbf16> to vector<1x256xbf16>
    %c16_i32_157 = arith.constant 16 : i32
    %423 = tpu.dynamic_rotate %417 by %c16_i32_157 dim 1 : vector<32x256xbf16>, i32 -> vector<32x256xbf16>
    %424 = vector.broadcast %422 : vector<1x256xbf16> to vector<32x256xbf16>
    %425 = arith.mulf %423, %424 : vector<32x256xbf16>
    %426 = vector.extract_strided_slice %0 {offsets = [2, 0], sizes = [1, 256], strides = [1, 1]} : vector<9x256xbf16> to vector<1x256xbf16>
    %c15_i32_158 = arith.constant 15 : i32
    %427 = tpu.dynamic_rotate %417 by %c15_i32_158 dim 1 : vector<32x256xbf16>, i32 -> vector<32x256xbf16>
    %428 = vector.broadcast %426 : vector<1x256xbf16> to vector<32x256xbf16>
    %429 = arith.mulf %427, %428 : vector<32x256xbf16>
    %430 = vector.extract_strided_slice %0 {offsets = [3, 0], sizes = [1, 256], strides = [1, 1]} : vector<9x256xbf16> to vector<1x256xbf16>
    %c1_i32_159 = arith.constant 1 : i32
    %431 = tpu.dynamic_rotate %417 by %c1_i32_159 dim 1 : vector<32x256xbf16>, i32 -> vector<32x256xbf16>
    %432 = vector.broadcast %430 : vector<1x256xbf16> to vector<32x256xbf16>
    %433 = arith.mulf %431, %432 : vector<32x256xbf16>
    %434 = vector.extract_strided_slice %0 {offsets = [5, 0], sizes = [1, 256], strides = [1, 1]} : vector<9x256xbf16> to vector<1x256xbf16>
    %c255_i32_160 = arith.constant 255 : i32
    %435 = tpu.dynamic_rotate %417 by %c255_i32_160 dim 1 : vector<32x256xbf16>, i32 -> vector<32x256xbf16>
    %436 = vector.broadcast %434 : vector<1x256xbf16> to vector<32x256xbf16>
    %437 = arith.mulf %435, %436 : vector<32x256xbf16>
    %438 = vector.extract_strided_slice %0 {offsets = [6, 0], sizes = [1, 256], strides = [1, 1]} : vector<9x256xbf16> to vector<1x256xbf16>
    %c241_i32_161 = arith.constant 241 : i32
    %439 = tpu.dynamic_rotate %417 by %c241_i32_161 dim 1 : vector<32x256xbf16>, i32 -> vector<32x256xbf16>
    %440 = vector.broadcast %438 : vector<1x256xbf16> to vector<32x256xbf16>
    %441 = arith.mulf %439, %440 : vector<32x256xbf16>
    %442 = vector.extract_strided_slice %0 {offsets = [7, 0], sizes = [1, 256], strides = [1, 1]} : vector<9x256xbf16> to vector<1x256xbf16>
    %c240_i32_162 = arith.constant 240 : i32
    %443 = tpu.dynamic_rotate %417 by %c240_i32_162 dim 1 : vector<32x256xbf16>, i32 -> vector<32x256xbf16>
    %444 = vector.broadcast %442 : vector<1x256xbf16> to vector<32x256xbf16>
    %445 = arith.mulf %443, %444 : vector<32x256xbf16>
    %446 = vector.extract_strided_slice %0 {offsets = [8, 0], sizes = [1, 256], strides = [1, 1]} : vector<9x256xbf16> to vector<1x256xbf16>
    %c239_i32_163 = arith.constant 239 : i32
    %447 = tpu.dynamic_rotate %417 by %c239_i32_163 dim 1 : vector<32x256xbf16>, i32 -> vector<32x256xbf16>
    %448 = vector.broadcast %446 : vector<1x256xbf16> to vector<32x256xbf16>
    %449 = arith.mulf %447, %448 : vector<32x256xbf16>
    %450 = tpu.concatenate %421, %425, %429, %433, %417, %437, %441, %445, %449 in 0 : vector<32x256xbf16>, vector<32x256xbf16>, vector<32x256xbf16>, vector<32x256xbf16>, vector<32x256xbf16>, vector<32x256xbf16>, vector<32x256xbf16>, vector<32x256xbf16>, vector<32x256xbf16> -> vector<288x256xbf16>
    %c0_164 = arith.constant 0 : index
    %c0_165 = arith.constant 0 : index
    %451 = vector.load %arg28[%c0_164, %c0_165] : memref<12x288xbf16, #tpu.memory_space<vmem>>, vector<12x288xbf16>
    %cst_166 = arith.constant dense<0.000000e+00> : vector<12x256xf32>
    %452 = tpu.matmul %451, %450, %cst_166 {dimension_numbers = #tpu.dot_dimension_numbers<[1], [0], [0], [1], [0, 0, 1, 1], [], []>} : vector<12x288xbf16>, vector<288x256xbf16>, vector<12x256xf32> -> vector<12x256xf32>
    %c0_167 = arith.constant 0 : index
    %c0_168 = arith.constant 0 : index
    %453 = vector.load %arg29[%c0_167, %c0_168] : memref<12x1xf32, #tpu.memory_space<vmem>>, vector<12x1xf32>
    %454 = vector.broadcast %453 : vector<12x1xf32> to vector<12x256xf32>
    %455 = arith.addf %452, %454 : vector<12x256xf32>
    %c0_169 = arith.constant 0 : index
    %c0_170 = arith.constant 0 : index
    %c0_171 = arith.constant 0 : index
    %456 = vector.load %arg31[%c0_169, %c0_170, %c0_171] : memref<1x12x256xf32, #tpu.memory_space<vmem>>, vector<1x12x256xf32>
    %457 = vector.shape_cast %456 : vector<1x12x256xf32> to vector<12x256xf32>
    %458 = vector.shape_cast %455 : vector<12x256xf32> to vector<1x12x256xf32>
    tpu.vector_store %arg31[%c0_169, %c0_170, %c0_171], %458 {strides = array<i32>} : memref<1x12x256xf32, #tpu.memory_space<vmem>>, vector<1x12x256xf32>,
    return
  }
  func.func @transform_0(%arg0: i32) -> (i32, i32, i32) {
    %c0_i32 = arith.constant 0 : i32
    %c0_i32_0 = arith.constant 0 : i32
    %c0_i32_1 = arith.constant 0 : i32
    return %arg0, %c0_i32, %c0_i32_0 : i32, i32, i32
  }
  func.func @transform_1(%arg0: i32) -> (i32, i32) {
    %c0_i32 = arith.constant 0 : i32
    %c0_i32_0 = arith.constant 0 : i32
    %c0_i32_1 = arith.constant 0 : i32
    return %c0_i32, %c0_i32_0 : i32, i32
  }
  func.func @transform_2(%arg0: i32) -> (i32, i32) {
    %c0_i32 = arith.constant 0 : i32
    %c0_i32_0 = arith.constant 0 : i32
    %c0_i32_1 = arith.constant 0 : i32
    return %c0_i32, %c0_i32_0 : i32, i32
  }
  func.func @transform_3(%arg0: i32) -> (i32, i32) {
    %c0_i32 = arith.constant 0 : i32
    %c0_i32_0 = arith.constant 0 : i32
    %c0_i32_1 = arith.constant 0 : i32
    return %c0_i32, %c0_i32_0 : i32, i32
  }
  func.func @transform_4(%arg0: i32) -> (i32, i32) {
    %c0_i32 = arith.constant 0 : i32
    %c0_i32_0 = arith.constant 0 : i32
    %c0_i32_1 = arith.constant 0 : i32
    return %c0_i32, %c0_i32_0 : i32, i32
  }
  func.func @transform_5(%arg0: i32) -> (i32, i32) {
    %c0_i32 = arith.constant 0 : i32
    %c0_i32_0 = arith.constant 0 : i32
    %c0_i32_1 = arith.constant 0 : i32
    return %c0_i32, %c0_i32_0 : i32, i32
  }
  func.func @transform_6(%arg0: i32) -> (i32, i32) {
    %c0_i32 = arith.constant 0 : i32
    %c0_i32_0 = arith.constant 0 : i32
    %c0_i32_1 = arith.constant 0 : i32
    return %c0_i32, %c0_i32_0 : i32, i32
  }
  func.func @transform_7(%arg0: i32) -> (i32, i32) {
    %c0_i32 = arith.constant 0 : i32
    %c0_i32_0 = arith.constant 0 : i32
    %c0_i32_1 = arith.constant 0 : i32
    return %c0_i32, %c0_i32_0 : i32, i32
  }
  func.func @transform_8(%arg0: i32) -> (i32, i32) {
    %c0_i32 = arith.constant 0 : i32
    %c0_i32_0 = arith.constant 0 : i32
    %c0_i32_1 = arith.constant 0 : i32
    return %c0_i32, %c0_i32_0 : i32, i32
  }
  func.func @transform_9(%arg0: i32) -> (i32, i32) {
    %c0_i32 = arith.constant 0 : i32
    %c0_i32_0 = arith.constant 0 : i32
    %c0_i32_1 = arith.constant 0 : i32
    return %c0_i32, %c0_i32_0 : i32, i32
  }
  func.func @transform_10(%arg0: i32) -> (i32, i32) {
    %c0_i32 = arith.constant 0 : i32
    %c0_i32_0 = arith.constant 0 : i32
    %c0_i32_1 = arith.constant 0 : i32
    return %c0_i32, %c0_i32_0 : i32, i32
  }
  func.func @transform_11(%arg0: i32) -> (i32, i32) {
    %c0_i32 = arith.constant 0 : i32
    %c0_i32_0 = arith.constant 0 : i32
    %c0_i32_1 = arith.constant 0 : i32
    return %c0_i32, %c0_i32_0 : i32, i32
  }
  func.func @transform_12(%arg0: i32) -> (i32, i32) {
    %c0_i32 = arith.constant 0 : i32
    %c0_i32_0 = arith.constant 0 : i32
    %c0_i32_1 = arith.constant 0 : i32
    return %c0_i32, %c0_i32_0 : i32, i32
  }
  func.func @transform_13(%arg0: i32) -> (i32, i32) {
    %c0_i32 = arith.constant 0 : i32
    %c0_i32_0 = arith.constant 0 : i32
    %c0_i32_1 = arith.constant 0 : i32
    return %c0_i32, %c0_i32_0 : i32, i32
  }
  func.func @transform_14(%arg0: i32) -> (i32, i32) {
    %c0_i32 = arith.constant 0 : i32
    %c0_i32_0 = arith.constant 0 : i32
    %c0_i32_1 = arith.constant 0 : i32
    return %c0_i32, %c0_i32_0 : i32, i32
  }
  func.func @transform_15(%arg0: i32) -> (i32, i32) {
    %c0_i32 = arith.constant 0 : i32
    %c0_i32_0 = arith.constant 0 : i32
    %c0_i32_1 = arith.constant 0 : i32
    return %c0_i32, %c0_i32_0 : i32, i32
  }
  func.func @transform_16(%arg0: i32) -> (i32, i32) {
    %c0_i32 = arith.constant 0 : i32
    %c0_i32_0 = arith.constant 0 : i32
    %c0_i32_1 = arith.constant 0 : i32
    return %c0_i32, %c0_i32_0 : i32, i32
  }
  func.func @transform_17(%arg0: i32) -> (i32, i32) {
    %c0_i32 = arith.constant 0 : i32
    %c0_i32_0 = arith.constant 0 : i32
    %c0_i32_1 = arith.constant 0 : i32
    return %c0_i32, %c0_i32_0 : i32, i32
  }
  func.func @transform_18(%arg0: i32) -> (i32, i32) {
    %c0_i32 = arith.constant 0 : i32
    %c0_i32_0 = arith.constant 0 : i32
    %c0_i32_1 = arith.constant 0 : i32
    return %c0_i32, %c0_i32_0 : i32, i32
  }
  func.func @transform_19(%arg0: i32) -> (i32, i32) {
    %c0_i32 = arith.constant 0 : i32
    %c0_i32_0 = arith.constant 0 : i32
    %c0_i32_1 = arith.constant 0 : i32
    return %c0_i32, %c0_i32_0 : i32, i32
  }
  func.func @transform_20(%arg0: i32) -> (i32, i32) {
    %c0_i32 = arith.constant 0 : i32
    %c0_i32_0 = arith.constant 0 : i32
    %c0_i32_1 = arith.constant 0 : i32
    return %c0_i32, %c0_i32_0 : i32, i32
  }
  func.func @transform_21(%arg0: i32) -> (i32, i32) {
    %c0_i32 = arith.constant 0 : i32
    %c0_i32_0 = arith.constant 0 : i32
    %c0_i32_1 = arith.constant 0 : i32
    return %c0_i32, %c0_i32_0 : i32, i32
  }
  func.func @transform_22(%arg0: i32) -> (i32, i32) {
    %c0_i32 = arith.constant 0 : i32
    %c0_i32_0 = arith.constant 0 : i32
    %c0_i32_1 = arith.constant 0 : i32
    return %c0_i32, %c0_i32_0 : i32, i32
  }
  func.func @transform_23(%arg0: i32) -> (i32, i32) {
    %c0_i32 = arith.constant 0 : i32
    %c0_i32_0 = arith.constant 0 : i32
    %c0_i32_1 = arith.constant 0 : i32
    return %c0_i32, %c0_i32_0 : i32, i32
  }
  func.func @transform_24(%arg0: i32) -> (i32, i32) {
    %c0_i32 = arith.constant 0 : i32
    %c0_i32_0 = arith.constant 0 : i32
    %c0_i32_1 = arith.constant 0 : i32
    return %c0_i32, %c0_i32_0 : i32, i32
  }
  func.func @transform_25(%arg0: i32) -> (i32, i32) {
    %c0_i32 = arith.constant 0 : i32
    %c0_i32_0 = arith.constant 0 : i32
    %c0_i32_1 = arith.constant 0 : i32
    return %c0_i32, %c0_i32_0 : i32, i32
  }
  func.func @transform_26(%arg0: i32) -> (i32, i32) {
    %c0_i32 = arith.constant 0 : i32
    %c0_i32_0 = arith.constant 0 : i32
    %c0_i32_1 = arith.constant 0 : i32
    return %c0_i32, %c0_i32_0 : i32, i32
  }
  func.func @transform_27(%arg0: i32) -> (i32, i32) {
    %c0_i32 = arith.constant 0 : i32
    %c0_i32_0 = arith.constant 0 : i32
    %c0_i32_1 = arith.constant 0 : i32
    return %c0_i32, %c0_i32_0 : i32, i32
  }
  func.func @transform_28(%arg0: i32) -> (i32, i32) {
    %c0_i32 = arith.constant 0 : i32
    %c0_i32_0 = arith.constant 0 : i32
    %c0_i32_1 = arith.constant 0 : i32
    return %c0_i32, %c0_i32_0 : i32, i32
  }
  func.func @transform_29(%arg0: i32) -> (i32, i32, i32) {
    %c0_i32 = arith.constant 0 : i32
    %c0_i32_0 = arith.constant 0 : i32
    %c0_i32_1 = arith.constant 0 : i32
    return %arg0, %c0_i32, %c0_i32_0 : i32, i32, i32
  }
  func.func @transform_30(%arg0: i32) -> (i32, i32, i32) {
    %c0_i32 = arith.constant 0 : i32
    %c0_i32_0 = arith.constant 0 : i32
    %c0_i32_1 = arith.constant 0 : i32
    return %arg0, %c0_i32, %c0_i32_0 : i32, i32, i32
  }
}

module attributes {stable_mosaic.version = 11 : i64} {
  func.func @_fused_prediction_kernel(%arg0: i32, %arg1: memref<1x32x256xf32, #tpu.memory_space<vmem>>, %arg2: memref<9x256xbf16, #tpu.memory_space<vmem>>, %arg3: memref<32x32xf32, #tpu.memory_space<vmem>>, %arg4: memref<32x288xbf16, #tpu.memory_space<vmem>>, %arg5: memref<32x1xf32, #tpu.memory_space<vmem>>, %arg6: memref<32x1xf32, #tpu.memory_space<vmem>>, %arg7: memref<32x1xf32, #tpu.memory_space<vmem>>, %arg8: memref<32x288xbf16, #tpu.memory_space<vmem>>, %arg9: memref<32x1xf32, #tpu.memory_space<vmem>>, %arg10: memref<32x1xf32, #tpu.memory_space<vmem>>, %arg11: memref<32x1xf32, #tpu.memory_space<vmem>>, %arg12: memref<64x288xbf16, #tpu.memory_space<vmem>>, %arg13: memref<64x1xf32, #tpu.memory_space<vmem>>, %arg14: memref<32x1xf32, #tpu.memory_space<vmem>>, %arg15: memref<32x1xf32, #tpu.memory_space<vmem>>, %arg16: memref<32x1xf32, #tpu.memory_space<vmem>>, %arg17: memref<32x1xf32, #tpu.memory_space<vmem>>, %arg18: memref<32x288xbf16, #tpu.memory_space<vmem>>, %arg19: memref<32x1xf32, #tpu.memory_space<vmem>>, %arg20: memref<32x1xf32, #tpu.memory_space<vmem>>, %arg21: memref<32x1xf32, #tpu.memory_space<vmem>>, %arg22: memref<21x288xbf16, #tpu.memory_space<vmem>>, %arg23: memref<21x1xf32, #tpu.memory_space<vmem>>, %arg24: memref<32x288xbf16, #tpu.memory_space<vmem>>, %arg25: memref<32x1xf32, #tpu.memory_space<vmem>>, %arg26: memref<32x1xf32, #tpu.memory_space<vmem>>, %arg27: memref<32x1xf32, #tpu.memory_space<vmem>>, %arg28: memref<12x288xbf16, #tpu.memory_space<vmem>>, %arg29: memref<12x1xf32, #tpu.memory_space<vmem>>, %arg30: memref<1x21x256xf32, #tpu.memory_space<vmem>>, %arg31: memref<1x12x256xf32, #tpu.memory_space<vmem>>) attributes {dimension_semantics = [#tpu.dimension_semantics<parallel>], iteration_bounds = array<i64: 2>, scalar_prefetch = 0 : i64, scratch_operands = 0 : i64, tpu.core_type = #tpu.core_type<tc>, window_params = [{transform_indices = @transform_0, window_bounds = array<i64: 1, 32, 256>}, {pipeline_mode = #tpu.pipeline_mode<synchronous>, transform_indices = @transform_1, window_bounds = array<i64: 9, 256>}, {pipeline_mode = #tpu.pipeline_mode<synchronous>, transform_indices = @transform_2, window_bounds = array<i64: 32, 32>}, {pipeline_mode = #tpu.pipeline_mode<synchronous>, transform_indices = @transform_3, window_bounds = array<i64: 32, 288>}, {pipeline_mode = #tpu.pipeline_mode<synchronous>, transform_indices = @transform_4, window_bounds = array<i64: 32, 1>}, {pipeline_mode = #tpu.pipeline_mode<synchronous>, transform_indices = @transform_5, window_bounds = array<i64: 32, 1>}, {pipeline_mode = #tpu.pipeline_mode<synchronous>, transform_indices = @transform_6, window_bounds = array<i64: 32, 1>}, {pipeline_mode = #tpu.pipeline_mode<synchronous>, transform_indices = @transform_7, window_bounds = array<i64: 32, 288>}, {pipeline_mode = #tpu.pipeline_mode<synchronous>, transform_indices = @transform_8, window_bounds = array<i64: 32, 1>}, {pipeline_mode = #tpu.pipeline_mode<synchronous>, transform_indices = @transform_9, window_bounds = array<i64: 32, 1>}, {pipeline_mode = #tpu.pipeline_mode<synchronous>, transform_indices = @transform_10, window_bounds = array<i64: 32, 1>}, {pipeline_mode = #tpu.pipeline_mode<synchronous>, transform_indices = @transform_11, window_bounds = array<i64: 64, 288>}, {pipeline_mode = #tpu.pipeline_mode<synchronous>, transform_indices = @transform_12, window_bounds = array<i64: 64, 1>}, {pipeline_mode = #tpu.pipeline_mode<synchronous>, transform_indices = @transform_13, window_bounds = array<i64: 32, 1>}, {pipeline_mode = #tpu.pipeline_mode<synchronous>, transform_indices = @transform_14, window_bounds = array<i64: 32, 1>}, {pipeline_mode = #tpu.pipeline_mode<synchronous>, transform_indices = @transform_15, window_bounds = array<i64: 32, 1>}, {pipeline_mode = #tpu.pipeline_mode<synchronous>, transform_indices = @transform_16, window_bounds = array<i64: 32, 1>}, {pipeline_mode = #tpu.pipeline_mode<synchronous>, transform_indices = @transform_17, window_bounds = array<i64: 32, 288>}, {pipeline_mode = #tpu.pipeline_mode<synchronous>, transform_indices = @transform_18, window_bounds = array<i64: 32, 1>}, {pipeline_mode = #tpu.pipeline_mode<synchronous>, transform_indices = @transform_19, window_bounds = array<i64: 32, 1>}, {pipeline_mode = #tpu.pipeline_mode<synchronous>, transform_indices = @transform_20, window_bounds = array<i64: 32, 1>}, {pipeline_mode = #tpu.pipeline_mode<synchronous>, transform_indices = @transform_21, window_bounds = array<i64: 21, 288>}, {pipeline_mode = #tpu.pipeline_mode<synchronous>, transform_indices = @transform_22, window_bounds = array<i64: 21, 1>}, {pipeline_mode = #tpu.pipeline_mode<synchronous>, transform_indices = @transform_23, window_bounds = array<i64: 32, 288>}, {pipeline_mode = #tpu.pipeline_mode<synchronous>, transform_indices = @transform_24, window_bounds = array<i64: 32, 1>}, {pipeline_mode = #tpu.pipeline_mode<synchronous>, transform_indices = @transform_25, window_bounds = array<i64: 32, 1>}, {pipeline_mode = #tpu.pipeline_mode<synchronous>, transform_indices = @transform_26, window_bounds = array<i64: 32, 1>}, {pipeline_mode = #tpu.pipeline_mode<synchronous>, transform_indices = @transform_27, window_bounds = array<i64: 12, 288>}, {pipeline_mode = #tpu.pipeline_mode<synchronous>, transform_indices = @transform_28, window_bounds = array<i64: 12, 1>}, {transform_indices = @transform_29, window_bounds = array<i64: 1, 21, 256>}, {transform_indices = @transform_30, window_bounds = array<i64: 1, 12, 256>}]} {
    %c0 = arith.constant 0 : index
    %c0_0 = arith.constant 0 : index
    %0 = vector.load %arg2[%c0, %c0_0] : memref<9x256xbf16, #tpu.memory_space<vmem>>, vector<9x256xbf16>
    %c0_1 = arith.constant 0 : index
    %c0_2 = arith.constant 0 : index
    %1 = vector.load %arg3[%c0_1, %c0_2] : memref<32x32xf32, #tpu.memory_space<vmem>>, vector<32x32xf32>
    %c0_3 = arith.constant 0 : index
    %c0_4 = arith.constant 0 : index
    %c0_5 = arith.constant 0 : index
    %2 = vector.load %arg1[%c0_3, %c0_4, %c0_5] : memref<1x32x256xf32, #tpu.memory_space<vmem>>, vector<1x32x256xf32>
    %3 = vector.shape_cast %2 : vector<1x32x256xf32> to vector<32x256xf32>
    %4 = arith.truncf %3 : vector<32x256xf32> to vector<32x256xbf16>
    %5 = vector.extract_strided_slice %0 {offsets = [0, 0], sizes = [1, 256], strides = [1, 1]} : vector<9x256xbf16> to vector<1x256xbf16>
    %c17_i32 = arith.constant 17 : i32
    %6 = tpu.dynamic_rotate %4 by %c17_i32 dim 1 : vector<32x256xbf16>, i32 -> vector<32x256xbf16>
    %7 = vector.broadcast %5 : vector<1x256xbf16> to vector<32x256xbf16>
    %8 = arith.mulf %6, %7 : vector<32x256xbf16>
    %9 = vector.extract_strided_slice %0 {offsets = [1, 0], sizes = [1, 256], strides = [1, 1]} : vector<9x256xbf16> to vector<1x256xbf16>
    %c16_i32 = arith.constant 16 : i32
    %10 = tpu.dynamic_rotate %4 by %c16_i32 dim 1 : vector<32x256xbf16>, i32 -> vector<32x256xbf16>
    %11 = vector.broadcast %9 : vector<1x256xbf16> to vector<32x256xbf16>
    %12 = arith.mulf %10, %11 : vector<32x256xbf16>
    %13 = vector.extract_strided_slice %0 {offsets = [2, 0], sizes = [1, 256], strides = [1, 1]} : vector<9x256xbf16> to vector<1x256xbf16>
    %c15_i32 = arith.constant 15 : i32
    %14 = tpu.dynamic_rotate %4 by %c15_i32 dim 1 : vector<32x256xbf16>, i32 -> vector<32x256xbf16>
    %15 = vector.broadcast %13 : vector<1x256xbf16> to vector<32x256xbf16>
    %16 = arith.mulf %14, %15 : vector<32x256xbf16>
    %17 = vector.extract_strided_slice %0 {offsets = [3, 0], sizes = [1, 256], strides = [1, 1]} : vector<9x256xbf16> to vector<1x256xbf16>
    %c1_i32 = arith.constant 1 : i32
    %18 = tpu.dynamic_rotate %4 by %c1_i32 dim 1 : vector<32x256xbf16>, i32 -> vector<32x256xbf16>
    %19 = vector.broadcast %17 : vector<1x256xbf16> to vector<32x256xbf16>
    %20 = arith.mulf %18, %19 : vector<32x256xbf16>
    %21 = vector.extract_strided_slice %0 {offsets = [5, 0], sizes = [1, 256], strides = [1, 1]} : vector<9x256xbf16> to vector<1x256xbf16>
    %c255_i32 = arith.constant 255 : i32
    %22 = tpu.dynamic_rotate %4 by %c255_i32 dim 1 : vector<32x256xbf16>, i32 -> vector<32x256xbf16>
    %23 = vector.broadcast %21 : vector<1x256xbf16> to vector<32x256xbf16>
    %24 = arith.mulf %22, %23 : vector<32x256xbf16>
    %25 = vector.extract_strided_slice %0 {offsets = [6, 0], sizes = [1, 256], strides = [1, 1]} : vector<9x256xbf16> to vector<1x256xbf16>
    %c241_i32 = arith.constant 241 : i32
    %26 = tpu.dynamic_rotate %4 by %c241_i32 dim 1 : vector<32x256xbf16>, i32 -> vector<32x256xbf16>
    %27 = vector.broadcast %25 : vector<1x256xbf16> to vector<32x256xbf16>
    %28 = arith.mulf %26, %27 : vector<32x256xbf16>
    %29 = vector.extract_strided_slice %0 {offsets = [7, 0], sizes = [1, 256], strides = [1, 1]} : vector<9x256xbf16> to vector<1x256xbf16>
    %c240_i32 = arith.constant 240 : i32
    %30 = tpu.dynamic_rotate %4 by %c240_i32 dim 1 : vector<32x256xbf16>, i32 -> vector<32x256xbf16>
    %31 = vector.broadcast %29 : vector<1x256xbf16> to vector<32x256xbf16>
    %32 = arith.mulf %30, %31 : vector<32x256xbf16>
    %33 = vector.extract_strided_slice %0 {offsets = [8, 0], sizes = [1, 256], strides = [1, 1]} : vector<9x256xbf16> to vector<1x256xbf16>
    %c239_i32 = arith.constant 239 : i32
    %34 = tpu.dynamic_rotate %4 by %c239_i32 dim 1 : vector<32x256xbf16>, i32 -> vector<32x256xbf16>
    %35 = vector.broadcast %33 : vector<1x256xbf16> to vector<32x256xbf16>
    %36 = arith.mulf %34, %35 : vector<32x256xbf16>
    %37 = tpu.concatenate %8, %12, %16, %20, %4, %24, %28, %32, %36 in 0 : vector<32x256xbf16>, vector<32x256xbf16>, vector<32x256xbf16>, vector<32x256xbf16>, vector<32x256xbf16>, vector<32x256xbf16>, vector<32x256xbf16>, vector<32x256xbf16>, vector<32x256xbf16> -> vector<288x256xbf16>
    %c0_6 = arith.constant 0 : index
    %c0_7 = arith.constant 0 : index
    %38 = vector.load %arg4[%c0_6, %c0_7] : memref<32x288xbf16, #tpu.memory_space<vmem>>, vector<32x288xbf16>
    %cst = arith.constant dense<0.000000e+00> : vector<32x256xf32>
    %39 = tpu.matmul %38, %37, %cst {dimension_numbers = #tpu.dot_dimension_numbers<[1], [0], [0], [1], [0, 0, 1, 1], [], []>} : vector<32x288xbf16>, vector<288x256xbf16>, vector<32x256xf32> -> vector<32x256xf32>
    %c0_8 = arith.constant 0 : index
    %c0_9 = arith.constant 0 : index
    %40 = vector.load %arg5[%c0_8, %c0_9] : memref<32x1xf32, #tpu.memory_space<vmem>>, vector<32x1xf32>
    %41 = vector.broadcast %40 : vector<32x1xf32> to vector<32x256xf32>
    %42 = arith.addf %39, %41 : vector<32x256xf32>
    %cst_10 = arith.constant dense<0.000000e+00> : vector<32xf32>
    %43 = vector.multi_reduction <add>, %42, %cst_10 [1] : vector<32x256xf32> to vector<32xf32>
    %44 = vector.shape_cast %43 : vector<32xf32> to vector<32x1xf32>
    %45 = arith.mulf %42, %42 : vector<32x256xf32>
    %cst_11 = arith.constant dense<0.000000e+00> : vector<32xf32>
    %46 = vector.multi_reduction <add>, %45, %cst_11 [1] : vector<32x256xf32> to vector<32xf32>
    %47 = vector.shape_cast %46 : vector<32xf32> to vector<32x1xf32>
    %cst_12 = arith.constant dense<0.000000e+00> : vector<32x1xf32>
    %48 = tpu.matmul %1, %44, %cst_12 {dimension_numbers = #tpu.dot_dimension_numbers<[1], [0], [0], [1], [0, 0, 1, 1], [], []>} : vector<32x32xf32>, vector<32x1xf32>, vector<32x1xf32> -> vector<32x1xf32>
    %cst_13 = arith.constant dense<0.000000e+00> : vector<32x1xf32>
    %49 = tpu.matmul %1, %47, %cst_13 {dimension_numbers = #tpu.dot_dimension_numbers<[1], [0], [0], [1], [0, 0, 1, 1], [], []>} : vector<32x32xf32>, vector<32x1xf32>, vector<32x1xf32> -> vector<32x1xf32>
    %cst_14 = arith.constant 9.765625E-4 : f32
    %50 = vector.broadcast %cst_14 : f32 to vector<32x1xf32>
    %51 = arith.mulf %48, %50 : vector<32x1xf32>
    %cst_15 = arith.constant 9.765625E-4 : f32
    %52 = vector.broadcast %cst_15 : f32 to vector<32x1xf32>
    %53 = arith.mulf %49, %52 : vector<32x1xf32>
    %54 = arith.mulf %51, %51 : vector<32x1xf32>
    %55 = arith.subf %53, %54 : vector<32x1xf32>
    %cst_16 = arith.constant 0.000000e+00 : f32
    %56 = vector.broadcast %cst_16 : f32 to vector<32x1xf32>
    %57 = arith.maximumf %55, %56 : vector<32x1xf32>
    %cst_17 = arith.constant 9.99999974E-6 : f32
    %58 = vector.broadcast %cst_17 : f32 to vector<32x1xf32>
    %59 = arith.addf %57, %58 : vector<32x1xf32>
    %60 = math.rsqrt %59 : vector<32x1xf32>
    %c0_18 = arith.constant 0 : index
    %c0_19 = arith.constant 0 : index
    %61 = vector.load %arg6[%c0_18, %c0_19] : memref<32x1xf32, #tpu.memory_space<vmem>>, vector<32x1xf32>
    %62 = arith.mulf %60, %61 : vector<32x1xf32>
    %c0_20 = arith.constant 0 : index
    %c0_21 = arith.constant 0 : index
    %63 = vector.load %arg7[%c0_20, %c0_21] : memref<32x1xf32, #tpu.memory_space<vmem>>, vector<32x1xf32>
    %64 = arith.mulf %51, %62 : vector<32x1xf32>
    %65 = arith.subf %63, %64 : vector<32x1xf32>
    %66 = vector.broadcast %62 : vector<32x1xf32> to vector<32x256xf32>
    %67 = arith.mulf %42, %66 : vector<32x256xf32>
    %68 = vector.broadcast %65 : vector<32x1xf32> to vector<32x256xf32>
    %69 = arith.addf %67, %68 : vector<32x256xf32>
    %cst_22 = arith.constant 0.000000e+00 : f32
    %70 = vector.broadcast %cst_22 : f32 to vector<32x256xf32>
    %71 = arith.maximumf %69, %70 : vector<32x256xf32>
    %72 = arith.truncf %71 : vector<32x256xf32> to vector<32x256xbf16>
    %73 = vector.extract_strided_slice %0 {offsets = [0, 0], sizes = [1, 256], strides = [1, 1]} : vector<9x256xbf16> to vector<1x256xbf16>
    %c17_i32_23 = arith.constant 17 : i32
    %74 = tpu.dynamic_rotate %72 by %c17_i32_23 dim 1 : vector<32x256xbf16>, i32 -> vector<32x256xbf16>
    %75 = vector.broadcast %73 : vector<1x256xbf16> to vector<32x256xbf16>
    %76 = arith.mulf %74, %75 : vector<32x256xbf16>
    %77 = vector.extract_strided_slice %0 {offsets = [1, 0], sizes = [1, 256], strides = [1, 1]} : vector<9x256xbf16> to vector<1x256xbf16>
    %c16_i32_24 = arith.constant 16 : i32
    %78 = tpu.dynamic_rotate %72 by %c16_i32_24 dim 1 : vector<32x256xbf16>, i32 -> vector<32x256xbf16>
    %79 = vector.broadcast %77 : vector<1x256xbf16> to vector<32x256xbf16>
    %80 = arith.mulf %78, %79 : vector<32x256xbf16>
    %81 = vector.extract_strided_slice %0 {offsets = [2, 0], sizes = [1, 256], strides = [1, 1]} : vector<9x256xbf16> to vector<1x256xbf16>
    %c15_i32_25 = arith.constant 15 : i32
    %82 = tpu.dynamic_rotate %72 by %c15_i32_25 dim 1 : vector<32x256xbf16>, i32 -> vector<32x256xbf16>
    %83 = vector.broadcast %81 : vector<1x256xbf16> to vector<32x256xbf16>
    %84 = arith.mulf %82, %83 : vector<32x256xbf16>
    %85 = vector.extract_strided_slice %0 {offsets = [3, 0], sizes = [1, 256], strides = [1, 1]} : vector<9x256xbf16> to vector<1x256xbf16>
    %c1_i32_26 = arith.constant 1 : i32
    %86 = tpu.dynamic_rotate %72 by %c1_i32_26 dim 1 : vector<32x256xbf16>, i32 -> vector<32x256xbf16>
    %87 = vector.broadcast %85 : vector<1x256xbf16> to vector<32x256xbf16>
    %88 = arith.mulf %86, %87 : vector<32x256xbf16>
    %89 = vector.extract_strided_slice %0 {offsets = [5, 0], sizes = [1, 256], strides = [1, 1]} : vector<9x256xbf16> to vector<1x256xbf16>
    %c255_i32_27 = arith.constant 255 : i32
    %90 = tpu.dynamic_rotate %72 by %c255_i32_27 dim 1 : vector<32x256xbf16>, i32 -> vector<32x256xbf16>
    %91 = vector.broadcast %89 : vector<1x256xbf16> to vector<32x256xbf16>
    %92 = arith.mulf %90, %91 : vector<32x256xbf16>
    %93 = vector.extract_strided_slice %0 {offsets = [6, 0], sizes = [1, 256], strides = [1, 1]} : vector<9x256xbf16> to vector<1x256xbf16>
    %c241_i32_28 = arith.constant 241 : i32
    %94 = tpu.dynamic_rotate %72 by %c241_i32_28 dim 1 : vector<32x256xbf16>, i32 -> vector<32x256xbf16>
    %95 = vector.broadcast %93 : vector<1x256xbf16> to vector<32x256xbf16>
    %96 = arith.mulf %94, %95 : vector<32x256xbf16>
    %97 = vector.extract_strided_slice %0 {offsets = [7, 0], sizes = [1, 256], strides = [1, 1]} : vector<9x256xbf16> to vector<1x256xbf16>
    %c240_i32_29 = arith.constant 240 : i32
    %98 = tpu.dynamic_rotate %72 by %c240_i32_29 dim 1 : vector<32x256xbf16>, i32 -> vector<32x256xbf16>
    %99 = vector.broadcast %97 : vector<1x256xbf16> to vector<32x256xbf16>
    %100 = arith.mulf %98, %99 : vector<32x256xbf16>
    %101 = vector.extract_strided_slice %0 {offsets = [8, 0], sizes = [1, 256], strides = [1, 1]} : vector<9x256xbf16> to vector<1x256xbf16>
    %c239_i32_30 = arith.constant 239 : i32
    %102 = tpu.dynamic_rotate %72 by %c239_i32_30 dim 1 : vector<32x256xbf16>, i32 -> vector<32x256xbf16>
    %103 = vector.broadcast %101 : vector<1x256xbf16> to vector<32x256xbf16>
    %104 = arith.mulf %102, %103 : vector<32x256xbf16>
    %105 = tpu.concatenate %76, %80, %84, %88, %72, %92, %96, %100, %104 in 0 : vector<32x256xbf16>, vector<32x256xbf16>, vector<32x256xbf16>, vector<32x256xbf16>, vector<32x256xbf16>, vector<32x256xbf16>, vector<32x256xbf16>, vector<32x256xbf16>, vector<32x256xbf16> -> vector<288x256xbf16>
    %c0_31 = arith.constant 0 : index
    %c0_32 = arith.constant 0 : index
    %106 = vector.load %arg8[%c0_31, %c0_32] : memref<32x288xbf16, #tpu.memory_space<vmem>>, vector<32x288xbf16>
    %cst_33 = arith.constant dense<0.000000e+00> : vector<32x256xf32>
    %107 = tpu.matmul %106, %105, %cst_33 {dimension_numbers = #tpu.dot_dimension_numbers<[1], [0], [0], [1], [0, 0, 1, 1], [], []>} : vector<32x288xbf16>, vector<288x256xbf16>, vector<32x256xf32> -> vector<32x256xf32>
    %c0_34 = arith.constant 0 : index
    %c0_35 = arith.constant 0 : index
    %108 = vector.load %arg9[%c0_34, %c0_35] : memref<32x1xf32, #tpu.memory_space<vmem>>, vector<32x1xf32>
    %109 = vector.broadcast %108 : vector<32x1xf32> to vector<32x256xf32>
    %110 = arith.addf %107, %109 : vector<32x256xf32>
    %cst_36 = arith.constant dense<0.000000e+00> : vector<32xf32>
    %111 = vector.multi_reduction <add>, %110, %cst_36 [1] : vector<32x256xf32> to vector<32xf32>
    %112 = vector.shape_cast %111 : vector<32xf32> to vector<32x1xf32>
    %113 = arith.mulf %110, %110 : vector<32x256xf32>
    %cst_37 = arith.constant dense<0.000000e+00> : vector<32xf32>
    %114 = vector.multi_reduction <add>, %113, %cst_37 [1] : vector<32x256xf32> to vector<32xf32>
    %115 = vector.shape_cast %114 : vector<32xf32> to vector<32x1xf32>
    %cst_38 = arith.constant dense<0.000000e+00> : vector<32x1xf32>
    %116 = tpu.matmul %1, %112, %cst_38 {dimension_numbers = #tpu.dot_dimension_numbers<[1], [0], [0], [1], [0, 0, 1, 1], [], []>} : vector<32x32xf32>, vector<32x1xf32>, vector<32x1xf32> -> vector<32x1xf32>
    %cst_39 = arith.constant dense<0.000000e+00> : vector<32x1xf32>
    %117 = tpu.matmul %1, %115, %cst_39 {dimension_numbers = #tpu.dot_dimension_numbers<[1], [0], [0], [1], [0, 0, 1, 1], [], []>} : vector<32x32xf32>, vector<32x1xf32>, vector<32x1xf32> -> vector<32x1xf32>
    %cst_40 = arith.constant 9.765625E-4 : f32
    %118 = vector.broadcast %cst_40 : f32 to vector<32x1xf32>
    %119 = arith.mulf %116, %118 : vector<32x1xf32>
    %cst_41 = arith.constant 9.765625E-4 : f32
    %120 = vector.broadcast %cst_41 : f32 to vector<32x1xf32>
    %121 = arith.mulf %117, %120 : vector<32x1xf32>
    %122 = arith.mulf %119, %119 : vector<32x1xf32>
    %123 = arith.subf %121, %122 : vector<32x1xf32>
    %cst_42 = arith.constant 0.000000e+00 : f32
    %124 = vector.broadcast %cst_42 : f32 to vector<32x1xf32>
    %125 = arith.maximumf %123, %124 : vector<32x1xf32>
    %cst_43 = arith.constant 9.99999974E-6 : f32
    %126 = vector.broadcast %cst_43 : f32 to vector<32x1xf32>
    %127 = arith.addf %125, %126 : vector<32x1xf32>
    %128 = math.rsqrt %127 : vector<32x1xf32>
    %c0_44 = arith.constant 0 : index
    %c0_45 = arith.constant 0 : index
    %129 = vector.load %arg10[%c0_44, %c0_45] : memref<32x1xf32, #tpu.memory_space<vmem>>, vector<32x1xf32>
    %130 = arith.mulf %128, %129 : vector<32x1xf32>
    %c0_46 = arith.constant 0 : index
    %c0_47 = arith.constant 0 : index
    %131 = vector.load %arg11[%c0_46, %c0_47] : memref<32x1xf32, #tpu.memory_space<vmem>>, vector<32x1xf32>
    %132 = arith.mulf %119, %130 : vector<32x1xf32>
    %133 = arith.subf %131, %132 : vector<32x1xf32>
    %134 = vector.broadcast %130 : vector<32x1xf32> to vector<32x256xf32>
    %135 = arith.mulf %110, %134 : vector<32x256xf32>
    %136 = vector.broadcast %133 : vector<32x1xf32> to vector<32x256xf32>
    %137 = arith.addf %135, %136 : vector<32x256xf32>
    %cst_48 = arith.constant 0.000000e+00 : f32
    %138 = vector.broadcast %cst_48 : f32 to vector<32x256xf32>
    %139 = arith.maximumf %137, %138 : vector<32x256xf32>
    %140 = arith.truncf %139 : vector<32x256xf32> to vector<32x256xbf16>
    %141 = vector.extract_strided_slice %0 {offsets = [0, 0], sizes = [1, 256], strides = [1, 1]} : vector<9x256xbf16> to vector<1x256xbf16>
    %c17_i32_49 = arith.constant 17 : i32
    %142 = tpu.dynamic_rotate %140 by %c17_i32_49 dim 1 : vector<32x256xbf16>, i32 -> vector<32x256xbf16>
    %143 = vector.broadcast %141 : vector<1x256xbf16> to vector<32x256xbf16>
    %144 = arith.mulf %142, %143 : vector<32x256xbf16>
    %145 = vector.extract_strided_slice %0 {offsets = [1, 0], sizes = [1, 256], strides = [1, 1]} : vector<9x256xbf16> to vector<1x256xbf16>
    %c16_i32_50 = arith.constant 16 : i32
    %146 = tpu.dynamic_rotate %140 by %c16_i32_50 dim 1 : vector<32x256xbf16>, i32 -> vector<32x256xbf16>
    %147 = vector.broadcast %145 : vector<1x256xbf16> to vector<32x256xbf16>
    %148 = arith.mulf %146, %147 : vector<32x256xbf16>
    %149 = vector.extract_strided_slice %0 {offsets = [2, 0], sizes = [1, 256], strides = [1, 1]} : vector<9x256xbf16> to vector<1x256xbf16>
    %c15_i32_51 = arith.constant 15 : i32
    %150 = tpu.dynamic_rotate %140 by %c15_i32_51 dim 1 : vector<32x256xbf16>, i32 -> vector<32x256xbf16>
    %151 = vector.broadcast %149 : vector<1x256xbf16> to vector<32x256xbf16>
    %152 = arith.mulf %150, %151 : vector<32x256xbf16>
    %153 = vector.extract_strided_slice %0 {offsets = [3, 0], sizes = [1, 256], strides = [1, 1]} : vector<9x256xbf16> to vector<1x256xbf16>
    %c1_i32_52 = arith.constant 1 : i32
    %154 = tpu.dynamic_rotate %140 by %c1_i32_52 dim 1 : vector<32x256xbf16>, i32 -> vector<32x256xbf16>
    %155 = vector.broadcast %153 : vector<1x256xbf16> to vector<32x256xbf16>
    %156 = arith.mulf %154, %155 : vector<32x256xbf16>
    %157 = vector.extract_strided_slice %0 {offsets = [5, 0], sizes = [1, 256], strides = [1, 1]} : vector<9x256xbf16> to vector<1x256xbf16>
    %c255_i32_53 = arith.constant 255 : i32
    %158 = tpu.dynamic_rotate %140 by %c255_i32_53 dim 1 : vector<32x256xbf16>, i32 -> vector<32x256xbf16>
    %159 = vector.broadcast %157 : vector<1x256xbf16> to vector<32x256xbf16>
    %160 = arith.mulf %158, %159 : vector<32x256xbf16>
    %161 = vector.extract_strided_slice %0 {offsets = [6, 0], sizes = [1, 256], strides = [1, 1]} : vector<9x256xbf16> to vector<1x256xbf16>
    %c241_i32_54 = arith.constant 241 : i32
    %162 = tpu.dynamic_rotate %140 by %c241_i32_54 dim 1 : vector<32x256xbf16>, i32 -> vector<32x256xbf16>
    %163 = vector.broadcast %161 : vector<1x256xbf16> to vector<32x256xbf16>
    %164 = arith.mulf %162, %163 : vector<32x256xbf16>
    %165 = vector.extract_strided_slice %0 {offsets = [7, 0], sizes = [1, 256], strides = [1, 1]} : vector<9x256xbf16> to vector<1x256xbf16>
    %c240_i32_55 = arith.constant 240 : i32
    %166 = tpu.dynamic_rotate %140 by %c240_i32_55 dim 1 : vector<32x256xbf16>, i32 -> vector<32x256xbf16>
    %167 = vector.broadcast %165 : vector<1x256xbf16> to vector<32x256xbf16>
    %168 = arith.mulf %166, %167 : vector<32x256xbf16>
    %169 = vector.extract_strided_slice %0 {offsets = [8, 0], sizes = [1, 256], strides = [1, 1]} : vector<9x256xbf16> to vector<1x256xbf16>
    %c239_i32_56 = arith.constant 239 : i32
    %170 = tpu.dynamic_rotate %140 by %c239_i32_56 dim 1 : vector<32x256xbf16>, i32 -> vector<32x256xbf16>
    %171 = vector.broadcast %169 : vector<1x256xbf16> to vector<32x256xbf16>
    %172 = arith.mulf %170, %171 : vector<32x256xbf16>
    %173 = tpu.concatenate %144, %148, %152, %156, %140, %160, %164, %168, %172 in 0 : vector<32x256xbf16>, vector<32x256xbf16>, vector<32x256xbf16>, vector<32x256xbf16>, vector<32x256xbf16>, vector<32x256xbf16>, vector<32x256xbf16>, vector<32x256xbf16>, vector<32x256xbf16> -> vector<288x256xbf16>
    %c0_57 = arith.constant 0 : index
    %c0_58 = arith.constant 0 : index
    %174 = vector.load %arg12[%c0_57, %c0_58] : memref<64x288xbf16, #tpu.memory_space<vmem>>, vector<64x288xbf16>
    %cst_59 = arith.constant dense<0.000000e+00> : vector<64x256xf32>
    %175 = tpu.matmul %174, %173, %cst_59 {dimension_numbers = #tpu.dot_dimension_numbers<[1], [0], [0], [1], [0, 0, 1, 1], [], []>} : vector<64x288xbf16>, vector<288x256xbf16>, vector<64x256xf32> -> vector<64x256xf32>
    %c0_60 = arith.constant 0 : index
    %c0_61 = arith.constant 0 : index
    %176 = vector.load %arg13[%c0_60, %c0_61] : memref<64x1xf32, #tpu.memory_space<vmem>>, vector<64x1xf32>
    %177 = vector.broadcast %176 : vector<64x1xf32> to vector<64x256xf32>
    %178 = arith.addf %175, %177 : vector<64x256xf32>
    %179 = vector.extract_strided_slice %178 {offsets = [0, 0], sizes = [32, 256], strides = [1, 1]} : vector<64x256xf32> to vector<32x256xf32>
    %cst_62 = arith.constant dense<0.000000e+00> : vector<32xf32>
    %180 = vector.multi_reduction <add>, %179, %cst_62 [1] : vector<32x256xf32> to vector<32xf32>
    %181 = vector.shape_cast %180 : vector<32xf32> to vector<32x1xf32>
    %182 = arith.mulf %179, %179 : vector<32x256xf32>
    %cst_63 = arith.constant dense<0.000000e+00> : vector<32xf32>
    %183 = vector.multi_reduction <add>, %182, %cst_63 [1] : vector<32x256xf32> to vector<32xf32>
    %184 = vector.shape_cast %183 : vector<32xf32> to vector<32x1xf32>
    %cst_64 = arith.constant dense<0.000000e+00> : vector<32x1xf32>
    %185 = tpu.matmul %1, %181, %cst_64 {dimension_numbers = #tpu.dot_dimension_numbers<[1], [0], [0], [1], [0, 0, 1, 1], [], []>} : vector<32x32xf32>, vector<32x1xf32>, vector<32x1xf32> -> vector<32x1xf32>
    %cst_65 = arith.constant dense<0.000000e+00> : vector<32x1xf32>
    %186 = tpu.matmul %1, %184, %cst_65 {dimension_numbers = #tpu.dot_dimension_numbers<[1], [0], [0], [1], [0, 0, 1, 1], [], []>} : vector<32x32xf32>, vector<32x1xf32>, vector<32x1xf32> -> vector<32x1xf32>
    %cst_66 = arith.constant 9.765625E-4 : f32
    %187 = vector.broadcast %cst_66 : f32 to vector<32x1xf32>
    %188 = arith.mulf %185, %187 : vector<32x1xf32>
    %cst_67 = arith.constant 9.765625E-4 : f32
    %189 = vector.broadcast %cst_67 : f32 to vector<32x1xf32>
    %190 = arith.mulf %186, %189 : vector<32x1xf32>
    %191 = arith.mulf %188, %188 : vector<32x1xf32>
    %192 = arith.subf %190, %191 : vector<32x1xf32>
    %cst_68 = arith.constant 0.000000e+00 : f32
    %193 = vector.broadcast %cst_68 : f32 to vector<32x1xf32>
    %194 = arith.maximumf %192, %193 : vector<32x1xf32>
    %cst_69 = arith.constant 9.99999974E-6 : f32
    %195 = vector.broadcast %cst_69 : f32 to vector<32x1xf32>
    %196 = arith.addf %194, %195 : vector<32x1xf32>
    %197 = math.rsqrt %196 : vector<32x1xf32>
    %c0_70 = arith.constant 0 : index
    %c0_71 = arith.constant 0 : index
    %198 = vector.load %arg14[%c0_70, %c0_71] : memref<32x1xf32, #tpu.memory_space<vmem>>, vector<32x1xf32>
    %199 = arith.mulf %197, %198 : vector<32x1xf32>
    %c0_72 = arith.constant 0 : index
    %c0_73 = arith.constant 0 : index
    %200 = vector.load %arg15[%c0_72, %c0_73] : memref<32x1xf32, #tpu.memory_space<vmem>>, vector<32x1xf32>
    %201 = arith.mulf %188, %199 : vector<32x1xf32>
    %202 = arith.subf %200, %201 : vector<32x1xf32>
    %203 = vector.broadcast %199 : vector<32x1xf32> to vector<32x256xf32>
    %204 = arith.mulf %179, %203 : vector<32x256xf32>
    %205 = vector.broadcast %202 : vector<32x1xf32> to vector<32x256xf32>
    %206 = arith.addf %204, %205 : vector<32x256xf32>
    %cst_74 = arith.constant 0.000000e+00 : f32
    %207 = vector.broadcast %cst_74 : f32 to vector<32x256xf32>
    %208 = arith.maximumf %206, %207 : vector<32x256xf32>
    %209 = vector.extract_strided_slice %178 {offsets = [32, 0], sizes = [32, 256], strides = [1, 1]} : vector<64x256xf32> to vector<32x256xf32>
    %cst_75 = arith.constant dense<0.000000e+00> : vector<32xf32>
    %210 = vector.multi_reduction <add>, %209, %cst_75 [1] : vector<32x256xf32> to vector<32xf32>
    %211 = vector.shape_cast %210 : vector<32xf32> to vector<32x1xf32>
    %212 = arith.mulf %209, %209 : vector<32x256xf32>
    %cst_76 = arith.constant dense<0.000000e+00> : vector<32xf32>
    %213 = vector.multi_reduction <add>, %212, %cst_76 [1] : vector<32x256xf32> to vector<32xf32>
    %214 = vector.shape_cast %213 : vector<32xf32> to vector<32x1xf32>
    %cst_77 = arith.constant dense<0.000000e+00> : vector<32x1xf32>
    %215 = tpu.matmul %1, %211, %cst_77 {dimension_numbers = #tpu.dot_dimension_numbers<[1], [0], [0], [1], [0, 0, 1, 1], [], []>} : vector<32x32xf32>, vector<32x1xf32>, vector<32x1xf32> -> vector<32x1xf32>
    %cst_78 = arith.constant dense<0.000000e+00> : vector<32x1xf32>
    %216 = tpu.matmul %1, %214, %cst_78 {dimension_numbers = #tpu.dot_dimension_numbers<[1], [0], [0], [1], [0, 0, 1, 1], [], []>} : vector<32x32xf32>, vector<32x1xf32>, vector<32x1xf32> -> vector<32x1xf32>
    %cst_79 = arith.constant 9.765625E-4 : f32
    %217 = vector.broadcast %cst_79 : f32 to vector<32x1xf32>
    %218 = arith.mulf %215, %217 : vector<32x1xf32>
    %cst_80 = arith.constant 9.765625E-4 : f32
    %219 = vector.broadcast %cst_80 : f32 to vector<32x1xf32>
    %220 = arith.mulf %216, %219 : vector<32x1xf32>
    %221 = arith.mulf %218, %218 : vector<32x1xf32>
    %222 = arith.subf %220, %221 : vector<32x1xf32>
    %cst_81 = arith.constant 0.000000e+00 : f32
    %223 = vector.broadcast %cst_81 : f32 to vector<32x1xf32>
    %224 = arith.maximumf %222, %223 : vector<32x1xf32>
    %cst_82 = arith.constant 9.99999974E-6 : f32
    %225 = vector.broadcast %cst_82 : f32 to vector<32x1xf32>
    %226 = arith.addf %224, %225 : vector<32x1xf32>
    %227 = math.rsqrt %226 : vector<32x1xf32>
    %c0_83 = arith.constant 0 : index
    %c0_84 = arith.constant 0 : index
    %228 = vector.load %arg16[%c0_83, %c0_84] : memref<32x1xf32, #tpu.memory_space<vmem>>, vector<32x1xf32>
    %229 = arith.mulf %227, %228 : vector<32x1xf32>
    %c0_85 = arith.constant 0 : index
    %c0_86 = arith.constant 0 : index
    %230 = vector.load %arg17[%c0_85, %c0_86] : memref<32x1xf32, #tpu.memory_space<vmem>>, vector<32x1xf32>
    %231 = arith.mulf %218, %229 : vector<32x1xf32>
    %232 = arith.subf %230, %231 : vector<32x1xf32>
    %233 = vector.broadcast %229 : vector<32x1xf32> to vector<32x256xf32>
    %234 = arith.mulf %209, %233 : vector<32x256xf32>
    %235 = vector.broadcast %232 : vector<32x1xf32> to vector<32x256xf32>
    %236 = arith.addf %234, %235 : vector<32x256xf32>
    %cst_87 = arith.constant 0.000000e+00 : f32
    %237 = vector.broadcast %cst_87 : f32 to vector<32x256xf32>
    %238 = arith.maximumf %236, %237 : vector<32x256xf32>
    %239 = arith.truncf %208 : vector<32x256xf32> to vector<32x256xbf16>
    %240 = vector.extract_strided_slice %0 {offsets = [0, 0], sizes = [1, 256], strides = [1, 1]} : vector<9x256xbf16> to vector<1x256xbf16>
    %c17_i32_88 = arith.constant 17 : i32
    %241 = tpu.dynamic_rotate %239 by %c17_i32_88 dim 1 : vector<32x256xbf16>, i32 -> vector<32x256xbf16>
    %242 = vector.broadcast %240 : vector<1x256xbf16> to vector<32x256xbf16>
    %243 = arith.mulf %241, %242 : vector<32x256xbf16>
    %244 = vector.extract_strided_slice %0 {offsets = [1, 0], sizes = [1, 256], strides = [1, 1]} : vector<9x256xbf16> to vector<1x256xbf16>
    %c16_i32_89 = arith.constant 16 : i32
    %245 = tpu.dynamic_rotate %239 by %c16_i32_89 dim 1 : vector<32x256xbf16>, i32 -> vector<32x256xbf16>
    %246 = vector.broadcast %244 : vector<1x256xbf16> to vector<32x256xbf16>
    %247 = arith.mulf %245, %246 : vector<32x256xbf16>
    %248 = vector.extract_strided_slice %0 {offsets = [2, 0], sizes = [1, 256], strides = [1, 1]} : vector<9x256xbf16> to vector<1x256xbf16>
    %c15_i32_90 = arith.constant 15 : i32
    %249 = tpu.dynamic_rotate %239 by %c15_i32_90 dim 1 : vector<32x256xbf16>, i32 -> vector<32x256xbf16>
    %250 = vector.broadcast %248 : vector<1x256xbf16> to vector<32x256xbf16>
    %251 = arith.mulf %249, %250 : vector<32x256xbf16>
    %252 = vector.extract_strided_slice %0 {offsets = [3, 0], sizes = [1, 256], strides = [1, 1]} : vector<9x256xbf16> to vector<1x256xbf16>
    %c1_i32_91 = arith.constant 1 : i32
    %253 = tpu.dynamic_rotate %239 by %c1_i32_91 dim 1 : vector<32x256xbf16>, i32 -> vector<32x256xbf16>
    %254 = vector.broadcast %252 : vector<1x256xbf16> to vector<32x256xbf16>
    %255 = arith.mulf %253, %254 : vector<32x256xbf16>
    %256 = vector.extract_strided_slice %0 {offsets = [5, 0], sizes = [1, 256], strides = [1, 1]} : vector<9x256xbf16> to vector<1x256xbf16>
    %c255_i32_92 = arith.constant 255 : i32
    %257 = tpu.dynamic_rotate %239 by %c255_i32_92 dim 1 : vector<32x256xbf16>, i32 -> vector<32x256xbf16>
    %258 = vector.broadcast %256 : vector<1x256xbf16> to vector<32x256xbf16>
    %259 = arith.mulf %257, %258 : vector<32x256xbf16>
    %260 = vector.extract_strided_slice %0 {offsets = [6, 0], sizes = [1, 256], strides = [1, 1]} : vector<9x256xbf16> to vector<1x256xbf16>
    %c241_i32_93 = arith.constant 241 : i32
    %261 = tpu.dynamic_rotate %239 by %c241_i32_93 dim 1 : vector<32x256xbf16>, i32 -> vector<32x256xbf16>
    %262 = vector.broadcast %260 : vector<1x256xbf16> to vector<32x256xbf16>
    %263 = arith.mulf %261, %262 : vector<32x256xbf16>
    %264 = vector.extract_strided_slice %0 {offsets = [7, 0], sizes = [1, 256], strides = [1, 1]} : vector<9x256xbf16> to vector<1x256xbf16>
    %c240_i32_94 = arith.constant 240 : i32
    %265 = tpu.dynamic_rotate %239 by %c240_i32_94 dim 1 : vector<32x256xbf16>, i32 -> vector<32x256xbf16>
    %266 = vector.broadcast %264 : vector<1x256xbf16> to vector<32x256xbf16>
    %267 = arith.mulf %265, %266 : vector<32x256xbf16>
    %268 = vector.extract_strided_slice %0 {offsets = [8, 0], sizes = [1, 256], strides = [1, 1]} : vector<9x256xbf16> to vector<1x256xbf16>
    %c239_i32_95 = arith.constant 239 : i32
    %269 = tpu.dynamic_rotate %239 by %c239_i32_95 dim 1 : vector<32x256xbf16>, i32 -> vector<32x256xbf16>
    %270 = vector.broadcast %268 : vector<1x256xbf16> to vector<32x256xbf16>
    %271 = arith.mulf %269, %270 : vector<32x256xbf16>
    %272 = tpu.concatenate %243, %247, %251, %255, %239, %259, %263, %267, %271 in 0 : vector<32x256xbf16>, vector<32x256xbf16>, vector<32x256xbf16>, vector<32x256xbf16>, vector<32x256xbf16>, vector<32x256xbf16>, vector<32x256xbf16>, vector<32x256xbf16>, vector<32x256xbf16> -> vector<288x256xbf16>
    %c0_96 = arith.constant 0 : index
    %c0_97 = arith.constant 0 : index
    %273 = vector.load %arg18[%c0_96, %c0_97] : memref<32x288xbf16, #tpu.memory_space<vmem>>, vector<32x288xbf16>
    %cst_98 = arith.constant dense<0.000000e+00> : vector<32x256xf32>
    %274 = tpu.matmul %273, %272, %cst_98 {dimension_numbers = #tpu.dot_dimension_numbers<[1], [0], [0], [1], [0, 0, 1, 1], [], []>} : vector<32x288xbf16>, vector<288x256xbf16>, vector<32x256xf32> -> vector<32x256xf32>
    %c0_99 = arith.constant 0 : index
    %c0_100 = arith.constant 0 : index
    %275 = vector.load %arg19[%c0_99, %c0_100] : memref<32x1xf32, #tpu.memory_space<vmem>>, vector<32x1xf32>
    %276 = vector.broadcast %275 : vector<32x1xf32> to vector<32x256xf32>
    %277 = arith.addf %274, %276 : vector<32x256xf32>
    %cst_101 = arith.constant dense<0.000000e+00> : vector<32xf32>
    %278 = vector.multi_reduction <add>, %277, %cst_101 [1] : vector<32x256xf32> to vector<32xf32>
    %279 = vector.shape_cast %278 : vector<32xf32> to vector<32x1xf32>
    %280 = arith.mulf %277, %277 : vector<32x256xf32>
    %cst_102 = arith.constant dense<0.000000e+00> : vector<32xf32>
    %281 = vector.multi_reduction <add>, %280, %cst_102 [1] : vector<32x256xf32> to vector<32xf32>
    %282 = vector.shape_cast %281 : vector<32xf32> to vector<32x1xf32>
    %cst_103 = arith.constant dense<0.000000e+00> : vector<32x1xf32>
    %283 = tpu.matmul %1, %279, %cst_103 {dimension_numbers = #tpu.dot_dimension_numbers<[1], [0], [0], [1], [0, 0, 1, 1], [], []>} : vector<32x32xf32>, vector<32x1xf32>, vector<32x1xf32> -> vector<32x1xf32>
    %cst_104 = arith.constant dense<0.000000e+00> : vector<32x1xf32>
    %284 = tpu.matmul %1, %282, %cst_104 {dimension_numbers = #tpu.dot_dimension_numbers<[1], [0], [0], [1], [0, 0, 1, 1], [], []>} : vector<32x32xf32>, vector<32x1xf32>, vector<32x1xf32> -> vector<32x1xf32>
    %cst_105 = arith.constant 9.765625E-4 : f32
    %285 = vector.broadcast %cst_105 : f32 to vector<32x1xf32>
    %286 = arith.mulf %283, %285 : vector<32x1xf32>
    %cst_106 = arith.constant 9.765625E-4 : f32
    %287 = vector.broadcast %cst_106 : f32 to vector<32x1xf32>
    %288 = arith.mulf %284, %287 : vector<32x1xf32>
    %289 = arith.mulf %286, %286 : vector<32x1xf32>
    %290 = arith.subf %288, %289 : vector<32x1xf32>
    %cst_107 = arith.constant 0.000000e+00 : f32
    %291 = vector.broadcast %cst_107 : f32 to vector<32x1xf32>
    %292 = arith.maximumf %290, %291 : vector<32x1xf32>
    %cst_108 = arith.constant 9.99999974E-6 : f32
    %293 = vector.broadcast %cst_108 : f32 to vector<32x1xf32>
    %294 = arith.addf %292, %293 : vector<32x1xf32>
    %295 = math.rsqrt %294 : vector<32x1xf32>
    %c0_109 = arith.constant 0 : index
    %c0_110 = arith.constant 0 : index
    %296 = vector.load %arg20[%c0_109, %c0_110] : memref<32x1xf32, #tpu.memory_space<vmem>>, vector<32x1xf32>
    %297 = arith.mulf %295, %296 : vector<32x1xf32>
    %c0_111 = arith.constant 0 : index
    %c0_112 = arith.constant 0 : index
    %298 = vector.load %arg21[%c0_111, %c0_112] : memref<32x1xf32, #tpu.memory_space<vmem>>, vector<32x1xf32>
    %299 = arith.mulf %286, %297 : vector<32x1xf32>
    %300 = arith.subf %298, %299 : vector<32x1xf32>
    %301 = vector.broadcast %297 : vector<32x1xf32> to vector<32x256xf32>
    %302 = arith.mulf %277, %301 : vector<32x256xf32>
    %303 = vector.broadcast %300 : vector<32x1xf32> to vector<32x256xf32>
    %304 = arith.addf %302, %303 : vector<32x256xf32>
    %cst_113 = arith.constant 0.000000e+00 : f32
    %305 = vector.broadcast %cst_113 : f32 to vector<32x256xf32>
    %306 = arith.maximumf %304, %305 : vector<32x256xf32>
    %307 = arith.truncf %306 : vector<32x256xf32> to vector<32x256xbf16>
    %308 = vector.extract_strided_slice %0 {offsets = [0, 0], sizes = [1, 256], strides = [1, 1]} : vector<9x256xbf16> to vector<1x256xbf16>
    %c17_i32_114 = arith.constant 17 : i32
    %309 = tpu.dynamic_rotate %307 by %c17_i32_114 dim 1 : vector<32x256xbf16>, i32 -> vector<32x256xbf16>
    %310 = vector.broadcast %308 : vector<1x256xbf16> to vector<32x256xbf16>
    %311 = arith.mulf %309, %310 : vector<32x256xbf16>
    %312 = vector.extract_strided_slice %0 {offsets = [1, 0], sizes = [1, 256], strides = [1, 1]} : vector<9x256xbf16> to vector<1x256xbf16>
    %c16_i32_115 = arith.constant 16 : i32
    %313 = tpu.dynamic_rotate %307 by %c16_i32_115 dim 1 : vector<32x256xbf16>, i32 -> vector<32x256xbf16>
    %314 = vector.broadcast %312 : vector<1x256xbf16> to vector<32x256xbf16>
    %315 = arith.mulf %313, %314 : vector<32x256xbf16>
    %316 = vector.extract_strided_slice %0 {offsets = [2, 0], sizes = [1, 256], strides = [1, 1]} : vector<9x256xbf16> to vector<1x256xbf16>
    %c15_i32_116 = arith.constant 15 : i32
    %317 = tpu.dynamic_rotate %307 by %c15_i32_116 dim 1 : vector<32x256xbf16>, i32 -> vector<32x256xbf16>
    %318 = vector.broadcast %316 : vector<1x256xbf16> to vector<32x256xbf16>
    %319 = arith.mulf %317, %318 : vector<32x256xbf16>
    %320 = vector.extract_strided_slice %0 {offsets = [3, 0], sizes = [1, 256], strides = [1, 1]} : vector<9x256xbf16> to vector<1x256xbf16>
    %c1_i32_117 = arith.constant 1 : i32
    %321 = tpu.dynamic_rotate %307 by %c1_i32_117 dim 1 : vector<32x256xbf16>, i32 -> vector<32x256xbf16>
    %322 = vector.broadcast %320 : vector<1x256xbf16> to vector<32x256xbf16>
    %323 = arith.mulf %321, %322 : vector<32x256xbf16>
    %324 = vector.extract_strided_slice %0 {offsets = [5, 0], sizes = [1, 256], strides = [1, 1]} : vector<9x256xbf16> to vector<1x256xbf16>
    %c255_i32_118 = arith.constant 255 : i32
    %325 = tpu.dynamic_rotate %307 by %c255_i32_118 dim 1 : vector<32x256xbf16>, i32 -> vector<32x256xbf16>
    %326 = vector.broadcast %324 : vector<1x256xbf16> to vector<32x256xbf16>
    %327 = arith.mulf %325, %326 : vector<32x256xbf16>
    %328 = vector.extract_strided_slice %0 {offsets = [6, 0], sizes = [1, 256], strides = [1, 1]} : vector<9x256xbf16> to vector<1x256xbf16>
    %c241_i32_119 = arith.constant 241 : i32
    %329 = tpu.dynamic_rotate %307 by %c241_i32_119 dim 1 : vector<32x256xbf16>, i32 -> vector<32x256xbf16>
    %330 = vector.broadcast %328 : vector<1x256xbf16> to vector<32x256xbf16>
    %331 = arith.mulf %329, %330 : vector<32x256xbf16>
    %332 = vector.extract_strided_slice %0 {offsets = [7, 0], sizes = [1, 256], strides = [1, 1]} : vector<9x256xbf16> to vector<1x256xbf16>
    %c240_i32_120 = arith.constant 240 : i32
    %333 = tpu.dynamic_rotate %307 by %c240_i32_120 dim 1 : vector<32x256xbf16>, i32 -> vector<32x256xbf16>
    %334 = vector.broadcast %332 : vector<1x256xbf16> to vector<32x256xbf16>
    %335 = arith.mulf %333, %334 : vector<32x256xbf16>
    %336 = vector.extract_strided_slice %0 {offsets = [8, 0], sizes = [1, 256], strides = [1, 1]} : vector<9x256xbf16> to vector<1x256xbf16>
    %c239_i32_121 = arith.constant 239 : i32
    %337 = tpu.dynamic_rotate %307 by %c239_i32_121 dim 1 : vector<32x256xbf16>, i32 -> vector<32x256xbf16>
    %338 = vector.broadcast %336 : vector<1x256xbf16> to vector<32x256xbf16>
    %339 = arith.mulf %337, %338 : vector<32x256xbf16>
    %340 = tpu.concatenate %311, %315, %319, %323, %307, %327, %331, %335, %339 in 0 : vector<32x256xbf16>, vector<32x256xbf16>, vector<32x256xbf16>, vector<32x256xbf16>, vector<32x256xbf16>, vector<32x256xbf16>, vector<32x256xbf16>, vector<32x256xbf16>, vector<32x256xbf16> -> vector<288x256xbf16>
    %c0_122 = arith.constant 0 : index
    %c0_123 = arith.constant 0 : index
    %341 = vector.load %arg22[%c0_122, %c0_123] : memref<21x288xbf16, #tpu.memory_space<vmem>>, vector<21x288xbf16>
    %cst_124 = arith.constant dense<0.000000e+00> : vector<21x256xf32>
    %342 = tpu.matmul %341, %340, %cst_124 {dimension_numbers = #tpu.dot_dimension_numbers<[1], [0], [0], [1], [0, 0, 1, 1], [], []>} : vector<21x288xbf16>, vector<288x256xbf16>, vector<21x256xf32> -> vector<21x256xf32>
    %c0_125 = arith.constant 0 : index
    %c0_126 = arith.constant 0 : index
    %343 = vector.load %arg23[%c0_125, %c0_126] : memref<21x1xf32, #tpu.memory_space<vmem>>, vector<21x1xf32>
    %344 = vector.broadcast %343 : vector<21x1xf32> to vector<21x256xf32>
    %345 = arith.addf %342, %344 : vector<21x256xf32>
    %c0_127 = arith.constant 0 : index
    %c0_128 = arith.constant 0 : index
    %c0_129 = arith.constant 0 : index
    %346 = vector.load %arg30[%c0_127, %c0_128, %c0_129] : memref<1x21x256xf32, #tpu.memory_space<vmem>>, vector<1x21x256xf32>
    %347 = vector.shape_cast %346 : vector<1x21x256xf32> to vector<21x256xf32>
    %348 = vector.shape_cast %345 : vector<21x256xf32> to vector<1x21x256xf32>
    tpu.vector_store %arg30[%c0_127, %c0_128, %c0_129], %348 {strides = array<i32>} : memref<1x21x256xf32, #tpu.memory_space<vmem>>, vector<1x21x256xf32>,
    %349 = arith.truncf %238 : vector<32x256xf32> to vector<32x256xbf16>
    %350 = vector.extract_strided_slice %0 {offsets = [0, 0], sizes = [1, 256], strides = [1, 1]} : vector<9x256xbf16> to vector<1x256xbf16>
    %c17_i32_130 = arith.constant 17 : i32
    %351 = tpu.dynamic_rotate %349 by %c17_i32_130 dim 1 : vector<32x256xbf16>, i32 -> vector<32x256xbf16>
    %352 = vector.broadcast %350 : vector<1x256xbf16> to vector<32x256xbf16>
    %353 = arith.mulf %351, %352 : vector<32x256xbf16>
    %354 = vector.extract_strided_slice %0 {offsets = [1, 0], sizes = [1, 256], strides = [1, 1]} : vector<9x256xbf16> to vector<1x256xbf16>
    %c16_i32_131 = arith.constant 16 : i32
    %355 = tpu.dynamic_rotate %349 by %c16_i32_131 dim 1 : vector<32x256xbf16>, i32 -> vector<32x256xbf16>
    %356 = vector.broadcast %354 : vector<1x256xbf16> to vector<32x256xbf16>
    %357 = arith.mulf %355, %356 : vector<32x256xbf16>
    %358 = vector.extract_strided_slice %0 {offsets = [2, 0], sizes = [1, 256], strides = [1, 1]} : vector<9x256xbf16> to vector<1x256xbf16>
    %c15_i32_132 = arith.constant 15 : i32
    %359 = tpu.dynamic_rotate %349 by %c15_i32_132 dim 1 : vector<32x256xbf16>, i32 -> vector<32x256xbf16>
    %360 = vector.broadcast %358 : vector<1x256xbf16> to vector<32x256xbf16>
    %361 = arith.mulf %359, %360 : vector<32x256xbf16>
    %362 = vector.extract_strided_slice %0 {offsets = [3, 0], sizes = [1, 256], strides = [1, 1]} : vector<9x256xbf16> to vector<1x256xbf16>
    %c1_i32_133 = arith.constant 1 : i32
    %363 = tpu.dynamic_rotate %349 by %c1_i32_133 dim 1 : vector<32x256xbf16>, i32 -> vector<32x256xbf16>
    %364 = vector.broadcast %362 : vector<1x256xbf16> to vector<32x256xbf16>
    %365 = arith.mulf %363, %364 : vector<32x256xbf16>
    %366 = vector.extract_strided_slice %0 {offsets = [5, 0], sizes = [1, 256], strides = [1, 1]} : vector<9x256xbf16> to vector<1x256xbf16>
    %c255_i32_134 = arith.constant 255 : i32
    %367 = tpu.dynamic_rotate %349 by %c255_i32_134 dim 1 : vector<32x256xbf16>, i32 -> vector<32x256xbf16>
    %368 = vector.broadcast %366 : vector<1x256xbf16> to vector<32x256xbf16>
    %369 = arith.mulf %367, %368 : vector<32x256xbf16>
    %370 = vector.extract_strided_slice %0 {offsets = [6, 0], sizes = [1, 256], strides = [1, 1]} : vector<9x256xbf16> to vector<1x256xbf16>
    %c241_i32_135 = arith.constant 241 : i32
    %371 = tpu.dynamic_rotate %349 by %c241_i32_135 dim 1 : vector<32x256xbf16>, i32 -> vector<32x256xbf16>
    %372 = vector.broadcast %370 : vector<1x256xbf16> to vector<32x256xbf16>
    %373 = arith.mulf %371, %372 : vector<32x256xbf16>
    %374 = vector.extract_strided_slice %0 {offsets = [7, 0], sizes = [1, 256], strides = [1, 1]} : vector<9x256xbf16> to vector<1x256xbf16>
    %c240_i32_136 = arith.constant 240 : i32
    %375 = tpu.dynamic_rotate %349 by %c240_i32_136 dim 1 : vector<32x256xbf16>, i32 -> vector<32x256xbf16>
    %376 = vector.broadcast %374 : vector<1x256xbf16> to vector<32x256xbf16>
    %377 = arith.mulf %375, %376 : vector<32x256xbf16>
    %378 = vector.extract_strided_slice %0 {offsets = [8, 0], sizes = [1, 256], strides = [1, 1]} : vector<9x256xbf16> to vector<1x256xbf16>
    %c239_i32_137 = arith.constant 239 : i32
    %379 = tpu.dynamic_rotate %349 by %c239_i32_137 dim 1 : vector<32x256xbf16>, i32 -> vector<32x256xbf16>
    %380 = vector.broadcast %378 : vector<1x256xbf16> to vector<32x256xbf16>
    %381 = arith.mulf %379, %380 : vector<32x256xbf16>
    %382 = tpu.concatenate %353, %357, %361, %365, %349, %369, %373, %377, %381 in 0 : vector<32x256xbf16>, vector<32x256xbf16>, vector<32x256xbf16>, vector<32x256xbf16>, vector<32x256xbf16>, vector<32x256xbf16>, vector<32x256xbf16>, vector<32x256xbf16>, vector<32x256xbf16> -> vector<288x256xbf16>
    %c0_138 = arith.constant 0 : index
    %c0_139 = arith.constant 0 : index
    %383 = vector.load %arg24[%c0_138, %c0_139] : memref<32x288xbf16, #tpu.memory_space<vmem>>, vector<32x288xbf16>
    %cst_140 = arith.constant dense<0.000000e+00> : vector<32x256xf32>
    %384 = tpu.matmul %383, %382, %cst_140 {dimension_numbers = #tpu.dot_dimension_numbers<[1], [0], [0], [1], [0, 0, 1, 1], [], []>} : vector<32x288xbf16>, vector<288x256xbf16>, vector<32x256xf32> -> vector<32x256xf32>
    %c0_141 = arith.constant 0 : index
    %c0_142 = arith.constant 0 : index
    %385 = vector.load %arg25[%c0_141, %c0_142] : memref<32x1xf32, #tpu.memory_space<vmem>>, vector<32x1xf32>
    %386 = vector.broadcast %385 : vector<32x1xf32> to vector<32x256xf32>
    %387 = arith.addf %384, %386 : vector<32x256xf32>
    %cst_143 = arith.constant dense<0.000000e+00> : vector<32xf32>
    %388 = vector.multi_reduction <add>, %387, %cst_143 [1] : vector<32x256xf32> to vector<32xf32>
    %389 = vector.shape_cast %388 : vector<32xf32> to vector<32x1xf32>
    %390 = arith.mulf %387, %387 : vector<32x256xf32>
    %cst_144 = arith.constant dense<0.000000e+00> : vector<32xf32>
    %391 = vector.multi_reduction <add>, %390, %cst_144 [1] : vector<32x256xf32> to vector<32xf32>
    %392 = vector.shape_cast %391 : vector<32xf32> to vector<32x1xf32>
    %cst_145 = arith.constant dense<0.000000e+00> : vector<32x1xf32>
    %393 = tpu.matmul %1, %389, %cst_145 {dimension_numbers = #tpu.dot_dimension_numbers<[1], [0], [0], [1], [0, 0, 1, 1], [], []>} : vector<32x32xf32>, vector<32x1xf32>, vector<32x1xf32> -> vector<32x1xf32>
    %cst_146 = arith.constant dense<0.000000e+00> : vector<32x1xf32>
    %394 = tpu.matmul %1, %392, %cst_146 {dimension_numbers = #tpu.dot_dimension_numbers<[1], [0], [0], [1], [0, 0, 1, 1], [], []>} : vector<32x32xf32>, vector<32x1xf32>, vector<32x1xf32> -> vector<32x1xf32>
    %cst_147 = arith.constant 9.765625E-4 : f32
    %395 = vector.broadcast %cst_147 : f32 to vector<32x1xf32>
    %396 = arith.mulf %393, %395 : vector<32x1xf32>
    %cst_148 = arith.constant 9.765625E-4 : f32
    %397 = vector.broadcast %cst_148 : f32 to vector<32x1xf32>
    %398 = arith.mulf %394, %397 : vector<32x1xf32>
    %399 = arith.mulf %396, %396 : vector<32x1xf32>
    %400 = arith.subf %398, %399 : vector<32x1xf32>
    %cst_149 = arith.constant 0.000000e+00 : f32
    %401 = vector.broadcast %cst_149 : f32 to vector<32x1xf32>
    %402 = arith.maximumf %400, %401 : vector<32x1xf32>
    %cst_150 = arith.constant 9.99999974E-6 : f32
    %403 = vector.broadcast %cst_150 : f32 to vector<32x1xf32>
    %404 = arith.addf %402, %403 : vector<32x1xf32>
    %405 = math.rsqrt %404 : vector<32x1xf32>
    %c0_151 = arith.constant 0 : index
    %c0_152 = arith.constant 0 : index
    %406 = vector.load %arg26[%c0_151, %c0_152] : memref<32x1xf32, #tpu.memory_space<vmem>>, vector<32x1xf32>
    %407 = arith.mulf %405, %406 : vector<32x1xf32>
    %c0_153 = arith.constant 0 : index
    %c0_154 = arith.constant 0 : index
    %408 = vector.load %arg27[%c0_153, %c0_154] : memref<32x1xf32, #tpu.memory_space<vmem>>, vector<32x1xf32>
    %409 = arith.mulf %396, %407 : vector<32x1xf32>
    %410 = arith.subf %408, %409 : vector<32x1xf32>
    %411 = vector.broadcast %407 : vector<32x1xf32> to vector<32x256xf32>
    %412 = arith.mulf %387, %411 : vector<32x256xf32>
    %413 = vector.broadcast %410 : vector<32x1xf32> to vector<32x256xf32>
    %414 = arith.addf %412, %413 : vector<32x256xf32>
    %cst_155 = arith.constant 0.000000e+00 : f32
    %415 = vector.broadcast %cst_155 : f32 to vector<32x256xf32>
    %416 = arith.maximumf %414, %415 : vector<32x256xf32>
    %417 = arith.truncf %416 : vector<32x256xf32> to vector<32x256xbf16>
    %418 = vector.extract_strided_slice %0 {offsets = [0, 0], sizes = [1, 256], strides = [1, 1]} : vector<9x256xbf16> to vector<1x256xbf16>
    %c17_i32_156 = arith.constant 17 : i32
    %419 = tpu.dynamic_rotate %417 by %c17_i32_156 dim 1 : vector<32x256xbf16>, i32 -> vector<32x256xbf16>
    %420 = vector.broadcast %418 : vector<1x256xbf16> to vector<32x256xbf16>
    %421 = arith.mulf %419, %420 : vector<32x256xbf16>
    %422 = vector.extract_strided_slice %0 {offsets = [1, 0], sizes = [1, 256], strides = [1, 1]} : vector<9x256xbf16> to vector<1x256xbf16>
    %c16_i32_157 = arith.constant 16 : i32
    %423 = tpu.dynamic_rotate %417 by %c16_i32_157 dim 1 : vector<32x256xbf16>, i32 -> vector<32x256xbf16>
    %424 = vector.broadcast %422 : vector<1x256xbf16> to vector<32x256xbf16>
    %425 = arith.mulf %423, %424 : vector<32x256xbf16>
    %426 = vector.extract_strided_slice %0 {offsets = [2, 0], sizes = [1, 256], strides = [1, 1]} : vector<9x256xbf16> to vector<1x256xbf16>
    %c15_i32_158 = arith.constant 15 : i32
    %427 = tpu.dynamic_rotate %417 by %c15_i32_158 dim 1 : vector<32x256xbf16>, i32 -> vector<32x256xbf16>
    %428 = vector.broadcast %426 : vector<1x256xbf16> to vector<32x256xbf16>
    %429 = arith.mulf %427, %428 : vector<32x256xbf16>
    %430 = vector.extract_strided_slice %0 {offsets = [3, 0], sizes = [1, 256], strides = [1, 1]} : vector<9x256xbf16> to vector<1x256xbf16>
    %c1_i32_159 = arith.constant 1 : i32
    %431 = tpu.dynamic_rotate %417 by %c1_i32_159 dim 1 : vector<32x256xbf16>, i32 -> vector<32x256xbf16>
    %432 = vector.broadcast %430 : vector<1x256xbf16> to vector<32x256xbf16>
    %433 = arith.mulf %431, %432 : vector<32x256xbf16>
    %434 = vector.extract_strided_slice %0 {offsets = [5, 0], sizes = [1, 256], strides = [1, 1]} : vector<9x256xbf16> to vector<1x256xbf16>
    %c255_i32_160 = arith.constant 255 : i32
    %435 = tpu.dynamic_rotate %417 by %c255_i32_160 dim 1 : vector<32x256xbf16>, i32 -> vector<32x256xbf16>
    %436 = vector.broadcast %434 : vector<1x256xbf16> to vector<32x256xbf16>
    %437 = arith.mulf %435, %436 : vector<32x256xbf16>
    %438 = vector.extract_strided_slice %0 {offsets = [6, 0], sizes = [1, 256], strides = [1, 1]} : vector<9x256xbf16> to vector<1x256xbf16>
    %c241_i32_161 = arith.constant 241 : i32
    %439 = tpu.dynamic_rotate %417 by %c241_i32_161 dim 1 : vector<32x256xbf16>, i32 -> vector<32x256xbf16>
    %440 = vector.broadcast %438 : vector<1x256xbf16> to vector<32x256xbf16>
    %441 = arith.mulf %439, %440 : vector<32x256xbf16>
    %442 = vector.extract_strided_slice %0 {offsets = [7, 0], sizes = [1, 256], strides = [1, 1]} : vector<9x256xbf16> to vector<1x256xbf16>
    %c240_i32_162 = arith.constant 240 : i32
    %443 = tpu.dynamic_rotate %417 by %c240_i32_162 dim 1 : vector<32x256xbf16>, i32 -> vector<32x256xbf16>
    %444 = vector.broadcast %442 : vector<1x256xbf16> to vector<32x256xbf16>
    %445 = arith.mulf %443, %444 : vector<32x256xbf16>
    %446 = vector.extract_strided_slice %0 {offsets = [8, 0], sizes = [1, 256], strides = [1, 1]} : vector<9x256xbf16> to vector<1x256xbf16>
    %c239_i32_163 = arith.constant 239 : i32
    %447 = tpu.dynamic_rotate %417 by %c239_i32_163 dim 1 : vector<32x256xbf16>, i32 -> vector<32x256xbf16>
    %448 = vector.broadcast %446 : vector<1x256xbf16> to vector<32x256xbf16>
    %449 = arith.mulf %447, %448 : vector<32x256xbf16>
    %450 = tpu.concatenate %421, %425, %429, %433, %417, %437, %441, %445, %449 in 0 : vector<32x256xbf16>, vector<32x256xbf16>, vector<32x256xbf16>, vector<32x256xbf16>, vector<32x256xbf16>, vector<32x256xbf16>, vector<32x256xbf16>, vector<32x256xbf16>, vector<32x256xbf16> -> vector<288x256xbf16>
    %c0_164 = arith.constant 0 : index
    %c0_165 = arith.constant 0 : index
    %451 = vector.load %arg28[%c0_164, %c0_165] : memref<12x288xbf16, #tpu.memory_space<vmem>>, vector<12x288xbf16>
    %cst_166 = arith.constant dense<0.000000e+00> : vector<12x256xf32>
    %452 = tpu.matmul %451, %450, %cst_166 {dimension_numbers = #tpu.dot_dimension_numbers<[1], [0], [0], [1], [0, 0, 1, 1], [], []>} : vector<12x288xbf16>, vector<288x256xbf16>, vector<12x256xf32> -> vector<12x256xf32>
    %c0_167 = arith.constant 0 : index
    %c0_168 = arith.constant 0 : index
    %453 = vector.load %arg29[%c0_167, %c0_168] : memref<12x1xf32, #tpu.memory_space<vmem>>, vector<12x1xf32>
    %454 = vector.broadcast %453 : vector<12x1xf32> to vector<12x256xf32>
    %455 = arith.addf %452, %454 : vector<12x256xf32>
    %c0_169 = arith.constant 0 : index
    %c0_170 = arith.constant 0 : index
    %c0_171 = arith.constant 0 : index
    %456 = vector.load %arg31[%c0_169, %c0_170, %c0_171] : memref<1x12x256xf32, #tpu.memory_space<vmem>>, vector<1x12x256xf32>
    %457 = vector.shape_cast %456 : vector<1x12x256xf32> to vector<12x256xf32>
    %458 = vector.shape_cast %455 : vector<12x256xf32> to vector<1x12x256xf32>
    tpu.vector_store %arg31[%c0_169, %c0_170, %c0_171], %458 {strides = array<i32>} : memref<1x12x256xf32, #tpu.memory_space<vmem>>, vector<1x12x256xf32>,
    return
  }
  func.func @transform_0(%arg0: i32) -> (i32, i32, i32) {
    %c0_i32 = arith.constant 0 : i32
    %c0_i32_0 = arith.constant 0 : i32
    %c0_i32_1 = arith.constant 0 : i32
    return %arg0, %c0_i32, %c0_i32_0 : i32, i32, i32
  }
  func.func @transform_1(%arg0: i32) -> (i32, i32) {
    %c0_i32 = arith.constant 0 : i32
    %c0_i32_0 = arith.constant 0 : i32
    %c0_i32_1 = arith.constant 0 : i32
    return %c0_i32, %c0_i32_0 : i32, i32
  }
  func.func @transform_2(%arg0: i32) -> (i32, i32) {
    %c0_i32 = arith.constant 0 : i32
    %c0_i32_0 = arith.constant 0 : i32
    %c0_i32_1 = arith.constant 0 : i32
    return %c0_i32, %c0_i32_0 : i32, i32
  }
  func.func @transform_3(%arg0: i32) -> (i32, i32) {
    %c0_i32 = arith.constant 0 : i32
    %c0_i32_0 = arith.constant 0 : i32
    %c0_i32_1 = arith.constant 0 : i32
    return %c0_i32, %c0_i32_0 : i32, i32
  }
  func.func @transform_4(%arg0: i32) -> (i32, i32) {
    %c0_i32 = arith.constant 0 : i32
    %c0_i32_0 = arith.constant 0 : i32
    %c0_i32_1 = arith.constant 0 : i32
    return %c0_i32, %c0_i32_0 : i32, i32
  }
  func.func @transform_5(%arg0: i32) -> (i32, i32) {
    %c0_i32 = arith.constant 0 : i32
    %c0_i32_0 = arith.constant 0 : i32
    %c0_i32_1 = arith.constant 0 : i32
    return %c0_i32, %c0_i32_0 : i32, i32
  }
  func.func @transform_6(%arg0: i32) -> (i32, i32) {
    %c0_i32 = arith.constant 0 : i32
    %c0_i32_0 = arith.constant 0 : i32
    %c0_i32_1 = arith.constant 0 : i32
    return %c0_i32, %c0_i32_0 : i32, i32
  }
  func.func @transform_7(%arg0: i32) -> (i32, i32) {
    %c0_i32 = arith.constant 0 : i32
    %c0_i32_0 = arith.constant 0 : i32
    %c0_i32_1 = arith.constant 0 : i32
    return %c0_i32, %c0_i32_0 : i32, i32
  }
  func.func @transform_8(%arg0: i32) -> (i32, i32) {
    %c0_i32 = arith.constant 0 : i32
    %c0_i32_0 = arith.constant 0 : i32
    %c0_i32_1 = arith.constant 0 : i32
    return %c0_i32, %c0_i32_0 : i32, i32
  }
  func.func @transform_9(%arg0: i32) -> (i32, i32) {
    %c0_i32 = arith.constant 0 : i32
    %c0_i32_0 = arith.constant 0 : i32
    %c0_i32_1 = arith.constant 0 : i32
    return %c0_i32, %c0_i32_0 : i32, i32
  }
  func.func @transform_10(%arg0: i32) -> (i32, i32) {
    %c0_i32 = arith.constant 0 : i32
    %c0_i32_0 = arith.constant 0 : i32
    %c0_i32_1 = arith.constant 0 : i32
    return %c0_i32, %c0_i32_0 : i32, i32
  }
  func.func @transform_11(%arg0: i32) -> (i32, i32) {
    %c0_i32 = arith.constant 0 : i32
    %c0_i32_0 = arith.constant 0 : i32
    %c0_i32_1 = arith.constant 0 : i32
    return %c0_i32, %c0_i32_0 : i32, i32
  }
  func.func @transform_12(%arg0: i32) -> (i32, i32) {
    %c0_i32 = arith.constant 0 : i32
    %c0_i32_0 = arith.constant 0 : i32
    %c0_i32_1 = arith.constant 0 : i32
    return %c0_i32, %c0_i32_0 : i32, i32
  }
  func.func @transform_13(%arg0: i32) -> (i32, i32) {
    %c0_i32 = arith.constant 0 : i32
    %c0_i32_0 = arith.constant 0 : i32
    %c0_i32_1 = arith.constant 0 : i32
    return %c0_i32, %c0_i32_0 : i32, i32
  }
  func.func @transform_14(%arg0: i32) -> (i32, i32) {
    %c0_i32 = arith.constant 0 : i32
    %c0_i32_0 = arith.constant 0 : i32
    %c0_i32_1 = arith.constant 0 : i32
    return %c0_i32, %c0_i32_0 : i32, i32
  }
  func.func @transform_15(%arg0: i32) -> (i32, i32) {
    %c0_i32 = arith.constant 0 : i32
    %c0_i32_0 = arith.constant 0 : i32
    %c0_i32_1 = arith.constant 0 : i32
    return %c0_i32, %c0_i32_0 : i32, i32
  }
  func.func @transform_16(%arg0: i32) -> (i32, i32) {
    %c0_i32 = arith.constant 0 : i32
    %c0_i32_0 = arith.constant 0 : i32
    %c0_i32_1 = arith.constant 0 : i32
    return %c0_i32, %c0_i32_0 : i32, i32
  }
  func.func @transform_17(%arg0: i32) -> (i32, i32) {
    %c0_i32 = arith.constant 0 : i32
    %c0_i32_0 = arith.constant 0 : i32
    %c0_i32_1 = arith.constant 0 : i32
    return %c0_i32, %c0_i32_0 : i32, i32
  }
  func.func @transform_18(%arg0: i32) -> (i32, i32) {
    %c0_i32 = arith.constant 0 : i32
    %c0_i32_0 = arith.constant 0 : i32
    %c0_i32_1 = arith.constant 0 : i32
    return %c0_i32, %c0_i32_0 : i32, i32
  }
  func.func @transform_19(%arg0: i32) -> (i32, i32) {
    %c0_i32 = arith.constant 0 : i32
    %c0_i32_0 = arith.constant 0 : i32
    %c0_i32_1 = arith.constant 0 : i32
    return %c0_i32, %c0_i32_0 : i32, i32
  }
  func.func @transform_20(%arg0: i32) -> (i32, i32) {
    %c0_i32 = arith.constant 0 : i32
    %c0_i32_0 = arith.constant 0 : i32
    %c0_i32_1 = arith.constant 0 : i32
    return %c0_i32, %c0_i32_0 : i32, i32
  }
  func.func @transform_21(%arg0: i32) -> (i32, i32) {
    %c0_i32 = arith.constant 0 : i32
    %c0_i32_0 = arith.constant 0 : i32
    %c0_i32_1 = arith.constant 0 : i32
    return %c0_i32, %c0_i32_0 : i32, i32
  }
  func.func @transform_22(%arg0: i32) -> (i32, i32) {
    %c0_i32 = arith.constant 0 : i32
    %c0_i32_0 = arith.constant 0 : i32
    %c0_i32_1 = arith.constant 0 : i32
    return %c0_i32, %c0_i32_0 : i32, i32
  }
  func.func @transform_23(%arg0: i32) -> (i32, i32) {
    %c0_i32 = arith.constant 0 : i32
    %c0_i32_0 = arith.constant 0 : i32
    %c0_i32_1 = arith.constant 0 : i32
    return %c0_i32, %c0_i32_0 : i32, i32
  }
  func.func @transform_24(%arg0: i32) -> (i32, i32) {
    %c0_i32 = arith.constant 0 : i32
    %c0_i32_0 = arith.constant 0 : i32
    %c0_i32_1 = arith.constant 0 : i32
    return %c0_i32, %c0_i32_0 : i32, i32
  }
  func.func @transform_25(%arg0: i32) -> (i32, i32) {
    %c0_i32 = arith.constant 0 : i32
    %c0_i32_0 = arith.constant 0 : i32
    %c0_i32_1 = arith.constant 0 : i32
    return %c0_i32, %c0_i32_0 : i32, i32
  }
  func.func @transform_26(%arg0: i32) -> (i32, i32) {
    %c0_i32 = arith.constant 0 : i32
    %c0_i32_0 = arith.constant 0 : i32
    %c0_i32_1 = arith.constant 0 : i32
    return %c0_i32, %c0_i32_0 : i32, i32
  }
  func.func @transform_27(%arg0: i32) -> (i32, i32) {
    %c0_i32 = arith.constant 0 : i32
    %c0_i32_0 = arith.constant 0 : i32
    %c0_i32_1 = arith.constant 0 : i32
    return %c0_i32, %c0_i32_0 : i32, i32
  }
  func.func @transform_28(%arg0: i32) -> (i32, i32) {
    %c0_i32 = arith.constant 0 : i32
    %c0_i32_0 = arith.constant 0 : i32
    %c0_i32_1 = arith.constant 0 : i32
    return %c0_i32, %c0_i32_0 : i32, i32
  }
  func.func @transform_29(%arg0: i32) -> (i32, i32, i32) {
    %c0_i32 = arith.constant 0 : i32
    %c0_i32_0 = arith.constant 0 : i32
    %c0_i32_1 = arith.constant 0 : i32
    return %arg0, %c0_i32, %c0_i32_0 : i32, i32, i32
  }
  func.func @transform_30(%arg0: i32) -> (i32, i32, i32) {
    %c0_i32 = arith.constant 0 : i32
    %c0_i32_0 = arith.constant 0 : i32
    %c0_i32_1 = arith.constant 0 : i32
    return %arg0, %c0_i32, %c0_i32_0 : i32, i32, i32
  }
}

module attributes {stable_mosaic.version = 11 : i64} {
  func.func @_fused_prediction_kernel(%arg0: i32, %arg1: memref<1x32x256xf32, #tpu.memory_space<vmem>>, %arg2: memref<9x256xbf16, #tpu.memory_space<vmem>>, %arg3: memref<32x32xf32, #tpu.memory_space<vmem>>, %arg4: memref<32x288xbf16, #tpu.memory_space<vmem>>, %arg5: memref<32x1xf32, #tpu.memory_space<vmem>>, %arg6: memref<32x1xf32, #tpu.memory_space<vmem>>, %arg7: memref<32x1xf32, #tpu.memory_space<vmem>>, %arg8: memref<32x288xbf16, #tpu.memory_space<vmem>>, %arg9: memref<32x1xf32, #tpu.memory_space<vmem>>, %arg10: memref<32x1xf32, #tpu.memory_space<vmem>>, %arg11: memref<32x1xf32, #tpu.memory_space<vmem>>, %arg12: memref<64x288xbf16, #tpu.memory_space<vmem>>, %arg13: memref<64x1xf32, #tpu.memory_space<vmem>>, %arg14: memref<32x1xf32, #tpu.memory_space<vmem>>, %arg15: memref<32x1xf32, #tpu.memory_space<vmem>>, %arg16: memref<32x1xf32, #tpu.memory_space<vmem>>, %arg17: memref<32x1xf32, #tpu.memory_space<vmem>>, %arg18: memref<32x288xbf16, #tpu.memory_space<vmem>>, %arg19: memref<32x1xf32, #tpu.memory_space<vmem>>, %arg20: memref<32x1xf32, #tpu.memory_space<vmem>>, %arg21: memref<32x1xf32, #tpu.memory_space<vmem>>, %arg22: memref<21x288xbf16, #tpu.memory_space<vmem>>, %arg23: memref<21x1xf32, #tpu.memory_space<vmem>>, %arg24: memref<32x288xbf16, #tpu.memory_space<vmem>>, %arg25: memref<32x1xf32, #tpu.memory_space<vmem>>, %arg26: memref<32x1xf32, #tpu.memory_space<vmem>>, %arg27: memref<32x1xf32, #tpu.memory_space<vmem>>, %arg28: memref<12x288xbf16, #tpu.memory_space<vmem>>, %arg29: memref<12x1xf32, #tpu.memory_space<vmem>>, %arg30: memref<1x21x256xf32, #tpu.memory_space<vmem>>, %arg31: memref<1x12x256xf32, #tpu.memory_space<vmem>>) attributes {dimension_semantics = [#tpu.dimension_semantics<parallel>], iteration_bounds = array<i64: 2>, scalar_prefetch = 0 : i64, scratch_operands = 0 : i64, tpu.core_type = #tpu.core_type<tc>, window_params = [{transform_indices = @transform_0, window_bounds = array<i64: 1, 32, 256>}, {pipeline_mode = #tpu.pipeline_mode<synchronous>, transform_indices = @transform_1, window_bounds = array<i64: 9, 256>}, {pipeline_mode = #tpu.pipeline_mode<synchronous>, transform_indices = @transform_2, window_bounds = array<i64: 32, 32>}, {pipeline_mode = #tpu.pipeline_mode<synchronous>, transform_indices = @transform_3, window_bounds = array<i64: 32, 288>}, {pipeline_mode = #tpu.pipeline_mode<synchronous>, transform_indices = @transform_4, window_bounds = array<i64: 32, 1>}, {pipeline_mode = #tpu.pipeline_mode<synchronous>, transform_indices = @transform_5, window_bounds = array<i64: 32, 1>}, {pipeline_mode = #tpu.pipeline_mode<synchronous>, transform_indices = @transform_6, window_bounds = array<i64: 32, 1>}, {pipeline_mode = #tpu.pipeline_mode<synchronous>, transform_indices = @transform_7, window_bounds = array<i64: 32, 288>}, {pipeline_mode = #tpu.pipeline_mode<synchronous>, transform_indices = @transform_8, window_bounds = array<i64: 32, 1>}, {pipeline_mode = #tpu.pipeline_mode<synchronous>, transform_indices = @transform_9, window_bounds = array<i64: 32, 1>}, {pipeline_mode = #tpu.pipeline_mode<synchronous>, transform_indices = @transform_10, window_bounds = array<i64: 32, 1>}, {pipeline_mode = #tpu.pipeline_mode<synchronous>, transform_indices = @transform_11, window_bounds = array<i64: 64, 288>}, {pipeline_mode = #tpu.pipeline_mode<synchronous>, transform_indices = @transform_12, window_bounds = array<i64: 64, 1>}, {pipeline_mode = #tpu.pipeline_mode<synchronous>, transform_indices = @transform_13, window_bounds = array<i64: 32, 1>}, {pipeline_mode = #tpu.pipeline_mode<synchronous>, transform_indices = @transform_14, window_bounds = array<i64: 32, 1>}, {pipeline_mode = #tpu.pipeline_mode<synchronous>, transform_indices = @transform_15, window_bounds = array<i64: 32, 1>}, {pipeline_mode = #tpu.pipeline_mode<synchronous>, transform_indices = @transform_16, window_bounds = array<i64: 32, 1>}, {pipeline_mode = #tpu.pipeline_mode<synchronous>, transform_indices = @transform_17, window_bounds = array<i64: 32, 288>}, {pipeline_mode = #tpu.pipeline_mode<synchronous>, transform_indices = @transform_18, window_bounds = array<i64: 32, 1>}, {pipeline_mode = #tpu.pipeline_mode<synchronous>, transform_indices = @transform_19, window_bounds = array<i64: 32, 1>}, {pipeline_mode = #tpu.pipeline_mode<synchronous>, transform_indices = @transform_20, window_bounds = array<i64: 32, 1>}, {pipeline_mode = #tpu.pipeline_mode<synchronous>, transform_indices = @transform_21, window_bounds = array<i64: 21, 288>}, {pipeline_mode = #tpu.pipeline_mode<synchronous>, transform_indices = @transform_22, window_bounds = array<i64: 21, 1>}, {pipeline_mode = #tpu.pipeline_mode<synchronous>, transform_indices = @transform_23, window_bounds = array<i64: 32, 288>}, {pipeline_mode = #tpu.pipeline_mode<synchronous>, transform_indices = @transform_24, window_bounds = array<i64: 32, 1>}, {pipeline_mode = #tpu.pipeline_mode<synchronous>, transform_indices = @transform_25, window_bounds = array<i64: 32, 1>}, {pipeline_mode = #tpu.pipeline_mode<synchronous>, transform_indices = @transform_26, window_bounds = array<i64: 32, 1>}, {pipeline_mode = #tpu.pipeline_mode<synchronous>, transform_indices = @transform_27, window_bounds = array<i64: 12, 288>}, {pipeline_mode = #tpu.pipeline_mode<synchronous>, transform_indices = @transform_28, window_bounds = array<i64: 12, 1>}, {transform_indices = @transform_29, window_bounds = array<i64: 1, 21, 256>}, {transform_indices = @transform_30, window_bounds = array<i64: 1, 12, 256>}]} {
    %c0 = arith.constant 0 : index
    %c0_0 = arith.constant 0 : index
    %0 = vector.load %arg2[%c0, %c0_0] : memref<9x256xbf16, #tpu.memory_space<vmem>>, vector<9x256xbf16>
    %c0_1 = arith.constant 0 : index
    %c0_2 = arith.constant 0 : index
    %1 = vector.load %arg3[%c0_1, %c0_2] : memref<32x32xf32, #tpu.memory_space<vmem>>, vector<32x32xf32>
    %c0_3 = arith.constant 0 : index
    %c0_4 = arith.constant 0 : index
    %c0_5 = arith.constant 0 : index
    %2 = vector.load %arg1[%c0_3, %c0_4, %c0_5] : memref<1x32x256xf32, #tpu.memory_space<vmem>>, vector<1x32x256xf32>
    %3 = vector.shape_cast %2 : vector<1x32x256xf32> to vector<32x256xf32>
    %4 = vector.extract_strided_slice %0 {offsets = [0, 0], sizes = [1, 256], strides = [1, 1]} : vector<9x256xbf16> to vector<1x256xbf16>
    %c17_i32 = arith.constant 17 : i32
    %5 = tpu.dynamic_rotate %3 by %c17_i32 dim 1 : vector<32x256xf32>, i32 -> vector<32x256xf32>
    %6 = arith.extf %4 : vector<1x256xbf16> to vector<1x256xf32>
    %7 = vector.broadcast %6 : vector<1x256xf32> to vector<32x256xf32>
    %8 = arith.mulf %5, %7 : vector<32x256xf32>
    %9 = arith.truncf %8 : vector<32x256xf32> to vector<32x256xbf16>
    %10 = vector.extract_strided_slice %0 {offsets = [1, 0], sizes = [1, 256], strides = [1, 1]} : vector<9x256xbf16> to vector<1x256xbf16>
    %c16_i32 = arith.constant 16 : i32
    %11 = tpu.dynamic_rotate %3 by %c16_i32 dim 1 : vector<32x256xf32>, i32 -> vector<32x256xf32>
    %12 = arith.extf %10 : vector<1x256xbf16> to vector<1x256xf32>
    %13 = vector.broadcast %12 : vector<1x256xf32> to vector<32x256xf32>
    %14 = arith.mulf %11, %13 : vector<32x256xf32>
    %15 = arith.truncf %14 : vector<32x256xf32> to vector<32x256xbf16>
    %16 = vector.extract_strided_slice %0 {offsets = [2, 0], sizes = [1, 256], strides = [1, 1]} : vector<9x256xbf16> to vector<1x256xbf16>
    %c15_i32 = arith.constant 15 : i32
    %17 = tpu.dynamic_rotate %3 by %c15_i32 dim 1 : vector<32x256xf32>, i32 -> vector<32x256xf32>
    %18 = arith.extf %16 : vector<1x256xbf16> to vector<1x256xf32>
    %19 = vector.broadcast %18 : vector<1x256xf32> to vector<32x256xf32>
    %20 = arith.mulf %17, %19 : vector<32x256xf32>
    %21 = arith.truncf %20 : vector<32x256xf32> to vector<32x256xbf16>
    %22 = vector.extract_strided_slice %0 {offsets = [3, 0], sizes = [1, 256], strides = [1, 1]} : vector<9x256xbf16> to vector<1x256xbf16>
    %c1_i32 = arith.constant 1 : i32
    %23 = tpu.dynamic_rotate %3 by %c1_i32 dim 1 : vector<32x256xf32>, i32 -> vector<32x256xf32>
    %24 = arith.extf %22 : vector<1x256xbf16> to vector<1x256xf32>
    %25 = vector.broadcast %24 : vector<1x256xf32> to vector<32x256xf32>
    %26 = arith.mulf %23, %25 : vector<32x256xf32>
    %27 = arith.truncf %26 : vector<32x256xf32> to vector<32x256xbf16>
    %28 = arith.truncf %3 : vector<32x256xf32> to vector<32x256xbf16>
    %29 = vector.extract_strided_slice %0 {offsets = [5, 0], sizes = [1, 256], strides = [1, 1]} : vector<9x256xbf16> to vector<1x256xbf16>
    %c255_i32 = arith.constant 255 : i32
    %30 = tpu.dynamic_rotate %3 by %c255_i32 dim 1 : vector<32x256xf32>, i32 -> vector<32x256xf32>
    %31 = arith.extf %29 : vector<1x256xbf16> to vector<1x256xf32>
    %32 = vector.broadcast %31 : vector<1x256xf32> to vector<32x256xf32>
    %33 = arith.mulf %30, %32 : vector<32x256xf32>
    %34 = arith.truncf %33 : vector<32x256xf32> to vector<32x256xbf16>
    %35 = vector.extract_strided_slice %0 {offsets = [6, 0], sizes = [1, 256], strides = [1, 1]} : vector<9x256xbf16> to vector<1x256xbf16>
    %c241_i32 = arith.constant 241 : i32
    %36 = tpu.dynamic_rotate %3 by %c241_i32 dim 1 : vector<32x256xf32>, i32 -> vector<32x256xf32>
    %37 = arith.extf %35 : vector<1x256xbf16> to vector<1x256xf32>
    %38 = vector.broadcast %37 : vector<1x256xf32> to vector<32x256xf32>
    %39 = arith.mulf %36, %38 : vector<32x256xf32>
    %40 = arith.truncf %39 : vector<32x256xf32> to vector<32x256xbf16>
    %41 = vector.extract_strided_slice %0 {offsets = [7, 0], sizes = [1, 256], strides = [1, 1]} : vector<9x256xbf16> to vector<1x256xbf16>
    %c240_i32 = arith.constant 240 : i32
    %42 = tpu.dynamic_rotate %3 by %c240_i32 dim 1 : vector<32x256xf32>, i32 -> vector<32x256xf32>
    %43 = arith.extf %41 : vector<1x256xbf16> to vector<1x256xf32>
    %44 = vector.broadcast %43 : vector<1x256xf32> to vector<32x256xf32>
    %45 = arith.mulf %42, %44 : vector<32x256xf32>
    %46 = arith.truncf %45 : vector<32x256xf32> to vector<32x256xbf16>
    %47 = vector.extract_strided_slice %0 {offsets = [8, 0], sizes = [1, 256], strides = [1, 1]} : vector<9x256xbf16> to vector<1x256xbf16>
    %c239_i32 = arith.constant 239 : i32
    %48 = tpu.dynamic_rotate %3 by %c239_i32 dim 1 : vector<32x256xf32>, i32 -> vector<32x256xf32>
    %49 = arith.extf %47 : vector<1x256xbf16> to vector<1x256xf32>
    %50 = vector.broadcast %49 : vector<1x256xf32> to vector<32x256xf32>
    %51 = arith.mulf %48, %50 : vector<32x256xf32>
    %52 = arith.truncf %51 : vector<32x256xf32> to vector<32x256xbf16>
    %53 = tpu.concatenate %9, %15, %21, %27, %28, %34, %40, %46, %52 in 0 : vector<32x256xbf16>, vector<32x256xbf16>, vector<32x256xbf16>, vector<32x256xbf16>, vector<32x256xbf16>, vector<32x256xbf16>, vector<32x256xbf16>, vector<32x256xbf16>, vector<32x256xbf16> -> vector<288x256xbf16>
    %c0_6 = arith.constant 0 : index
    %c0_7 = arith.constant 0 : index
    %54 = vector.load %arg4[%c0_6, %c0_7] : memref<32x288xbf16, #tpu.memory_space<vmem>>, vector<32x288xbf16>
    %cst = arith.constant dense<0.000000e+00> : vector<32x256xf32>
    %55 = tpu.matmul %54, %53, %cst {dimension_numbers = #tpu.dot_dimension_numbers<[1], [0], [0], [1], [0, 0, 1, 1], [], []>} : vector<32x288xbf16>, vector<288x256xbf16>, vector<32x256xf32> -> vector<32x256xf32>
    %c0_8 = arith.constant 0 : index
    %c0_9 = arith.constant 0 : index
    %56 = vector.load %arg5[%c0_8, %c0_9] : memref<32x1xf32, #tpu.memory_space<vmem>>, vector<32x1xf32>
    %57 = vector.broadcast %56 : vector<32x1xf32> to vector<32x256xf32>
    %58 = arith.addf %55, %57 : vector<32x256xf32>
    %cst_10 = arith.constant dense<0.000000e+00> : vector<32xf32>
    %59 = vector.multi_reduction <add>, %58, %cst_10 [1] : vector<32x256xf32> to vector<32xf32>
    %60 = vector.shape_cast %59 : vector<32xf32> to vector<32x1xf32>
    %61 = arith.mulf %58, %58 : vector<32x256xf32>
    %cst_11 = arith.constant dense<0.000000e+00> : vector<32xf32>
    %62 = vector.multi_reduction <add>, %61, %cst_11 [1] : vector<32x256xf32> to vector<32xf32>
    %63 = vector.shape_cast %62 : vector<32xf32> to vector<32x1xf32>
    %cst_12 = arith.constant dense<0.000000e+00> : vector<32x1xf32>
    %64 = tpu.matmul %1, %60, %cst_12 {dimension_numbers = #tpu.dot_dimension_numbers<[1], [0], [0], [1], [0, 0, 1, 1], [], []>} : vector<32x32xf32>, vector<32x1xf32>, vector<32x1xf32> -> vector<32x1xf32>
    %cst_13 = arith.constant dense<0.000000e+00> : vector<32x1xf32>
    %65 = tpu.matmul %1, %63, %cst_13 {dimension_numbers = #tpu.dot_dimension_numbers<[1], [0], [0], [1], [0, 0, 1, 1], [], []>} : vector<32x32xf32>, vector<32x1xf32>, vector<32x1xf32> -> vector<32x1xf32>
    %cst_14 = arith.constant 9.765625E-4 : f32
    %66 = vector.broadcast %cst_14 : f32 to vector<32x1xf32>
    %67 = arith.mulf %64, %66 : vector<32x1xf32>
    %cst_15 = arith.constant 9.765625E-4 : f32
    %68 = vector.broadcast %cst_15 : f32 to vector<32x1xf32>
    %69 = arith.mulf %65, %68 : vector<32x1xf32>
    %70 = arith.mulf %67, %67 : vector<32x1xf32>
    %71 = arith.subf %69, %70 : vector<32x1xf32>
    %cst_16 = arith.constant 0.000000e+00 : f32
    %72 = vector.broadcast %cst_16 : f32 to vector<32x1xf32>
    %73 = arith.maximumf %71, %72 : vector<32x1xf32>
    %cst_17 = arith.constant 9.99999974E-6 : f32
    %74 = vector.broadcast %cst_17 : f32 to vector<32x1xf32>
    %75 = arith.addf %73, %74 : vector<32x1xf32>
    %76 = math.rsqrt %75 : vector<32x1xf32>
    %c0_18 = arith.constant 0 : index
    %c0_19 = arith.constant 0 : index
    %77 = vector.load %arg6[%c0_18, %c0_19] : memref<32x1xf32, #tpu.memory_space<vmem>>, vector<32x1xf32>
    %78 = arith.mulf %76, %77 : vector<32x1xf32>
    %c0_20 = arith.constant 0 : index
    %c0_21 = arith.constant 0 : index
    %79 = vector.load %arg7[%c0_20, %c0_21] : memref<32x1xf32, #tpu.memory_space<vmem>>, vector<32x1xf32>
    %80 = arith.mulf %67, %78 : vector<32x1xf32>
    %81 = arith.subf %79, %80 : vector<32x1xf32>
    %82 = vector.broadcast %78 : vector<32x1xf32> to vector<32x256xf32>
    %83 = arith.mulf %58, %82 : vector<32x256xf32>
    %84 = vector.broadcast %81 : vector<32x1xf32> to vector<32x256xf32>
    %85 = arith.addf %83, %84 : vector<32x256xf32>
    %cst_22 = arith.constant 0.000000e+00 : f32
    %86 = vector.broadcast %cst_22 : f32 to vector<32x256xf32>
    %87 = arith.maximumf %85, %86 : vector<32x256xf32>
    %88 = vector.extract_strided_slice %0 {offsets = [0, 0], sizes = [1, 256], strides = [1, 1]} : vector<9x256xbf16> to vector<1x256xbf16>
    %c17_i32_23 = arith.constant 17 : i32
    %89 = tpu.dynamic_rotate %87 by %c17_i32_23 dim 1 : vector<32x256xf32>, i32 -> vector<32x256xf32>
    %90 = arith.extf %88 : vector<1x256xbf16> to vector<1x256xf32>
    %91 = vector.broadcast %90 : vector<1x256xf32> to vector<32x256xf32>
    %92 = arith.mulf %89, %91 : vector<32x256xf32>
    %93 = arith.truncf %92 : vector<32x256xf32> to vector<32x256xbf16>
    %94 = vector.extract_strided_slice %0 {offsets = [1, 0], sizes = [1, 256], strides = [1, 1]} : vector<9x256xbf16> to vector<1x256xbf16>
    %c16_i32_24 = arith.constant 16 : i32
    %95 = tpu.dynamic_rotate %87 by %c16_i32_24 dim 1 : vector<32x256xf32>, i32 -> vector<32x256xf32>
    %96 = arith.extf %94 : vector<1x256xbf16> to vector<1x256xf32>
    %97 = vector.broadcast %96 : vector<1x256xf32> to vector<32x256xf32>
    %98 = arith.mulf %95, %97 : vector<32x256xf32>
    %99 = arith.truncf %98 : vector<32x256xf32> to vector<32x256xbf16>
    %100 = vector.extract_strided_slice %0 {offsets = [2, 0], sizes = [1, 256], strides = [1, 1]} : vector<9x256xbf16> to vector<1x256xbf16>
    %c15_i32_25 = arith.constant 15 : i32
    %101 = tpu.dynamic_rotate %87 by %c15_i32_25 dim 1 : vector<32x256xf32>, i32 -> vector<32x256xf32>
    %102 = arith.extf %100 : vector<1x256xbf16> to vector<1x256xf32>
    %103 = vector.broadcast %102 : vector<1x256xf32> to vector<32x256xf32>
    %104 = arith.mulf %101, %103 : vector<32x256xf32>
    %105 = arith.truncf %104 : vector<32x256xf32> to vector<32x256xbf16>
    %106 = vector.extract_strided_slice %0 {offsets = [3, 0], sizes = [1, 256], strides = [1, 1]} : vector<9x256xbf16> to vector<1x256xbf16>
    %c1_i32_26 = arith.constant 1 : i32
    %107 = tpu.dynamic_rotate %87 by %c1_i32_26 dim 1 : vector<32x256xf32>, i32 -> vector<32x256xf32>
    %108 = arith.extf %106 : vector<1x256xbf16> to vector<1x256xf32>
    %109 = vector.broadcast %108 : vector<1x256xf32> to vector<32x256xf32>
    %110 = arith.mulf %107, %109 : vector<32x256xf32>
    %111 = arith.truncf %110 : vector<32x256xf32> to vector<32x256xbf16>
    %112 = arith.truncf %87 : vector<32x256xf32> to vector<32x256xbf16>
    %113 = vector.extract_strided_slice %0 {offsets = [5, 0], sizes = [1, 256], strides = [1, 1]} : vector<9x256xbf16> to vector<1x256xbf16>
    %c255_i32_27 = arith.constant 255 : i32
    %114 = tpu.dynamic_rotate %87 by %c255_i32_27 dim 1 : vector<32x256xf32>, i32 -> vector<32x256xf32>
    %115 = arith.extf %113 : vector<1x256xbf16> to vector<1x256xf32>
    %116 = vector.broadcast %115 : vector<1x256xf32> to vector<32x256xf32>
    %117 = arith.mulf %114, %116 : vector<32x256xf32>
    %118 = arith.truncf %117 : vector<32x256xf32> to vector<32x256xbf16>
    %119 = vector.extract_strided_slice %0 {offsets = [6, 0], sizes = [1, 256], strides = [1, 1]} : vector<9x256xbf16> to vector<1x256xbf16>
    %c241_i32_28 = arith.constant 241 : i32
    %120 = tpu.dynamic_rotate %87 by %c241_i32_28 dim 1 : vector<32x256xf32>, i32 -> vector<32x256xf32>
    %121 = arith.extf %119 : vector<1x256xbf16> to vector<1x256xf32>
    %122 = vector.broadcast %121 : vector<1x256xf32> to vector<32x256xf32>
    %123 = arith.mulf %120, %122 : vector<32x256xf32>
    %124 = arith.truncf %123 : vector<32x256xf32> to vector<32x256xbf16>
    %125 = vector.extract_strided_slice %0 {offsets = [7, 0], sizes = [1, 256], strides = [1, 1]} : vector<9x256xbf16> to vector<1x256xbf16>
    %c240_i32_29 = arith.constant 240 : i32
    %126 = tpu.dynamic_rotate %87 by %c240_i32_29 dim 1 : vector<32x256xf32>, i32 -> vector<32x256xf32>
    %127 = arith.extf %125 : vector<1x256xbf16> to vector<1x256xf32>
    %128 = vector.broadcast %127 : vector<1x256xf32> to vector<32x256xf32>
    %129 = arith.mulf %126, %128 : vector<32x256xf32>
    %130 = arith.truncf %129 : vector<32x256xf32> to vector<32x256xbf16>
    %131 = vector.extract_strided_slice %0 {offsets = [8, 0], sizes = [1, 256], strides = [1, 1]} : vector<9x256xbf16> to vector<1x256xbf16>
    %c239_i32_30 = arith.constant 239 : i32
    %132 = tpu.dynamic_rotate %87 by %c239_i32_30 dim 1 : vector<32x256xf32>, i32 -> vector<32x256xf32>
    %133 = arith.extf %131 : vector<1x256xbf16> to vector<1x256xf32>
    %134 = vector.broadcast %133 : vector<1x256xf32> to vector<32x256xf32>
    %135 = arith.mulf %132, %134 : vector<32x256xf32>
    %136 = arith.truncf %135 : vector<32x256xf32> to vector<32x256xbf16>
    %137 = tpu.concatenate %93, %99, %105, %111, %112, %118, %124, %130, %136 in 0 : vector<32x256xbf16>, vector<32x256xbf16>, vector<32x256xbf16>, vector<32x256xbf16>, vector<32x256xbf16>, vector<32x256xbf16>, vector<32x256xbf16>, vector<32x256xbf16>, vector<32x256xbf16> -> vector<288x256xbf16>
    %c0_31 = arith.constant 0 : index
    %c0_32 = arith.constant 0 : index
    %138 = vector.load %arg8[%c0_31, %c0_32] : memref<32x288xbf16, #tpu.memory_space<vmem>>, vector<32x288xbf16>
    %cst_33 = arith.constant dense<0.000000e+00> : vector<32x256xf32>
    %139 = tpu.matmul %138, %137, %cst_33 {dimension_numbers = #tpu.dot_dimension_numbers<[1], [0], [0], [1], [0, 0, 1, 1], [], []>} : vector<32x288xbf16>, vector<288x256xbf16>, vector<32x256xf32> -> vector<32x256xf32>
    %c0_34 = arith.constant 0 : index
    %c0_35 = arith.constant 0 : index
    %140 = vector.load %arg9[%c0_34, %c0_35] : memref<32x1xf32, #tpu.memory_space<vmem>>, vector<32x1xf32>
    %141 = vector.broadcast %140 : vector<32x1xf32> to vector<32x256xf32>
    %142 = arith.addf %139, %141 : vector<32x256xf32>
    %cst_36 = arith.constant dense<0.000000e+00> : vector<32xf32>
    %143 = vector.multi_reduction <add>, %142, %cst_36 [1] : vector<32x256xf32> to vector<32xf32>
    %144 = vector.shape_cast %143 : vector<32xf32> to vector<32x1xf32>
    %145 = arith.mulf %142, %142 : vector<32x256xf32>
    %cst_37 = arith.constant dense<0.000000e+00> : vector<32xf32>
    %146 = vector.multi_reduction <add>, %145, %cst_37 [1] : vector<32x256xf32> to vector<32xf32>
    %147 = vector.shape_cast %146 : vector<32xf32> to vector<32x1xf32>
    %cst_38 = arith.constant dense<0.000000e+00> : vector<32x1xf32>
    %148 = tpu.matmul %1, %144, %cst_38 {dimension_numbers = #tpu.dot_dimension_numbers<[1], [0], [0], [1], [0, 0, 1, 1], [], []>} : vector<32x32xf32>, vector<32x1xf32>, vector<32x1xf32> -> vector<32x1xf32>
    %cst_39 = arith.constant dense<0.000000e+00> : vector<32x1xf32>
    %149 = tpu.matmul %1, %147, %cst_39 {dimension_numbers = #tpu.dot_dimension_numbers<[1], [0], [0], [1], [0, 0, 1, 1], [], []>} : vector<32x32xf32>, vector<32x1xf32>, vector<32x1xf32> -> vector<32x1xf32>
    %cst_40 = arith.constant 9.765625E-4 : f32
    %150 = vector.broadcast %cst_40 : f32 to vector<32x1xf32>
    %151 = arith.mulf %148, %150 : vector<32x1xf32>
    %cst_41 = arith.constant 9.765625E-4 : f32
    %152 = vector.broadcast %cst_41 : f32 to vector<32x1xf32>
    %153 = arith.mulf %149, %152 : vector<32x1xf32>
    %154 = arith.mulf %151, %151 : vector<32x1xf32>
    %155 = arith.subf %153, %154 : vector<32x1xf32>
    %cst_42 = arith.constant 0.000000e+00 : f32
    %156 = vector.broadcast %cst_42 : f32 to vector<32x1xf32>
    %157 = arith.maximumf %155, %156 : vector<32x1xf32>
    %cst_43 = arith.constant 9.99999974E-6 : f32
    %158 = vector.broadcast %cst_43 : f32 to vector<32x1xf32>
    %159 = arith.addf %157, %158 : vector<32x1xf32>
    %160 = math.rsqrt %159 : vector<32x1xf32>
    %c0_44 = arith.constant 0 : index
    %c0_45 = arith.constant 0 : index
    %161 = vector.load %arg10[%c0_44, %c0_45] : memref<32x1xf32, #tpu.memory_space<vmem>>, vector<32x1xf32>
    %162 = arith.mulf %160, %161 : vector<32x1xf32>
    %c0_46 = arith.constant 0 : index
    %c0_47 = arith.constant 0 : index
    %163 = vector.load %arg11[%c0_46, %c0_47] : memref<32x1xf32, #tpu.memory_space<vmem>>, vector<32x1xf32>
    %164 = arith.mulf %151, %162 : vector<32x1xf32>
    %165 = arith.subf %163, %164 : vector<32x1xf32>
    %166 = vector.broadcast %162 : vector<32x1xf32> to vector<32x256xf32>
    %167 = arith.mulf %142, %166 : vector<32x256xf32>
    %168 = vector.broadcast %165 : vector<32x1xf32> to vector<32x256xf32>
    %169 = arith.addf %167, %168 : vector<32x256xf32>
    %cst_48 = arith.constant 0.000000e+00 : f32
    %170 = vector.broadcast %cst_48 : f32 to vector<32x256xf32>
    %171 = arith.maximumf %169, %170 : vector<32x256xf32>
    %172 = vector.extract_strided_slice %0 {offsets = [0, 0], sizes = [1, 256], strides = [1, 1]} : vector<9x256xbf16> to vector<1x256xbf16>
    %c17_i32_49 = arith.constant 17 : i32
    %173 = tpu.dynamic_rotate %171 by %c17_i32_49 dim 1 : vector<32x256xf32>, i32 -> vector<32x256xf32>
    %174 = arith.extf %172 : vector<1x256xbf16> to vector<1x256xf32>
    %175 = vector.broadcast %174 : vector<1x256xf32> to vector<32x256xf32>
    %176 = arith.mulf %173, %175 : vector<32x256xf32>
    %177 = arith.truncf %176 : vector<32x256xf32> to vector<32x256xbf16>
    %178 = vector.extract_strided_slice %0 {offsets = [1, 0], sizes = [1, 256], strides = [1, 1]} : vector<9x256xbf16> to vector<1x256xbf16>
    %c16_i32_50 = arith.constant 16 : i32
    %179 = tpu.dynamic_rotate %171 by %c16_i32_50 dim 1 : vector<32x256xf32>, i32 -> vector<32x256xf32>
    %180 = arith.extf %178 : vector<1x256xbf16> to vector<1x256xf32>
    %181 = vector.broadcast %180 : vector<1x256xf32> to vector<32x256xf32>
    %182 = arith.mulf %179, %181 : vector<32x256xf32>
    %183 = arith.truncf %182 : vector<32x256xf32> to vector<32x256xbf16>
    %184 = vector.extract_strided_slice %0 {offsets = [2, 0], sizes = [1, 256], strides = [1, 1]} : vector<9x256xbf16> to vector<1x256xbf16>
    %c15_i32_51 = arith.constant 15 : i32
    %185 = tpu.dynamic_rotate %171 by %c15_i32_51 dim 1 : vector<32x256xf32>, i32 -> vector<32x256xf32>
    %186 = arith.extf %184 : vector<1x256xbf16> to vector<1x256xf32>
    %187 = vector.broadcast %186 : vector<1x256xf32> to vector<32x256xf32>
    %188 = arith.mulf %185, %187 : vector<32x256xf32>
    %189 = arith.truncf %188 : vector<32x256xf32> to vector<32x256xbf16>
    %190 = vector.extract_strided_slice %0 {offsets = [3, 0], sizes = [1, 256], strides = [1, 1]} : vector<9x256xbf16> to vector<1x256xbf16>
    %c1_i32_52 = arith.constant 1 : i32
    %191 = tpu.dynamic_rotate %171 by %c1_i32_52 dim 1 : vector<32x256xf32>, i32 -> vector<32x256xf32>
    %192 = arith.extf %190 : vector<1x256xbf16> to vector<1x256xf32>
    %193 = vector.broadcast %192 : vector<1x256xf32> to vector<32x256xf32>
    %194 = arith.mulf %191, %193 : vector<32x256xf32>
    %195 = arith.truncf %194 : vector<32x256xf32> to vector<32x256xbf16>
    %196 = arith.truncf %171 : vector<32x256xf32> to vector<32x256xbf16>
    %197 = vector.extract_strided_slice %0 {offsets = [5, 0], sizes = [1, 256], strides = [1, 1]} : vector<9x256xbf16> to vector<1x256xbf16>
    %c255_i32_53 = arith.constant 255 : i32
    %198 = tpu.dynamic_rotate %171 by %c255_i32_53 dim 1 : vector<32x256xf32>, i32 -> vector<32x256xf32>
    %199 = arith.extf %197 : vector<1x256xbf16> to vector<1x256xf32>
    %200 = vector.broadcast %199 : vector<1x256xf32> to vector<32x256xf32>
    %201 = arith.mulf %198, %200 : vector<32x256xf32>
    %202 = arith.truncf %201 : vector<32x256xf32> to vector<32x256xbf16>
    %203 = vector.extract_strided_slice %0 {offsets = [6, 0], sizes = [1, 256], strides = [1, 1]} : vector<9x256xbf16> to vector<1x256xbf16>
    %c241_i32_54 = arith.constant 241 : i32
    %204 = tpu.dynamic_rotate %171 by %c241_i32_54 dim 1 : vector<32x256xf32>, i32 -> vector<32x256xf32>
    %205 = arith.extf %203 : vector<1x256xbf16> to vector<1x256xf32>
    %206 = vector.broadcast %205 : vector<1x256xf32> to vector<32x256xf32>
    %207 = arith.mulf %204, %206 : vector<32x256xf32>
    %208 = arith.truncf %207 : vector<32x256xf32> to vector<32x256xbf16>
    %209 = vector.extract_strided_slice %0 {offsets = [7, 0], sizes = [1, 256], strides = [1, 1]} : vector<9x256xbf16> to vector<1x256xbf16>
    %c240_i32_55 = arith.constant 240 : i32
    %210 = tpu.dynamic_rotate %171 by %c240_i32_55 dim 1 : vector<32x256xf32>, i32 -> vector<32x256xf32>
    %211 = arith.extf %209 : vector<1x256xbf16> to vector<1x256xf32>
    %212 = vector.broadcast %211 : vector<1x256xf32> to vector<32x256xf32>
    %213 = arith.mulf %210, %212 : vector<32x256xf32>
    %214 = arith.truncf %213 : vector<32x256xf32> to vector<32x256xbf16>
    %215 = vector.extract_strided_slice %0 {offsets = [8, 0], sizes = [1, 256], strides = [1, 1]} : vector<9x256xbf16> to vector<1x256xbf16>
    %c239_i32_56 = arith.constant 239 : i32
    %216 = tpu.dynamic_rotate %171 by %c239_i32_56 dim 1 : vector<32x256xf32>, i32 -> vector<32x256xf32>
    %217 = arith.extf %215 : vector<1x256xbf16> to vector<1x256xf32>
    %218 = vector.broadcast %217 : vector<1x256xf32> to vector<32x256xf32>
    %219 = arith.mulf %216, %218 : vector<32x256xf32>
    %220 = arith.truncf %219 : vector<32x256xf32> to vector<32x256xbf16>
    %221 = tpu.concatenate %177, %183, %189, %195, %196, %202, %208, %214, %220 in 0 : vector<32x256xbf16>, vector<32x256xbf16>, vector<32x256xbf16>, vector<32x256xbf16>, vector<32x256xbf16>, vector<32x256xbf16>, vector<32x256xbf16>, vector<32x256xbf16>, vector<32x256xbf16> -> vector<288x256xbf16>
    %c0_57 = arith.constant 0 : index
    %c0_58 = arith.constant 0 : index
    %222 = vector.load %arg12[%c0_57, %c0_58] : memref<64x288xbf16, #tpu.memory_space<vmem>>, vector<64x288xbf16>
    %cst_59 = arith.constant dense<0.000000e+00> : vector<64x256xf32>
    %223 = tpu.matmul %222, %221, %cst_59 {dimension_numbers = #tpu.dot_dimension_numbers<[1], [0], [0], [1], [0, 0, 1, 1], [], []>} : vector<64x288xbf16>, vector<288x256xbf16>, vector<64x256xf32> -> vector<64x256xf32>
    %c0_60 = arith.constant 0 : index
    %c0_61 = arith.constant 0 : index
    %224 = vector.load %arg13[%c0_60, %c0_61] : memref<64x1xf32, #tpu.memory_space<vmem>>, vector<64x1xf32>
    %225 = vector.broadcast %224 : vector<64x1xf32> to vector<64x256xf32>
    %226 = arith.addf %223, %225 : vector<64x256xf32>
    %227 = vector.extract_strided_slice %226 {offsets = [0, 0], sizes = [32, 256], strides = [1, 1]} : vector<64x256xf32> to vector<32x256xf32>
    %cst_62 = arith.constant dense<0.000000e+00> : vector<32xf32>
    %228 = vector.multi_reduction <add>, %227, %cst_62 [1] : vector<32x256xf32> to vector<32xf32>
    %229 = vector.shape_cast %228 : vector<32xf32> to vector<32x1xf32>
    %230 = arith.mulf %227, %227 : vector<32x256xf32>
    %cst_63 = arith.constant dense<0.000000e+00> : vector<32xf32>
    %231 = vector.multi_reduction <add>, %230, %cst_63 [1] : vector<32x256xf32> to vector<32xf32>
    %232 = vector.shape_cast %231 : vector<32xf32> to vector<32x1xf32>
    %cst_64 = arith.constant dense<0.000000e+00> : vector<32x1xf32>
    %233 = tpu.matmul %1, %229, %cst_64 {dimension_numbers = #tpu.dot_dimension_numbers<[1], [0], [0], [1], [0, 0, 1, 1], [], []>} : vector<32x32xf32>, vector<32x1xf32>, vector<32x1xf32> -> vector<32x1xf32>
    %cst_65 = arith.constant dense<0.000000e+00> : vector<32x1xf32>
    %234 = tpu.matmul %1, %232, %cst_65 {dimension_numbers = #tpu.dot_dimension_numbers<[1], [0], [0], [1], [0, 0, 1, 1], [], []>} : vector<32x32xf32>, vector<32x1xf32>, vector<32x1xf32> -> vector<32x1xf32>
    %cst_66 = arith.constant 9.765625E-4 : f32
    %235 = vector.broadcast %cst_66 : f32 to vector<32x1xf32>
    %236 = arith.mulf %233, %235 : vector<32x1xf32>
    %cst_67 = arith.constant 9.765625E-4 : f32
    %237 = vector.broadcast %cst_67 : f32 to vector<32x1xf32>
    %238 = arith.mulf %234, %237 : vector<32x1xf32>
    %239 = arith.mulf %236, %236 : vector<32x1xf32>
    %240 = arith.subf %238, %239 : vector<32x1xf32>
    %cst_68 = arith.constant 0.000000e+00 : f32
    %241 = vector.broadcast %cst_68 : f32 to vector<32x1xf32>
    %242 = arith.maximumf %240, %241 : vector<32x1xf32>
    %cst_69 = arith.constant 9.99999974E-6 : f32
    %243 = vector.broadcast %cst_69 : f32 to vector<32x1xf32>
    %244 = arith.addf %242, %243 : vector<32x1xf32>
    %245 = math.rsqrt %244 : vector<32x1xf32>
    %c0_70 = arith.constant 0 : index
    %c0_71 = arith.constant 0 : index
    %246 = vector.load %arg14[%c0_70, %c0_71] : memref<32x1xf32, #tpu.memory_space<vmem>>, vector<32x1xf32>
    %247 = arith.mulf %245, %246 : vector<32x1xf32>
    %c0_72 = arith.constant 0 : index
    %c0_73 = arith.constant 0 : index
    %248 = vector.load %arg15[%c0_72, %c0_73] : memref<32x1xf32, #tpu.memory_space<vmem>>, vector<32x1xf32>
    %249 = arith.mulf %236, %247 : vector<32x1xf32>
    %250 = arith.subf %248, %249 : vector<32x1xf32>
    %251 = vector.broadcast %247 : vector<32x1xf32> to vector<32x256xf32>
    %252 = arith.mulf %227, %251 : vector<32x256xf32>
    %253 = vector.broadcast %250 : vector<32x1xf32> to vector<32x256xf32>
    %254 = arith.addf %252, %253 : vector<32x256xf32>
    %cst_74 = arith.constant 0.000000e+00 : f32
    %255 = vector.broadcast %cst_74 : f32 to vector<32x256xf32>
    %256 = arith.maximumf %254, %255 : vector<32x256xf32>
    %257 = vector.extract_strided_slice %226 {offsets = [32, 0], sizes = [32, 256], strides = [1, 1]} : vector<64x256xf32> to vector<32x256xf32>
    %cst_75 = arith.constant dense<0.000000e+00> : vector<32xf32>
    %258 = vector.multi_reduction <add>, %257, %cst_75 [1] : vector<32x256xf32> to vector<32xf32>
    %259 = vector.shape_cast %258 : vector<32xf32> to vector<32x1xf32>
    %260 = arith.mulf %257, %257 : vector<32x256xf32>
    %cst_76 = arith.constant dense<0.000000e+00> : vector<32xf32>
    %261 = vector.multi_reduction <add>, %260, %cst_76 [1] : vector<32x256xf32> to vector<32xf32>
    %262 = vector.shape_cast %261 : vector<32xf32> to vector<32x1xf32>
    %cst_77 = arith.constant dense<0.000000e+00> : vector<32x1xf32>
    %263 = tpu.matmul %1, %259, %cst_77 {dimension_numbers = #tpu.dot_dimension_numbers<[1], [0], [0], [1], [0, 0, 1, 1], [], []>} : vector<32x32xf32>, vector<32x1xf32>, vector<32x1xf32> -> vector<32x1xf32>
    %cst_78 = arith.constant dense<0.000000e+00> : vector<32x1xf32>
    %264 = tpu.matmul %1, %262, %cst_78 {dimension_numbers = #tpu.dot_dimension_numbers<[1], [0], [0], [1], [0, 0, 1, 1], [], []>} : vector<32x32xf32>, vector<32x1xf32>, vector<32x1xf32> -> vector<32x1xf32>
    %cst_79 = arith.constant 9.765625E-4 : f32
    %265 = vector.broadcast %cst_79 : f32 to vector<32x1xf32>
    %266 = arith.mulf %263, %265 : vector<32x1xf32>
    %cst_80 = arith.constant 9.765625E-4 : f32
    %267 = vector.broadcast %cst_80 : f32 to vector<32x1xf32>
    %268 = arith.mulf %264, %267 : vector<32x1xf32>
    %269 = arith.mulf %266, %266 : vector<32x1xf32>
    %270 = arith.subf %268, %269 : vector<32x1xf32>
    %cst_81 = arith.constant 0.000000e+00 : f32
    %271 = vector.broadcast %cst_81 : f32 to vector<32x1xf32>
    %272 = arith.maximumf %270, %271 : vector<32x1xf32>
    %cst_82 = arith.constant 9.99999974E-6 : f32
    %273 = vector.broadcast %cst_82 : f32 to vector<32x1xf32>
    %274 = arith.addf %272, %273 : vector<32x1xf32>
    %275 = math.rsqrt %274 : vector<32x1xf32>
    %c0_83 = arith.constant 0 : index
    %c0_84 = arith.constant 0 : index
    %276 = vector.load %arg16[%c0_83, %c0_84] : memref<32x1xf32, #tpu.memory_space<vmem>>, vector<32x1xf32>
    %277 = arith.mulf %275, %276 : vector<32x1xf32>
    %c0_85 = arith.constant 0 : index
    %c0_86 = arith.constant 0 : index
    %278 = vector.load %arg17[%c0_85, %c0_86] : memref<32x1xf32, #tpu.memory_space<vmem>>, vector<32x1xf32>
    %279 = arith.mulf %266, %277 : vector<32x1xf32>
    %280 = arith.subf %278, %279 : vector<32x1xf32>
    %281 = vector.broadcast %277 : vector<32x1xf32> to vector<32x256xf32>
    %282 = arith.mulf %257, %281 : vector<32x256xf32>
    %283 = vector.broadcast %280 : vector<32x1xf32> to vector<32x256xf32>
    %284 = arith.addf %282, %283 : vector<32x256xf32>
    %cst_87 = arith.constant 0.000000e+00 : f32
    %285 = vector.broadcast %cst_87 : f32 to vector<32x256xf32>
    %286 = arith.maximumf %284, %285 : vector<32x256xf32>
    %287 = vector.extract_strided_slice %0 {offsets = [0, 0], sizes = [1, 256], strides = [1, 1]} : vector<9x256xbf16> to vector<1x256xbf16>
    %c17_i32_88 = arith.constant 17 : i32
    %288 = tpu.dynamic_rotate %256 by %c17_i32_88 dim 1 : vector<32x256xf32>, i32 -> vector<32x256xf32>
    %289 = arith.extf %287 : vector<1x256xbf16> to vector<1x256xf32>
    %290 = vector.broadcast %289 : vector<1x256xf32> to vector<32x256xf32>
    %291 = arith.mulf %288, %290 : vector<32x256xf32>
    %292 = arith.truncf %291 : vector<32x256xf32> to vector<32x256xbf16>
    %293 = vector.extract_strided_slice %0 {offsets = [1, 0], sizes = [1, 256], strides = [1, 1]} : vector<9x256xbf16> to vector<1x256xbf16>
    %c16_i32_89 = arith.constant 16 : i32
    %294 = tpu.dynamic_rotate %256 by %c16_i32_89 dim 1 : vector<32x256xf32>, i32 -> vector<32x256xf32>
    %295 = arith.extf %293 : vector<1x256xbf16> to vector<1x256xf32>
    %296 = vector.broadcast %295 : vector<1x256xf32> to vector<32x256xf32>
    %297 = arith.mulf %294, %296 : vector<32x256xf32>
    %298 = arith.truncf %297 : vector<32x256xf32> to vector<32x256xbf16>
    %299 = vector.extract_strided_slice %0 {offsets = [2, 0], sizes = [1, 256], strides = [1, 1]} : vector<9x256xbf16> to vector<1x256xbf16>
    %c15_i32_90 = arith.constant 15 : i32
    %300 = tpu.dynamic_rotate %256 by %c15_i32_90 dim 1 : vector<32x256xf32>, i32 -> vector<32x256xf32>
    %301 = arith.extf %299 : vector<1x256xbf16> to vector<1x256xf32>
    %302 = vector.broadcast %301 : vector<1x256xf32> to vector<32x256xf32>
    %303 = arith.mulf %300, %302 : vector<32x256xf32>
    %304 = arith.truncf %303 : vector<32x256xf32> to vector<32x256xbf16>
    %305 = vector.extract_strided_slice %0 {offsets = [3, 0], sizes = [1, 256], strides = [1, 1]} : vector<9x256xbf16> to vector<1x256xbf16>
    %c1_i32_91 = arith.constant 1 : i32
    %306 = tpu.dynamic_rotate %256 by %c1_i32_91 dim 1 : vector<32x256xf32>, i32 -> vector<32x256xf32>
    %307 = arith.extf %305 : vector<1x256xbf16> to vector<1x256xf32>
    %308 = vector.broadcast %307 : vector<1x256xf32> to vector<32x256xf32>
    %309 = arith.mulf %306, %308 : vector<32x256xf32>
    %310 = arith.truncf %309 : vector<32x256xf32> to vector<32x256xbf16>
    %311 = arith.truncf %256 : vector<32x256xf32> to vector<32x256xbf16>
    %312 = vector.extract_strided_slice %0 {offsets = [5, 0], sizes = [1, 256], strides = [1, 1]} : vector<9x256xbf16> to vector<1x256xbf16>
    %c255_i32_92 = arith.constant 255 : i32
    %313 = tpu.dynamic_rotate %256 by %c255_i32_92 dim 1 : vector<32x256xf32>, i32 -> vector<32x256xf32>
    %314 = arith.extf %312 : vector<1x256xbf16> to vector<1x256xf32>
    %315 = vector.broadcast %314 : vector<1x256xf32> to vector<32x256xf32>
    %316 = arith.mulf %313, %315 : vector<32x256xf32>
    %317 = arith.truncf %316 : vector<32x256xf32> to vector<32x256xbf16>
    %318 = vector.extract_strided_slice %0 {offsets = [6, 0], sizes = [1, 256], strides = [1, 1]} : vector<9x256xbf16> to vector<1x256xbf16>
    %c241_i32_93 = arith.constant 241 : i32
    %319 = tpu.dynamic_rotate %256 by %c241_i32_93 dim 1 : vector<32x256xf32>, i32 -> vector<32x256xf32>
    %320 = arith.extf %318 : vector<1x256xbf16> to vector<1x256xf32>
    %321 = vector.broadcast %320 : vector<1x256xf32> to vector<32x256xf32>
    %322 = arith.mulf %319, %321 : vector<32x256xf32>
    %323 = arith.truncf %322 : vector<32x256xf32> to vector<32x256xbf16>
    %324 = vector.extract_strided_slice %0 {offsets = [7, 0], sizes = [1, 256], strides = [1, 1]} : vector<9x256xbf16> to vector<1x256xbf16>
    %c240_i32_94 = arith.constant 240 : i32
    %325 = tpu.dynamic_rotate %256 by %c240_i32_94 dim 1 : vector<32x256xf32>, i32 -> vector<32x256xf32>
    %326 = arith.extf %324 : vector<1x256xbf16> to vector<1x256xf32>
    %327 = vector.broadcast %326 : vector<1x256xf32> to vector<32x256xf32>
    %328 = arith.mulf %325, %327 : vector<32x256xf32>
    %329 = arith.truncf %328 : vector<32x256xf32> to vector<32x256xbf16>
    %330 = vector.extract_strided_slice %0 {offsets = [8, 0], sizes = [1, 256], strides = [1, 1]} : vector<9x256xbf16> to vector<1x256xbf16>
    %c239_i32_95 = arith.constant 239 : i32
    %331 = tpu.dynamic_rotate %256 by %c239_i32_95 dim 1 : vector<32x256xf32>, i32 -> vector<32x256xf32>
    %332 = arith.extf %330 : vector<1x256xbf16> to vector<1x256xf32>
    %333 = vector.broadcast %332 : vector<1x256xf32> to vector<32x256xf32>
    %334 = arith.mulf %331, %333 : vector<32x256xf32>
    %335 = arith.truncf %334 : vector<32x256xf32> to vector<32x256xbf16>
    %336 = tpu.concatenate %292, %298, %304, %310, %311, %317, %323, %329, %335 in 0 : vector<32x256xbf16>, vector<32x256xbf16>, vector<32x256xbf16>, vector<32x256xbf16>, vector<32x256xbf16>, vector<32x256xbf16>, vector<32x256xbf16>, vector<32x256xbf16>, vector<32x256xbf16> -> vector<288x256xbf16>
    %c0_96 = arith.constant 0 : index
    %c0_97 = arith.constant 0 : index
    %337 = vector.load %arg18[%c0_96, %c0_97] : memref<32x288xbf16, #tpu.memory_space<vmem>>, vector<32x288xbf16>
    %cst_98 = arith.constant dense<0.000000e+00> : vector<32x256xf32>
    %338 = tpu.matmul %337, %336, %cst_98 {dimension_numbers = #tpu.dot_dimension_numbers<[1], [0], [0], [1], [0, 0, 1, 1], [], []>} : vector<32x288xbf16>, vector<288x256xbf16>, vector<32x256xf32> -> vector<32x256xf32>
    %c0_99 = arith.constant 0 : index
    %c0_100 = arith.constant 0 : index
    %339 = vector.load %arg19[%c0_99, %c0_100] : memref<32x1xf32, #tpu.memory_space<vmem>>, vector<32x1xf32>
    %340 = vector.broadcast %339 : vector<32x1xf32> to vector<32x256xf32>
    %341 = arith.addf %338, %340 : vector<32x256xf32>
    %cst_101 = arith.constant dense<0.000000e+00> : vector<32xf32>
    %342 = vector.multi_reduction <add>, %341, %cst_101 [1] : vector<32x256xf32> to vector<32xf32>
    %343 = vector.shape_cast %342 : vector<32xf32> to vector<32x1xf32>
    %344 = arith.mulf %341, %341 : vector<32x256xf32>
    %cst_102 = arith.constant dense<0.000000e+00> : vector<32xf32>
    %345 = vector.multi_reduction <add>, %344, %cst_102 [1] : vector<32x256xf32> to vector<32xf32>
    %346 = vector.shape_cast %345 : vector<32xf32> to vector<32x1xf32>
    %cst_103 = arith.constant dense<0.000000e+00> : vector<32x1xf32>
    %347 = tpu.matmul %1, %343, %cst_103 {dimension_numbers = #tpu.dot_dimension_numbers<[1], [0], [0], [1], [0, 0, 1, 1], [], []>} : vector<32x32xf32>, vector<32x1xf32>, vector<32x1xf32> -> vector<32x1xf32>
    %cst_104 = arith.constant dense<0.000000e+00> : vector<32x1xf32>
    %348 = tpu.matmul %1, %346, %cst_104 {dimension_numbers = #tpu.dot_dimension_numbers<[1], [0], [0], [1], [0, 0, 1, 1], [], []>} : vector<32x32xf32>, vector<32x1xf32>, vector<32x1xf32> -> vector<32x1xf32>
    %cst_105 = arith.constant 9.765625E-4 : f32
    %349 = vector.broadcast %cst_105 : f32 to vector<32x1xf32>
    %350 = arith.mulf %347, %349 : vector<32x1xf32>
    %cst_106 = arith.constant 9.765625E-4 : f32
    %351 = vector.broadcast %cst_106 : f32 to vector<32x1xf32>
    %352 = arith.mulf %348, %351 : vector<32x1xf32>
    %353 = arith.mulf %350, %350 : vector<32x1xf32>
    %354 = arith.subf %352, %353 : vector<32x1xf32>
    %cst_107 = arith.constant 0.000000e+00 : f32
    %355 = vector.broadcast %cst_107 : f32 to vector<32x1xf32>
    %356 = arith.maximumf %354, %355 : vector<32x1xf32>
    %cst_108 = arith.constant 9.99999974E-6 : f32
    %357 = vector.broadcast %cst_108 : f32 to vector<32x1xf32>
    %358 = arith.addf %356, %357 : vector<32x1xf32>
    %359 = math.rsqrt %358 : vector<32x1xf32>
    %c0_109 = arith.constant 0 : index
    %c0_110 = arith.constant 0 : index
    %360 = vector.load %arg20[%c0_109, %c0_110] : memref<32x1xf32, #tpu.memory_space<vmem>>, vector<32x1xf32>
    %361 = arith.mulf %359, %360 : vector<32x1xf32>
    %c0_111 = arith.constant 0 : index
    %c0_112 = arith.constant 0 : index
    %362 = vector.load %arg21[%c0_111, %c0_112] : memref<32x1xf32, #tpu.memory_space<vmem>>, vector<32x1xf32>
    %363 = arith.mulf %350, %361 : vector<32x1xf32>
    %364 = arith.subf %362, %363 : vector<32x1xf32>
    %365 = vector.broadcast %361 : vector<32x1xf32> to vector<32x256xf32>
    %366 = arith.mulf %341, %365 : vector<32x256xf32>
    %367 = vector.broadcast %364 : vector<32x1xf32> to vector<32x256xf32>
    %368 = arith.addf %366, %367 : vector<32x256xf32>
    %cst_113 = arith.constant 0.000000e+00 : f32
    %369 = vector.broadcast %cst_113 : f32 to vector<32x256xf32>
    %370 = arith.maximumf %368, %369 : vector<32x256xf32>
    %371 = vector.extract_strided_slice %0 {offsets = [0, 0], sizes = [1, 256], strides = [1, 1]} : vector<9x256xbf16> to vector<1x256xbf16>
    %c17_i32_114 = arith.constant 17 : i32
    %372 = tpu.dynamic_rotate %370 by %c17_i32_114 dim 1 : vector<32x256xf32>, i32 -> vector<32x256xf32>
    %373 = arith.extf %371 : vector<1x256xbf16> to vector<1x256xf32>
    %374 = vector.broadcast %373 : vector<1x256xf32> to vector<32x256xf32>
    %375 = arith.mulf %372, %374 : vector<32x256xf32>
    %376 = arith.truncf %375 : vector<32x256xf32> to vector<32x256xbf16>
    %377 = vector.extract_strided_slice %0 {offsets = [1, 0], sizes = [1, 256], strides = [1, 1]} : vector<9x256xbf16> to vector<1x256xbf16>
    %c16_i32_115 = arith.constant 16 : i32
    %378 = tpu.dynamic_rotate %370 by %c16_i32_115 dim 1 : vector<32x256xf32>, i32 -> vector<32x256xf32>
    %379 = arith.extf %377 : vector<1x256xbf16> to vector<1x256xf32>
    %380 = vector.broadcast %379 : vector<1x256xf32> to vector<32x256xf32>
    %381 = arith.mulf %378, %380 : vector<32x256xf32>
    %382 = arith.truncf %381 : vector<32x256xf32> to vector<32x256xbf16>
    %383 = vector.extract_strided_slice %0 {offsets = [2, 0], sizes = [1, 256], strides = [1, 1]} : vector<9x256xbf16> to vector<1x256xbf16>
    %c15_i32_116 = arith.constant 15 : i32
    %384 = tpu.dynamic_rotate %370 by %c15_i32_116 dim 1 : vector<32x256xf32>, i32 -> vector<32x256xf32>
    %385 = arith.extf %383 : vector<1x256xbf16> to vector<1x256xf32>
    %386 = vector.broadcast %385 : vector<1x256xf32> to vector<32x256xf32>
    %387 = arith.mulf %384, %386 : vector<32x256xf32>
    %388 = arith.truncf %387 : vector<32x256xf32> to vector<32x256xbf16>
    %389 = vector.extract_strided_slice %0 {offsets = [3, 0], sizes = [1, 256], strides = [1, 1]} : vector<9x256xbf16> to vector<1x256xbf16>
    %c1_i32_117 = arith.constant 1 : i32
    %390 = tpu.dynamic_rotate %370 by %c1_i32_117 dim 1 : vector<32x256xf32>, i32 -> vector<32x256xf32>
    %391 = arith.extf %389 : vector<1x256xbf16> to vector<1x256xf32>
    %392 = vector.broadcast %391 : vector<1x256xf32> to vector<32x256xf32>
    %393 = arith.mulf %390, %392 : vector<32x256xf32>
    %394 = arith.truncf %393 : vector<32x256xf32> to vector<32x256xbf16>
    %395 = arith.truncf %370 : vector<32x256xf32> to vector<32x256xbf16>
    %396 = vector.extract_strided_slice %0 {offsets = [5, 0], sizes = [1, 256], strides = [1, 1]} : vector<9x256xbf16> to vector<1x256xbf16>
    %c255_i32_118 = arith.constant 255 : i32
    %397 = tpu.dynamic_rotate %370 by %c255_i32_118 dim 1 : vector<32x256xf32>, i32 -> vector<32x256xf32>
    %398 = arith.extf %396 : vector<1x256xbf16> to vector<1x256xf32>
    %399 = vector.broadcast %398 : vector<1x256xf32> to vector<32x256xf32>
    %400 = arith.mulf %397, %399 : vector<32x256xf32>
    %401 = arith.truncf %400 : vector<32x256xf32> to vector<32x256xbf16>
    %402 = vector.extract_strided_slice %0 {offsets = [6, 0], sizes = [1, 256], strides = [1, 1]} : vector<9x256xbf16> to vector<1x256xbf16>
    %c241_i32_119 = arith.constant 241 : i32
    %403 = tpu.dynamic_rotate %370 by %c241_i32_119 dim 1 : vector<32x256xf32>, i32 -> vector<32x256xf32>
    %404 = arith.extf %402 : vector<1x256xbf16> to vector<1x256xf32>
    %405 = vector.broadcast %404 : vector<1x256xf32> to vector<32x256xf32>
    %406 = arith.mulf %403, %405 : vector<32x256xf32>
    %407 = arith.truncf %406 : vector<32x256xf32> to vector<32x256xbf16>
    %408 = vector.extract_strided_slice %0 {offsets = [7, 0], sizes = [1, 256], strides = [1, 1]} : vector<9x256xbf16> to vector<1x256xbf16>
    %c240_i32_120 = arith.constant 240 : i32
    %409 = tpu.dynamic_rotate %370 by %c240_i32_120 dim 1 : vector<32x256xf32>, i32 -> vector<32x256xf32>
    %410 = arith.extf %408 : vector<1x256xbf16> to vector<1x256xf32>
    %411 = vector.broadcast %410 : vector<1x256xf32> to vector<32x256xf32>
    %412 = arith.mulf %409, %411 : vector<32x256xf32>
    %413 = arith.truncf %412 : vector<32x256xf32> to vector<32x256xbf16>
    %414 = vector.extract_strided_slice %0 {offsets = [8, 0], sizes = [1, 256], strides = [1, 1]} : vector<9x256xbf16> to vector<1x256xbf16>
    %c239_i32_121 = arith.constant 239 : i32
    %415 = tpu.dynamic_rotate %370 by %c239_i32_121 dim 1 : vector<32x256xf32>, i32 -> vector<32x256xf32>
    %416 = arith.extf %414 : vector<1x256xbf16> to vector<1x256xf32>
    %417 = vector.broadcast %416 : vector<1x256xf32> to vector<32x256xf32>
    %418 = arith.mulf %415, %417 : vector<32x256xf32>
    %419 = arith.truncf %418 : vector<32x256xf32> to vector<32x256xbf16>
    %420 = tpu.concatenate %376, %382, %388, %394, %395, %401, %407, %413, %419 in 0 : vector<32x256xbf16>, vector<32x256xbf16>, vector<32x256xbf16>, vector<32x256xbf16>, vector<32x256xbf16>, vector<32x256xbf16>, vector<32x256xbf16>, vector<32x256xbf16>, vector<32x256xbf16> -> vector<288x256xbf16>
    %c0_122 = arith.constant 0 : index
    %c0_123 = arith.constant 0 : index
    %421 = vector.load %arg22[%c0_122, %c0_123] : memref<21x288xbf16, #tpu.memory_space<vmem>>, vector<21x288xbf16>
    %cst_124 = arith.constant dense<0.000000e+00> : vector<21x256xf32>
    %422 = tpu.matmul %421, %420, %cst_124 {dimension_numbers = #tpu.dot_dimension_numbers<[1], [0], [0], [1], [0, 0, 1, 1], [], []>} : vector<21x288xbf16>, vector<288x256xbf16>, vector<21x256xf32> -> vector<21x256xf32>
    %c0_125 = arith.constant 0 : index
    %c0_126 = arith.constant 0 : index
    %423 = vector.load %arg23[%c0_125, %c0_126] : memref<21x1xf32, #tpu.memory_space<vmem>>, vector<21x1xf32>
    %424 = vector.broadcast %423 : vector<21x1xf32> to vector<21x256xf32>
    %425 = arith.addf %422, %424 : vector<21x256xf32>
    %c0_127 = arith.constant 0 : index
    %c0_128 = arith.constant 0 : index
    %c0_129 = arith.constant 0 : index
    %426 = vector.load %arg30[%c0_127, %c0_128, %c0_129] : memref<1x21x256xf32, #tpu.memory_space<vmem>>, vector<1x21x256xf32>
    %427 = vector.shape_cast %426 : vector<1x21x256xf32> to vector<21x256xf32>
    %428 = vector.shape_cast %425 : vector<21x256xf32> to vector<1x21x256xf32>
    tpu.vector_store %arg30[%c0_127, %c0_128, %c0_129], %428 {strides = array<i32>} : memref<1x21x256xf32, #tpu.memory_space<vmem>>, vector<1x21x256xf32>,
    %429 = vector.extract_strided_slice %0 {offsets = [0, 0], sizes = [1, 256], strides = [1, 1]} : vector<9x256xbf16> to vector<1x256xbf16>
    %c17_i32_130 = arith.constant 17 : i32
    %430 = tpu.dynamic_rotate %286 by %c17_i32_130 dim 1 : vector<32x256xf32>, i32 -> vector<32x256xf32>
    %431 = arith.extf %429 : vector<1x256xbf16> to vector<1x256xf32>
    %432 = vector.broadcast %431 : vector<1x256xf32> to vector<32x256xf32>
    %433 = arith.mulf %430, %432 : vector<32x256xf32>
    %434 = arith.truncf %433 : vector<32x256xf32> to vector<32x256xbf16>
    %435 = vector.extract_strided_slice %0 {offsets = [1, 0], sizes = [1, 256], strides = [1, 1]} : vector<9x256xbf16> to vector<1x256xbf16>
    %c16_i32_131 = arith.constant 16 : i32
    %436 = tpu.dynamic_rotate %286 by %c16_i32_131 dim 1 : vector<32x256xf32>, i32 -> vector<32x256xf32>
    %437 = arith.extf %435 : vector<1x256xbf16> to vector<1x256xf32>
    %438 = vector.broadcast %437 : vector<1x256xf32> to vector<32x256xf32>
    %439 = arith.mulf %436, %438 : vector<32x256xf32>
    %440 = arith.truncf %439 : vector<32x256xf32> to vector<32x256xbf16>
    %441 = vector.extract_strided_slice %0 {offsets = [2, 0], sizes = [1, 256], strides = [1, 1]} : vector<9x256xbf16> to vector<1x256xbf16>
    %c15_i32_132 = arith.constant 15 : i32
    %442 = tpu.dynamic_rotate %286 by %c15_i32_132 dim 1 : vector<32x256xf32>, i32 -> vector<32x256xf32>
    %443 = arith.extf %441 : vector<1x256xbf16> to vector<1x256xf32>
    %444 = vector.broadcast %443 : vector<1x256xf32> to vector<32x256xf32>
    %445 = arith.mulf %442, %444 : vector<32x256xf32>
    %446 = arith.truncf %445 : vector<32x256xf32> to vector<32x256xbf16>
    %447 = vector.extract_strided_slice %0 {offsets = [3, 0], sizes = [1, 256], strides = [1, 1]} : vector<9x256xbf16> to vector<1x256xbf16>
    %c1_i32_133 = arith.constant 1 : i32
    %448 = tpu.dynamic_rotate %286 by %c1_i32_133 dim 1 : vector<32x256xf32>, i32 -> vector<32x256xf32>
    %449 = arith.extf %447 : vector<1x256xbf16> to vector<1x256xf32>
    %450 = vector.broadcast %449 : vector<1x256xf32> to vector<32x256xf32>
    %451 = arith.mulf %448, %450 : vector<32x256xf32>
    %452 = arith.truncf %451 : vector<32x256xf32> to vector<32x256xbf16>
    %453 = arith.truncf %286 : vector<32x256xf32> to vector<32x256xbf16>
    %454 = vector.extract_strided_slice %0 {offsets = [5, 0], sizes = [1, 256], strides = [1, 1]} : vector<9x256xbf16> to vector<1x256xbf16>
    %c255_i32_134 = arith.constant 255 : i32
    %455 = tpu.dynamic_rotate %286 by %c255_i32_134 dim 1 : vector<32x256xf32>, i32 -> vector<32x256xf32>
    %456 = arith.extf %454 : vector<1x256xbf16> to vector<1x256xf32>
    %457 = vector.broadcast %456 : vector<1x256xf32> to vector<32x256xf32>
    %458 = arith.mulf %455, %457 : vector<32x256xf32>
    %459 = arith.truncf %458 : vector<32x256xf32> to vector<32x256xbf16>
    %460 = vector.extract_strided_slice %0 {offsets = [6, 0], sizes = [1, 256], strides = [1, 1]} : vector<9x256xbf16> to vector<1x256xbf16>
    %c241_i32_135 = arith.constant 241 : i32
    %461 = tpu.dynamic_rotate %286 by %c241_i32_135 dim 1 : vector<32x256xf32>, i32 -> vector<32x256xf32>
    %462 = arith.extf %460 : vector<1x256xbf16> to vector<1x256xf32>
    %463 = vector.broadcast %462 : vector<1x256xf32> to vector<32x256xf32>
    %464 = arith.mulf %461, %463 : vector<32x256xf32>
    %465 = arith.truncf %464 : vector<32x256xf32> to vector<32x256xbf16>
    %466 = vector.extract_strided_slice %0 {offsets = [7, 0], sizes = [1, 256], strides = [1, 1]} : vector<9x256xbf16> to vector<1x256xbf16>
    %c240_i32_136 = arith.constant 240 : i32
    %467 = tpu.dynamic_rotate %286 by %c240_i32_136 dim 1 : vector<32x256xf32>, i32 -> vector<32x256xf32>
    %468 = arith.extf %466 : vector<1x256xbf16> to vector<1x256xf32>
    %469 = vector.broadcast %468 : vector<1x256xf32> to vector<32x256xf32>
    %470 = arith.mulf %467, %469 : vector<32x256xf32>
    %471 = arith.truncf %470 : vector<32x256xf32> to vector<32x256xbf16>
    %472 = vector.extract_strided_slice %0 {offsets = [8, 0], sizes = [1, 256], strides = [1, 1]} : vector<9x256xbf16> to vector<1x256xbf16>
    %c239_i32_137 = arith.constant 239 : i32
    %473 = tpu.dynamic_rotate %286 by %c239_i32_137 dim 1 : vector<32x256xf32>, i32 -> vector<32x256xf32>
    %474 = arith.extf %472 : vector<1x256xbf16> to vector<1x256xf32>
    %475 = vector.broadcast %474 : vector<1x256xf32> to vector<32x256xf32>
    %476 = arith.mulf %473, %475 : vector<32x256xf32>
    %477 = arith.truncf %476 : vector<32x256xf32> to vector<32x256xbf16>
    %478 = tpu.concatenate %434, %440, %446, %452, %453, %459, %465, %471, %477 in 0 : vector<32x256xbf16>, vector<32x256xbf16>, vector<32x256xbf16>, vector<32x256xbf16>, vector<32x256xbf16>, vector<32x256xbf16>, vector<32x256xbf16>, vector<32x256xbf16>, vector<32x256xbf16> -> vector<288x256xbf16>
    %c0_138 = arith.constant 0 : index
    %c0_139 = arith.constant 0 : index
    %479 = vector.load %arg24[%c0_138, %c0_139] : memref<32x288xbf16, #tpu.memory_space<vmem>>, vector<32x288xbf16>
    %cst_140 = arith.constant dense<0.000000e+00> : vector<32x256xf32>
    %480 = tpu.matmul %479, %478, %cst_140 {dimension_numbers = #tpu.dot_dimension_numbers<[1], [0], [0], [1], [0, 0, 1, 1], [], []>} : vector<32x288xbf16>, vector<288x256xbf16>, vector<32x256xf32> -> vector<32x256xf32>
    %c0_141 = arith.constant 0 : index
    %c0_142 = arith.constant 0 : index
    %481 = vector.load %arg25[%c0_141, %c0_142] : memref<32x1xf32, #tpu.memory_space<vmem>>, vector<32x1xf32>
    %482 = vector.broadcast %481 : vector<32x1xf32> to vector<32x256xf32>
    %483 = arith.addf %480, %482 : vector<32x256xf32>
    %cst_143 = arith.constant dense<0.000000e+00> : vector<32xf32>
    %484 = vector.multi_reduction <add>, %483, %cst_143 [1] : vector<32x256xf32> to vector<32xf32>
    %485 = vector.shape_cast %484 : vector<32xf32> to vector<32x1xf32>
    %486 = arith.mulf %483, %483 : vector<32x256xf32>
    %cst_144 = arith.constant dense<0.000000e+00> : vector<32xf32>
    %487 = vector.multi_reduction <add>, %486, %cst_144 [1] : vector<32x256xf32> to vector<32xf32>
    %488 = vector.shape_cast %487 : vector<32xf32> to vector<32x1xf32>
    %cst_145 = arith.constant dense<0.000000e+00> : vector<32x1xf32>
    %489 = tpu.matmul %1, %485, %cst_145 {dimension_numbers = #tpu.dot_dimension_numbers<[1], [0], [0], [1], [0, 0, 1, 1], [], []>} : vector<32x32xf32>, vector<32x1xf32>, vector<32x1xf32> -> vector<32x1xf32>
    %cst_146 = arith.constant dense<0.000000e+00> : vector<32x1xf32>
    %490 = tpu.matmul %1, %488, %cst_146 {dimension_numbers = #tpu.dot_dimension_numbers<[1], [0], [0], [1], [0, 0, 1, 1], [], []>} : vector<32x32xf32>, vector<32x1xf32>, vector<32x1xf32> -> vector<32x1xf32>
    %cst_147 = arith.constant 9.765625E-4 : f32
    %491 = vector.broadcast %cst_147 : f32 to vector<32x1xf32>
    %492 = arith.mulf %489, %491 : vector<32x1xf32>
    %cst_148 = arith.constant 9.765625E-4 : f32
    %493 = vector.broadcast %cst_148 : f32 to vector<32x1xf32>
    %494 = arith.mulf %490, %493 : vector<32x1xf32>
    %495 = arith.mulf %492, %492 : vector<32x1xf32>
    %496 = arith.subf %494, %495 : vector<32x1xf32>
    %cst_149 = arith.constant 0.000000e+00 : f32
    %497 = vector.broadcast %cst_149 : f32 to vector<32x1xf32>
    %498 = arith.maximumf %496, %497 : vector<32x1xf32>
    %cst_150 = arith.constant 9.99999974E-6 : f32
    %499 = vector.broadcast %cst_150 : f32 to vector<32x1xf32>
    %500 = arith.addf %498, %499 : vector<32x1xf32>
    %501 = math.rsqrt %500 : vector<32x1xf32>
    %c0_151 = arith.constant 0 : index
    %c0_152 = arith.constant 0 : index
    %502 = vector.load %arg26[%c0_151, %c0_152] : memref<32x1xf32, #tpu.memory_space<vmem>>, vector<32x1xf32>
    %503 = arith.mulf %501, %502 : vector<32x1xf32>
    %c0_153 = arith.constant 0 : index
    %c0_154 = arith.constant 0 : index
    %504 = vector.load %arg27[%c0_153, %c0_154] : memref<32x1xf32, #tpu.memory_space<vmem>>, vector<32x1xf32>
    %505 = arith.mulf %492, %503 : vector<32x1xf32>
    %506 = arith.subf %504, %505 : vector<32x1xf32>
    %507 = vector.broadcast %503 : vector<32x1xf32> to vector<32x256xf32>
    %508 = arith.mulf %483, %507 : vector<32x256xf32>
    %509 = vector.broadcast %506 : vector<32x1xf32> to vector<32x256xf32>
    %510 = arith.addf %508, %509 : vector<32x256xf32>
    %cst_155 = arith.constant 0.000000e+00 : f32
    %511 = vector.broadcast %cst_155 : f32 to vector<32x256xf32>
    %512 = arith.maximumf %510, %511 : vector<32x256xf32>
    %513 = vector.extract_strided_slice %0 {offsets = [0, 0], sizes = [1, 256], strides = [1, 1]} : vector<9x256xbf16> to vector<1x256xbf16>
    %c17_i32_156 = arith.constant 17 : i32
    %514 = tpu.dynamic_rotate %512 by %c17_i32_156 dim 1 : vector<32x256xf32>, i32 -> vector<32x256xf32>
    %515 = arith.extf %513 : vector<1x256xbf16> to vector<1x256xf32>
    %516 = vector.broadcast %515 : vector<1x256xf32> to vector<32x256xf32>
    %517 = arith.mulf %514, %516 : vector<32x256xf32>
    %518 = arith.truncf %517 : vector<32x256xf32> to vector<32x256xbf16>
    %519 = vector.extract_strided_slice %0 {offsets = [1, 0], sizes = [1, 256], strides = [1, 1]} : vector<9x256xbf16> to vector<1x256xbf16>
    %c16_i32_157 = arith.constant 16 : i32
    %520 = tpu.dynamic_rotate %512 by %c16_i32_157 dim 1 : vector<32x256xf32>, i32 -> vector<32x256xf32>
    %521 = arith.extf %519 : vector<1x256xbf16> to vector<1x256xf32>
    %522 = vector.broadcast %521 : vector<1x256xf32> to vector<32x256xf32>
    %523 = arith.mulf %520, %522 : vector<32x256xf32>
    %524 = arith.truncf %523 : vector<32x256xf32> to vector<32x256xbf16>
    %525 = vector.extract_strided_slice %0 {offsets = [2, 0], sizes = [1, 256], strides = [1, 1]} : vector<9x256xbf16> to vector<1x256xbf16>
    %c15_i32_158 = arith.constant 15 : i32
    %526 = tpu.dynamic_rotate %512 by %c15_i32_158 dim 1 : vector<32x256xf32>, i32 -> vector<32x256xf32>
    %527 = arith.extf %525 : vector<1x256xbf16> to vector<1x256xf32>
    %528 = vector.broadcast %527 : vector<1x256xf32> to vector<32x256xf32>
    %529 = arith.mulf %526, %528 : vector<32x256xf32>
    %530 = arith.truncf %529 : vector<32x256xf32> to vector<32x256xbf16>
    %531 = vector.extract_strided_slice %0 {offsets = [3, 0], sizes = [1, 256], strides = [1, 1]} : vector<9x256xbf16> to vector<1x256xbf16>
    %c1_i32_159 = arith.constant 1 : i32
    %532 = tpu.dynamic_rotate %512 by %c1_i32_159 dim 1 : vector<32x256xf32>, i32 -> vector<32x256xf32>
    %533 = arith.extf %531 : vector<1x256xbf16> to vector<1x256xf32>
    %534 = vector.broadcast %533 : vector<1x256xf32> to vector<32x256xf32>
    %535 = arith.mulf %532, %534 : vector<32x256xf32>
    %536 = arith.truncf %535 : vector<32x256xf32> to vector<32x256xbf16>
    %537 = arith.truncf %512 : vector<32x256xf32> to vector<32x256xbf16>
    %538 = vector.extract_strided_slice %0 {offsets = [5, 0], sizes = [1, 256], strides = [1, 1]} : vector<9x256xbf16> to vector<1x256xbf16>
    %c255_i32_160 = arith.constant 255 : i32
    %539 = tpu.dynamic_rotate %512 by %c255_i32_160 dim 1 : vector<32x256xf32>, i32 -> vector<32x256xf32>
    %540 = arith.extf %538 : vector<1x256xbf16> to vector<1x256xf32>
    %541 = vector.broadcast %540 : vector<1x256xf32> to vector<32x256xf32>
    %542 = arith.mulf %539, %541 : vector<32x256xf32>
    %543 = arith.truncf %542 : vector<32x256xf32> to vector<32x256xbf16>
    %544 = vector.extract_strided_slice %0 {offsets = [6, 0], sizes = [1, 256], strides = [1, 1]} : vector<9x256xbf16> to vector<1x256xbf16>
    %c241_i32_161 = arith.constant 241 : i32
    %545 = tpu.dynamic_rotate %512 by %c241_i32_161 dim 1 : vector<32x256xf32>, i32 -> vector<32x256xf32>
    %546 = arith.extf %544 : vector<1x256xbf16> to vector<1x256xf32>
    %547 = vector.broadcast %546 : vector<1x256xf32> to vector<32x256xf32>
    %548 = arith.mulf %545, %547 : vector<32x256xf32>
    %549 = arith.truncf %548 : vector<32x256xf32> to vector<32x256xbf16>
    %550 = vector.extract_strided_slice %0 {offsets = [7, 0], sizes = [1, 256], strides = [1, 1]} : vector<9x256xbf16> to vector<1x256xbf16>
    %c240_i32_162 = arith.constant 240 : i32
    %551 = tpu.dynamic_rotate %512 by %c240_i32_162 dim 1 : vector<32x256xf32>, i32 -> vector<32x256xf32>
    %552 = arith.extf %550 : vector<1x256xbf16> to vector<1x256xf32>
    %553 = vector.broadcast %552 : vector<1x256xf32> to vector<32x256xf32>
    %554 = arith.mulf %551, %553 : vector<32x256xf32>
    %555 = arith.truncf %554 : vector<32x256xf32> to vector<32x256xbf16>
    %556 = vector.extract_strided_slice %0 {offsets = [8, 0], sizes = [1, 256], strides = [1, 1]} : vector<9x256xbf16> to vector<1x256xbf16>
    %c239_i32_163 = arith.constant 239 : i32
    %557 = tpu.dynamic_rotate %512 by %c239_i32_163 dim 1 : vector<32x256xf32>, i32 -> vector<32x256xf32>
    %558 = arith.extf %556 : vector<1x256xbf16> to vector<1x256xf32>
    %559 = vector.broadcast %558 : vector<1x256xf32> to vector<32x256xf32>
    %560 = arith.mulf %557, %559 : vector<32x256xf32>
    %561 = arith.truncf %560 : vector<32x256xf32> to vector<32x256xbf16>
    %562 = tpu.concatenate %518, %524, %530, %536, %537, %543, %549, %555, %561 in 0 : vector<32x256xbf16>, vector<32x256xbf16>, vector<32x256xbf16>, vector<32x256xbf16>, vector<32x256xbf16>, vector<32x256xbf16>, vector<32x256xbf16>, vector<32x256xbf16>, vector<32x256xbf16> -> vector<288x256xbf16>
    %c0_164 = arith.constant 0 : index
    %c0_165 = arith.constant 0 : index
    %563 = vector.load %arg28[%c0_164, %c0_165] : memref<12x288xbf16, #tpu.memory_space<vmem>>, vector<12x288xbf16>
    %cst_166 = arith.constant dense<0.000000e+00> : vector<12x256xf32>
    %564 = tpu.matmul %563, %562, %cst_166 {dimension_numbers = #tpu.dot_dimension_numbers<[1], [0], [0], [1], [0, 0, 1, 1], [], []>} : vector<12x288xbf16>, vector<288x256xbf16>, vector<12x256xf32> -> vector<12x256xf32>
    %c0_167 = arith.constant 0 : index
    %c0_168 = arith.constant 0 : index
    %565 = vector.load %arg29[%c0_167, %c0_168] : memref<12x1xf32, #tpu.memory_space<vmem>>, vector<12x1xf32>
    %566 = vector.broadcast %565 : vector<12x1xf32> to vector<12x256xf32>
    %567 = arith.addf %564, %566 : vector<12x256xf32>
    %c0_169 = arith.constant 0 : index
    %c0_170 = arith.constant 0 : index
    %c0_171 = arith.constant 0 : index
    %568 = vector.load %arg31[%c0_169, %c0_170, %c0_171] : memref<1x12x256xf32, #tpu.memory_space<vmem>>, vector<1x12x256xf32>
    %569 = vector.shape_cast %568 : vector<1x12x256xf32> to vector<12x256xf32>
    %570 = vector.shape_cast %567 : vector<12x256xf32> to vector<1x12x256xf32>
    tpu.vector_store %arg31[%c0_169, %c0_170, %c0_171], %570 {strides = array<i32>} : memref<1x12x256xf32, #tpu.memory_space<vmem>>, vector<1x12x256xf32>,
    return
  }
  func.func @transform_0(%arg0: i32) -> (i32, i32, i32) {
    %c0_i32 = arith.constant 0 : i32
    %c0_i32_0 = arith.constant 0 : i32
    %c0_i32_1 = arith.constant 0 : i32
    return %arg0, %c0_i32, %c0_i32_0 : i32, i32, i32
  }
  func.func @transform_1(%arg0: i32) -> (i32, i32) {
    %c0_i32 = arith.constant 0 : i32
    %c0_i32_0 = arith.constant 0 : i32
    %c0_i32_1 = arith.constant 0 : i32
    return %c0_i32, %c0_i32_0 : i32, i32
  }
  func.func @transform_2(%arg0: i32) -> (i32, i32) {
    %c0_i32 = arith.constant 0 : i32
    %c0_i32_0 = arith.constant 0 : i32
    %c0_i32_1 = arith.constant 0 : i32
    return %c0_i32, %c0_i32_0 : i32, i32
  }
  func.func @transform_3(%arg0: i32) -> (i32, i32) {
    %c0_i32 = arith.constant 0 : i32
    %c0_i32_0 = arith.constant 0 : i32
    %c0_i32_1 = arith.constant 0 : i32
    return %c0_i32, %c0_i32_0 : i32, i32
  }
  func.func @transform_4(%arg0: i32) -> (i32, i32) {
    %c0_i32 = arith.constant 0 : i32
    %c0_i32_0 = arith.constant 0 : i32
    %c0_i32_1 = arith.constant 0 : i32
    return %c0_i32, %c0_i32_0 : i32, i32
  }
  func.func @transform_5(%arg0: i32) -> (i32, i32) {
    %c0_i32 = arith.constant 0 : i32
    %c0_i32_0 = arith.constant 0 : i32
    %c0_i32_1 = arith.constant 0 : i32
    return %c0_i32, %c0_i32_0 : i32, i32
  }
  func.func @transform_6(%arg0: i32) -> (i32, i32) {
    %c0_i32 = arith.constant 0 : i32
    %c0_i32_0 = arith.constant 0 : i32
    %c0_i32_1 = arith.constant 0 : i32
    return %c0_i32, %c0_i32_0 : i32, i32
  }
  func.func @transform_7(%arg0: i32) -> (i32, i32) {
    %c0_i32 = arith.constant 0 : i32
    %c0_i32_0 = arith.constant 0 : i32
    %c0_i32_1 = arith.constant 0 : i32
    return %c0_i32, %c0_i32_0 : i32, i32
  }
  func.func @transform_8(%arg0: i32) -> (i32, i32) {
    %c0_i32 = arith.constant 0 : i32
    %c0_i32_0 = arith.constant 0 : i32
    %c0_i32_1 = arith.constant 0 : i32
    return %c0_i32, %c0_i32_0 : i32, i32
  }
  func.func @transform_9(%arg0: i32) -> (i32, i32) {
    %c0_i32 = arith.constant 0 : i32
    %c0_i32_0 = arith.constant 0 : i32
    %c0_i32_1 = arith.constant 0 : i32
    return %c0_i32, %c0_i32_0 : i32, i32
  }
  func.func @transform_10(%arg0: i32) -> (i32, i32) {
    %c0_i32 = arith.constant 0 : i32
    %c0_i32_0 = arith.constant 0 : i32
    %c0_i32_1 = arith.constant 0 : i32
    return %c0_i32, %c0_i32_0 : i32, i32
  }
  func.func @transform_11(%arg0: i32) -> (i32, i32) {
    %c0_i32 = arith.constant 0 : i32
    %c0_i32_0 = arith.constant 0 : i32
    %c0_i32_1 = arith.constant 0 : i32
    return %c0_i32, %c0_i32_0 : i32, i32
  }
  func.func @transform_12(%arg0: i32) -> (i32, i32) {
    %c0_i32 = arith.constant 0 : i32
    %c0_i32_0 = arith.constant 0 : i32
    %c0_i32_1 = arith.constant 0 : i32
    return %c0_i32, %c0_i32_0 : i32, i32
  }
  func.func @transform_13(%arg0: i32) -> (i32, i32) {
    %c0_i32 = arith.constant 0 : i32
    %c0_i32_0 = arith.constant 0 : i32
    %c0_i32_1 = arith.constant 0 : i32
    return %c0_i32, %c0_i32_0 : i32, i32
  }
  func.func @transform_14(%arg0: i32) -> (i32, i32) {
    %c0_i32 = arith.constant 0 : i32
    %c0_i32_0 = arith.constant 0 : i32
    %c0_i32_1 = arith.constant 0 : i32
    return %c0_i32, %c0_i32_0 : i32, i32
  }
  func.func @transform_15(%arg0: i32) -> (i32, i32) {
    %c0_i32 = arith.constant 0 : i32
    %c0_i32_0 = arith.constant 0 : i32
    %c0_i32_1 = arith.constant 0 : i32
    return %c0_i32, %c0_i32_0 : i32, i32
  }
  func.func @transform_16(%arg0: i32) -> (i32, i32) {
    %c0_i32 = arith.constant 0 : i32
    %c0_i32_0 = arith.constant 0 : i32
    %c0_i32_1 = arith.constant 0 : i32
    return %c0_i32, %c0_i32_0 : i32, i32
  }
  func.func @transform_17(%arg0: i32) -> (i32, i32) {
    %c0_i32 = arith.constant 0 : i32
    %c0_i32_0 = arith.constant 0 : i32
    %c0_i32_1 = arith.constant 0 : i32
    return %c0_i32, %c0_i32_0 : i32, i32
  }
  func.func @transform_18(%arg0: i32) -> (i32, i32) {
    %c0_i32 = arith.constant 0 : i32
    %c0_i32_0 = arith.constant 0 : i32
    %c0_i32_1 = arith.constant 0 : i32
    return %c0_i32, %c0_i32_0 : i32, i32
  }
  func.func @transform_19(%arg0: i32) -> (i32, i32) {
    %c0_i32 = arith.constant 0 : i32
    %c0_i32_0 = arith.constant 0 : i32
    %c0_i32_1 = arith.constant 0 : i32
    return %c0_i32, %c0_i32_0 : i32, i32
  }
  func.func @transform_20(%arg0: i32) -> (i32, i32) {
    %c0_i32 = arith.constant 0 : i32
    %c0_i32_0 = arith.constant 0 : i32
    %c0_i32_1 = arith.constant 0 : i32
    return %c0_i32, %c0_i32_0 : i32, i32
  }
  func.func @transform_21(%arg0: i32) -> (i32, i32) {
    %c0_i32 = arith.constant 0 : i32
    %c0_i32_0 = arith.constant 0 : i32
    %c0_i32_1 = arith.constant 0 : i32
    return %c0_i32, %c0_i32_0 : i32, i32
  }
  func.func @transform_22(%arg0: i32) -> (i32, i32) {
    %c0_i32 = arith.constant 0 : i32
    %c0_i32_0 = arith.constant 0 : i32
    %c0_i32_1 = arith.constant 0 : i32
    return %c0_i32, %c0_i32_0 : i32, i32
  }
  func.func @transform_23(%arg0: i32) -> (i32, i32) {
    %c0_i32 = arith.constant 0 : i32
    %c0_i32_0 = arith.constant 0 : i32
    %c0_i32_1 = arith.constant 0 : i32
    return %c0_i32, %c0_i32_0 : i32, i32
  }
  func.func @transform_24(%arg0: i32) -> (i32, i32) {
    %c0_i32 = arith.constant 0 : i32
    %c0_i32_0 = arith.constant 0 : i32
    %c0_i32_1 = arith.constant 0 : i32
    return %c0_i32, %c0_i32_0 : i32, i32
  }
  func.func @transform_25(%arg0: i32) -> (i32, i32) {
    %c0_i32 = arith.constant 0 : i32
    %c0_i32_0 = arith.constant 0 : i32
    %c0_i32_1 = arith.constant 0 : i32
    return %c0_i32, %c0_i32_0 : i32, i32
  }
  func.func @transform_26(%arg0: i32) -> (i32, i32) {
    %c0_i32 = arith.constant 0 : i32
    %c0_i32_0 = arith.constant 0 : i32
    %c0_i32_1 = arith.constant 0 : i32
    return %c0_i32, %c0_i32_0 : i32, i32
  }
  func.func @transform_27(%arg0: i32) -> (i32, i32) {
    %c0_i32 = arith.constant 0 : i32
    %c0_i32_0 = arith.constant 0 : i32
    %c0_i32_1 = arith.constant 0 : i32
    return %c0_i32, %c0_i32_0 : i32, i32
  }
  func.func @transform_28(%arg0: i32) -> (i32, i32) {
    %c0_i32 = arith.constant 0 : i32
    %c0_i32_0 = arith.constant 0 : i32
    %c0_i32_1 = arith.constant 0 : i32
    return %c0_i32, %c0_i32_0 : i32, i32
  }
  func.func @transform_29(%arg0: i32) -> (i32, i32, i32) {
    %c0_i32 = arith.constant 0 : i32
    %c0_i32_0 = arith.constant 0 : i32
    %c0_i32_1 = arith.constant 0 : i32
    return %arg0, %c0_i32, %c0_i32_0 : i32, i32, i32
  }
  func.func @transform_30(%arg0: i32) -> (i32, i32, i32) {
    %c0_i32 = arith.constant 0 : i32
    %c0_i32_0 = arith.constant 0 : i32
    %c0_i32_1 = arith.constant 0 : i32
    return %arg0, %c0_i32, %c0_i32_0 : i32, i32, i32
  }
}

</mosaic_0001>

<llo_original>
// kernel: tpu_custom_call.1
$region0: #{tpu_custom_call.1}
  #allocation0 [shape = 'u32[]', space=smem, size = 0x4, offset = 0x4, fixed_abs, tag = 'smem constant byte address 0x4 - core index']
  #allocation1 [shape = 'u32[144,128]{1,0:T(1,128)}', space=vmem, size = 0x12000, scoped, tag = 'internal scratch']
  %s0 = inlined_call_operand.smem [shape: u32[31], index: -1, kind: input, shape index: {}]
  %s1 = sld [smem:[%s0]]
  %s2 = scalar_lea.smem %s0, 1
  %s3 = sld [smem:[%s2]]
  %s4 = scalar_lea.smem %s0, 2
  %s5 = sld [smem:[%s4]]
  %s6 = scalar_lea.smem %s0, 3
  %s7 = sld [smem:[%s6]]
  %s8 = scalar_lea.smem %s0, 4
  %s9 = sld [smem:[%s8]]
  %s10 = scalar_lea.smem %s0, 5
  %s11 = sld [smem:[%s10]]
  %s12 = scalar_lea.smem %s0, 6
  %s13 = sld [smem:[%s12]]
  %s14 = scalar_lea.smem %s0, 7
  %s15 = sld [smem:[%s14]]
  %s16 = scalar_lea.smem %s0, 8
  %s17 = sld [smem:[%s16]]
  %s18 = scalar_lea.smem %s0, 9
  %s19 = sld [smem:[%s18]]
  %s20 = scalar_lea.smem %s0, 10
  %s21 = sld [smem:[%s20]]
  %s22 = scalar_lea.smem %s0, 11
  %s23 = sld [smem:[%s22]]
  %s24 = scalar_lea.smem %s0, 12
  %s25 = sld [smem:[%s24]]
  %s26 = scalar_lea.smem %s0, 13
  %s27 = sld [smem:[%s26]]
  %s28 = scalar_lea.smem %s0, 14
  %s29 = sld [smem:[%s28]]
  %s30 = scalar_lea.smem %s0, 15
  %s31 = sld [smem:[%s30]]
  %s32 = scalar_lea.smem %s0, 16
  %s33 = sld [smem:[%s32]]
  %s34 = scalar_lea.smem %s0, 17
  %s35 = sld [smem:[%s34]]
  %s36 = scalar_lea.smem %s0, 18
  %s37 = sld [smem:[%s36]]
  %s38 = scalar_lea.smem %s0, 19
  %s39 = sld [smem:[%s38]]
  %s40 = scalar_lea.smem %s0, 20
  %s41 = sld [smem:[%s40]]
  %s42 = scalar_lea.smem %s0, 21
  %s43 = sld [smem:[%s42]]
  %s44 = scalar_lea.smem %s0, 22
  %s45 = sld [smem:[%s44]]
  %s46 = scalar_lea.smem %s0, 23
  %s47 = sld [smem:[%s46]]
  %s48 = scalar_lea.smem %s0, 24
  %s49 = sld [smem:[%s48]]
  %s50 = scalar_lea.smem %s0, 25
  %s51 = sld [smem:[%s50]]
  %s52 = scalar_lea.smem %s0, 26
  %s53 = sld [smem:[%s52]]
  %s54 = scalar_lea.smem %s0, 27
  %s55 = sld [smem:[%s54]]
  %s56 = scalar_lea.smem %s0, 28
  %s57 = sld [smem:[%s56]]
  %s58 = scalar_lea.smem %s0, 29
  %s59 = sld [smem:[%s58]]
  %s60 = scalar_lea.smem %s0, 30
  %s61 = sld [smem:[%s60]]
  %62 = xla_tuple %s59, %s61
  %s63 = sld [smem:[#allocation0]]
  $region157: #{tpu_custom_call.1} parent=0
    _
  %s65 = ssub.s32 1, %s63
  %s66 = scalar_select 0, %s65, %s63
  loop: start=0, step=1, limit=4
  $region2: #{tpu_custom_call.1} parent=0 // loop_pre_header
    _
  $region3: #{tpu_custom_call.1} parent=0 // loop_header
    %s68 = sphi 0, %s72
    %p69 = scmp.ge.s32.totalorder %s68, 4
    %s78 = sphi 0, %s80
    %s81 = sphi 0, %s78
    %s82 = sphi 0, %s81
    %s98 = sphi 0, %s82
    %s102 = sphi 0, %s102
    %s104 = sphi 0, %s102
    %s105 = sphi 0, %s104
    %s119 = sphi 0, %s105
    %s123 = sphi 0, %s123
    %s125 = sphi 0, %s123
    %s126 = sphi 0, %s125
    %s140 = sphi 0, %s126
    %s144 = sphi 0, %s144
    %s146 = sphi 0, %s144
    %s147 = sphi 0, %s146
    %s161 = sphi 0, %s147
    %s165 = sphi 0, %s165
    %s167 = sphi 0, %s165
    %s168 = sphi 0, %s167
    %s182 = sphi 0, %s168
    %s186 = sphi 0, %s186
    %s188 = sphi 0, %s186
    %s189 = sphi 0, %s188
    %s203 = sphi 0, %s189
    %s207 = sphi 0, %s207
    %s209 = sphi 0, %s207
    %s210 = sphi 0, %s209
    %s224 = sphi 0, %s210
    %s228 = sphi 0, %s228
    %s230 = sphi 0, %s228
    %s231 = sphi 0, %s230
    %s245 = sphi 0, %s231
    %s249 = sphi 0, %s249
    %s251 = sphi 0, %s249
    %s252 = sphi 0, %s251
    %s266 = sphi 0, %s252
    %s270 = sphi 0, %s270
    %s272 = sphi 0, %s270
    %s273 = sphi 0, %s272
    %s287 = sphi 0, %s273
    %s291 = sphi 0, %s291
    %s293 = sphi 0, %s291
    %s294 = sphi 0, %s293
    %s308 = sphi 0, %s294
    %s312 = sphi 0, %s312
    %s314 = sphi 0, %s312
    %s315 = sphi 0, %s314
    %s329 = sphi 0, %s315
    %s333 = sphi 0, %s333
    %s335 = sphi 0, %s333
    %s336 = sphi 0, %s335
    %s350 = sphi 0, %s336
    %s354 = sphi 0, %s354
    %s356 = sphi 0, %s354
    %s357 = sphi 0, %s356
    %s371 = sphi 0, %s357
    %s375 = sphi 0, %s375
    %s377 = sphi 0, %s375
    %s378 = sphi 0, %s377
    %s392 = sphi 0, %s378
    %s396 = sphi 0, %s396
    %s398 = sphi 0, %s396
    %s399 = sphi 0, %s398
    %s413 = sphi 0, %s399
    %s417 = sphi 0, %s417
    %s419 = sphi 0, %s417
    %s420 = sphi 0, %s419
    %s434 = sphi 0, %s420
    %s438 = sphi 0, %s438
    %s440 = sphi 0, %s438
    %s441 = sphi 0, %s440
    %s455 = sphi 0, %s441
    %s459 = sphi 0, %s459
    %s461 = sphi 0, %s459
    %s462 = sphi 0, %s461
    %s476 = sphi 0, %s462
    %s480 = sphi 0, %s480
    %s482 = sphi 0, %s480
    %s483 = sphi 0, %s482
    %s497 = sphi 0, %s483
    %s501 = sphi 0, %s501
    %s503 = sphi 0, %s501
    %s504 = sphi 0, %s503
    %s518 = sphi 0, %s504
    %s522 = sphi 0, %s522
    %s524 = sphi 0, %s522
    %s525 = sphi 0, %s524
    %s539 = sphi 0, %s525
    %s543 = sphi 0, %s543
    %s545 = sphi 0, %s543
    %s546 = sphi 0, %s545
    %s560 = sphi 0, %s546
    %s564 = sphi 0, %s564
    %s566 = sphi 0, %s564
    %s567 = sphi 0, %s566
    %s581 = sphi 0, %s567
    %s585 = sphi 0, %s585
    %s587 = sphi 0, %s585
    %s588 = sphi 0, %s587
    %s602 = sphi 0, %s588
    %s606 = sphi 0, %s606
    %s608 = sphi 0, %s606
    %s609 = sphi 0, %s608
    %s623 = sphi 0, %s609
    %s627 = sphi 0, %s627
    %s629 = sphi 0, %s627
    %s630 = sphi 0, %s629
    %s644 = sphi 0, %s630
    %s648 = sphi 0, %s648
    %s650 = sphi 0, %s648
    %s651 = sphi 0, %s650
    %s665 = sphi 0, %s651
    %s669 = sphi 0, %s669
    %s671 = sphi 0, %s669
    %s672 = sphi 0, %s671
    %s686 = sphi 0, %s672
    %s692 = sphi 0, %s694
    %s695 = sphi 0, %s692
    %s696 = sphi 0, %s695
    %s712 = sphi 0, %s696
    %s718 = sphi 0, %s720
    %s721 = sphi 0, %s718
    %s722 = sphi 0, %s721
    %s738 = sphi 0, %s722
  $region4: #{tpu_custom_call.1} parent=0 // loop_header_branch
    %71 = sbr.rel (%p69) target = $region8
  $region5: #{tpu_custom_call.1} parent=0 // loop_body
    %s73 = ssub.s32 %s68, 1
    %s74 = ssub.s32 %s68, 2
    %s75 = sadd.s32 %s68, 1
    %s76 = ssub.s32 %s68, %s75
    %p77 = scmp.eq.s32.totalorder %s76, 0
    %s79 = sadd.s32 %s78, 1
    %s80 = scalar_select %p77, %s78, %s79
    %p83 = pneg %p77
    %p84 = scmp.eq.s32.totalorder %s68, 1
    %p85 = por %p83, %p84
    %p86 = scmp.ne.s32.totalorder %s78, %s81
    %p87 = scmp.eq.s32.totalorder %s68, 0
    %p88 = por %p86, %p87
    %p89 = scmp.ne.s32.totalorder %s78, %s81
    %p90 = scmp.eq.s32.totalorder %s73, 1
    %p91 = por %p89, %p90
    %p92 = scmp.ne.s32.totalorder %s81, %s82
    %p93 = scmp.eq.s32.totalorder %s73, 0
    %p94 = por %p92, %p93
    %p95 = scmp.ne.s32.totalorder %s81, %s82
    %p96 = scmp.eq.s32.totalorder %s74, 1
    %p97 = por %p95, %p96
    %p99 = scmp.ne.s32.totalorder %s82, %s98
    %p100 = scmp.eq.s32.totalorder %s74, 0
    %p101 = por %p99, %p100
    %s103 = sadd.s32 %s102, 1
    %p106 = scmp.eq.s32.totalorder %s68, 1
    %p107 = scmp.ne.s32.totalorder %s102, %s104
    %p108 = scmp.eq.s32.totalorder %s68, 0
    %p109 = por %p107, %p108
    %p110 = scmp.ne.s32.totalorder %s102, %s104
    %p111 = scmp.eq.s32.totalorder %s73, 1
    %p112 = por %p110, %p111
    %p113 = scmp.ne.s32.totalorder %s104, %s105
    %p114 = scmp.eq.s32.totalorder %s73, 0
    %p115 = por %p113, %p114
    %p116 = scmp.ne.s32.totalorder %s104, %s105
    %p117 = scmp.eq.s32.totalorder %s74, 1
    %p118 = por %p116, %p117
    %p120 = scmp.ne.s32.totalorder %s105, %s119
    %p121 = scmp.eq.s32.totalorder %s74, 0
    %p122 = por %p120, %p121
    %s124 = sadd.s32 %s123, 1
    %p127 = scmp.eq.s32.totalorder %s68, 1
    %p128 = scmp.ne.s32.totalorder %s123, %s125
    %p129 = scmp.eq.s32.totalorder %s68, 0
    %p130 = por %p128, %p129
    %p131 = scmp.ne.s32.totalorder %s123, %s125
    %p132 = scmp.eq.s32.totalorder %s73, 1
    %p133 = por %p131, %p132
    %p134 = scmp.ne.s32.totalorder %s125, %s126
    %p135 = scmp.eq.s32.totalorder %s73, 0
    %p136 = por %p134, %p135
    %p137 = scmp.ne.s32.totalorder %s125, %s126
    %p138 = scmp.eq.s32.totalorder %s74, 1
    %p139 = por %p137, %p138
    %p141 = scmp.ne.s32.totalorder %s126, %s140
    %p142 = scmp.eq.s32.totalorder %s74, 0
    %p143 = por %p141, %p142
    %s145 = sadd.s32 %s144, 1
    %p148 = scmp.eq.s32.totalorder %s68, 1
    %p149 = scmp.ne.s32.totalorder %s144, %s146
    %p150 = scmp.eq.s32.totalorder %s68, 0
    %p151 = por %p149, %p150
    %p152 = scmp.ne.s32.totalorder %s144, %s146
    %p153 = scmp.eq.s32.totalorder %s73, 1
    %p154 = por %p152, %p153
    %p155 = scmp.ne.s32.totalorder %s146, %s147
    %p156 = scmp.eq.s32.totalorder %s73, 0
    %p157 = por %p155, %p156
    %p158 = scmp.ne.s32.totalorder %s146, %s147
    %p159 = scmp.eq.s32.totalorder %s74, 1
    %p160 = por %p158, %p159
    %p162 = scmp.ne.s32.totalorder %s147, %s161
    %p163 = scmp.eq.s32.totalorder %s74, 0
    %p164 = por %p162, %p163
    %s166 = sadd.s32 %s165, 1
    %p169 = scmp.eq.s32.totalorder %s68, 1
    %p170 = scmp.ne.s32.totalorder %s165, %s167
    %p171 = scmp.eq.s32.totalorder %s68, 0
    %p172 = por %p170, %p171
    %p173 = scmp.ne.s32.totalorder %s165, %s167
    %p174 = scmp.eq.s32.totalorder %s73, 1
    %p175 = por %p173, %p174
    %p176 = scmp.ne.s32.totalorder %s167, %s168
    %p177 = scmp.eq.s32.totalorder %s73, 0
    %p178 = por %p176, %p177
    %p179 = scmp.ne.s32.totalorder %s167, %s168
    %p180 = scmp.eq.s32.totalorder %s74, 1
    %p181 = por %p179, %p180
    %p183 = scmp.ne.s32.totalorder %s168, %s182
    %p184 = scmp.eq.s32.totalorder %s74, 0
    %p185 = por %p183, %p184
    %s187 = sadd.s32 %s186, 1
    %p190 = scmp.eq.s32.totalorder %s68, 1
    %p191 = scmp.ne.s32.totalorder %s186, %s188
    %p192 = scmp.eq.s32.totalorder %s68, 0
    %p193 = por %p191, %p192
    %p194 = scmp.ne.s32.totalorder %s186, %s188
    %p195 = scmp.eq.s32.totalorder %s73, 1
    %p196 = por %p194, %p195
    %p197 = scmp.ne.s32.totalorder %s188, %s189
    %p198 = scmp.eq.s32.totalorder %s73, 0
    %p199 = por %p197, %p198
    %p200 = scmp.ne.s32.totalorder %s188, %s189
    %p201 = scmp.eq.s32.totalorder %s74, 1
    %p202 = por %p200, %p201
    %p204 = scmp.ne.s32.totalorder %s189, %s203
    %p205 = scmp.eq.s32.totalorder %s74, 0
    %p206 = por %p204, %p205
    %s208 = sadd.s32 %s207, 1
    %p211 = scmp.eq.s32.totalorder %s68, 1
    %p212 = scmp.ne.s32.totalorder %s207, %s209
    %p213 = scmp.eq.s32.totalorder %s68, 0
    %p214 = por %p212, %p213
    %p215 = scmp.ne.s32.totalorder %s207, %s209
    %p216 = scmp.eq.s32.totalorder %s73, 1
    %p217 = por %p215, %p216
    %p218 = scmp.ne.s32.totalorder %s209, %s210
    %p219 = scmp.eq.s32.totalorder %s73, 0
    %p220 = por %p218, %p219
    %p221 = scmp.ne.s32.totalorder %s209, %s210
    %p222 = scmp.eq.s32.totalorder %s74, 1
    %p223 = por %p221, %p222
    %p225 = scmp.ne.s32.totalorder %s210, %s224
    %p226 = scmp.eq.s32.totalorder %s74, 0
    %p227 = por %p225, %p226
    %s229 = sadd.s32 %s228, 1
    %p232 = scmp.eq.s32.totalorder %s68, 1
    %p233 = scmp.ne.s32.totalorder %s228, %s230
    %p234 = scmp.eq.s32.totalorder %s68, 0
    %p235 = por %p233, %p234
    %p236 = scmp.ne.s32.totalorder %s228, %s230
    %p237 = scmp.eq.s32.totalorder %s73, 1
    %p238 = por %p236, %p237
    %p239 = scmp.ne.s32.totalorder %s230, %s231
    %p240 = scmp.eq.s32.totalorder %s73, 0
    %p241 = por %p239, %p240
    %p242 = scmp.ne.s32.totalorder %s230, %s231
    %p243 = scmp.eq.s32.totalorder %s74, 1
    %p244 = por %p242, %p243
    %p246 = scmp.ne.s32.totalorder %s231, %s245
    %p247 = scmp.eq.s32.totalorder %s74, 0
    %p248 = por %p246, %p247
    %s250 = sadd.s32 %s249, 1
    %p253 = scmp.eq.s32.totalorder %s68, 1
    %p254 = scmp.ne.s32.totalorder %s249, %s251
    %p255 = scmp.eq.s32.totalorder %s68, 0
    %p256 = por %p254, %p255
    %p257 = scmp.ne.s32.totalorder %s249, %s251
    %p258 = scmp.eq.s32.totalorder %s73, 1
    %p259 = por %p257, %p258
    %p260 = scmp.ne.s32.totalorder %s251, %s252
    %p261 = scmp.eq.s32.totalorder %s73, 0
    %p262 = por %p260, %p261
    %p263 = scmp.ne.s32.totalorder %s251, %s252
    %p264 = scmp.eq.s32.totalorder %s74, 1
    %p265 = por %p263, %p264
    %p267 = scmp.ne.s32.totalorder %s252, %s266
    %p268 = scmp.eq.s32.totalorder %s74, 0
    %p269 = por %p267, %p268
    %s271 = sadd.s32 %s270, 1
    %p274 = scmp.eq.s32.totalorder %s68, 1
    %p275 = scmp.ne.s32.totalorder %s270, %s272
    %p276 = scmp.eq.s32.totalorder %s68, 0
    %p277 = por %p275, %p276
    %p278 = scmp.ne.s32.totalorder %s270, %s272
    %p279 = scmp.eq.s32.totalorder %s73, 1
    %p280 = por %p278, %p279
    %p281 = scmp.ne.s32.totalorder %s272, %s273
    %p282 = scmp.eq.s32.totalorder %s73, 0
    %p283 = por %p281, %p282
    %p284 = scmp.ne.s32.totalorder %s272, %s273
    %p285 = scmp.eq.s32.totalorder %s74, 1
    %p286 = por %p284, %p285
    %p288 = scmp.ne.s32.totalorder %s273, %s287
    %p289 = scmp.eq.s32.totalorder %s74, 0
    %p290 = por %p288, %p289
    %s292 = sadd.s32 %s291, 1
    %p295 = scmp.eq.s32.totalorder %s68, 1
    %p296 = scmp.ne.s32.totalorder %s291, %s293
    %p297 = scmp.eq.s32.totalorder %s68, 0
    %p298 = por %p296, %p297
    %p299 = scmp.ne.s32.totalorder %s291, %s293
    %p300 = scmp.eq.s32.totalorder %s73, 1
    %p301 = por %p299, %p300
    %p302 = scmp.ne.s32.totalorder %s293, %s294
    %p303 = scmp.eq.s32.totalorder %s73, 0
    %p304 = por %p302, %p303
    %p305 = scmp.ne.s32.totalorder %s293, %s294
    %p306 = scmp.eq.s32.totalorder %s74, 1
    %p307 = por %p305, %p306
    %p309 = scmp.ne.s32.totalorder %s294, %s308
    %p310 = scmp.eq.s32.totalorder %s74, 0
    %p311 = por %p309, %p310
    %s313 = sadd.s32 %s312, 1
    %p316 = scmp.eq.s32.totalorder %s68, 1
    %p317 = scmp.ne.s32.totalorder %s312, %s314
    %p318 = scmp.eq.s32.totalorder %s68, 0
    %p319 = por %p317, %p318
    %p320 = scmp.ne.s32.totalorder %s312, %s314
    %p321 = scmp.eq.s32.totalorder %s73, 1
    %p322 = por %p320, %p321
    %p323 = scmp.ne.s32.totalorder %s314, %s315
    %p324 = scmp.eq.s32.totalorder %s73, 0
    %p325 = por %p323, %p324
    %p326 = scmp.ne.s32.totalorder %s314, %s315
    %p327 = scmp.eq.s32.totalorder %s74, 1
    %p328 = por %p326, %p327
    %p330 = scmp.ne.s32.totalorder %s315, %s329
    %p331 = scmp.eq.s32.totalorder %s74, 0
    %p332 = por %p330, %p331
    %s334 = sadd.s32 %s333, 1
    %p337 = scmp.eq.s32.totalorder %s68, 1
    %p338 = scmp.ne.s32.totalorder %s333, %s335
    %p339 = scmp.eq.s32.totalorder %s68, 0
    %p340 = por %p338, %p339
    %p341 = scmp.ne.s32.totalorder %s333, %s335
    %p342 = scmp.eq.s32.totalorder %s73, 1
    %p343 = por %p341, %p342
    %p344 = scmp.ne.s32.totalorder %s335, %s336
    %p345 = scmp.eq.s32.totalorder %s73, 0
    %p346 = por %p344, %p345
    %p347 = scmp.ne.s32.totalorder %s335, %s336
    %p348 = scmp.eq.s32.totalorder %s74, 1
    %p349 = por %p347, %p348
    %p351 = scmp.ne.s32.totalorder %s336, %s350
    %p352 = scmp.eq.s32.totalorder %s74, 0
    %p353 = por %p351, %p352
    %s355 = sadd.s32 %s354, 1
    %p358 = scmp.eq.s32.totalorder %s68, 1
    %p359 = scmp.ne.s32.totalorder %s354, %s356
    %p360 = scmp.eq.s32.totalorder %s68, 0
    %p361 = por %p359, %p360
    %p362 = scmp.ne.s32.totalorder %s354, %s356
    %p363 = scmp.eq.s32.totalorder %s73, 1
    %p364 = por %p362, %p363
    %p365 = scmp.ne.s32.totalorder %s356, %s357
    %p366 = scmp.eq.s32.totalorder %s73, 0
    %p367 = por %p365, %p366
    %p368 = scmp.ne.s32.totalorder %s356, %s357
    %p369 = scmp.eq.s32.totalorder %s74, 1
    %p370 = por %p368, %p369
    %p372 = scmp.ne.s32.totalorder %s357, %s371
    %p373 = scmp.eq.s32.totalorder %s74, 0
    %p374 = por %p372, %p373
    %s376 = sadd.s32 %s375, 1
    %p379 = scmp.eq.s32.totalorder %s68, 1
    %p380 = scmp.ne.s32.totalorder %s375, %s377
    %p381 = scmp.eq.s32.totalorder %s68, 0
    %p382 = por %p380, %p381
    %p383 = scmp.ne.s32.totalorder %s375, %s377
    %p384 = scmp.eq.s32.totalorder %s73, 1
    %p385 = por %p383, %p384
    %p386 = scmp.ne.s32.totalorder %s377, %s378
    %p387 = scmp.eq.s32.totalorder %s73, 0
    %p388 = por %p386, %p387
    %p389 = scmp.ne.s32.totalorder %s377, %s378
    %p390 = scmp.eq.s32.totalorder %s74, 1
    %p391 = por %p389, %p390
    %p393 = scmp.ne.s32.totalorder %s378, %s392
    %p394 = scmp.eq.s32.totalorder %s74, 0
    %p395 = por %p393, %p394
    %s397 = sadd.s32 %s396, 1
    %p400 = scmp.eq.s32.totalorder %s68, 1
    %p401 = scmp.ne.s32.totalorder %s396, %s398
    %p402 = scmp.eq.s32.totalorder %s68, 0
    %p403 = por %p401, %p402
    %p404 = scmp.ne.s32.totalorder %s396, %s398
    %p405 = scmp.eq.s32.totalorder %s73, 1
    %p406 = por %p404, %p405
    %p407 = scmp.ne.s32.totalorder %s398, %s399
    %p408 = scmp.eq.s32.totalorder %s73, 0
    %p409 = por %p407, %p408
    %p410 = scmp.ne.s32.totalorder %s398, %s399
    %p411 = scmp.eq.s32.totalorder %s74, 1
    %p412 = por %p410, %p411
    %p414 = scmp.ne.s32.totalorder %s399, %s413
    %p415 = scmp.eq.s32.totalorder %s74, 0
    %p416 = por %p414, %p415
    %s418 = sadd.s32 %s417, 1
    %p421 = scmp.eq.s32.totalorder %s68, 1
    %p422 = scmp.ne.s32.totalorder %s417, %s419
    %p423 = scmp.eq.s32.totalorder %s68, 0
    %p424 = por %p422, %p423
    %p425 = scmp.ne.s32.totalorder %s417, %s419
    %p426 = scmp.eq.s32.totalorder %s73, 1
    %p427 = por %p425, %p426
    %p428 = scmp.ne.s32.totalorder %s419, %s420
    %p429 = scmp.eq.s32.totalorder %s73, 0
    %p430 = por %p428, %p429
    %p431 = scmp.ne.s32.totalorder %s419, %s420
    %p432 = scmp.eq.s32.totalorder %s74, 1
    %p433 = por %p431, %p432
    %p435 = scmp.ne.s32.totalorder %s420, %s434
    %p436 = scmp.eq.s32.totalorder %s74, 0
    %p437 = por %p435, %p436
    %s439 = sadd.s32 %s438, 1
    %p442 = scmp.eq.s32.totalorder %s68, 1
    %p443 = scmp.ne.s32.totalorder %s438, %s440
    %p444 = scmp.eq.s32.totalorder %s68, 0
    %p445 = por %p443, %p444
    %p446 = scmp.ne.s32.totalorder %s438, %s440
    %p447 = scmp.eq.s32.totalorder %s73, 1
    %p448 = por %p446, %p447
    %p449 = scmp.ne.s32.totalorder %s440, %s441
    %p450 = scmp.eq.s32.totalorder %s73, 0
    %p451 = por %p449, %p450
    %p452 = scmp.ne.s32.totalorder %s440, %s441
    %p453 = scmp.eq.s32.totalorder %s74, 1
    %p454 = por %p452, %p453
    %p456 = scmp.ne.s32.totalorder %s441, %s455
    %p457 = scmp.eq.s32.totalorder %s74, 0
    %p458 = por %p456, %p457
    %s460 = sadd.s32 %s459, 1
    %p463 = scmp.eq.s32.totalorder %s68, 1
    %p464 = scmp.ne.s32.totalorder %s459, %s461
    %p465 = scmp.eq.s32.totalorder %s68, 0
    %p466 = por %p464, %p465
    %p467 = scmp.ne.s32.totalorder %s459, %s461
    %p468 = scmp.eq.s32.totalorder %s73, 1
    %p469 = por %p467, %p468
    %p470 = scmp.ne.s32.totalorder %s461, %s462
    %p471 = scmp.eq.s32.totalorder %s73, 0
    %p472 = por %p470, %p471
    %p473 = scmp.ne.s32.totalorder %s461, %s462
    %p474 = scmp.eq.s32.totalorder %s74, 1
    %p475 = por %p473, %p474
    %p477 = scmp.ne.s32.totalorder %s462, %s476
    %p478 = scmp.eq.s32.totalorder %s74, 0
    %p479 = por %p477, %p478
    %s481 = sadd.s32 %s480, 1
    %p484 = scmp.eq.s32.totalorder %s68, 1
    %p485 = scmp.ne.s32.totalorder %s480, %s482
    %p486 = scmp.eq.s32.totalorder %s68, 0
    %p487 = por %p485, %p486
    %p488 = scmp.ne.s32.totalorder %s480, %s482
    %p489 = scmp.eq.s32.totalorder %s73, 1
    %p490 = por %p488, %p489
    %p491 = scmp.ne.s32.totalorder %s482, %s483
    %p492 = scmp.eq.s32.totalorder %s73, 0
    %p493 = por %p491, %p492
    %p494 = scmp.ne.s32.totalorder %s482, %s483
    %p495 = scmp.eq.s32.totalorder %s74, 1
    %p496 = por %p494, %p495
    %p498 = scmp.ne.s32.totalorder %s483, %s497
    %p499 = scmp.eq.s32.totalorder %s74, 0
    %p500 = por %p498, %p499
    %s502 = sadd.s32 %s501, 1
    %p505 = scmp.eq.s32.totalorder %s68, 1
    %p506 = scmp.ne.s32.totalorder %s501, %s503
    %p507 = scmp.eq.s32.totalorder %s68, 0
    %p508 = por %p506, %p507
    %p509 = scmp.ne.s32.totalorder %s501, %s503
    %p510 = scmp.eq.s32.totalorder %s73, 1
    %p511 = por %p509, %p510
    %p512 = scmp.ne.s32.totalorder %s503, %s504
    %p513 = scmp.eq.s32.totalorder %s73, 0
    %p514 = por %p512, %p513
    %p515 = scmp.ne.s32.totalorder %s503, %s504
    %p516 = scmp.eq.s32.totalorder %s74, 1
    %p517 = por %p515, %p516
    %p519 = scmp.ne.s32.totalorder %s504, %s518
    %p520 = scmp.eq.s32.totalorder %s74, 0
    %p521 = por %p519, %p520
    %s523 = sadd.s32 %s522, 1
    %p526 = scmp.eq.s32.totalorder %s68, 1
    %p527 = scmp.ne.s32.totalorder %s522, %s524
    %p528 = scmp.eq.s32.totalorder %s68, 0
    %p529 = por %p527, %p528
    %p530 = scmp.ne.s32.totalorder %s522, %s524
    %p531 = scmp.eq.s32.totalorder %s73, 1
    %p532 = por %p530, %p531
    %p533 = scmp.ne.s32.totalorder %s524, %s525
    %p534 = scmp.eq.s32.totalorder %s73, 0
    %p535 = por %p533, %p534
    %p536 = scmp.ne.s32.totalorder %s524, %s525
    %p537 = scmp.eq.s32.totalorder %s74, 1
    %p538 = por %p536, %p537
    %p540 = scmp.ne.s32.totalorder %s525, %s539
    %p541 = scmp.eq.s32.totalorder %s74, 0
    %p542 = por %p540, %p541
    %s544 = sadd.s32 %s543, 1
    %p547 = scmp.eq.s32.totalorder %s68, 1
    %p548 = scmp.ne.s32.totalorder %s543, %s545
    %p549 = scmp.eq.s32.totalorder %s68, 0
    %p550 = por %p548, %p549
    %p551 = scmp.ne.s32.totalorder %s543, %s545
    %p552 = scmp.eq.s32.totalorder %s73, 1
    %p553 = por %p551, %p552
    %p554 = scmp.ne.s32.totalorder %s545, %s546
    %p555 = scmp.eq.s32.totalorder %s73, 0
    %p556 = por %p554, %p555
    %p557 = scmp.ne.s32.totalorder %s545, %s546
    %p558 = scmp.eq.s32.totalorder %s74, 1
    %p559 = por %p557, %p558
    %p561 = scmp.ne.s32.totalorder %s546, %s560
    %p562 = scmp.eq.s32.totalorder %s74, 0
    %p563 = por %p561, %p562
    %s565 = sadd.s32 %s564, 1
    %p568 = scmp.eq.s32.totalorder %s68, 1
    %p569 = scmp.ne.s32.totalorder %s564, %s566
    %p570 = scmp.eq.s32.totalorder %s68, 0
    %p571 = por %p569, %p570
    %p572 = scmp.ne.s32.totalorder %s564, %s566
    %p573 = scmp.eq.s32.totalorder %s73, 1
    %p574 = por %p572, %p573
    %p575 = scmp.ne.s32.totalorder %s566, %s567
    %p576 = scmp.eq.s32.totalorder %s73, 0
    %p577 = por %p575, %p576
    %p578 = scmp.ne.s32.totalorder %s566, %s567
    %p579 = scmp.eq.s32.totalorder %s74, 1
    %p580 = por %p578, %p579
    %p582 = scmp.ne.s32.totalorder %s567, %s581
    %p583 = scmp.eq.s32.totalorder %s74, 0
    %p584 = por %p582, %p583
    %s586 = sadd.s32 %s585, 1
    %p589 = scmp.eq.s32.totalorder %s68, 1
    %p590 = scmp.ne.s32.totalorder %s585, %s587
    %p591 = scmp.eq.s32.totalorder %s68, 0
    %p592 = por %p590, %p591
    %p593 = scmp.ne.s32.totalorder %s585, %s587
    %p594 = scmp.eq.s32.totalorder %s73, 1
    %p595 = por %p593, %p594
    %p596 = scmp.ne.s32.totalorder %s587, %s588
    %p597 = scmp.eq.s32.totalorder %s73, 0
    %p598 = por %p596, %p597
    %p599 = scmp.ne.s32.totalorder %s587, %s588
    %p600 = scmp.eq.s32.totalorder %s74, 1
    %p601 = por %p599, %p600
    %p603 = scmp.ne.s32.totalorder %s588, %s602
    %p604 = scmp.eq.s32.totalorder %s74, 0
    %p605 = por %p603, %p604
    %s607 = sadd.s32 %s606, 1
    %p610 = scmp.eq.s32.totalorder %s68, 1
    %p611 = scmp.ne.s32.totalorder %s606, %s608
    %p612 = scmp.eq.s32.totalorder %s68, 0
    %p613 = por %p611, %p612
    %p614 = scmp.ne.s32.totalorder %s606, %s608
    %p615 = scmp.eq.s32.totalorder %s73, 1
    %p616 = por %p614, %p615
    %p617 = scmp.ne.s32.totalorder %s608, %s609
    %p618 = scmp.eq.s32.totalorder %s73, 0
    %p619 = por %p617, %p618
    %p620 = scmp.ne.s32.totalorder %s608, %s609
    %p621 = scmp.eq.s32.totalorder %s74, 1
    %p622 = por %p620, %p621
    %p624 = scmp.ne.s32.totalorder %s609, %s623
    %p625 = scmp.eq.s32.totalorder %s74, 0
    %p626 = por %p624, %p625
    %s628 = sadd.s32 %s627, 1
    %p631 = scmp.eq.s32.totalorder %s68, 1
    %p632 = scmp.ne.s32.totalorder %s627, %s629
    %p633 = scmp.eq.s32.totalorder %s68, 0
    %p634 = por %p632, %p633
    %p635 = scmp.ne.s32.totalorder %s627, %s629
    %p636 = scmp.eq.s32.totalorder %s73, 1
    %p637 = por %p635, %p636
    %p638 = scmp.ne.s32.totalorder %s629, %s630
    %p639 = scmp.eq.s32.totalorder %s73, 0
    %p640 = por %p638, %p639
    %p641 = scmp.ne.s32.totalorder %s629, %s630
    %p642 = scmp.eq.s32.totalorder %s74, 1
    %p643 = por %p641, %p642
    %p645 = scmp.ne.s32.totalorder %s630, %s644
    %p646 = scmp.eq.s32.totalorder %s74, 0
    %p647 = por %p645, %p646
    %s649 = sadd.s32 %s648, 1
    %p652 = scmp.eq.s32.totalorder %s68, 1
    %p653 = scmp.ne.s32.totalorder %s648, %s650
    %p654 = scmp.eq.s32.totalorder %s68, 0
    %p655 = por %p653, %p654
    %p656 = scmp.ne.s32.totalorder %s648, %s650
    %p657 = scmp.eq.s32.totalorder %s73, 1
    %p658 = por %p656, %p657
    %p659 = scmp.ne.s32.totalorder %s650, %s651
    %p660 = scmp.eq.s32.totalorder %s73, 0
    %p661 = por %p659, %p660
    %p662 = scmp.ne.s32.totalorder %s650, %s651
    %p663 = scmp.eq.s32.totalorder %s74, 1
    %p664 = por %p662, %p663
    %p666 = scmp.ne.s32.totalorder %s651, %s665
    %p667 = scmp.eq.s32.totalorder %s74, 0
    %p668 = por %p666, %p667
    %s670 = sadd.s32 %s669, 1
    %p673 = scmp.eq.s32.totalorder %s68, 1
    %p674 = scmp.ne.s32.totalorder %s669, %s671
    %p675 = scmp.eq.s32.totalorder %s68, 0
    %p676 = por %p674, %p675
    %p677 = scmp.ne.s32.totalorder %s669, %s671
    %p678 = scmp.eq.s32.totalorder %s73, 1
    %p679 = por %p677, %p678
    %p680 = scmp.ne.s32.totalorder %s671, %s672
    %p681 = scmp.eq.s32.totalorder %s73, 0
    %p682 = por %p680, %p681
    %p683 = scmp.ne.s32.totalorder %s671, %s672
    %p684 = scmp.eq.s32.totalorder %s74, 1
    %p685 = por %p683, %p684
    %p687 = scmp.ne.s32.totalorder %s672, %s686
    %p688 = scmp.eq.s32.totalorder %s74, 0
    %p689 = por %p687, %p688
    %s690 = ssub.s32 %s68, %s75
    %p691 = scmp.eq.s32.totalorder %s690, 0
    %s693 = sadd.s32 %s692, 1
    %s694 = scalar_select %p691, %s692, %s693
    %p697 = pneg %p691
    %p698 = scmp.eq.s32.totalorder %s68, 1
    %p699 = por %p697, %p698
    %p700 = scmp.ne.s32.totalorder %s692, %s695
    %p701 = scmp.eq.s32.totalorder %s68, 0
    %p702 = por %p700, %p701
    %p703 = scmp.ne.s32.totalorder %s692, %s695
    %p704 = scmp.eq.s32.totalorder %s73, 1
    %p705 = por %p703, %p704
    %p706 = scmp.ne.s32.totalorder %s695, %s696
    %p707 = scmp.eq.s32.totalorder %s73, 0
    %p708 = por %p706, %p707
    %p709 = scmp.ne.s32.totalorder %s695, %s696
    %p710 = scmp.eq.s32.totalorder %s74, 1
    %p711 = por %p709, %p710
    %p713 = scmp.ne.s32.totalorder %s696, %s712
    %p714 = scmp.eq.s32.totalorder %s74, 0
    %p715 = por %p713, %p714
    %s716 = ssub.s32 %s68, %s75
    %p717 = scmp.eq.s32.totalorder %s716, 0
    %s719 = sadd.s32 %s718, 1
    %s720 = scalar_select %p717, %s718, %s719
    %p723 = pneg %p717
    %p724 = scmp.eq.s32.totalorder %s68, 1
    %p725 = por %p723, %p724
    %p726 = scmp.ne.s32.totalorder %s718, %s721
    %p727 = scmp.eq.s32.totalorder %s68, 0
    %p728 = por %p726, %p727
    %p729 = scmp.ne.s32.totalorder %s718, %s721
    %p730 = scmp.eq.s32.totalorder %s73, 1
    %p731 = por %p729, %p730
    %p732 = scmp.ne.s32.totalorder %s721, %s722
    %p733 = scmp.eq.s32.totalorder %s73, 0
    %p734 = por %p732, %p733
    %p735 = scmp.ne.s32.totalorder %s721, %s722
    %p736 = scmp.eq.s32.totalorder %s74, 1
    %p737 = por %p735, %p736
    %p739 = scmp.ne.s32.totalorder %s722, %s738
    %p740 = scmp.eq.s32.totalorder %s74, 0
    %p741 = por %p739, %p740
    %p742 = scmp.le.s32.totalorder 1, %s68
    %p743 = scmp.lt.s32.totalorder %s68, 3
    %p744 = pnand %p742, %p743
    %p745 = pneg %p744
    // Predicated region
    $region9: #{tpu_custom_call.1} parent=5 // pred_check
      _
    $region10: #{tpu_custom_call.1} parent=5 // pred_check_branch
      %747 = sbr.rel (%p744) target = $region12
    $region11: #{tpu_custom_call.1} parent=5 // pred_region
      %s748 = ssub.s32 %s68, 1
      // Predicated region
      $region13: #{tpu_custom_call.1} parent=11 // pred_check
        %p749 = pneg %p115
      $region14: #{tpu_custom_call.1} parent=11 // pred_check_branch
        %751 = sbr.rel (%p749) target = $region16
      $region15: #{tpu_custom_call.1} parent=11 // pred_region
        _
      $region16: #{tpu_custom_call.1} parent=11 // pred_fallthru
        _
      // Predicated region
      $region17: #{tpu_custom_call.1} parent=11 // pred_check
        %p752 = pneg %p136
      $region18: #{tpu_custom_call.1} parent=11 // pred_check_branch
        %754 = sbr.rel (%p752) target = $region20
      $region19: #{tpu_custom_call.1} parent=11 // pred_region
        _
      $region20: #{tpu_custom_call.1} parent=11 // pred_fallthru
        _
      // Predicated region
      $region21: #{tpu_custom_call.1} parent=11 // pred_check
        %p755 = pneg %p157
      $region22: #{tpu_custom_call.1} parent=11 // pred_check_branch
        %757 = sbr.rel (%p755) target = $region24
      $region23: #{tpu_custom_call.1} parent=11 // pred_region
        _
      $region24: #{tpu_custom_call.1} parent=11 // pred_fallthru
        _
      // Predicated region
      $region25: #{tpu_custom_call.1} parent=11 // pred_check
        %p758 = pneg %p178
      $region26: #{tpu_custom_call.1} parent=11 // pred_check_branch
        %760 = sbr.rel (%p758) target = $region28
      $region27: #{tpu_custom_call.1} parent=11 // pred_region
        _
      $region28: #{tpu_custom_call.1} parent=11 // pred_fallthru
        _
      // Predicated region
      $region29: #{tpu_custom_call.1} parent=11 // pred_check
        %p761 = pneg %p199
      $region30: #{tpu_custom_call.1} parent=11 // pred_check_branch
        %763 = sbr.rel (%p761) target = $region32
      $region31: #{tpu_custom_call.1} parent=11 // pred_region
        _
      $region32: #{tpu_custom_call.1} parent=11 // pred_fallthru
        _
      // Predicated region
      $region33: #{tpu_custom_call.1} parent=11 // pred_check
        %p764 = pneg %p220
      $region34: #{tpu_custom_call.1} parent=11 // pred_check_branch
        %766 = sbr.rel (%p764) target = $region36
      $region35: #{tpu_custom_call.1} parent=11 // pred_region
        _
      $region36: #{tpu_custom_call.1} parent=11 // pred_fallthru
        _
      // Predicated region
      $region37: #{tpu_custom_call.1} parent=11 // pred_check
        %p767 = pneg %p241
      $region38: #{tpu_custom_call.1} parent=11 // pred_check_branch
        %769 = sbr.rel (%p767) target = $region40
      $region39: #{tpu_custom_call.1} parent=11 // pred_region
        _
      $region40: #{tpu_custom_call.1} parent=11 // pred_fallthru
        _
      // Predicated region
      $region41: #{tpu_custom_call.1} parent=11 // pred_check
        %p770 = pneg %p262
      $region42: #{tpu_custom_call.1} parent=11 // pred_check_branch
        %772 = sbr.rel (%p770) target = $region44
      $region43: #{tpu_custom_call.1} parent=11 // pred_region
        _
      $region44: #{tpu_custom_call.1} parent=11 // pred_fallthru
        _
      // Predicated region
      $region45: #{tpu_custom_call.1} parent=11 // pred_check
        %p773 = pneg %p283
      $region46: #{tpu_custom_call.1} parent=11 // pred_check_branch
        %775 = sbr.rel (%p773) target = $region48
      $region47: #{tpu_custom_call.1} parent=11 // pred_region
        _
      $region48: #{tpu_custom_call.1} parent=11 // pred_fallthru
        _
      // Predicated region
      $region49: #{tpu_custom_call.1} parent=11 // pred_check
        %p776 = pneg %p304
      $region50: #{tpu_custom_call.1} parent=11 // pred_check_branch
        %778 = sbr.rel (%p776) target = $region52
      $region51: #{tpu_custom_call.1} parent=11 // pred_region
        _
      $region52: #{tpu_custom_call.1} parent=11 // pred_fallthru
        _
      // Predicated region
      $region53: #{tpu_custom_call.1} parent=11 // pred_check
        %p779 = pneg %p325
      $region54: #{tpu_custom_call.1} parent=11 // pred_check_branch
        %781 = sbr.rel (%p779) target = $region56
      $region55: #{tpu_custom_call.1} parent=11 // pred_region
        _
      $region56: #{tpu_custom_call.1} parent=11 // pred_fallthru
        _
      // Predicated region
      $region57: #{tpu_custom_call.1} parent=11 // pred_check
        %p782 = pneg %p346
      $region58: #{tpu_custom_call.1} parent=11 // pred_check_branch
        %784 = sbr.rel (%p782) target = $region60
      $region59: #{tpu_custom_call.1} parent=11 // pred_region
        _
      $region60: #{tpu_custom_call.1} parent=11 // pred_fallthru
        _
      // Predicated region
      $region61: #{tpu_custom_call.1} parent=11 // pred_check
        %p785 = pneg %p367
      $region62: #{tpu_custom_call.1} parent=11 // pred_check_branch
        %787 = sbr.rel (%p785) target = $region64
      $region63: #{tpu_custom_call.1} parent=11 // pred_region
        _
      $region64: #{tpu_custom_call.1} parent=11 // pred_fallthru
        _
      // Predicated region
      $region65: #{tpu_custom_call.1} parent=11 // pred_check
        %p788 = pneg %p388
      $region66: #{tpu_custom_call.1} parent=11 // pred_check_branch
        %790 = sbr.rel (%p788) target = $region68
      $region67: #{tpu_custom_call.1} parent=11 // pred_region
        _
      $region68: #{tpu_custom_call.1} parent=11 // pred_fallthru
        _
      // Predicated region
      $region69: #{tpu_custom_call.1} parent=11 // pred_check
        %p791 = pneg %p409
      $region70: #{tpu_custom_call.1} parent=11 // pred_check_branch
        %793 = sbr.rel (%p791) target = $region72
      $region71: #{tpu_custom_call.1} parent=11 // pred_region
        _
      $region72: #{tpu_custom_call.1} parent=11 // pred_fallthru
        _
      // Predicated region
      $region73: #{tpu_custom_call.1} parent=11 // pred_check
        %p794 = pneg %p430
      $region74: #{tpu_custom_call.1} parent=11 // pred_check_branch
        %796 = sbr.rel (%p794) target = $region76
      $region75: #{tpu_custom_call.1} parent=11 // pred_region
        _
      $region76: #{tpu_custom_call.1} parent=11 // pred_fallthru
        _
      // Predicated region
      $region77: #{tpu_custom_call.1} parent=11 // pred_check
        %p797 = pneg %p451
      $region78: #{tpu_custom_call.1} parent=11 // pred_check_branch
        %799 = sbr.rel (%p797) target = $region80
      $region79: #{tpu_custom_call.1} parent=11 // pred_region
        _
      $region80: #{tpu_custom_call.1} parent=11 // pred_fallthru
        _
      // Predicated region
      $region81: #{tpu_custom_call.1} parent=11 // pred_check
        %p800 = pneg %p472
      $region82: #{tpu_custom_call.1} parent=11 // pred_check_branch
        %802 = sbr.rel (%p800) target = $region84
      $region83: #{tpu_custom_call.1} parent=11 // pred_region
        _
      $region84: #{tpu_custom_call.1} parent=11 // pred_fallthru
        _
      // Predicated region
      $region85: #{tpu_custom_call.1} parent=11 // pred_check
        %p803 = pneg %p493
      $region86: #{tpu_custom_call.1} parent=11 // pred_check_branch
        %805 = sbr.rel (%p803) target = $region88
      $region87: #{tpu_custom_call.1} parent=11 // pred_region
        _
      $region88: #{tpu_custom_call.1} parent=11 // pred_fallthru
        _
      // Predicated region
      $region89: #{tpu_custom_call.1} parent=11 // pred_check
        %p806 = pneg %p514
      $region90: #{tpu_custom_call.1} parent=11 // pred_check_branch
        %808 = sbr.rel (%p806) target = $region92
      $region91: #{tpu_custom_call.1} parent=11 // pred_region
        _
      $region92: #{tpu_custom_call.1} parent=11 // pred_fallthru
        _
      // Predicated region
      $region93: #{tpu_custom_call.1} parent=11 // pred_check
        %p809 = pneg %p535
      $region94: #{tpu_custom_call.1} parent=11 // pred_check_branch
        %811 = sbr.rel (%p809) target = $region96
      $region95: #{tpu_custom_call.1} parent=11 // pred_region
        _
      $region96: #{tpu_custom_call.1} parent=11 // pred_fallthru
        _
      // Predicated region
      $region97: #{tpu_custom_call.1} parent=11 // pred_check
        %p812 = pneg %p556
      $region98: #{tpu_custom_call.1} parent=11 // pred_check_branch
        %814 = sbr.rel (%p812) target = $region100
      $region99: #{tpu_custom_call.1} parent=11 // pred_region
        _
      $region100: #{tpu_custom_call.1} parent=11 // pred_fallthru
        _
      // Predicated region
      $region101: #{tpu_custom_call.1} parent=11 // pred_check
        %p815 = pneg %p577
      $region102: #{tpu_custom_call.1} parent=11 // pred_check_branch
        %817 = sbr.rel (%p815) target = $region104
      $region103: #{tpu_custom_call.1} parent=11 // pred_region
        _
      $region104: #{tpu_custom_call.1} parent=11 // pred_fallthru
        _
      // Predicated region
      $region105: #{tpu_custom_call.1} parent=11 // pred_check
        %p818 = pneg %p598
      $region106: #{tpu_custom_call.1} parent=11 // pred_check_branch
        %820 = sbr.rel (%p818) target = $region108
      $region107: #{tpu_custom_call.1} parent=11 // pred_region
        _
      $region108: #{tpu_custom_call.1} parent=11 // pred_fallthru
        _
      // Predicated region
      $region109: #{tpu_custom_call.1} parent=11 // pred_check
        %p821 = pneg %p619
      $region110: #{tpu_custom_call.1} parent=11 // pred_check_branch
        %823 = sbr.rel (%p821) target = $region112
      $region111: #{tpu_custom_call.1} parent=11 // pred_region
        _
      $region112: #{tpu_custom_call.1} parent=11 // pred_fallthru
        _
      // Predicated region
      $region113: #{tpu_custom_call.1} parent=11 // pred_check
        %p824 = pneg %p640
      $region114: #{tpu_custom_call.1} parent=11 // pred_check_branch
        %826 = sbr.rel (%p824) target = $region116
      $region115: #{tpu_custom_call.1} parent=11 // pred_region
        _
      $region116: #{tpu_custom_call.1} parent=11 // pred_fallthru
        _
      // Predicated region
      $region117: #{tpu_custom_call.1} parent=11 // pred_check
        %p827 = pneg %p661
      $region118: #{tpu_custom_call.1} parent=11 // pred_check_branch
        %829 = sbr.rel (%p827) target = $region120
      $region119: #{tpu_custom_call.1} parent=11 // pred_region
        _
      $region120: #{tpu_custom_call.1} parent=11 // pred_fallthru
        _
      // Predicated region
      $region121: #{tpu_custom_call.1} parent=11 // pred_check
        %p830 = pneg %p682
      $region122: #{tpu_custom_call.1} parent=11 // pred_check_branch
        %832 = sbr.rel (%p830) target = $region124
      $region123: #{tpu_custom_call.1} parent=11 // pred_region
        _
      $region124: #{tpu_custom_call.1} parent=11 // pred_fallthru
        _
    $region12: #{tpu_custom_call.1} parent=5 // pred_fallthru
      _
    %p833 = scmp.lt.s32.totalorder %s68, 2
    // Predicated region
    $region125: #{tpu_custom_call.1} parent=5 // pred_check
      %p834 = pneg %p833
    $region126: #{tpu_custom_call.1} parent=5 // pred_check_branch
      %836 = sbr.rel (%p834) target = $region128
    $region127: #{tpu_custom_call.1} parent=5 // pred_region
      // Predicated region
      $region129: #{tpu_custom_call.1} parent=127 // pred_check
        %p837 = pneg %p88
      $region130: #{tpu_custom_call.1} parent=127 // pred_check_branch
        %839 = sbr.rel (%p837) target = $region132
      $region131: #{tpu_custom_call.1} parent=127 // pred_region
        %p840 = scmp.lt.s32.totalorder %s68, 1
        %s841 = scalar_select %p840, %s68, 1
        %s842 = smul.addr %s841, 8
        %s843 = smul.addr %s842, 8
        %s844 = scalar_lea.vmem %s1, %s843
      $region132: #{tpu_custom_call.1} parent=127 // pred_fallthru
        _
    $region128: #{tpu_custom_call.1} parent=5 // pred_fallthru
      _
    %p845 = scmp.le.s32.totalorder 1, %s68
    %p846 = scmp.lt.s32.totalorder %s68, 3
    %p847 = pnand %p845, %p846
    %p848 = pneg %p847
    // Predicated region
    $region133: #{tpu_custom_call.1} parent=5 // pred_check
      _
    $region134: #{tpu_custom_call.1} parent=5 // pred_check_branch
      %850 = sbr.rel (%p847) target = $region136
    $region135: #{tpu_custom_call.1} parent=5 // pred_region
      %s851 = ssub.s32 %s68, 1
      %p852 = scmp.lt.s32.totalorder %s73, 1
      %s853 = scalar_select %p852, %s73, 1
      %s854 = smul.addr %s853, 8
      %s855 = smul.addr %s854, 8
      %s856 = scalar_lea.vmem %s1, %s855
      %p857 = pneg %p94
      %p858 = pneg %p91
      %p859 = pneg %p115
      %p860 = pneg %p112
      %p861 = pneg %p136
      %p862 = pneg %p133
      %p863 = pneg %p157
      %p864 = pneg %p154
      %p865 = pneg %p178
      %p866 = pneg %p175
      %p867 = pneg %p199
      %p868 = pneg %p196
      %p869 = pneg %p220
      %p870 = pneg %p217
      %p871 = pneg %p241
      %p872 = pneg %p238
      %p873 = pneg %p262
      %p874 = pneg %p259
      %p875 = pneg %p283
      %p876 = pneg %p280
      %p877 = pneg %p304
      %p878 = pneg %p301
      %p879 = pneg %p325
      %p880 = pneg %p322
      %p881 = pneg %p346
      %p882 = pneg %p343
      %p883 = pneg %p367
      %p884 = pneg %p364
      %p885 = pneg %p388
      %p886 = pneg %p385
      %p887 = pneg %p409
      %p888 = pneg %p406
      %p889 = pneg %p430
      %p890 = pneg %p427
      %p891 = pneg %p451
      %p892 = pneg %p448
      %p893 = pneg %p472
      %p894 = pneg %p469
      %p895 = pneg %p493
      %p896 = pneg %p490
      %p897 = pneg %p514
      %p898 = pneg %p511
      %p899 = pneg %p535
      %p900 = pneg %p532
      %p901 = pneg %p556
      %p902 = pneg %p553
      %p903 = pneg %p577
      %p904 = pneg %p574
      %p905 = pneg %p598
      %p906 = pneg %p595
      %p907 = pneg %p619
      %p908 = pneg %p616
      %p909 = pneg %p640
      %p910 = pneg %p637
      %p911 = pneg %p661
      %p912 = pneg %p658
      %p913 = pneg %p682
      %p914 = pneg %p679
      %p915 = pneg %p708
      %p916 = pneg %p705
      %p917 = scmp.lt.s32.totalorder %s73, 1
      %s918 = scalar_select %p917, %s73, 1
      %s919 = smul.addr %s918, 6
      %s920 = smul.addr %s919, 8
      %s921 = scalar_lea.vmem %s59, %s920
      %p922 = pneg %p734
      %p923 = pneg %p731
      %p924 = scmp.lt.s32.totalorder %s73, 1
      %s925 = scalar_select %p924, %s73, 1
      %s926 = smul.addr %s925, 4
      %s927 = smul.addr %s926, 8
      %s928 = scalar_lea.vmem %s61, %s927
      %p929 = scmp.lt.s32.totalorder %s73, 1
      %s930 = scalar_select %p929, %s73, 1
      %s931 = smul.addr %s930, 8
      %s932 = smul.addr %s931, 8
      %s933 = scalar_lea.vmem %s1, %s932
      %p934 = scmp.lt.s32.totalorder %s73, 1
      %s935 = scalar_select %p934, %s73, 1
      %s936 = smul.addr %s935, 6
      %s937 = smul.addr %s936, 8
      %s938 = scalar_lea.vmem %s59, %s937
      %p939 = scmp.lt.s32.totalorder %s73, 1
      %s940 = scalar_select %p939, %s73, 1
      %s941 = smul.addr %s940, 4
      %s942 = smul.addr %s941, 8
      %s943 = scalar_lea.vmem %s61, %s942
      %v945 = vld [vmem:[%s3] sm:$0xff]
      %v946 = vld [vmem:[%s3 + $0x8] sm:$0x11]
      %v947 = vld [vmem:[%s5] sm:$0xff]
      %v948 = vld [vmem:[%s5 + $0x8] sm:$0xff]
      %v949 = vld [vmem:[%s5 + $0x10] sm:$0xff]
      %v950 = vld [vmem:[%s5 + $0x18] sm:$0xff]
      %v951 = vld [vmem:[%s933] sm:$0xff]
      %v952 = vld [vmem:[%s933 + $0x8] sm:$0xff]
      %v953 = vld [vmem:[%s933 + $0x10] sm:$0xff]
      %v954 = vld [vmem:[%s933 + $0x18] sm:$0xff]
      %v955 = vld [vmem:[%s933 + $0x20] sm:$0xff]
      %v956 = vld [vmem:[%s933 + $0x28] sm:$0xff]
      %v957 = vld [vmem:[%s933 + $0x30] sm:$0xff]
      %v958 = vld [vmem:[%s933 + $0x38] sm:$0xff]
      %959 = vrot.lane.b32.xlu0 %v951, 17
      %v960 = vpop.permute.xlu0 %959
      %961 = vrot.lane.b32.xlu0 %v953, 17
      %v962 = vpop.permute.xlu0 %961
      %963 = vrot.lane.b32.xlu0 %v955, 17
      %v964 = vpop.permute.xlu0 %963
      %965 = vrot.lane.b32.xlu0 %v957, 17
      %v966 = vpop.permute.xlu0 %965
      %967 = vrot.lane.b32.xlu0 %v952, 17
      %v968 = vpop.permute.xlu0 %967
      %969 = vrot.lane.b32.xlu0 %v954, 17
      %v970 = vpop.permute.xlu0 %969
      %971 = vrot.lane.b32.xlu0 %v956, 17
      %v972 = vpop.permute.xlu0 %971
      %973 = vrot.lane.b32.xlu0 %v958, 17
      %v974 = vpop.permute.xlu0 %973
      %v975 = vlaneseq
      %v976 = vand.u32 %v975, 127
      %vm977 = vcmp.lt.s32.totalorder %v976, 17
      %v978 = vsel %vm977, %v960, %v968
      %v979 = vsel %vm977, %v962, %v970
      %v980 = vsel %vm977, %v964, %v972
      %v981 = vsel %vm977, %v966, %v974
      %v982 = vsel %vm977, %v968, %v960
      %v983 = vsel %vm977, %v970, %v962
      %v984 = vsel %vm977, %v972, %v964
      %v985 = vsel %vm977, %v974, %v966
      %v986 = vunpack.c.l.bf16 %v945
      %v987 = vunpack.c.h.bf16 %v945
      %v988 = vlaneseq
      %v989 = vshrl.u32 %v988, 7
      %v990 = vsub.s32 0, %v989
      %v991 = vrot.slane %v986, %v990
      %v992 = vlaneseq
      %v993 = vshrl.u32 %v992, 7
      %v994 = vsub.s32 0, %v993
      %v995 = vrot.slane %v987, %v994
      %v996 = vmul.f32 %v982, %v991
      %v997 = vmul.f32 %v978, %v995
      %v998 = vmul.f32 %v983, %v991
      %v999 = vmul.f32 %v979, %v995
      %v1000 = vmul.f32 %v984, %v991
      %v1001 = vmul.f32 %v980, %v995
      %v1002 = vmul.f32 %v985, %v991
      %v1003 = vmul.f32 %v981, %v995
      %v1004 = vpack.c.bf16 %v998, %v996
      %v1005 = vpack.c.bf16 %v999, %v997
      %v1006 = vpack.c.bf16 %v1002, %v1000
      %v1007 = vpack.c.bf16 %v1003, %v1001
      %1008 = vrot.lane.b32.xlu0 %v951, 16
      %v1009 = vpop.permute.xlu0 %1008
      %1010 = vrot.lane.b32.xlu0 %v953, 16
      %v1011 = vpop.permute.xlu0 %1010
      %1012 = vrot.lane.b32.xlu0 %v955, 16
      %v1013 = vpop.permute.xlu0 %1012
      %1014 = vrot.lane.b32.xlu0 %v957, 16
      %v1015 = vpop.permute.xlu0 %1014
      %1016 = vrot.lane.b32.xlu0 %v952, 16
      %v1017 = vpop.permute.xlu0 %1016
      %1018 = vrot.lane.b32.xlu0 %v954, 16
      %v1019 = vpop.permute.xlu0 %1018
      %1020 = vrot.lane.b32.xlu0 %v956, 16
      %v1021 = vpop.permute.xlu0 %1020
      %1022 = vrot.lane.b32.xlu0 %v958, 16
      %v1023 = vpop.permute.xlu0 %1022
      %vm1024 = vcmp.lt.s32.totalorder %v976, 16
      %v1025 = vsel %vm1024, %v1009, %v1017
      %v1026 = vsel %vm1024, %v1011, %v1019
      %v1027 = vsel %vm1024, %v1013, %v1021
      %v1028 = vsel %vm1024, %v1015, %v1023
      %v1029 = vsel %vm1024, %v1017, %v1009
      %v1030 = vsel %vm1024, %v1019, %v1011
      %v1031 = vsel %vm1024, %v1021, %v1013
      %v1032 = vsel %vm1024, %v1023, %v1015
      %v1033 = vlaneseq
      %v1034 = vshrl.u32 %v1033, 7
      %v1035 = vsub.s32 1, %v1034
      %v1036 = vrot.slane %v986, %v1035
      %v1037 = vlaneseq
      %v1038 = vshrl.u32 %v1037, 7
      %v1039 = vsub.s32 1, %v1038
      %v1040 = vrot.slane %v987, %v1039
      %v1041 = vmul.f32 %v1029, %v1036
      %v1042 = vmul.f32 %v1025, %v1040
      %v1043 = vmul.f32 %v1030, %v1036
      %v1044 = vmul.f32 %v1026, %v1040
      %v1045 = vmul.f32 %v1031, %v1036
      %v1046 = vmul.f32 %v1027, %v1040
      %v1047 = vmul.f32 %v1032, %v1036
      %v1048 = vmul.f32 %v1028, %v1040
      %v1049 = vpack.c.bf16 %v1043, %v1041
      %v1050 = vpack.c.bf16 %v1044, %v1042
      %v1051 = vpack.c.bf16 %v1047, %v1045
      %v1052 = vpack.c.bf16 %v1048, %v1046
      %1053 = vrot.lane.b32.xlu0 %v951, 15
      %v1054 = vpop.permute.xlu0 %1053
      %1055 = vrot.lane.b32.xlu0 %v953, 15
      %v1056 = vpop.permute.xlu0 %1055
      %1057 = vrot.lane.b32.xlu0 %v955, 15
      %v1058 = vpop.permute.xlu0 %1057
      %1059 = vrot.lane.b32.xlu0 %v957, 15
      %v1060 = vpop.permute.xlu0 %1059
      %1061 = vrot.lane.b32.xlu0 %v952, 15
      %v1062 = vpop.permute.xlu0 %1061
      %1063 = vrot.lane.b32.xlu0 %v954, 15
      %v1064 = vpop.permute.xlu0 %1063
      %1065 = vrot.lane.b32.xlu0 %v956, 15
      %v1066 = vpop.permute.xlu0 %1065
      %1067 = vrot.lane.b32.xlu0 %v958, 15
      %v1068 = vpop.permute.xlu0 %1067
      %vm1069 = vcmp.lt.s32.totalorder %v976, 15
      %v1070 = vsel %vm1069, %v1054, %v1062
      %v1071 = vsel %vm1069, %v1056, %v1064
      %v1072 = vsel %vm1069, %v1058, %v1066
      %v1073 = vsel %vm1069, %v1060, %v1068
      %v1074 = vsel %vm1069, %v1062, %v1054
      %v1075 = vsel %vm1069, %v1064, %v1056
      %v1076 = vsel %vm1069, %v1066, %v1058
      %v1077 = vsel %vm1069, %v1068, %v1060
      %v1078 = vlaneseq
      %v1079 = vshrl.u32 %v1078, 7
      %v1080 = vsub.s32 2, %v1079
      %v1081 = vrot.slane %v986, %v1080
      %v1082 = vlaneseq
      %v1083 = vshrl.u32 %v1082, 7
      %v1084 = vsub.s32 2, %v1083
      %v1085 = vrot.slane %v987, %v1084
      %v1086 = vmul.f32 %v1074, %v1081
      %v1087 = vmul.f32 %v1070, %v1085
      %v1088 = vmul.f32 %v1075, %v1081
      %v1089 = vmul.f32 %v1071, %v1085
      %v1090 = vmul.f32 %v1076, %v1081
      %v1091 = vmul.f32 %v1072, %v1085
      %v1092 = vmul.f32 %v1077, %v1081
      %v1093 = vmul.f32 %v1073, %v1085
      %v1094 = vpack.c.bf16 %v1088, %v1086
      %v1095 = vpack.c.bf16 %v1089, %v1087
      %v1096 = vpack.c.bf16 %v1092, %v1090
      %v1097 = vpack.c.bf16 %v1093, %v1091
      %1098 = vrot.lane.b32.xlu0 %v951, 1
      %v1099 = vpop.permute.xlu0 %1098
      %1100 = vrot.lane.b32.xlu0 %v953, 1
      %v1101 = vpop.permute.xlu0 %1100
      %1102 = vrot.lane.b32.xlu0 %v955, 1
      %v1103 = vpop.permute.xlu0 %1102
      %1104 = vrot.lane.b32.xlu0 %v957, 1
      %v1105 = vpop.permute.xlu0 %1104
      %1106 = vrot.lane.b32.xlu0 %v952, 1
      %v1107 = vpop.permute.xlu0 %1106
      %1108 = vrot.lane.b32.xlu0 %v954, 1
      %v1109 = vpop.permute.xlu0 %1108
      %1110 = vrot.lane.b32.xlu0 %v956, 1
      %v1111 = vpop.permute.xlu0 %1110
      %1112 = vrot.lane.b32.xlu0 %v958, 1
      %v1113 = vpop.permute.xlu0 %1112
      %vm1114 = vcmp.lt.s32.totalorder %v976, 1
      %v1115 = vsel %vm1114, %v1099, %v1107
      %v1116 = vsel %vm1114, %v1101, %v1109
      %v1117 = vsel %vm1114, %v1103, %v1111
      %v1118 = vsel %vm1114, %v1105, %v1113
      %v1119 = vsel %vm1114, %v1107, %v1099
      %v1120 = vsel %vm1114, %v1109, %v1101
      %v1121 = vsel %vm1114, %v1111, %v1103
      %v1122 = vsel %vm1114, %v1113, %v1105
      %v1123 = vlaneseq
      %v1124 = vshrl.u32 %v1123, 7
      %v1125 = vsub.s32 3, %v1124
      %v1126 = vrot.slane %v986, %v1125
      %v1127 = vlaneseq
      %v1128 = vshrl.u32 %v1127, 7
      %v1129 = vsub.s32 3, %v1128
      %v1130 = vrot.slane %v987, %v1129
      %v1131 = vmul.f32 %v1119, %v1126
      %v1132 = vmul.f32 %v1115, %v1130
      %v1133 = vmul.f32 %v1120, %v1126
      %v1134 = vmul.f32 %v1116, %v1130
      %v1135 = vmul.f32 %v1121, %v1126
      %v1136 = vmul.f32 %v1117, %v1130
      %v1137 = vmul.f32 %v1122, %v1126
      %v1138 = vmul.f32 %v1118, %v1130
      %v1139 = vpack.c.bf16 %v1133, %v1131
      %v1140 = vpack.c.bf16 %v1134, %v1132
      %v1141 = vpack.c.bf16 %v1137, %v1135
      %v1142 = vpack.c.bf16 %v1138, %v1136
      %v1143 = vpack.c.bf16 %v953, %v951
      %v1144 = vpack.c.bf16 %v954, %v952
      %v1145 = vpack.c.bf16 %v957, %v955
      %v1146 = vpack.c.bf16 %v958, %v956
      %1147 = vrot.lane.b32.xlu0 %v951, 127
      %v1148 = vpop.permute.xlu0 %1147
      %1149 = vrot.lane.b32.xlu0 %v953, 127
      %v1150 = vpop.permute.xlu0 %1149
      %1151 = vrot.lane.b32.xlu0 %v955, 127
      %v1152 = vpop.permute.xlu0 %1151
      %1153 = vrot.lane.b32.xlu0 %v957, 127
      %v1154 = vpop.permute.xlu0 %1153
      %1155 = vrot.lane.b32.xlu0 %v952, 127
      %v1156 = vpop.permute.xlu0 %1155
      %1157 = vrot.lane.b32.xlu0 %v954, 127
      %v1158 = vpop.permute.xlu0 %1157
      %1159 = vrot.lane.b32.xlu0 %v956, 127
      %v1160 = vpop.permute.xlu0 %1159
      %1161 = vrot.lane.b32.xlu0 %v958, 127
      %v1162 = vpop.permute.xlu0 %1161
      %vm1163 = vcmp.lt.s32.totalorder %v976, 127
      %v1164 = vsel %vm1163, %v1148, %v1156
      %v1165 = vsel %vm1163, %v1150, %v1158
      %v1166 = vsel %vm1163, %v1152, %v1160
      %v1167 = vsel %vm1163, %v1154, %v1162
      %v1168 = vsel %vm1163, %v1156, %v1148
      %v1169 = vsel %vm1163, %v1158, %v1150
      %v1170 = vsel %vm1163, %v1160, %v1152
      %v1171 = vsel %vm1163, %v1162, %v1154
      %v1172 = vlaneseq
      %v1173 = vshrl.u32 %v1172, 7
      %v1174 = vsub.s32 5, %v1173
      %v1175 = vrot.slane %v986, %v1174
      %v1176 = vlaneseq
      %v1177 = vshrl.u32 %v1176, 7
      %v1178 = vsub.s32 5, %v1177
      %v1179 = vrot.slane %v987, %v1178
      %v1180 = vmul.f32 %v1164, %v1175
      %v1181 = vmul.f32 %v1168, %v1179
      %v1182 = vmul.f32 %v1165, %v1175
      %v1183 = vmul.f32 %v1169, %v1179
      %v1184 = vmul.f32 %v1166, %v1175
      %v1185 = vmul.f32 %v1170, %v1179
      %v1186 = vmul.f32 %v1167, %v1175
      %v1187 = vmul.f32 %v1171, %v1179
      %v1188 = vpack.c.bf16 %v1182, %v1180
      %v1189 = vpack.c.bf16 %v1183, %v1181
      %v1190 = vpack.c.bf16 %v1186, %v1184
      %v1191 = vpack.c.bf16 %v1187, %v1185
      %1192 = vrot.lane.b32.xlu0 %v951, 113
      %v1193 = vpop.permute.xlu0 %1192
      %1194 = vrot.lane.b32.xlu0 %v953, 113
      %v1195 = vpop.permute.xlu0 %1194
      %1196 = vrot.lane.b32.xlu0 %v955, 113
      %v1197 = vpop.permute.xlu0 %1196
      %1198 = vrot.lane.b32.xlu0 %v957, 113
      %v1199 = vpop.permute.xlu0 %1198
      %1200 = vrot.lane.b32.xlu0 %v952, 113
      %v1201 = vpop.permute.xlu0 %1200
      %1202 = vrot.lane.b32.xlu0 %v954, 113
      %v1203 = vpop.permute.xlu0 %1202
      %1204 = vrot.lane.b32.xlu0 %v956, 113
      %v1205 = vpop.permute.xlu0 %1204
      %1206 = vrot.lane.b32.xlu0 %v958, 113
      %v1207 = vpop.permute.xlu0 %1206
      %vm1208 = vcmp.lt.s32.totalorder %v976, 113
      %v1209 = vsel %vm1208, %v1193, %v1201
      %v1210 = vsel %vm1208, %v1195, %v1203
      %v1211 = vsel %vm1208, %v1197, %v1205
      %v1212 = vsel %vm1208, %v1199, %v1207
      %v1213 = vsel %vm1208, %v1201, %v1193
      %v1214 = vsel %vm1208, %v1203, %v1195
      %v1215 = vsel %vm1208, %v1205, %v1197
      %v1216 = vsel %vm1208, %v1207, %v1199
      %v1217 = vlaneseq
      %v1218 = vshrl.u32 %v1217, 7
      %v1219 = vsub.s32 6, %v1218
      %v1220 = vrot.slane %v986, %v1219
      %v1221 = vlaneseq
      %v1222 = vshrl.u32 %v1221, 7
      %v1223 = vsub.s32 6, %v1222
      %v1224 = vrot.slane %v987, %v1223
      %v1225 = vmul.f32 %v1209, %v1220
      %v1226 = vmul.f32 %v1213, %v1224
      %v1227 = vmul.f32 %v1210, %v1220
      %v1228 = vmul.f32 %v1214, %v1224
      %v1229 = vmul.f32 %v1211, %v1220
      %v1230 = vmul.f32 %v1215, %v1224
      %v1231 = vmul.f32 %v1212, %v1220
      %v1232 = vmul.f32 %v1216, %v1224
      %v1233 = vpack.c.bf16 %v1227, %v1225
      %v1234 = vpack.c.bf16 %v1228, %v1226
      %v1235 = vpack.c.bf16 %v1231, %v1229
      %v1236 = vpack.c.bf16 %v1232, %v1230
      %1237 = vrot.lane.b32.xlu0 %v951, 112
      %v1238 = vpop.permute.xlu0 %1237
      %1239 = vrot.lane.b32.xlu0 %v953, 112
      %v1240 = vpop.permute.xlu0 %1239
      %1241 = vrot.lane.b32.xlu0 %v955, 112
      %v1242 = vpop.permute.xlu0 %1241
      %1243 = vrot.lane.b32.xlu0 %v957, 112
      %v1244 = vpop.permute.xlu0 %1243
      %1245 = vrot.lane.b32.xlu0 %v952, 112
      %v1246 = vpop.permute.xlu0 %1245
      %1247 = vrot.lane.b32.xlu0 %v954, 112
      %v1248 = vpop.permute.xlu0 %1247
      %1249 = vrot.lane.b32.xlu0 %v956, 112
      %v1250 = vpop.permute.xlu0 %1249
      %1251 = vrot.lane.b32.xlu0 %v958, 112
      %v1252 = vpop.permute.xlu0 %1251
      %vm1253 = vcmp.lt.s32.totalorder %v976, 112
      %v1254 = vsel %vm1253, %v1238, %v1246
      %v1255 = vsel %vm1253, %v1240, %v1248
      %v1256 = vsel %vm1253, %v1242, %v1250
      %v1257 = vsel %vm1253, %v1244, %v1252
      %v1258 = vsel %vm1253, %v1246, %v1238
      %v1259 = vsel %vm1253, %v1248, %v1240
      %v1260 = vsel %vm1253, %v1250, %v1242
      %v1261 = vsel %vm1253, %v1252, %v1244
      %v1262 = vlaneseq
      %v1263 = vshrl.u32 %v1262, 7
      %v1264 = vsub.s32 7, %v1263
      %v1265 = vrot.slane %v986, %v1264
      %v1266 = vlaneseq
      %v1267 = vshrl.u32 %v1266, 7
      %v1268 = vsub.s32 7, %v1267
      %v1269 = vrot.slane %v987, %v1268
      %v1270 = vmul.f32 %v1254, %v1265
      %v1271 = vmul.f32 %v1258, %v1269
      %v1272 = vmul.f32 %v1255, %v1265
      %v1273 = vmul.f32 %v1259, %v1269
      %v1274 = vmul.f32 %v1256, %v1265
      %v1275 = vmul.f32 %v1260, %v1269
      %v1276 = vmul.f32 %v1257, %v1265
      %v1277 = vmul.f32 %v1261, %v1269
      %v1278 = vpack.c.bf16 %v1272, %v1270
      %v1279 = vpack.c.bf16 %v1273, %v1271
      %v1280 = vpack.c.bf16 %v1276, %v1274
      %v1281 = vpack.c.bf16 %v1277, %v1275
      %1282 = vrot.lane.b32.xlu0 %v951, 111
      %v1283 = vpop.permute.xlu0 %1282
      %1284 = vrot.lane.b32.xlu0 %v953, 111
      %v1285 = vpop.permute.xlu0 %1284
      %1286 = vrot.lane.b32.xlu0 %v955, 111
      %v1287 = vpop.permute.xlu0 %1286
      %1288 = vrot.lane.b32.xlu0 %v957, 111
      %v1289 = vpop.permute.xlu0 %1288
      %1290 = vrot.lane.b32.xlu0 %v952, 111
      %v1291 = vpop.permute.xlu0 %1290
      %1292 = vrot.lane.b32.xlu0 %v954, 111
      %v1293 = vpop.permute.xlu0 %1292
      %1294 = vrot.lane.b32.xlu0 %v956, 111
      %v1295 = vpop.permute.xlu0 %1294
      %1296 = vrot.lane.b32.xlu0 %v958, 111
      %v1297 = vpop.permute.xlu0 %1296
      %vm1298 = vcmp.lt.s32.totalorder %v976, 111
      %v1299 = vsel %vm1298, %v1283, %v1291
      %v1300 = vsel %vm1298, %v1285, %v1293
      %v1301 = vsel %vm1298, %v1287, %v1295
      %v1302 = vsel %vm1298, %v1289, %v1297
      %v1303 = vsel %vm1298, %v1291, %v1283
      %v1304 = vsel %vm1298, %v1293, %v1285
      %v1305 = vsel %vm1298, %v1295, %v1287
      %v1306 = vsel %vm1298, %v1297, %v1289
      %v1307 = vunpack.c.l.bf16 %v946
      %v1308 = vunpack.c.h.bf16 %v946
      %v1309 = vlaneseq
      %v1310 = vshrl.u32 %v1309, 7
      %v1311 = vsub.s32 0, %v1310
      %v1312 = vrot.slane %v1307, %v1311
      %v1313 = vlaneseq
      %v1314 = vshrl.u32 %v1313, 7
      %v1315 = vsub.s32 0, %v1314
      %v1316 = vrot.slane %v1308, %v1315
      %v1317 = vmul.f32 %v1299, %v1312
      %v1318 = vmul.f32 %v1303, %v1316
      %v1319 = vmul.f32 %v1300, %v1312
      %v1320 = vmul.f32 %v1304, %v1316
      %v1321 = vmul.f32 %v1301, %v1312
      %v1322 = vmul.f32 %v1305, %v1316
      %v1323 = vmul.f32 %v1302, %v1312
      %v1324 = vmul.f32 %v1306, %v1316
      %v1325 = vpack.c.bf16 %v1319, %v1317
      %v1326 = vpack.c.bf16 %v1320, %v1318
      %v1327 = vpack.c.bf16 %v1323, %v1321
      %v1328 = vpack.c.bf16 %v1324, %v1322
      %v1329 = vld [vmem:[%s7] sm:$0xff]
      %v1330 = vld [vmem:[%s7 + $0x8] sm:$0xf]
      %v1331 = vld [vmem:[%s7 + $0xc] sm:$0xff]
      %v1332 = vld [vmem:[%s7 + $0x14] sm:$0xf]
      %v1333 = vld [vmem:[%s7 + $0x18] sm:$0xff]
      %v1334 = vld [vmem:[%s7 + $0x20] sm:$0xf]
      %v1335 = vld [vmem:[%s7 + $0x24] sm:$0xff]
      %v1336 = vld [vmem:[%s7 + $0x2c] sm:$0xf]
      %v1337 = vld [vmem:[%s9] sm:$0xff]
      %v1338 = vld [vmem:[%s9 + $0x8] sm:$0xff]
      %v1339 = vld [vmem:[%s9 + $0x10] sm:$0xff]
      %v1340 = vld [vmem:[%s9 + $0x18] sm:$0xff]
      %1342 = vset.pattern.permute.xlu0 0
      %1343 = vperm.xlu0 %1342, %v1337
      %v1344 = vpop.permute.xlu0 %1343
      %1347 = vset.pattern.permute.xlu0 0
      %1348 = vperm.xlu0 %1347, %v1338
      %v1349 = vpop.permute.xlu0 %1348
      %1352 = vset.pattern.permute.xlu0 0
      %1353 = vperm.xlu0 %1352, %v1339
      %v1354 = vpop.permute.xlu0 %1353
      %1357 = vset.pattern.permute.xlu0 0
      %1358 = vperm.xlu0 %1357, %v1340
      %v1359 = vpop.permute.xlu0 %1358
      %v1369 = vunpack.c.l.b16 %v1329
      %v1370 = vunpack.c.h.b16 %v1329
      %v1371 = vunpack.c.l.b16 %v1330
      %v1372 = vunpack.c.l.b16 %v1331
      %v1373 = vunpack.c.h.b16 %v1331
      %v1374 = vunpack.c.l.b16 %v1332
      %v1375 = vunpack.c.l.b16 %v1333
      %v1376 = vunpack.c.h.b16 %v1333
      %v1377 = vunpack.c.l.b16 %v1334
      %v1378 = vunpack.c.l.b16 %v1335
      %v1379 = vunpack.c.h.b16 %v1335
      %v1380 = vunpack.c.l.b16 %v1336
      %v1381 = vpack.c.b16 %v1372, %v1369
      %v1382 = vpack.c.b16 %v1373, %v1370
      %v1383 = vpack.c.b16 %v1374, %v1371
      %v1384 = vpack.c.b16 %v1378, %v1375
      %v1385 = vpack.c.b16 %v1379, %v1376
      %v1386 = vpack.c.b16 %v1380, %v1377
      %vm1391 = vcmask 261120
      %v1393 = vsel %vm1391, %v1383, 0
      %v1396 = vsel %vm1391, %v1386, 0
      %1398 = vmatprep.subr.bf16.mxu0 %v1005
      %1399 = vmatpush1.bf16.msra.mxu0 %v1004
      %1400 = vmatprep.subr.bf16.mxu0 %v1007
      %1401 = vmatpush1.bf16.msra.mxu0 %v1006
      %1402 = vmatprep.subr.bf16.mxu0 %v1050
      %1403 = vmatpush1.bf16.msra.mxu0 %v1049
      %1404 = vmatprep.subr.bf16.mxu0 %v1052
      %1405 = vmatpush1.bf16.msra.mxu0 %v1051
      %1406 = vmatprep.subr.bf16.mxu0 %v1095
      %1407 = vmatpush1.bf16.msra.mxu0 %v1094
      %1408 = vmatprep.subr.bf16.mxu0 %v1097
      %1409 = vmatpush1.bf16.msra.mxu0 %v1096
      %1410 = vmatprep.subr.bf16.mxu0 %v1140
      %1411 = vmatpush1.bf16.msra.mxu0 %v1139
      %1412 = vmatprep.subr.bf16.mxu0 %v1142
      %1413 = vmatpush1.bf16.msra.mxu0 %v1141
      %1414 = vmatprep.subr.bf16.mxu0 %v1144
      %1415 = vmatpush1.bf16.msra.mxu0 %v1143
      %1416 = vmatprep.subr.bf16.mxu0 %v1146
      %1417 = vmatpush1.bf16.msra.mxu0 %v1145
      %1418 = vmatprep.subr.bf16.mxu0 %v1189
      %1419 = vmatpush1.bf16.msra.mxu0 %v1188
      %1420 = vmatprep.subr.bf16.mxu0 %v1191
      %1421 = vmatpush1.bf16.msra.mxu0 %v1190
      %1422 = vmatprep.subr.bf16.mxu0 %v1234
      %1423 = vmatpush1.bf16.msra.mxu0 %v1233
      %1424 = vmatprep.subr.bf16.mxu0 %v1236
      %1425 = vmatpush1.bf16.msra.mxu0 %v1235
      %1426 = vmatprep.subr.bf16.mxu0 %v1279
      %1427 = vmatpush1.bf16.msra.mxu0 %v1278
      %1428 = vmatprep.subr.bf16.mxu0 %v1281
      %1429 = vmatpush1.bf16.msra.mxu0 %v1280
      %1430 = vmatprep.mubr.bf16.mxu0 %v1382
      %1431 = vmatmul.mubr.bf16.gmra.mrb[0].mxu0 %v1381
      %v1432 = vpop.f32.mrb[0].mxu0
      %v1433 = vadd.f32 %v1344, %v1432
      %v1434 = vpop.f32.mrb[0].mxu0
      %v1435 = vadd.f32 %v1344, %v1434
      %v1436 = vpop.f32.mrb[0].mxu0
      %v1437 = vadd.f32 %v1349, %v1436
      %v1438 = vpop.f32.mrb[0].mxu0
      %v1439 = vadd.f32 %v1349, %v1438
      %1440 = vmatprep.mubr.bf16.mxu0 %v1385
      %1441 = vmatmul.mubr.bf16.gmra.mrb[0].mxu0 %v1384
      %v1442 = vpop.f32.mrb[0].mxu0
      %v1443 = vadd.f32 %v1354, %v1442
      %v1444 = vpop.f32.mrb[0].mxu0
      %v1445 = vadd.f32 %v1354, %v1444
      %v1446 = vpop.f32.mrb[0].mxu0
      %v1447 = vadd.f32 %v1359, %v1446
      %v1448 = vpop.f32.mrb[0].mxu0
      %v1449 = vadd.f32 %v1359, %v1448
      %1450 = vdwg.mxu0
      %1451 = vmatprep.subr.bf16.mxu0 %v1326
      %1452 = vmatpush1.bf16.msra.mxu0 %v1325
      %1453 = vmatprep.subr.bf16.mxu0 %v1328
      %1454 = vmatpush1.bf16.msra.mxu0 %v1327
      %1455 = vmatprep.subr.bf16.mxu0 0
      %1456 = vmatpush1.bf16.msra.mxu0 0
      %1457 = vmatprep.subr.bf16.mxu0 0
      %1458 = vmatpush1.bf16.msra.mxu0 0
      %1459 = vmatprep.subr.bf16.mxu0 0
      %1460 = vmatpush1.bf16.msra.mxu0 0
      %1461 = vmatprep.subr.bf16.mxu0 0
      %1462 = vmatpush1.bf16.msra.mxu0 0
      %1463 = vmatprep.subr.bf16.mxu0 0
      %1464 = vmatpush1.bf16.msra.mxu0 0
      %1465 = vmatprep.subr.bf16.mxu0 0
      %1466 = vmatpush1.bf16.msra.mxu0 0
      %1467 = vmatprep.subr.bf16.mxu0 0
      %1468 = vmatpush1.bf16.msra.mxu0 0
      %1469 = vmatprep.subr.bf16.mxu0 0
      %1470 = vmatpush1.bf16.msra.mxu0 0
      %1471 = vmatprep.subr.bf16.mxu0 0
      %1472 = vmatpush1.bf16.msra.mxu0 0
      %1473 = vmatprep.subr.bf16.mxu0 0
      %1474 = vmatpush1.bf16.msra.mxu0 0
      %1475 = vmatprep.subr.bf16.mxu0 0
      %1476 = vmatpush1.bf16.msra.mxu0 0
      %1477 = vmatprep.subr.bf16.mxu0 0
      %1478 = vmatpush1.bf16.msra.mxu0 0
      %1479 = vmatprep.subr.bf16.mxu0 0
      %1480 = vmatpush1.bf16.msra.mxu0 0
      %1481 = vmatprep.subr.bf16.mxu0 0
      %1482 = vmatpush1.bf16.msra.mxu0 0
      %1483 = vmatprep.mubr.bf16.mxu0 0
      %1484 = vmatmul.mubr.bf16.gmra.mrb[0].mxu0 %v1393
      %v1485 = vpop.f32.mrb[0].mxu0
      %v1486 = vadd.f32 %v1433, %v1485
      %v1487 = vpop.f32.mrb[0].mxu0
      %v1488 = vadd.f32 %v1435, %v1487
      %v1489 = vpop.f32.mrb[0].mxu0
      %v1490 = vadd.f32 %v1437, %v1489
      %v1491 = vpop.f32.mrb[0].mxu0
      %v1492 = vadd.f32 %v1439, %v1491
      %1493 = vmatprep.mubr.bf16.mxu0 0
      %1494 = vmatmul.mubr.bf16.gmra.mrb[0].mxu0 %v1396
      %v1495 = vpop.f32.mrb[0].mxu0
      %v1496 = vadd.f32 %v1443, %v1495
      %v1497 = vpop.f32.mrb[0].mxu0
      %v1498 = vadd.f32 %v1445, %v1497
      %v1499 = vpop.f32.mrb[0].mxu0
      %v1500 = vadd.f32 %v1447, %v1499
      %v1501 = vpop.f32.mrb[0].mxu0
      %v1502 = vadd.f32 %v1449, %v1501
      %1503 = vdwg.mxu0
      %v1504 = vadd.f32 %v1486, %v1488
      %1505 = vadd.xlane.f32.xlu0 %v1504
      %v1506 = vpop.xlane.xlu0 %1505
      %v1507 = vadd.f32 %v1490, %v1492
      %1508 = vadd.xlane.f32.xlu0 %v1507
      %v1509 = vpop.xlane.xlu0 %1508
      %v1510 = vadd.f32 %v1496, %v1498
      %1511 = vadd.xlane.f32.xlu0 %v1510
      %v1512 = vpop.xlane.xlu0 %1511
      %v1513 = vadd.f32 %v1500, %v1502
      %1514 = vadd.xlane.f32.xlu0 %v1513
      %v1515 = vpop.xlane.xlu0 %1514
      %v1516 = vmul.f32 %v1486, %v1486
      %v1517 = vmul.f32 %v1488, %v1488
      %v1518 = vmul.f32 %v1490, %v1490
      %v1519 = vmul.f32 %v1492, %v1492
      %v1520 = vmul.f32 %v1496, %v1496
      %v1521 = vmul.f32 %v1498, %v1498
      %v1522 = vmul.f32 %v1500, %v1500
      %v1523 = vmul.f32 %v1502, %v1502
      %v1524 = vadd.f32 %v1516, %v1517
      %1525 = vadd.xlane.f32.xlu0 %v1524
      %v1526 = vpop.xlane.xlu0 %1525
      %v1527 = vadd.f32 %v1518, %v1519
      %1528 = vadd.xlane.f32.xlu0 %v1527
      %v1529 = vpop.xlane.xlu0 %1528
      %v1530 = vadd.f32 %v1520, %v1521
      %1531 = vadd.xlane.f32.xlu0 %v1530
      %v1532 = vpop.xlane.xlu0 %1531
      %v1533 = vadd.f32 %v1522, %v1523
      %1534 = vadd.xlane.f32.xlu0 %v1533
      %v1535 = vpop.xlane.xlu0 %1534
      %v1537 = vsel %vm1391, %v947, 0
      %v1540 = vsel %vm1391, %v948, 0
      %v1543 = vsel %vm1391, %v949, 0
      %v1546 = vsel %vm1391, %v950, 0
      %1548 = vmatprep.subr.mxu0 0.0
      %1549 = vmatpush1.msra.mxu0 %v1506
      %1550 = vmatprep.subr.mxu0 0.0
      %1551 = vmatpush1.msra.mxu0 %v1509
      %1552 = vmatprep.subr.mxu0 0.0
      %1553 = vmatpush1.msra.mxu0 %v1512
      %1554 = vmatprep.subr.mxu0 0.0
      %1555 = vmatpush1.msra.mxu0 %v1515
      %1556 = vmatprep.subr.mxu0 0.0
      %1557 = vmatpush1.msra.mxu0 0.0
      %1558 = vmatprep.subr.mxu0 0.0
      %1559 = vmatpush1.msra.mxu0 0.0
      %1560 = vmatprep.subr.mxu0 0.0
      %1561 = vmatpush1.msra.mxu0 0.0
      %1562 = vmatprep.subr.mxu0 0.0
      %1563 = vmatpush1.msra.mxu0 0.0
      %1564 = vmatprep.subr.mxu0 0.0
      %1565 = vmatpush1.msra.mxu0 0.0
      %1566 = vmatprep.subr.mxu0 0.0
      %1567 = vmatpush1.msra.mxu0 0.0
      %1568 = vmatprep.subr.mxu0 0.0
      %1569 = vmatpush1.msra.mxu0 0.0
      %1570 = vmatprep.subr.mxu0 0.0
      %1571 = vmatpush1.msra.mxu0 0.0
      %1572 = vmatprep.subr.mxu0 0.0
      %1573 = vmatpush1.msra.mxu0 0.0
      %1574 = vmatprep.subr.mxu0 0.0
      %1575 = vmatpush1.msra.mxu0 0.0
      %1576 = vmatprep.subr.mxu0 0.0
      %1577 = vmatpush1.msra.mxu0 0.0
      %1578 = vmatprep.subr.mxu0 0.0
      %1579 = vmatpush1.msra.mxu0 0.0
      %1580 = vmatprep.subr.mxu0 0.0
      %1581 = vmatpush1.msra.mxu0 0.0
      %1582 = vmatprep.subr.mxu0 0.0
      %1583 = vmatpush1.msra.mxu0 0.0
      %1584 = vmatprep.subr.mxu0 0.0
      %1585 = vmatpush1.msra.mxu0 0.0
      %1586 = vmatprep.subr.mxu0 0.0
      %1587 = vmatpush1.msra.mxu0 0.0
      %1588 = vmatprep.subr.mxu0 0.0
      %1589 = vmatpush1.msra.mxu0 0.0
      %1590 = vmatprep.subr.mxu0 0.0
      %1591 = vmatpush1.msra.mxu0 0.0
      %1592 = vmatprep.subr.mxu0 0.0
      %1593 = vmatpush1.msra.mxu0 0.0
      %1594 = vmatprep.subr.mxu0 0.0
      %1595 = vmatpush1.msra.mxu0 0.0
      %1596 = vmatprep.subr.mxu0 0.0
      %1597 = vmatpush1.msra.mxu0 0.0
      %1598 = vmatprep.subr.mxu0 0.0
      %1599 = vmatpush1.msra.mxu0 0.0
      %1600 = vmatprep.subr.mxu0 0.0
      %1601 = vmatpush1.msra.mxu0 0.0
      %1602 = vmatprep.subr.mxu0 0.0
      %1603 = vmatpush1.msra.mxu0 0.0
      %1604 = vmatprep.subr.mxu0 0.0
      %1605 = vmatpush1.msra.mxu0 0.0
      %1606 = vmatprep.subr.mxu0 0.0
      %1607 = vmatpush1.msra.mxu0 0.0
      %1608 = vmatprep.subr.mxu0 0.0
      %1609 = vmatpush1.msra.mxu0 0.0
      %1610 = vmatprep.subr.mxu0 0.0
      %1611 = vmatpush1.msra.mxu0 0.0
      %1612 = vmatprep.mubr.f32.mxu0 0.0
      %1613 = vmatmul.mubr.f32.gmra.mrb[0].mxu0 %v1537
      %v1614 = vpop.f32.mrb[0].mxu0
      %v1615 = vadd.f32 0.0, %v1614
      %v1616 = vpop.f32.mrb[0].mxu0
      %1617 = vmatprep.mubr.f32.mxu0 0.0
      %1618 = vmatmul.mubr.f32.gmra.mrb[0].mxu0 %v1540
      %v1619 = vpop.f32.mrb[0].mxu0
      %v1620 = vadd.f32 0.0, %v1619
      %v1621 = vpop.f32.mrb[0].mxu0
      %1622 = vmatprep.mubr.f32.mxu0 0.0
      %1623 = vmatmul.mubr.f32.gmra.mrb[0].mxu0 %v1543
      %v1624 = vpop.f32.mrb[0].mxu0
      %v1625 = vadd.f32 0.0, %v1624
      %v1626 = vpop.f32.mrb[0].mxu0
      %1627 = vmatprep.mubr.f32.mxu0 0.0
      %1628 = vmatmul.mubr.f32.gmra.mrb[0].mxu0 %v1546
      %v1629 = vpop.f32.mrb[0].mxu0
      %v1630 = vadd.f32 0.0, %v1629
      %v1631 = vpop.f32.mrb[0].mxu0
      %1632 = vdwg.mxu0
      %1633 = vmatprep.subr.mxu0 0.0
      %1634 = vmatpush1.msra.mxu0 %v1526
      %1635 = vmatprep.subr.mxu0 0.0
      %1636 = vmatpush1.msra.mxu0 %v1529
      %1637 = vmatprep.subr.mxu0 0.0
      %1638 = vmatpush1.msra.mxu0 %v1532
      %1639 = vmatprep.subr.mxu0 0.0
      %1640 = vmatpush1.msra.mxu0 %v1535
      %1641 = vmatprep.subr.mxu0 0.0
      %1642 = vmatpush1.msra.mxu0 0.0
      %1643 = vmatprep.subr.mxu0 0.0
      %1644 = vmatpush1.msra.mxu0 0.0
      %1645 = vmatprep.subr.mxu0 0.0
      %1646 = vmatpush1.msra.mxu0 0.0
      %1647 = vmatprep.subr.mxu0 0.0
      %1648 = vmatpush1.msra.mxu0 0.0
      %1649 = vmatprep.subr.mxu0 0.0
      %1650 = vmatpush1.msra.mxu0 0.0
      %1651 = vmatprep.subr.mxu0 0.0
      %1652 = vmatpush1.msra.mxu0 0.0
      %1653 = vmatprep.subr.mxu0 0.0
      %1654 = vmatpush1.msra.mxu0 0.0
      %1655 = vmatprep.subr.mxu0 0.0
      %1656 = vmatpush1.msra.mxu0 0.0
      %1657 = vmatprep.subr.mxu0 0.0
      %1658 = vmatpush1.msra.mxu0 0.0
      %1659 = vmatprep.subr.mxu0 0.0
      %1660 = vmatpush1.msra.mxu0 0.0
      %1661 = vmatprep.subr.mxu0 0.0
      %1662 = vmatpush1.msra.mxu0 0.0
      %1663 = vmatprep.subr.mxu0 0.0
      %1664 = vmatpush1.msra.mxu0 0.0
      %1665 = vmatprep.subr.mxu0 0.0
      %1666 = vmatpush1.msra.mxu0 0.0
      %1667 = vmatprep.subr.mxu0 0.0
      %1668 = vmatpush1.msra.mxu0 0.0
      %1669 = vmatprep.subr.mxu0 0.0
      %1670 = vmatpush1.msra.mxu0 0.0
      %1671 = vmatprep.subr.mxu0 0.0
      %1672 = vmatpush1.msra.mxu0 0.0
      %1673 = vmatprep.subr.mxu0 0.0
      %1674 = vmatpush1.msra.mxu0 0.0
      %1675 = vmatprep.subr.mxu0 0.0
      %1676 = vmatpush1.msra.mxu0 0.0
      %1677 = vmatprep.subr.mxu0 0.0
      %1678 = vmatpush1.msra.mxu0 0.0
      %1679 = vmatprep.subr.mxu0 0.0
      %1680 = vmatpush1.msra.mxu0 0.0
      %1681 = vmatprep.subr.mxu0 0.0
      %1682 = vmatpush1.msra.mxu0 0.0
      %1683 = vmatprep.subr.mxu0 0.0
      %1684 = vmatpush1.msra.mxu0 0.0
      %1685 = vmatprep.subr.mxu0 0.0
      %1686 = vmatpush1.msra.mxu0 0.0
      %1687 = vmatprep.subr.mxu0 0.0
      %1688 = vmatpush1.msra.mxu0 0.0
      %1689 = vmatprep.subr.mxu0 0.0
      %1690 = vmatpush1.msra.mxu0 0.0
      %1691 = vmatprep.subr.mxu0 0.0
      %1692 = vmatpush1.msra.mxu0 0.0
      %1693 = vmatprep.subr.mxu0 0.0
      %1694 = vmatpush1.msra.mxu0 0.0
      %1695 = vmatprep.subr.mxu0 0.0
      %1696 = vmatpush1.msra.mxu0 0.0
      %1697 = vmatprep.mubr.f32.mxu0 0.0
      %1698 = vmatmul.mubr.f32.gmra.mrb[0].mxu0 %v1537
      %v1699 = vpop.f32.mrb[0].mxu0
      %v1700 = vadd.f32 0.0, %v1699
      %v1701 = vpop.f32.mrb[0].mxu0
      %1702 = vmatprep.mubr.f32.mxu0 0.0
      %1703 = vmatmul.mubr.f32.gmra.mrb[0].mxu0 %v1540
      %v1704 = vpop.f32.mrb[0].mxu0
      %v1705 = vadd.f32 0.0, %v1704
      %v1706 = vpop.f32.mrb[0].mxu0
      %1707 = vmatprep.mubr.f32.mxu0 0.0
      %1708 = vmatmul.mubr.f32.gmra.mrb[0].mxu0 %v1543
      %v1709 = vpop.f32.mrb[0].mxu0
      %v1710 = vadd.f32 0.0, %v1709
      %v1711 = vpop.f32.mrb[0].mxu0
      %1712 = vmatprep.mubr.f32.mxu0 0.0
      %1713 = vmatmul.mubr.f32.gmra.mrb[0].mxu0 %v1546
      %v1714 = vpop.f32.mrb[0].mxu0
      %v1715 = vadd.f32 0.0, %v1714
      %v1716 = vpop.f32.mrb[0].mxu0
      %1717 = vdwg.mxu0
      %v1718 = vmul.f32 %v1615, 0.0009765625
      %v1719 = vmul.f32 %v1620, 0.0009765625
      %v1720 = vmul.f32 %v1625, 0.0009765625
      %v1721 = vmul.f32 %v1630, 0.0009765625
      %v1722 = vmul.f32 %v1700, 0.0009765625
      %v1723 = vmul.f32 %v1705, 0.0009765625
      %v1724 = vmul.f32 %v1710, 0.0009765625
      %v1725 = vmul.f32 %v1715, 0.0009765625
      %v1726 = vmul.f32 %v1718, %v1718
      %v1727 = vmul.f32 %v1719, %v1719
      %v1728 = vmul.f32 %v1720, %v1720
      %v1729 = vmul.f32 %v1721, %v1721
      %v1730 = vsub.f32 %v1722, %v1726
      %v1731 = vsub.f32 %v1723, %v1727
      %v1732 = vsub.f32 %v1724, %v1728
      %v1733 = vsub.f32 %v1725, %v1729
      %v1734 = vmax.f32 %v1730, 0.0
      %v1735 = vmax.f32 %v1731, 0.0
      %v1736 = vmax.f32 %v1732, 0.0
      %v1737 = vmax.f32 %v1733, 0.0
      %v1738 = vadd.f32 %v1734, 1e-05
      %v1739 = vadd.f32 %v1735, 1e-05
      %v1740 = vadd.f32 %v1736, 1e-05
      %v1741 = vadd.f32 %v1737, 1e-05
      %v1742 = vrsqrt.pop %v1738
      %v1743 = vrsqrt.pop %v1739
      %v1744 = vrsqrt.pop %v1740
      %v1745 = vrsqrt.pop %v1741
      %v1746 = vld [vmem:[%s11] sm:$0xff]
      %v1747 = vld [vmem:[%s11 + $0x8] sm:$0xff]
      %v1748 = vld [vmem:[%s11 + $0x10] sm:$0xff]
      %v1749 = vld [vmem:[%s11 + $0x18] sm:$0xff]
      %v1750 = vmul.f32 %v1742, %v1746
      %v1751 = vmul.f32 %v1743, %v1747
      %v1752 = vmul.f32 %v1744, %v1748
      %v1753 = vmul.f32 %v1745, %v1749
      %v1754 = vld [vmem:[%s13] sm:$0xff]
      %v1755 = vld [vmem:[%s13 + $0x8] sm:$0xff]
      %v1756 = vld [vmem:[%s13 + $0x10] sm:$0xff]
      %v1757 = vld [vmem:[%s13 + $0x18] sm:$0xff]
      %v1758 = vmul.f32 %v1718, %v1750
      %v1759 = vmul.f32 %v1719, %v1751
      %v1760 = vmul.f32 %v1720, %v1752
      %v1761 = vmul.f32 %v1721, %v1753
      %v1762 = vsub.f32 %v1754, %v1758
      %v1763 = vsub.f32 %v1755, %v1759
      %v1764 = vsub.f32 %v1756, %v1760
      %v1765 = vsub.f32 %v1757, %v1761
      %1767 = vset.pattern.permute.xlu0 0
      %1768 = vperm.xlu0 %1767, %v1750
      %v1769 = vpop.permute.xlu0 %1768
      %1772 = vset.pattern.permute.xlu0 0
      %1773 = vperm.xlu0 %1772, %v1751
      %v1774 = vpop.permute.xlu0 %1773
      %1777 = vset.pattern.permute.xlu0 0
      %1778 = vperm.xlu0 %1777, %v1752
      %v1779 = vpop.permute.xlu0 %1778
      %1782 = vset.pattern.permute.xlu0 0
      %1783 = vperm.xlu0 %1782, %v1753
      %v1784 = vpop.permute.xlu0 %1783
      %v1786 = vmul.f32 %v1486, %v1769
      %v1787 = vmul.f32 %v1488, %v1769
      %v1788 = vmul.f32 %v1490, %v1774
      %v1789 = vmul.f32 %v1492, %v1774
      %v1790 = vmul.f32 %v1496, %v1779
      %v1791 = vmul.f32 %v1498, %v1779
      %v1792 = vmul.f32 %v1500, %v1784
      %v1793 = vmul.f32 %v1502, %v1784
      %1795 = vset.pattern.permute.xlu0 0
      %1796 = vperm.xlu0 %1795, %v1762
      %v1797 = vpop.permute.xlu0 %1796
      %1800 = vset.pattern.permute.xlu0 0
      %1801 = vperm.xlu0 %1800, %v1763
      %v1802 = vpop.permute.xlu0 %1801
      %1805 = vset.pattern.permute.xlu0 0
      %1806 = vperm.xlu0 %1805, %v1764
      %v1807 = vpop.permute.xlu0 %1806
      %1810 = vset.pattern.permute.xlu0 0
      %1811 = vperm.xlu0 %1810, %v1765
      %v1812 = vpop.permute.xlu0 %1811
      %v1814 = vadd.f32 %v1786, %v1797
      %v1815 = vadd.f32 %v1787, %v1797
      %v1816 = vadd.f32 %v1788, %v1802
      %v1817 = vadd.f32 %v1789, %v1802
      %v1818 = vadd.f32 %v1790, %v1807
      %v1819 = vadd.f32 %v1791, %v1807
      %v1820 = vadd.f32 %v1792, %v1812
      %v1821 = vadd.f32 %v1793, %v1812
      %v1822 = vmax.f32 %v1814, 0.0
      %v1823 = vmax.f32 %v1815, 0.0
      %v1824 = vmax.f32 %v1816, 0.0
      %v1825 = vmax.f32 %v1817, 0.0
      %v1826 = vmax.f32 %v1818, 0.0
      %v1827 = vmax.f32 %v1819, 0.0
      %v1828 = vmax.f32 %v1820, 0.0
      %v1829 = vmax.f32 %v1821, 0.0
      %1830 = vrot.lane.b32.xlu0 %v1822, 17
      %v1831 = vpop.permute.xlu0 %1830
      %1832 = vrot.lane.b32.xlu0 %v1824, 17
      %v1833 = vpop.permute.xlu0 %1832
      %1834 = vrot.lane.b32.xlu0 %v1826, 17
      %v1835 = vpop.permute.xlu0 %1834
      %1836 = vrot.lane.b32.xlu0 %v1828, 17
      %v1837 = vpop.permute.xlu0 %1836
      %1838 = vrot.lane.b32.xlu0 %v1823, 17
      %v1839 = vpop.permute.xlu0 %1838
      %1840 = vrot.lane.b32.xlu0 %v1825, 17
      %v1841 = vpop.permute.xlu0 %1840
      %1842 = vrot.lane.b32.xlu0 %v1827, 17
      %v1843 = vpop.permute.xlu0 %1842
      %1844 = vrot.lane.b32.xlu0 %v1829, 17
      %v1845 = vpop.permute.xlu0 %1844
      %v1846 = vsel %vm977, %v1831, %v1839
      %v1847 = vsel %vm977, %v1833, %v1841
      %v1848 = vsel %vm977, %v1835, %v1843
      %v1849 = vsel %vm977, %v1837, %v1845
      %v1850 = vsel %vm977, %v1839, %v1831
      %v1851 = vsel %vm977, %v1841, %v1833
      %v1852 = vsel %vm977, %v1843, %v1835
      %v1853 = vsel %vm977, %v1845, %v1837
      %v1854 = vmul.f32 %v1850, %v991
      %v1855 = vmul.f32 %v1846, %v995
      %v1856 = vmul.f32 %v1851, %v991
      %v1857 = vmul.f32 %v1847, %v995
      %v1858 = vmul.f32 %v1852, %v991
      %v1859 = vmul.f32 %v1848, %v995
      %v1860 = vmul.f32 %v1853, %v991
      %v1861 = vmul.f32 %v1849, %v995
      %v1862 = vpack.c.bf16 %v1856, %v1854
      %v1863 = vpack.c.bf16 %v1857, %v1855
      %v1864 = vpack.c.bf16 %v1860, %v1858
      %v1865 = vpack.c.bf16 %v1861, %v1859
      %1866 = vrot.lane.b32.xlu0 %v1822, 16
      %v1867 = vpop.permute.xlu0 %1866
      %1868 = vrot.lane.b32.xlu0 %v1824, 16
      %v1869 = vpop.permute.xlu0 %1868
      %1870 = vrot.lane.b32.xlu0 %v1826, 16
      %v1871 = vpop.permute.xlu0 %1870
      %1872 = vrot.lane.b32.xlu0 %v1828, 16
      %v1873 = vpop.permute.xlu0 %1872
      %1874 = vrot.lane.b32.xlu0 %v1823, 16
      %v1875 = vpop.permute.xlu0 %1874
      %1876 = vrot.lane.b32.xlu0 %v1825, 16
      %v1877 = vpop.permute.xlu0 %1876
      %1878 = vrot.lane.b32.xlu0 %v1827, 16
      %v1879 = vpop.permute.xlu0 %1878
      %1880 = vrot.lane.b32.xlu0 %v1829, 16
      %v1881 = vpop.permute.xlu0 %1880
      %v1882 = vsel %vm1024, %v1867, %v1875
      %v1883 = vsel %vm1024, %v1869, %v1877
      %v1884 = vsel %vm1024, %v1871, %v1879
      %v1885 = vsel %vm1024, %v1873, %v1881
      %v1886 = vsel %vm1024, %v1875, %v1867
      %v1887 = vsel %vm1024, %v1877, %v1869
      %v1888 = vsel %vm1024, %v1879, %v1871
      %v1889 = vsel %vm1024, %v1881, %v1873
      %v1890 = vmul.f32 %v1886, %v1036
      %v1891 = vmul.f32 %v1882, %v1040
      %v1892 = vmul.f32 %v1887, %v1036
      %v1893 = vmul.f32 %v1883, %v1040
      %v1894 = vmul.f32 %v1888, %v1036
      %v1895 = vmul.f32 %v1884, %v1040
      %v1896 = vmul.f32 %v1889, %v1036
      %v1897 = vmul.f32 %v1885, %v1040
      %v1898 = vpack.c.bf16 %v1892, %v1890
      %v1899 = vpack.c.bf16 %v1893, %v1891
      %v1900 = vpack.c.bf16 %v1896, %v1894
      %v1901 = vpack.c.bf16 %v1897, %v1895
      %1902 = vrot.lane.b32.xlu0 %v1822, 15
      %v1903 = vpop.permute.xlu0 %1902
      %1904 = vrot.lane.b32.xlu0 %v1824, 15
      %v1905 = vpop.permute.xlu0 %1904
      %1906 = vrot.lane.b32.xlu0 %v1826, 15
      %v1907 = vpop.permute.xlu0 %1906
      %1908 = vrot.lane.b32.xlu0 %v1828, 15
      %v1909 = vpop.permute.xlu0 %1908
      %1910 = vrot.lane.b32.xlu0 %v1823, 15
      %v1911 = vpop.permute.xlu0 %1910
      %1912 = vrot.lane.b32.xlu0 %v1825, 15
      %v1913 = vpop.permute.xlu0 %1912
      %1914 = vrot.lane.b32.xlu0 %v1827, 15
      %v1915 = vpop.permute.xlu0 %1914
      %1916 = vrot.lane.b32.xlu0 %v1829, 15
      %v1917 = vpop.permute.xlu0 %1916
      %v1918 = vsel %vm1069, %v1903, %v1911
      %v1919 = vsel %vm1069, %v1905, %v1913
      %v1920 = vsel %vm1069, %v1907, %v1915
      %v1921 = vsel %vm1069, %v1909, %v1917
      %v1922 = vsel %vm1069, %v1911, %v1903
      %v1923 = vsel %vm1069, %v1913, %v1905
      %v1924 = vsel %vm1069, %v1915, %v1907
      %v1925 = vsel %vm1069, %v1917, %v1909
      %v1926 = vmul.f32 %v1922, %v1081
      %v1927 = vmul.f32 %v1918, %v1085
      %v1928 = vmul.f32 %v1923, %v1081
      %v1929 = vmul.f32 %v1919, %v1085
      %v1930 = vmul.f32 %v1924, %v1081
      %v1931 = vmul.f32 %v1920, %v1085
      %v1932 = vmul.f32 %v1925, %v1081
      %v1933 = vmul.f32 %v1921, %v1085
      %v1934 = vpack.c.bf16 %v1928, %v1926
      %v1935 = vpack.c.bf16 %v1929, %v1927
      %v1936 = vpack.c.bf16 %v1932, %v1930
      %v1937 = vpack.c.bf16 %v1933, %v1931
      %1938 = vrot.lane.b32.xlu0 %v1822, 1
      %v1939 = vpop.permute.xlu0 %1938
      %1940 = vrot.lane.b32.xlu0 %v1824, 1
      %v1941 = vpop.permute.xlu0 %1940
      %1942 = vrot.lane.b32.xlu0 %v1826, 1
      %v1943 = vpop.permute.xlu0 %1942
      %1944 = vrot.lane.b32.xlu0 %v1828, 1
      %v1945 = vpop.permute.xlu0 %1944
      %1946 = vrot.lane.b32.xlu0 %v1823, 1
      %v1947 = vpop.permute.xlu0 %1946
      %1948 = vrot.lane.b32.xlu0 %v1825, 1
      %v1949 = vpop.permute.xlu0 %1948
      %1950 = vrot.lane.b32.xlu0 %v1827, 1
      %v1951 = vpop.permute.xlu0 %1950
      %1952 = vrot.lane.b32.xlu0 %v1829, 1
      %v1953 = vpop.permute.xlu0 %1952
      %v1954 = vsel %vm1114, %v1939, %v1947
      %v1955 = vsel %vm1114, %v1941, %v1949
      %v1956 = vsel %vm1114, %v1943, %v1951
      %v1957 = vsel %vm1114, %v1945, %v1953
      %v1958 = vsel %vm1114, %v1947, %v1939
      %v1959 = vsel %vm1114, %v1949, %v1941
      %v1960 = vsel %vm1114, %v1951, %v1943
      %v1961 = vsel %vm1114, %v1953, %v1945
      %v1962 = vmul.f32 %v1958, %v1126
      %v1963 = vmul.f32 %v1954, %v1130
      %v1964 = vmul.f32 %v1959, %v1126
      %v1965 = vmul.f32 %v1955, %v1130
      %v1966 = vmul.f32 %v1960, %v1126
      %v1967 = vmul.f32 %v1956, %v1130
      %v1968 = vmul.f32 %v1961, %v1126
      %v1969 = vmul.f32 %v1957, %v1130
      %v1970 = vpack.c.bf16 %v1964, %v1962
      %v1971 = vpack.c.bf16 %v1965, %v1963
      %v1972 = vpack.c.bf16 %v1968, %v1966
      %v1973 = vpack.c.bf16 %v1969, %v1967
      %v1974 = vpack.c.bf16 %v1824, %v1822
      %v1975 = vpack.c.bf16 %v1825, %v1823
      %v1976 = vpack.c.bf16 %v1828, %v1826
      %v1977 = vpack.c.bf16 %v1829, %v1827
      %1978 = vrot.lane.b32.xlu0 %v1822, 127
      %v1979 = vpop.permute.xlu0 %1978
      %1980 = vrot.lane.b32.xlu0 %v1824, 127
      %v1981 = vpop.permute.xlu0 %1980
      %1982 = vrot.lane.b32.xlu0 %v1826, 127
      %v1983 = vpop.permute.xlu0 %1982
      %1984 = vrot.lane.b32.xlu0 %v1828, 127
      %v1985 = vpop.permute.xlu0 %1984
      %1986 = vrot.lane.b32.xlu0 %v1823, 127
      %v1987 = vpop.permute.xlu0 %1986
      %1988 = vrot.lane.b32.xlu0 %v1825, 127
      %v1989 = vpop.permute.xlu0 %1988
      %1990 = vrot.lane.b32.xlu0 %v1827, 127
      %v1991 = vpop.permute.xlu0 %1990
      %1992 = vrot.lane.b32.xlu0 %v1829, 127
      %v1993 = vpop.permute.xlu0 %1992
      %v1994 = vsel %vm1163, %v1979, %v1987
      %v1995 = vsel %vm1163, %v1981, %v1989
      %v1996 = vsel %vm1163, %v1983, %v1991
      %v1997 = vsel %vm1163, %v1985, %v1993
      %v1998 = vsel %vm1163, %v1987, %v1979
      %v1999 = vsel %vm1163, %v1989, %v1981
      %v2000 = vsel %vm1163, %v1991, %v1983
      %v2001 = vsel %vm1163, %v1993, %v1985
      %v2002 = vmul.f32 %v1994, %v1175
      %v2003 = vmul.f32 %v1998, %v1179
      %v2004 = vmul.f32 %v1995, %v1175
      %v2005 = vmul.f32 %v1999, %v1179
      %v2006 = vmul.f32 %v1996, %v1175
      %v2007 = vmul.f32 %v2000, %v1179
      %v2008 = vmul.f32 %v1997, %v1175
      %v2009 = vmul.f32 %v2001, %v1179
      %v2010 = vpack.c.bf16 %v2004, %v2002
      %v2011 = vpack.c.bf16 %v2005, %v2003
      %v2012 = vpack.c.bf16 %v2008, %v2006
      %v2013 = vpack.c.bf16 %v2009, %v2007
      %2014 = vrot.lane.b32.xlu0 %v1822, 113
      %v2015 = vpop.permute.xlu0 %2014
      %2016 = vrot.lane.b32.xlu0 %v1824, 113
      %v2017 = vpop.permute.xlu0 %2016
      %2018 = vrot.lane.b32.xlu0 %v1826, 113
      %v2019 = vpop.permute.xlu0 %2018
      %2020 = vrot.lane.b32.xlu0 %v1828, 113
      %v2021 = vpop.permute.xlu0 %2020
      %2022 = vrot.lane.b32.xlu0 %v1823, 113
      %v2023 = vpop.permute.xlu0 %2022
      %2024 = vrot.lane.b32.xlu0 %v1825, 113
      %v2025 = vpop.permute.xlu0 %2024
      %2026 = vrot.lane.b32.xlu0 %v1827, 113
      %v2027 = vpop.permute.xlu0 %2026
      %2028 = vrot.lane.b32.xlu0 %v1829, 113
      %v2029 = vpop.permute.xlu0 %2028
      %v2030 = vsel %vm1208, %v2015, %v2023
      %v2031 = vsel %vm1208, %v2017, %v2025
      %v2032 = vsel %vm1208, %v2019, %v2027
      %v2033 = vsel %vm1208, %v2021, %v2029
      %v2034 = vsel %vm1208, %v2023, %v2015
      %v2035 = vsel %vm1208, %v2025, %v2017
      %v2036 = vsel %vm1208, %v2027, %v2019
      %v2037 = vsel %vm1208, %v2029, %v2021
      %v2038 = vmul.f32 %v2030, %v1220
      %v2039 = vmul.f32 %v2034, %v1224
      %v2040 = vmul.f32 %v2031, %v1220
      %v2041 = vmul.f32 %v2035, %v1224
      %v2042 = vmul.f32 %v2032, %v1220
      %v2043 = vmul.f32 %v2036, %v1224
      %v2044 = vmul.f32 %v2033, %v1220
      %v2045 = vmul.f32 %v2037, %v1224
      %v2046 = vpack.c.bf16 %v2040, %v2038
      %v2047 = vpack.c.bf16 %v2041, %v2039
      %v2048 = vpack.c.bf16 %v2044, %v2042
      %v2049 = vpack.c.bf16 %v2045, %v2043
      %2050 = vrot.lane.b32.xlu0 %v1822, 112
      %v2051 = vpop.permute.xlu0 %2050
      %2052 = vrot.lane.b32.xlu0 %v1824, 112
      %v2053 = vpop.permute.xlu0 %2052
      %2054 = vrot.lane.b32.xlu0 %v1826, 112
      %v2055 = vpop.permute.xlu0 %2054
      %2056 = vrot.lane.b32.xlu0 %v1828, 112
      %v2057 = vpop.permute.xlu0 %2056
      %2058 = vrot.lane.b32.xlu0 %v1823, 112
      %v2059 = vpop.permute.xlu0 %2058
      %2060 = vrot.lane.b32.xlu0 %v1825, 112
      %v2061 = vpop.permute.xlu0 %2060
      %2062 = vrot.lane.b32.xlu0 %v1827, 112
      %v2063 = vpop.permute.xlu0 %2062
      %2064 = vrot.lane.b32.xlu0 %v1829, 112
      %v2065 = vpop.permute.xlu0 %2064
      %v2066 = vsel %vm1253, %v2051, %v2059
      %v2067 = vsel %vm1253, %v2053, %v2061
      %v2068 = vsel %vm1253, %v2055, %v2063
      %v2069 = vsel %vm1253, %v2057, %v2065
      %v2070 = vsel %vm1253, %v2059, %v2051
      %v2071 = vsel %vm1253, %v2061, %v2053
      %v2072 = vsel %vm1253, %v2063, %v2055
      %v2073 = vsel %vm1253, %v2065, %v2057
      %v2074 = vmul.f32 %v2066, %v1265
      %v2075 = vmul.f32 %v2070, %v1269
      %v2076 = vmul.f32 %v2067, %v1265
      %v2077 = vmul.f32 %v2071, %v1269
      %v2078 = vmul.f32 %v2068, %v1265
      %v2079 = vmul.f32 %v2072, %v1269
      %v2080 = vmul.f32 %v2069, %v1265
      %v2081 = vmul.f32 %v2073, %v1269
      %v2082 = vpack.c.bf16 %v2076, %v2074
      %v2083 = vpack.c.bf16 %v2077, %v2075
      %v2084 = vpack.c.bf16 %v2080, %v2078
      %v2085 = vpack.c.bf16 %v2081, %v2079
      %2086 = vrot.lane.b32.xlu0 %v1822, 111
      %v2087 = vpop.permute.xlu0 %2086
      %2088 = vrot.lane.b32.xlu0 %v1824, 111
      %v2089 = vpop.permute.xlu0 %2088
      %2090 = vrot.lane.b32.xlu0 %v1826, 111
      %v2091 = vpop.permute.xlu0 %2090
      %2092 = vrot.lane.b32.xlu0 %v1828, 111
      %v2093 = vpop.permute.xlu0 %2092
      %2094 = vrot.lane.b32.xlu0 %v1823, 111
      %v2095 = vpop.permute.xlu0 %2094
      %2096 = vrot.lane.b32.xlu0 %v1825, 111
      %v2097 = vpop.permute.xlu0 %2096
      %2098 = vrot.lane.b32.xlu0 %v1827, 111
      %v2099 = vpop.permute.xlu0 %2098
      %2100 = vrot.lane.b32.xlu0 %v1829, 111
      %v2101 = vpop.permute.xlu0 %2100
      %v2102 = vsel %vm1298, %v2087, %v2095
      %v2103 = vsel %vm1298, %v2089, %v2097
      %v2104 = vsel %vm1298, %v2091, %v2099
      %v2105 = vsel %vm1298, %v2093, %v2101
      %v2106 = vsel %vm1298, %v2095, %v2087
      %v2107 = vsel %vm1298, %v2097, %v2089
      %v2108 = vsel %vm1298, %v2099, %v2091
      %v2109 = vsel %vm1298, %v2101, %v2093
      %v2110 = vmul.f32 %v2102, %v1312
      %v2111 = vmul.f32 %v2106, %v1316
      %v2112 = vmul.f32 %v2103, %v1312
      %v2113 = vmul.f32 %v2107, %v1316
      %v2114 = vmul.f32 %v2104, %v1312
      %v2115 = vmul.f32 %v2108, %v1316
      %v2116 = vmul.f32 %v2105, %v1312
      %v2117 = vmul.f32 %v2109, %v1316
      %v2118 = vpack.c.bf16 %v2112, %v2110
      %v2119 = vpack.c.bf16 %v2113, %v2111
      %v2120 = vpack.c.bf16 %v2116, %v2114
      %v2121 = vpack.c.bf16 %v2117, %v2115
      %v2122 = vld [vmem:[%s15] sm:$0xff]
      %v2123 = vld [vmem:[%s15 + $0x8] sm:$0xf]
      %v2124 = vld [vmem:[%s15 + $0xc] sm:$0xff]
      %v2125 = vld [vmem:[%s15 + $0x14] sm:$0xf]
      %v2126 = vld [vmem:[%s15 + $0x18] sm:$0xff]
      %v2127 = vld [vmem:[%s15 + $0x20] sm:$0xf]
      %v2128 = vld [vmem:[%s15 + $0x24] sm:$0xff]
      %v2129 = vld [vmem:[%s15 + $0x2c] sm:$0xf]
      %v2130 = vld [vmem:[%s17] sm:$0xff]
      %v2131 = vld [vmem:[%s17 + $0x8] sm:$0xff]
      %v2132 = vld [vmem:[%s17 + $0x10] sm:$0xff]
      %v2133 = vld [vmem:[%s17 + $0x18] sm:$0xff]
      %2135 = vset.pattern.permute.xlu0 0
      %2136 = vperm.xlu0 %2135, %v2130
      %v2137 = vpop.permute.xlu0 %2136
      %2140 = vset.pattern.permute.xlu0 0
      %2141 = vperm.xlu0 %2140, %v2131
      %v2142 = vpop.permute.xlu0 %2141
      %2145 = vset.pattern.permute.xlu0 0
      %2146 = vperm.xlu0 %2145, %v2132
      %v2147 = vpop.permute.xlu0 %2146
      %2150 = vset.pattern.permute.xlu0 0
      %2151 = vperm.xlu0 %2150, %v2133
      %v2152 = vpop.permute.xlu0 %2151
      %v2162 = vunpack.c.l.b16 %v2122
      %v2163 = vunpack.c.h.b16 %v2122
      %v2164 = vunpack.c.l.b16 %v2123
      %v2165 = vunpack.c.l.b16 %v2124
      %v2166 = vunpack.c.h.b16 %v2124
      %v2167 = vunpack.c.l.b16 %v2125
      %v2168 = vunpack.c.l.b16 %v2126
      %v2169 = vunpack.c.h.b16 %v2126
      %v2170 = vunpack.c.l.b16 %v2127
      %v2171 = vunpack.c.l.b16 %v2128
      %v2172 = vunpack.c.h.b16 %v2128
      %v2173 = vunpack.c.l.b16 %v2129
      %v2174 = vpack.c.b16 %v2165, %v2162
      %v2175 = vpack.c.b16 %v2166, %v2163
      %v2176 = vpack.c.b16 %v2167, %v2164
      %v2177 = vpack.c.b16 %v2171, %v2168
      %v2178 = vpack.c.b16 %v2172, %v2169
      %v2179 = vpack.c.b16 %v2173, %v2170
      %v2185 = vsel %vm1391, %v2176, 0
      %v2188 = vsel %vm1391, %v2179, 0
      %2190 = vmatprep.subr.bf16.mxu0 %v1863
      %2191 = vmatpush1.bf16.msra.mxu0 %v1862
      %2192 = vmatprep.subr.bf16.mxu0 %v1865
      %2193 = vmatpush1.bf16.msra.mxu0 %v1864
      %2194 = vmatprep.subr.bf16.mxu0 %v1899
      %2195 = vmatpush1.bf16.msra.mxu0 %v1898
      %2196 = vmatprep.subr.bf16.mxu0 %v1901
      %2197 = vmatpush1.bf16.msra.mxu0 %v1900
      %2198 = vmatprep.subr.bf16.mxu0 %v1935
      %2199 = vmatpush1.bf16.msra.mxu0 %v1934
      %2200 = vmatprep.subr.bf16.mxu0 %v1937
      %2201 = vmatpush1.bf16.msra.mxu0 %v1936
      %2202 = vmatprep.subr.bf16.mxu0 %v1971
      %2203 = vmatpush1.bf16.msra.mxu0 %v1970
      %2204 = vmatprep.subr.bf16.mxu0 %v1973
      %2205 = vmatpush1.bf16.msra.mxu0 %v1972
      %2206 = vmatprep.subr.bf16.mxu0 %v1975
      %2207 = vmatpush1.bf16.msra.mxu0 %v1974
      %2208 = vmatprep.subr.bf16.mxu0 %v1977
      %2209 = vmatpush1.bf16.msra.mxu0 %v1976
      %2210 = vmatprep.subr.bf16.mxu0 %v2011
      %2211 = vmatpush1.bf16.msra.mxu0 %v2010
      %2212 = vmatprep.subr.bf16.mxu0 %v2013
      %2213 = vmatpush1.bf16.msra.mxu0 %v2012
      %2214 = vmatprep.subr.bf16.mxu0 %v2047
      %2215 = vmatpush1.bf16.msra.mxu0 %v2046
      %2216 = vmatprep.subr.bf16.mxu0 %v2049
      %2217 = vmatpush1.bf16.msra.mxu0 %v2048
      %2218 = vmatprep.subr.bf16.mxu0 %v2083
      %2219 = vmatpush1.bf16.msra.mxu0 %v2082
      %2220 = vmatprep.subr.bf16.mxu0 %v2085
      %2221 = vmatpush1.bf16.msra.mxu0 %v2084
      %2222 = vmatprep.mubr.bf16.mxu0 %v2175
      %2223 = vmatmul.mubr.bf16.gmra.mrb[0].mxu0 %v2174
      %v2224 = vpop.f32.mrb[0].mxu0
      %v2225 = vadd.f32 %v2137, %v2224
      %v2226 = vpop.f32.mrb[0].mxu0
      %v2227 = vadd.f32 %v2137, %v2226
      %v2228 = vpop.f32.mrb[0].mxu0
      %v2229 = vadd.f32 %v2142, %v2228
      %v2230 = vpop.f32.mrb[0].mxu0
      %v2231 = vadd.f32 %v2142, %v2230
      %2232 = vmatprep.mubr.bf16.mxu0 %v2178
      %2233 = vmatmul.mubr.bf16.gmra.mrb[0].mxu0 %v2177
      %v2234 = vpop.f32.mrb[0].mxu0
      %v2235 = vadd.f32 %v2147, %v2234
      %v2236 = vpop.f32.mrb[0].mxu0
      %v2237 = vadd.f32 %v2147, %v2236
      %v2238 = vpop.f32.mrb[0].mxu0
      %v2239 = vadd.f32 %v2152, %v2238
      %v2240 = vpop.f32.mrb[0].mxu0
      %v2241 = vadd.f32 %v2152, %v2240
      %2242 = vdwg.mxu0
      %2243 = vmatprep.subr.bf16.mxu0 %v2119
      %2244 = vmatpush1.bf16.msra.mxu0 %v2118
      %2245 = vmatprep.subr.bf16.mxu0 %v2121
      %2246 = vmatpush1.bf16.msra.mxu0 %v2120
      %2247 = vmatprep.subr.bf16.mxu0 0
      %2248 = vmatpush1.bf16.msra.mxu0 0
      %2249 = vmatprep.subr.bf16.mxu0 0
      %2250 = vmatpush1.bf16.msra.mxu0 0
      %2251 = vmatprep.subr.bf16.mxu0 0
      %2252 = vmatpush1.bf16.msra.mxu0 0
      %2253 = vmatprep.subr.bf16.mxu0 0
      %2254 = vmatpush1.bf16.msra.mxu0 0
      %2255 = vmatprep.subr.bf16.mxu0 0
      %2256 = vmatpush1.bf16.msra.mxu0 0
      %2257 = vmatprep.subr.bf16.mxu0 0
      %2258 = vmatpush1.bf16.msra.mxu0 0
      %2259 = vmatprep.subr.bf16.mxu0 0
      %2260 = vmatpush1.bf16.msra.mxu0 0
      %2261 = vmatprep.subr.bf16.mxu0 0
      %2262 = vmatpush1.bf16.msra.mxu0 0
      %2263 = vmatprep.subr.bf16.mxu0 0
      %2264 = vmatpush1.bf16.msra.mxu0 0
      %2265 = vmatprep.subr.bf16.mxu0 0
      %2266 = vmatpush1.bf16.msra.mxu0 0
      %2267 = vmatprep.subr.bf16.mxu0 0
      %2268 = vmatpush1.bf16.msra.mxu0 0
      %2269 = vmatprep.subr.bf16.mxu0 0
      %2270 = vmatpush1.bf16.msra.mxu0 0
      %2271 = vmatprep.subr.bf16.mxu0 0
      %2272 = vmatpush1.bf16.msra.mxu0 0
      %2273 = vmatprep.subr.bf16.mxu0 0
      %2274 = vmatpush1.bf16.msra.mxu0 0
      %2275 = vmatprep.mubr.bf16.mxu0 0
      %2276 = vmatmul.mubr.bf16.gmra.mrb[0].mxu0 %v2185
      %v2277 = vpop.f32.mrb[0].mxu0
      %v2278 = vadd.f32 %v2225, %v2277
      %v2279 = vpop.f32.mrb[0].mxu0
      %v2280 = vadd.f32 %v2227, %v2279
      %v2281 = vpop.f32.mrb[0].mxu0
      %v2282 = vadd.f32 %v2229, %v2281
      %v2283 = vpop.f32.mrb[0].mxu0
      %v2284 = vadd.f32 %v2231, %v2283
      %2285 = vmatprep.mubr.bf16.mxu0 0
      %2286 = vmatmul.mubr.bf16.gmra.mrb[0].mxu0 %v2188
      %v2287 = vpop.f32.mrb[0].mxu0
      %v2288 = vadd.f32 %v2235, %v2287
      %v2289 = vpop.f32.mrb[0].mxu0
      %v2290 = vadd.f32 %v2237, %v2289
      %v2291 = vpop.f32.mrb[0].mxu0
      %v2292 = vadd.f32 %v2239, %v2291
      %v2293 = vpop.f32.mrb[0].mxu0
      %v2294 = vadd.f32 %v2241, %v2293
      %2295 = vdwg.mxu0
      %v2296 = vadd.f32 %v2278, %v2280
      %2297 = vadd.xlane.f32.xlu0 %v2296
      %v2298 = vpop.xlane.xlu0 %2297
      %v2299 = vadd.f32 %v2282, %v2284
      %2300 = vadd.xlane.f32.xlu0 %v2299
      %v2301 = vpop.xlane.xlu0 %2300
      %v2302 = vadd.f32 %v2288, %v2290
      %2303 = vadd.xlane.f32.xlu0 %v2302
      %v2304 = vpop.xlane.xlu0 %2303
      %v2305 = vadd.f32 %v2292, %v2294
      %2306 = vadd.xlane.f32.xlu0 %v2305
      %v2307 = vpop.xlane.xlu0 %2306
      %v2308 = vmul.f32 %v2278, %v2278
      %v2309 = vmul.f32 %v2280, %v2280
      %v2310 = vmul.f32 %v2282, %v2282
      %v2311 = vmul.f32 %v2284, %v2284
      %v2312 = vmul.f32 %v2288, %v2288
      %v2313 = vmul.f32 %v2290, %v2290
      %v2314 = vmul.f32 %v2292, %v2292
      %v2315 = vmul.f32 %v2294, %v2294
      %v2316 = vadd.f32 %v2308, %v2309
      %2317 = vadd.xlane.f32.xlu0 %v2316
      %v2318 = vpop.xlane.xlu0 %2317
      %v2319 = vadd.f32 %v2310, %v2311
      %2320 = vadd.xlane.f32.xlu0 %v2319
      %v2321 = vpop.xlane.xlu0 %2320
      %v2322 = vadd.f32 %v2312, %v2313
      %2323 = vadd.xlane.f32.xlu0 %v2322
      %v2324 = vpop.xlane.xlu0 %2323
      %v2325 = vadd.f32 %v2314, %v2315
      %2326 = vadd.xlane.f32.xlu0 %v2325
      %v2327 = vpop.xlane.xlu0 %2326
      %2328 = vmatprep.subr.mxu0 0.0
      %2329 = vmatpush1.msra.mxu0 %v2298
      %2330 = vmatprep.subr.mxu0 0.0
      %2331 = vmatpush1.msra.mxu0 %v2301
      %2332 = vmatprep.subr.mxu0 0.0
      %2333 = vmatpush1.msra.mxu0 %v2304
      %2334 = vmatprep.subr.mxu0 0.0
      %2335 = vmatpush1.msra.mxu0 %v2307
      %2336 = vmatprep.subr.mxu0 0.0
      %2337 = vmatpush1.msra.mxu0 0.0
      %2338 = vmatprep.subr.mxu0 0.0
      %2339 = vmatpush1.msra.mxu0 0.0
      %2340 = vmatprep.subr.mxu0 0.0
      %2341 = vmatpush1.msra.mxu0 0.0
      %2342 = vmatprep.subr.mxu0 0.0
      %2343 = vmatpush1.msra.mxu0 0.0
      %2344 = vmatprep.subr.mxu0 0.0
      %2345 = vmatpush1.msra.mxu0 0.0
      %2346 = vmatprep.subr.mxu0 0.0
      %2347 = vmatpush1.msra.mxu0 0.0
      %2348 = vmatprep.subr.mxu0 0.0
      %2349 = vmatpush1.msra.mxu0 0.0
      %2350 = vmatprep.subr.mxu0 0.0
      %2351 = vmatpush1.msra.mxu0 0.0
      %2352 = vmatprep.subr.mxu0 0.0
      %2353 = vmatpush1.msra.mxu0 0.0
      %2354 = vmatprep.subr.mxu0 0.0
      %2355 = vmatpush1.msra.mxu0 0.0
      %2356 = vmatprep.subr.mxu0 0.0
      %2357 = vmatpush1.msra.mxu0 0.0
      %2358 = vmatprep.subr.mxu0 0.0
      %2359 = vmatpush1.msra.mxu0 0.0
      %2360 = vmatprep.subr.mxu0 0.0
      %2361 = vmatpush1.msra.mxu0 0.0
      %2362 = vmatprep.subr.mxu0 0.0
      %2363 = vmatpush1.msra.mxu0 0.0
      %2364 = vmatprep.subr.mxu0 0.0
      %2365 = vmatpush1.msra.mxu0 0.0
      %2366 = vmatprep.subr.mxu0 0.0
      %2367 = vmatpush1.msra.mxu0 0.0
      %2368 = vmatprep.subr.mxu0 0.0
      %2369 = vmatpush1.msra.mxu0 0.0
      %2370 = vmatprep.subr.mxu0 0.0
      %2371 = vmatpush1.msra.mxu0 0.0
      %2372 = vmatprep.subr.mxu0 0.0
      %2373 = vmatpush1.msra.mxu0 0.0
      %2374 = vmatprep.subr.mxu0 0.0
      %2375 = vmatpush1.msra.mxu0 0.0
      %2376 = vmatprep.subr.mxu0 0.0
      %2377 = vmatpush1.msra.mxu0 0.0
      %2378 = vmatprep.subr.mxu0 0.0
      %2379 = vmatpush1.msra.mxu0 0.0
      %2380 = vmatprep.subr.mxu0 0.0
      %2381 = vmatpush1.msra.mxu0 0.0
      %2382 = vmatprep.subr.mxu0 0.0
      %2383 = vmatpush1.msra.mxu0 0.0
      %2384 = vmatprep.subr.mxu0 0.0
      %2385 = vmatpush1.msra.mxu0 0.0
      %2386 = vmatprep.subr.mxu0 0.0
      %2387 = vmatpush1.msra.mxu0 0.0
      %2388 = vmatprep.subr.mxu0 0.0
      %2389 = vmatpush1.msra.mxu0 0.0
      %2390 = vmatprep.subr.mxu0 0.0
      %2391 = vmatpush1.msra.mxu0 0.0
      %2392 = vmatprep.mubr.f32.mxu0 0.0
      %2393 = vmatmul.mubr.f32.gmra.mrb[0].mxu0 %v1537
      %v2394 = vpop.f32.mrb[0].mxu0
      %v2395 = vadd.f32 0.0, %v2394
      %v2396 = vpop.f32.mrb[0].mxu0
      %2397 = vmatprep.mubr.f32.mxu0 0.0
      %2398 = vmatmul.mubr.f32.gmra.mrb[0].mxu0 %v1540
      %v2399 = vpop.f32.mrb[0].mxu0
      %v2400 = vadd.f32 0.0, %v2399
      %v2401 = vpop.f32.mrb[0].mxu0
      %2402 = vmatprep.mubr.f32.mxu0 0.0
      %2403 = vmatmul.mubr.f32.gmra.mrb[0].mxu0 %v1543
      %v2404 = vpop.f32.mrb[0].mxu0
      %v2405 = vadd.f32 0.0, %v2404
      %v2406 = vpop.f32.mrb[0].mxu0
      %2407 = vmatprep.mubr.f32.mxu0 0.0
      %2408 = vmatmul.mubr.f32.gmra.mrb[0].mxu0 %v1546
      %v2409 = vpop.f32.mrb[0].mxu0
      %v2410 = vadd.f32 0.0, %v2409
      %v2411 = vpop.f32.mrb[0].mxu0
      %2412 = vdwg.mxu0
      %2413 = vmatprep.subr.mxu0 0.0
      %2414 = vmatpush1.msra.mxu0 %v2318
      %2415 = vmatprep.subr.mxu0 0.0
      %2416 = vmatpush1.msra.mxu0 %v2321
      %2417 = vmatprep.subr.mxu0 0.0
      %2418 = vmatpush1.msra.mxu0 %v2324
      %2419 = vmatprep.subr.mxu0 0.0
      %2420 = vmatpush1.msra.mxu0 %v2327
      %2421 = vmatprep.subr.mxu0 0.0
      %2422 = vmatpush1.msra.mxu0 0.0
      %2423 = vmatprep.subr.mxu0 0.0
      %2424 = vmatpush1.msra.mxu0 0.0
      %2425 = vmatprep.subr.mxu0 0.0
      %2426 = vmatpush1.msra.mxu0 0.0
      %2427 = vmatprep.subr.mxu0 0.0
      %2428 = vmatpush1.msra.mxu0 0.0
      %2429 = vmatprep.subr.mxu0 0.0
      %2430 = vmatpush1.msra.mxu0 0.0
      %2431 = vmatprep.subr.mxu0 0.0
      %2432 = vmatpush1.msra.mxu0 0.0
      %2433 = vmatprep.subr.mxu0 0.0
      %2434 = vmatpush1.msra.mxu0 0.0
      %2435 = vmatprep.subr.mxu0 0.0
      %2436 = vmatpush1.msra.mxu0 0.0
      %2437 = vmatprep.subr.mxu0 0.0
      %2438 = vmatpush1.msra.mxu0 0.0
      %2439 = vmatprep.subr.mxu0 0.0
      %2440 = vmatpush1.msra.mxu0 0.0
      %2441 = vmatprep.subr.mxu0 0.0
      %2442 = vmatpush1.msra.mxu0 0.0
      %2443 = vmatprep.subr.mxu0 0.0
      %2444 = vmatpush1.msra.mxu0 0.0
      %2445 = vmatprep.subr.mxu0 0.0
      %2446 = vmatpush1.msra.mxu0 0.0
      %2447 = vmatprep.subr.mxu0 0.0
      %2448 = vmatpush1.msra.mxu0 0.0
      %2449 = vmatprep.subr.mxu0 0.0
      %2450 = vmatpush1.msra.mxu0 0.0
      %2451 = vmatprep.subr.mxu0 0.0
      %2452 = vmatpush1.msra.mxu0 0.0
      %2453 = vmatprep.subr.mxu0 0.0
      %2454 = vmatpush1.msra.mxu0 0.0
      %2455 = vmatprep.subr.mxu0 0.0
      %2456 = vmatpush1.msra.mxu0 0.0
      %2457 = vmatprep.subr.mxu0 0.0
      %2458 = vmatpush1.msra.mxu0 0.0
      %2459 = vmatprep.subr.mxu0 0.0
      %2460 = vmatpush1.msra.mxu0 0.0
      %2461 = vmatprep.subr.mxu0 0.0
      %2462 = vmatpush1.msra.mxu0 0.0
      %2463 = vmatprep.subr.mxu0 0.0
      %2464 = vmatpush1.msra.mxu0 0.0
      %2465 = vmatprep.subr.mxu0 0.0
      %2466 = vmatpush1.msra.mxu0 0.0
      %2467 = vmatprep.subr.mxu0 0.0
      %2468 = vmatpush1.msra.mxu0 0.0
      %2469 = vmatprep.subr.mxu0 0.0
      %2470 = vmatpush1.msra.mxu0 0.0
      %2471 = vmatprep.subr.mxu0 0.0
      %2472 = vmatpush1.msra.mxu0 0.0
      %2473 = vmatprep.subr.mxu0 0.0
      %2474 = vmatpush1.msra.mxu0 0.0
      %2475 = vmatprep.subr.mxu0 0.0
      %2476 = vmatpush1.msra.mxu0 0.0
      %2477 = vmatprep.mubr.f32.mxu0 0.0
      %2478 = vmatmul.mubr.f32.gmra.mrb[0].mxu0 %v1537
      %v2479 = vpop.f32.mrb[0].mxu0
      %v2480 = vadd.f32 0.0, %v2479
      %v2481 = vpop.f32.mrb[0].mxu0
      %2482 = vmatprep.mubr.f32.mxu0 0.0
      %2483 = vmatmul.mubr.f32.gmra.mrb[0].mxu0 %v1540
      %v2484 = vpop.f32.mrb[0].mxu0
      %v2485 = vadd.f32 0.0, %v2484
      %v2486 = vpop.f32.mrb[0].mxu0
      %2487 = vmatprep.mubr.f32.mxu0 0.0
      %2488 = vmatmul.mubr.f32.gmra.mrb[0].mxu0 %v1543
      %v2489 = vpop.f32.mrb[0].mxu0
      %v2490 = vadd.f32 0.0, %v2489
      %v2491 = vpop.f32.mrb[0].mxu0
      %2492 = vmatprep.mubr.f32.mxu0 0.0
      %2493 = vmatmul.mubr.f32.gmra.mrb[0].mxu0 %v1546
      %v2494 = vpop.f32.mrb[0].mxu0
      %v2495 = vadd.f32 0.0, %v2494
      %v2496 = vpop.f32.mrb[0].mxu0
      %2497 = vdwg.mxu0
      %v2498 = vmul.f32 %v2395, 0.0009765625
      %v2499 = vmul.f32 %v2400, 0.0009765625
      %v2500 = vmul.f32 %v2405, 0.0009765625
      %v2501 = vmul.f32 %v2410, 0.0009765625
      %v2502 = vmul.f32 %v2480, 0.0009765625
      %v2503 = vmul.f32 %v2485, 0.0009765625
      %v2504 = vmul.f32 %v2490, 0.0009765625
      %v2505 = vmul.f32 %v2495, 0.0009765625
      %v2506 = vmul.f32 %v2498, %v2498
      %v2507 = vmul.f32 %v2499, %v2499
      %v2508 = vmul.f32 %v2500, %v2500
      %v2509 = vmul.f32 %v2501, %v2501
      %v2510 = vsub.f32 %v2502, %v2506
      %v2511 = vsub.f32 %v2503, %v2507
      %v2512 = vsub.f32 %v2504, %v2508
      %v2513 = vsub.f32 %v2505, %v2509
      %v2514 = vmax.f32 %v2510, 0.0
      %v2515 = vmax.f32 %v2511, 0.0
      %v2516 = vmax.f32 %v2512, 0.0
      %v2517 = vmax.f32 %v2513, 0.0
      %v2518 = vadd.f32 %v2514, 1e-05
      %v2519 = vadd.f32 %v2515, 1e-05
      %v2520 = vadd.f32 %v2516, 1e-05
      %v2521 = vadd.f32 %v2517, 1e-05
      %v2522 = vrsqrt.pop %v2518
      %v2523 = vrsqrt.pop %v2519
      %v2524 = vrsqrt.pop %v2520
      %v2525 = vrsqrt.pop %v2521
      %v2526 = vld [vmem:[%s19] sm:$0xff]
      %v2527 = vld [vmem:[%s19 + $0x8] sm:$0xff]
      %v2528 = vld [vmem:[%s19 + $0x10] sm:$0xff]
      %v2529 = vld [vmem:[%s19 + $0x18] sm:$0xff]
      %v2530 = vmul.f32 %v2522, %v2526
      %v2531 = vmul.f32 %v2523, %v2527
      %v2532 = vmul.f32 %v2524, %v2528
      %v2533 = vmul.f32 %v2525, %v2529
      %v2534 = vld [vmem:[%s21] sm:$0xff]
      %v2535 = vld [vmem:[%s21 + $0x8] sm:$0xff]
      %v2536 = vld [vmem:[%s21 + $0x10] sm:$0xff]
      %v2537 = vld [vmem:[%s21 + $0x18] sm:$0xff]
      %v2538 = vmul.f32 %v2498, %v2530
      %v2539 = vmul.f32 %v2499, %v2531
      %v2540 = vmul.f32 %v2500, %v2532
      %v2541 = vmul.f32 %v2501, %v2533
      %v2542 = vsub.f32 %v2534, %v2538
      %v2543 = vsub.f32 %v2535, %v2539
      %v2544 = vsub.f32 %v2536, %v2540
      %v2545 = vsub.f32 %v2537, %v2541
      %2547 = vset.pattern.permute.xlu0 0
      %2548 = vperm.xlu0 %2547, %v2530
      %v2549 = vpop.permute.xlu0 %2548
      %2552 = vset.pattern.permute.xlu0 0
      %2553 = vperm.xlu0 %2552, %v2531
      %v2554 = vpop.permute.xlu0 %2553
      %2557 = vset.pattern.permute.xlu0 0
      %2558 = vperm.xlu0 %2557, %v2532
      %v2559 = vpop.permute.xlu0 %2558
      %2562 = vset.pattern.permute.xlu0 0
      %2563 = vperm.xlu0 %2562, %v2533
      %v2564 = vpop.permute.xlu0 %2563
      %v2566 = vmul.f32 %v2278, %v2549
      %v2567 = vmul.f32 %v2280, %v2549
      %v2568 = vmul.f32 %v2282, %v2554
      %v2569 = vmul.f32 %v2284, %v2554
      %v2570 = vmul.f32 %v2288, %v2559
      %v2571 = vmul.f32 %v2290, %v2559
      %v2572 = vmul.f32 %v2292, %v2564
      %v2573 = vmul.f32 %v2294, %v2564
      %2575 = vset.pattern.permute.xlu0 0
      %2576 = vperm.xlu0 %2575, %v2542
      %v2577 = vpop.permute.xlu0 %2576
      %2580 = vset.pattern.permute.xlu0 0
      %2581 = vperm.xlu0 %2580, %v2543
      %v2582 = vpop.permute.xlu0 %2581
      %2585 = vset.pattern.permute.xlu0 0
      %2586 = vperm.xlu0 %2585, %v2544
      %v2587 = vpop.permute.xlu0 %2586
      %2590 = vset.pattern.permute.xlu0 0
      %2591 = vperm.xlu0 %2590, %v2545
      %v2592 = vpop.permute.xlu0 %2591
      %v2594 = vadd.f32 %v2566, %v2577
      %v2595 = vadd.f32 %v2567, %v2577
      %v2596 = vadd.f32 %v2568, %v2582
      %v2597 = vadd.f32 %v2569, %v2582
      %v2598 = vadd.f32 %v2570, %v2587
      %v2599 = vadd.f32 %v2571, %v2587
      %v2600 = vadd.f32 %v2572, %v2592
      %v2601 = vadd.f32 %v2573, %v2592
      %v2602 = vmax.f32 %v2594, 0.0
      %v2603 = vmax.f32 %v2595, 0.0
      %v2604 = vmax.f32 %v2596, 0.0
      %v2605 = vmax.f32 %v2597, 0.0
      %v2606 = vmax.f32 %v2598, 0.0
      %v2607 = vmax.f32 %v2599, 0.0
      %v2608 = vmax.f32 %v2600, 0.0
      %v2609 = vmax.f32 %v2601, 0.0
      %2610 = vrot.lane.b32.xlu0 %v2602, 17
      %v2611 = vpop.permute.xlu0 %2610
      %2612 = vrot.lane.b32.xlu0 %v2604, 17
      %v2613 = vpop.permute.xlu0 %2612
      %2614 = vrot.lane.b32.xlu0 %v2606, 17
      %v2615 = vpop.permute.xlu0 %2614
      %2616 = vrot.lane.b32.xlu0 %v2608, 17
      %v2617 = vpop.permute.xlu0 %2616
      %2618 = vrot.lane.b32.xlu0 %v2603, 17
      %v2619 = vpop.permute.xlu0 %2618
      %2620 = vrot.lane.b32.xlu0 %v2605, 17
      %v2621 = vpop.permute.xlu0 %2620
      %2622 = vrot.lane.b32.xlu0 %v2607, 17
      %v2623 = vpop.permute.xlu0 %2622
      %2624 = vrot.lane.b32.xlu0 %v2609, 17
      %v2625 = vpop.permute.xlu0 %2624
      %v2626 = vsel %vm977, %v2611, %v2619
      %v2627 = vsel %vm977, %v2613, %v2621
      %v2628 = vsel %vm977, %v2615, %v2623
      %v2629 = vsel %vm977, %v2617, %v2625
      %v2630 = vsel %vm977, %v2619, %v2611
      %v2631 = vsel %vm977, %v2621, %v2613
      %v2632 = vsel %vm977, %v2623, %v2615
      %v2633 = vsel %vm977, %v2625, %v2617
      %v2634 = vmul.f32 %v2630, %v991
      %v2635 = vmul.f32 %v2626, %v995
      %v2636 = vmul.f32 %v2631, %v991
      %v2637 = vmul.f32 %v2627, %v995
      %v2638 = vmul.f32 %v2632, %v991
      %v2639 = vmul.f32 %v2628, %v995
      %v2640 = vmul.f32 %v2633, %v991
      %v2641 = vmul.f32 %v2629, %v995
      %v2642 = vpack.c.bf16 %v2636, %v2634
      %v2643 = vpack.c.bf16 %v2637, %v2635
      %v2644 = vpack.c.bf16 %v2640, %v2638
      %v2645 = vpack.c.bf16 %v2641, %v2639
      %2646 = vrot.lane.b32.xlu0 %v2602, 16
      %v2647 = vpop.permute.xlu0 %2646
      %2648 = vrot.lane.b32.xlu0 %v2604, 16
      %v2649 = vpop.permute.xlu0 %2648
      %2650 = vrot.lane.b32.xlu0 %v2606, 16
      %v2651 = vpop.permute.xlu0 %2650
      %2652 = vrot.lane.b32.xlu0 %v2608, 16
      %v2653 = vpop.permute.xlu0 %2652
      %2654 = vrot.lane.b32.xlu0 %v2603, 16
      %v2655 = vpop.permute.xlu0 %2654
      %2656 = vrot.lane.b32.xlu0 %v2605, 16
      %v2657 = vpop.permute.xlu0 %2656
      %2658 = vrot.lane.b32.xlu0 %v2607, 16
      %v2659 = vpop.permute.xlu0 %2658
      %2660 = vrot.lane.b32.xlu0 %v2609, 16
      %v2661 = vpop.permute.xlu0 %2660
      %v2662 = vsel %vm1024, %v2647, %v2655
      %v2663 = vsel %vm1024, %v2649, %v2657
      %v2664 = vsel %vm1024, %v2651, %v2659
      %v2665 = vsel %vm1024, %v2653, %v2661
      %v2666 = vsel %vm1024, %v2655, %v2647
      %v2667 = vsel %vm1024, %v2657, %v2649
      %v2668 = vsel %vm1024, %v2659, %v2651
      %v2669 = vsel %vm1024, %v2661, %v2653
      %v2670 = vmul.f32 %v2666, %v1036
      %v2671 = vmul.f32 %v2662, %v1040
      %v2672 = vmul.f32 %v2667, %v1036
      %v2673 = vmul.f32 %v2663, %v1040
      %v2674 = vmul.f32 %v2668, %v1036
      %v2675 = vmul.f32 %v2664, %v1040
      %v2676 = vmul.f32 %v2669, %v1036
      %v2677 = vmul.f32 %v2665, %v1040
      %v2678 = vpack.c.bf16 %v2672, %v2670
      %v2679 = vpack.c.bf16 %v2673, %v2671
      %v2680 = vpack.c.bf16 %v2676, %v2674
      %v2681 = vpack.c.bf16 %v2677, %v2675
      %2682 = vrot.lane.b32.xlu0 %v2602, 15
      %v2683 = vpop.permute.xlu0 %2682
      %2684 = vrot.lane.b32.xlu0 %v2604, 15
      %v2685 = vpop.permute.xlu0 %2684
      %2686 = vrot.lane.b32.xlu0 %v2606, 15
      %v2687 = vpop.permute.xlu0 %2686
      %2688 = vrot.lane.b32.xlu0 %v2608, 15
      %v2689 = vpop.permute.xlu0 %2688
      %2690 = vrot.lane.b32.xlu0 %v2603, 15
      %v2691 = vpop.permute.xlu0 %2690
      %2692 = vrot.lane.b32.xlu0 %v2605, 15
      %v2693 = vpop.permute.xlu0 %2692
      %2694 = vrot.lane.b32.xlu0 %v2607, 15
      %v2695 = vpop.permute.xlu0 %2694
      %2696 = vrot.lane.b32.xlu0 %v2609, 15
      %v2697 = vpop.permute.xlu0 %2696
      %v2698 = vsel %vm1069, %v2683, %v2691
      %v2699 = vsel %vm1069, %v2685, %v2693
      %v2700 = vsel %vm1069, %v2687, %v2695
      %v2701 = vsel %vm1069, %v2689, %v2697
      %v2702 = vsel %vm1069, %v2691, %v2683
      %v2703 = vsel %vm1069, %v2693, %v2685
      %v2704 = vsel %vm1069, %v2695, %v2687
      %v2705 = vsel %vm1069, %v2697, %v2689
      %v2706 = vmul.f32 %v2702, %v1081
      %v2707 = vmul.f32 %v2698, %v1085
      %v2708 = vmul.f32 %v2703, %v1081
      %v2709 = vmul.f32 %v2699, %v1085
      %v2710 = vmul.f32 %v2704, %v1081
      %v2711 = vmul.f32 %v2700, %v1085
      %v2712 = vmul.f32 %v2705, %v1081
      %v2713 = vmul.f32 %v2701, %v1085
      %v2714 = vpack.c.bf16 %v2708, %v2706
      %v2715 = vpack.c.bf16 %v2709, %v2707
      %v2716 = vpack.c.bf16 %v2712, %v2710
      %v2717 = vpack.c.bf16 %v2713, %v2711
      %2718 = vrot.lane.b32.xlu0 %v2602, 1
      %v2719 = vpop.permute.xlu0 %2718
      %2720 = vrot.lane.b32.xlu0 %v2604, 1
      %v2721 = vpop.permute.xlu0 %2720
      %2722 = vrot.lane.b32.xlu0 %v2606, 1
      %v2723 = vpop.permute.xlu0 %2722
      %2724 = vrot.lane.b32.xlu0 %v2608, 1
      %v2725 = vpop.permute.xlu0 %2724
      %2726 = vrot.lane.b32.xlu0 %v2603, 1
      %v2727 = vpop.permute.xlu0 %2726
      %2728 = vrot.lane.b32.xlu0 %v2605, 1
      %v2729 = vpop.permute.xlu0 %2728
      %2730 = vrot.lane.b32.xlu0 %v2607, 1
      %v2731 = vpop.permute.xlu0 %2730
      %2732 = vrot.lane.b32.xlu0 %v2609, 1
      %v2733 = vpop.permute.xlu0 %2732
      %v2734 = vsel %vm1114, %v2719, %v2727
      %v2735 = vsel %vm1114, %v2721, %v2729
      %v2736 = vsel %vm1114, %v2723, %v2731
      %v2737 = vsel %vm1114, %v2725, %v2733
      %v2738 = vsel %vm1114, %v2727, %v2719
      %v2739 = vsel %vm1114, %v2729, %v2721
      %v2740 = vsel %vm1114, %v2731, %v2723
      %v2741 = vsel %vm1114, %v2733, %v2725
      %v2742 = vmul.f32 %v2738, %v1126
      %v2743 = vmul.f32 %v2734, %v1130
      %v2744 = vmul.f32 %v2739, %v1126
      %v2745 = vmul.f32 %v2735, %v1130
      %v2746 = vmul.f32 %v2740, %v1126
      %v2747 = vmul.f32 %v2736, %v1130
      %v2748 = vmul.f32 %v2741, %v1126
      %v2749 = vmul.f32 %v2737, %v1130
      %v2750 = vpack.c.bf16 %v2744, %v2742
      %v2751 = vpack.c.bf16 %v2745, %v2743
      %v2752 = vpack.c.bf16 %v2748, %v2746
      %v2753 = vpack.c.bf16 %v2749, %v2747
      %v2754 = vpack.c.bf16 %v2604, %v2602
      %v2755 = vpack.c.bf16 %v2605, %v2603
      %v2756 = vpack.c.bf16 %v2608, %v2606
      %v2757 = vpack.c.bf16 %v2609, %v2607
      %2758 = vrot.lane.b32.xlu0 %v2602, 127
      %v2759 = vpop.permute.xlu0 %2758
      %2760 = vrot.lane.b32.xlu0 %v2604, 127
      %v2761 = vpop.permute.xlu0 %2760
      %2762 = vrot.lane.b32.xlu0 %v2606, 127
      %v2763 = vpop.permute.xlu0 %2762
      %2764 = vrot.lane.b32.xlu0 %v2608, 127
      %v2765 = vpop.permute.xlu0 %2764
      %2766 = vrot.lane.b32.xlu0 %v2603, 127
      %v2767 = vpop.permute.xlu0 %2766
      %2768 = vrot.lane.b32.xlu0 %v2605, 127
      %v2769 = vpop.permute.xlu0 %2768
      %2770 = vrot.lane.b32.xlu0 %v2607, 127
      %v2771 = vpop.permute.xlu0 %2770
      %2772 = vrot.lane.b32.xlu0 %v2609, 127
      %v2773 = vpop.permute.xlu0 %2772
      %v2774 = vsel %vm1163, %v2759, %v2767
      %v2775 = vsel %vm1163, %v2761, %v2769
      %v2776 = vsel %vm1163, %v2763, %v2771
      %v2777 = vsel %vm1163, %v2765, %v2773
      %v2778 = vsel %vm1163, %v2767, %v2759
      %v2779 = vsel %vm1163, %v2769, %v2761
      %v2780 = vsel %vm1163, %v2771, %v2763
      %v2781 = vsel %vm1163, %v2773, %v2765
      %v2782 = vmul.f32 %v2774, %v1175
      %v2783 = vmul.f32 %v2778, %v1179
      %v2784 = vmul.f32 %v2775, %v1175
      %v2785 = vmul.f32 %v2779, %v1179
      %v2786 = vmul.f32 %v2776, %v1175
      %v2787 = vmul.f32 %v2780, %v1179
      %v2788 = vmul.f32 %v2777, %v1175
      %v2789 = vmul.f32 %v2781, %v1179
      %v2790 = vpack.c.bf16 %v2784, %v2782
      %v2791 = vpack.c.bf16 %v2785, %v2783
      %v2792 = vpack.c.bf16 %v2788, %v2786
      %v2793 = vpack.c.bf16 %v2789, %v2787
      %2794 = vrot.lane.b32.xlu0 %v2602, 113
      %v2795 = vpop.permute.xlu0 %2794
      %2796 = vrot.lane.b32.xlu0 %v2604, 113
      %v2797 = vpop.permute.xlu0 %2796
      %2798 = vrot.lane.b32.xlu0 %v2606, 113
      %v2799 = vpop.permute.xlu0 %2798
      %2800 = vrot.lane.b32.xlu0 %v2608, 113
      %v2801 = vpop.permute.xlu0 %2800
      %2802 = vrot.lane.b32.xlu0 %v2603, 113
      %v2803 = vpop.permute.xlu0 %2802
      %2804 = vrot.lane.b32.xlu0 %v2605, 113
      %v2805 = vpop.permute.xlu0 %2804
      %2806 = vrot.lane.b32.xlu0 %v2607, 113
      %v2807 = vpop.permute.xlu0 %2806
      %2808 = vrot.lane.b32.xlu0 %v2609, 113
      %v2809 = vpop.permute.xlu0 %2808
      %v2810 = vsel %vm1208, %v2795, %v2803
      %v2811 = vsel %vm1208, %v2797, %v2805
      %v2812 = vsel %vm1208, %v2799, %v2807
      %v2813 = vsel %vm1208, %v2801, %v2809
      %v2814 = vsel %vm1208, %v2803, %v2795
      %v2815 = vsel %vm1208, %v2805, %v2797
      %v2816 = vsel %vm1208, %v2807, %v2799
      %v2817 = vsel %vm1208, %v2809, %v2801
      %v2818 = vmul.f32 %v2810, %v1220
      %v2819 = vmul.f32 %v2814, %v1224
      %v2820 = vmul.f32 %v2811, %v1220
      %v2821 = vmul.f32 %v2815, %v1224
      %v2822 = vmul.f32 %v2812, %v1220
      %v2823 = vmul.f32 %v2816, %v1224
      %v2824 = vmul.f32 %v2813, %v1220
      %v2825 = vmul.f32 %v2817, %v1224
      %v2826 = vpack.c.bf16 %v2820, %v2818
      %v2827 = vpack.c.bf16 %v2821, %v2819
      %v2828 = vpack.c.bf16 %v2824, %v2822
      %v2829 = vpack.c.bf16 %v2825, %v2823
      %2830 = vrot.lane.b32.xlu0 %v2602, 112
      %v2831 = vpop.permute.xlu0 %2830
      %2832 = vrot.lane.b32.xlu0 %v2604, 112
      %v2833 = vpop.permute.xlu0 %2832
      %2834 = vrot.lane.b32.xlu0 %v2606, 112
      %v2835 = vpop.permute.xlu0 %2834
      %2836 = vrot.lane.b32.xlu0 %v2608, 112
      %v2837 = vpop.permute.xlu0 %2836
      %2838 = vrot.lane.b32.xlu0 %v2603, 112
      %v2839 = vpop.permute.xlu0 %2838
      %2840 = vrot.lane.b32.xlu0 %v2605, 112
      %v2841 = vpop.permute.xlu0 %2840
      %2842 = vrot.lane.b32.xlu0 %v2607, 112
      %v2843 = vpop.permute.xlu0 %2842
      %2844 = vrot.lane.b32.xlu0 %v2609, 112
      %v2845 = vpop.permute.xlu0 %2844
      %v2846 = vsel %vm1253, %v2831, %v2839
      %v2847 = vsel %vm1253, %v2833, %v2841
      %v2848 = vsel %vm1253, %v2835, %v2843
      %v2849 = vsel %vm1253, %v2837, %v2845
      %v2850 = vsel %vm1253, %v2839, %v2831
      %v2851 = vsel %vm1253, %v2841, %v2833
      %v2852 = vsel %vm1253, %v2843, %v2835
      %v2853 = vsel %vm1253, %v2845, %v2837
      %v2854 = vmul.f32 %v2846, %v1265
      %v2855 = vmul.f32 %v2850, %v1269
      %v2856 = vmul.f32 %v2847, %v1265
      %v2857 = vmul.f32 %v2851, %v1269
      %v2858 = vmul.f32 %v2848, %v1265
      %v2859 = vmul.f32 %v2852, %v1269
      %v2860 = vmul.f32 %v2849, %v1265
      %v2861 = vmul.f32 %v2853, %v1269
      %v2862 = vpack.c.bf16 %v2856, %v2854
      %v2863 = vpack.c.bf16 %v2857, %v2855
      %v2864 = vpack.c.bf16 %v2860, %v2858
      %v2865 = vpack.c.bf16 %v2861, %v2859
      %2866 = vrot.lane.b32.xlu0 %v2602, 111
      %v2867 = vpop.permute.xlu0 %2866
      %2868 = vrot.lane.b32.xlu0 %v2604, 111
      %v2869 = vpop.permute.xlu0 %2868
      %2870 = vrot.lane.b32.xlu0 %v2606, 111
      %v2871 = vpop.permute.xlu0 %2870
      %2872 = vrot.lane.b32.xlu0 %v2608, 111
      %v2873 = vpop.permute.xlu0 %2872
      %2874 = vrot.lane.b32.xlu0 %v2603, 111
      %v2875 = vpop.permute.xlu0 %2874
      %2876 = vrot.lane.b32.xlu0 %v2605, 111
      %v2877 = vpop.permute.xlu0 %2876
      %2878 = vrot.lane.b32.xlu0 %v2607, 111
      %v2879 = vpop.permute.xlu0 %2878
      %2880 = vrot.lane.b32.xlu0 %v2609, 111
      %v2881 = vpop.permute.xlu0 %2880
      %v2882 = vsel %vm1298, %v2867, %v2875
      %v2883 = vsel %vm1298, %v2869, %v2877
      %v2884 = vsel %vm1298, %v2871, %v2879
      %v2885 = vsel %vm1298, %v2873, %v2881
      %v2886 = vsel %vm1298, %v2875, %v2867
      %v2887 = vsel %vm1298, %v2877, %v2869
      %v2888 = vsel %vm1298, %v2879, %v2871
      %v2889 = vsel %vm1298, %v2881, %v2873
      %v2890 = vmul.f32 %v2882, %v1312
      %v2891 = vmul.f32 %v2886, %v1316
      %v2892 = vmul.f32 %v2883, %v1312
      %v2893 = vmul.f32 %v2887, %v1316
      %v2894 = vmul.f32 %v2884, %v1312
      %v2895 = vmul.f32 %v2888, %v1316
      %v2896 = vmul.f32 %v2885, %v1312
      %v2897 = vmul.f32 %v2889, %v1316
      %v2898 = vpack.c.bf16 %v2892, %v2890
      %v2899 = vpack.c.bf16 %v2893, %v2891
      %v2900 = vpack.c.bf16 %v2896, %v2894
      %v2901 = vpack.c.bf16 %v2897, %v2895
      %v2902 = vld [vmem:[%s23] sm:$0xff]
      %v2903 = vld [vmem:[%s23 + $0x8] sm:$0xf]
      %v2904 = vld [vmem:[%s23 + $0xc] sm:$0xff]
      %v2905 = vld [vmem:[%s23 + $0x14] sm:$0xf]
      %v2906 = vld [vmem:[%s23 + $0x18] sm:$0xff]
      %v2907 = vld [vmem:[%s23 + $0x20] sm:$0xf]
      %v2908 = vld [vmem:[%s23 + $0x24] sm:$0xff]
      %v2909 = vld [vmem:[%s23 + $0x2c] sm:$0xf]
      %v2910 = vld [vmem:[%s23 + $0x30] sm:$0xff]
      %v2911 = vld [vmem:[%s23 + $0x38] sm:$0xf]
      %v2912 = vld [vmem:[%s23 + $0x3c] sm:$0xff]
      %v2913 = vld [vmem:[%s23 + $0x44] sm:$0xf]
      %v2914 = vld [vmem:[%s23 + $0x48] sm:$0xff]
      %v2915 = vld [vmem:[%s23 + $0x50] sm:$0xf]
      %v2916 = vld [vmem:[%s23 + $0x54] sm:$0xff]
      %v2917 = vld [vmem:[%s23 + $0x5c] sm:$0xf]
      %v2918 = vld [vmem:[%s25] sm:$0xff]
      %v2919 = vld [vmem:[%s25 + $0x8] sm:$0xff]
      %v2920 = vld [vmem:[%s25 + $0x10] sm:$0xff]
      %v2921 = vld [vmem:[%s25 + $0x18] sm:$0xff]
      %v2922 = vld [vmem:[%s25 + $0x20] sm:$0xff]
      %v2923 = vld [vmem:[%s25 + $0x28] sm:$0xff]
      %v2924 = vld [vmem:[%s25 + $0x30] sm:$0xff]
      %v2925 = vld [vmem:[%s25 + $0x38] sm:$0xff]
      %2927 = vset.pattern.permute.xlu0 0
      %2928 = vperm.xlu0 %2927, %v2918
      %v2929 = vpop.permute.xlu0 %2928
      %2932 = vset.pattern.permute.xlu0 0
      %2933 = vperm.xlu0 %2932, %v2919
      %v2934 = vpop.permute.xlu0 %2933
      %2937 = vset.pattern.permute.xlu0 0
      %2938 = vperm.xlu0 %2937, %v2920
      %v2939 = vpop.permute.xlu0 %2938
      %2942 = vset.pattern.permute.xlu0 0
      %2943 = vperm.xlu0 %2942, %v2921
      %v2944 = vpop.permute.xlu0 %2943
      %2947 = vset.pattern.permute.xlu0 0
      %2948 = vperm.xlu0 %2947, %v2922
      %v2949 = vpop.permute.xlu0 %2948
      %2952 = vset.pattern.permute.xlu0 0
      %2953 = vperm.xlu0 %2952, %v2923
      %v2954 = vpop.permute.xlu0 %2953
      %2957 = vset.pattern.permute.xlu0 0
      %2958 = vperm.xlu0 %2957, %v2924
      %v2959 = vpop.permute.xlu0 %2958
      %2962 = vset.pattern.permute.xlu0 0
      %2963 = vperm.xlu0 %2962, %v2925
      %v2964 = vpop.permute.xlu0 %2963
      %v2982 = vunpack.c.l.b16 %v2902
      %v2983 = vunpack.c.h.b16 %v2902
      %v2984 = vunpack.c.l.b16 %v2903
      %v2985 = vunpack.c.l.b16 %v2904
      %v2986 = vunpack.c.h.b16 %v2904
      %v2987 = vunpack.c.l.b16 %v2905
      %v2988 = vunpack.c.l.b16 %v2906
      %v2989 = vunpack.c.h.b16 %v2906
      %v2990 = vunpack.c.l.b16 %v2907
      %v2991 = vunpack.c.l.b16 %v2908
      %v2992 = vunpack.c.h.b16 %v2908
      %v2993 = vunpack.c.l.b16 %v2909
      %v2994 = vunpack.c.l.b16 %v2910
      %v2995 = vunpack.c.h.b16 %v2910
      %v2996 = vunpack.c.l.b16 %v2911
      %v2997 = vunpack.c.l.b16 %v2912
      %v2998 = vunpack.c.h.b16 %v2912
      %v2999 = vunpack.c.l.b16 %v2913
      %v3000 = vunpack.c.l.b16 %v2914
      %v3001 = vunpack.c.h.b16 %v2914
      %v3002 = vunpack.c.l.b16 %v2915
      %v3003 = vunpack.c.l.b16 %v2916
      %v3004 = vunpack.c.h.b16 %v2916
      %v3005 = vunpack.c.l.b16 %v2917
      %v3006 = vpack.c.b16 %v2985, %v2982
      %v3007 = vpack.c.b16 %v2986, %v2983
      %v3008 = vpack.c.b16 %v2987, %v2984
      %v3009 = vpack.c.b16 %v2991, %v2988
      %v3010 = vpack.c.b16 %v2992, %v2989
      %v3011 = vpack.c.b16 %v2993, %v2990
      %v3012 = vpack.c.b16 %v2997, %v2994
      %v3013 = vpack.c.b16 %v2998, %v2995
      %v3014 = vpack.c.b16 %v2999, %v2996
      %v3015 = vpack.c.b16 %v3003, %v3000
      %v3016 = vpack.c.b16 %v3004, %v3001
      %v3017 = vpack.c.b16 %v3005, %v3002
      %v3027 = vsel %vm1391, %v3008, 0
      %v3030 = vsel %vm1391, %v3011, 0
      %v3033 = vsel %vm1391, %v3014, 0
      %v3036 = vsel %vm1391, %v3017, 0
      %3038 = vmatprep.subr.bf16.mxu0 %v2643
      %3039 = vmatpush1.bf16.msra.mxu0 %v2642
      %3040 = vmatprep.subr.bf16.mxu0 %v2645
      %3041 = vmatpush1.bf16.msra.mxu0 %v2644
      %3042 = vmatprep.subr.bf16.mxu0 %v2679
      %3043 = vmatpush1.bf16.msra.mxu0 %v2678
      %3044 = vmatprep.subr.bf16.mxu0 %v2681
      %3045 = vmatpush1.bf16.msra.mxu0 %v2680
      %3046 = vmatprep.subr.bf16.mxu0 %v2715
      %3047 = vmatpush1.bf16.msra.mxu0 %v2714
      %3048 = vmatprep.subr.bf16.mxu0 %v2717
      %3049 = vmatpush1.bf16.msra.mxu0 %v2716
      %3050 = vmatprep.subr.bf16.mxu0 %v2751
      %3051 = vmatpush1.bf16.msra.mxu0 %v2750
      %3052 = vmatprep.subr.bf16.mxu0 %v2753
      %3053 = vmatpush1.bf16.msra.mxu0 %v2752
      %3054 = vmatprep.subr.bf16.mxu0 %v2755
      %3055 = vmatpush1.bf16.msra.mxu0 %v2754
      %3056 = vmatprep.subr.bf16.mxu0 %v2757
      %3057 = vmatpush1.bf16.msra.mxu0 %v2756
      %3058 = vmatprep.subr.bf16.mxu0 %v2791
      %3059 = vmatpush1.bf16.msra.mxu0 %v2790
      %3060 = vmatprep.subr.bf16.mxu0 %v2793
      %3061 = vmatpush1.bf16.msra.mxu0 %v2792
      %3062 = vmatprep.subr.bf16.mxu0 %v2827
      %3063 = vmatpush1.bf16.msra.mxu0 %v2826
      %3064 = vmatprep.subr.bf16.mxu0 %v2829
      %3065 = vmatpush1.bf16.msra.mxu0 %v2828
      %3066 = vmatprep.subr.bf16.mxu0 %v2863
      %3067 = vmatpush1.bf16.msra.mxu0 %v2862
      %3068 = vmatprep.subr.bf16.mxu0 %v2865
      %3069 = vmatpush1.bf16.msra.mxu0 %v2864
      %3070 = vmatprep.mubr.bf16.mxu0 %v3007
      %3071 = vmatmul.mubr.bf16.gmra.mrb[0].mxu0 %v3006
      %v3072 = vpop.f32.mrb[0].mxu0
      %v3073 = vadd.f32 %v2929, %v3072
      %v3074 = vpop.f32.mrb[0].mxu0
      %v3075 = vadd.f32 %v2929, %v3074
      %v3076 = vpop.f32.mrb[0].mxu0
      %v3077 = vadd.f32 %v2934, %v3076
      %v3078 = vpop.f32.mrb[0].mxu0
      %v3079 = vadd.f32 %v2934, %v3078
      %3080 = vmatprep.mubr.bf16.mxu0 %v3010
      %3081 = vmatmul.mubr.bf16.gmra.mrb[0].mxu0 %v3009
      %v3082 = vpop.f32.mrb[0].mxu0
      %v3083 = vadd.f32 %v2939, %v3082
      %v3084 = vpop.f32.mrb[0].mxu0
      %v3085 = vadd.f32 %v2939, %v3084
      %v3086 = vpop.f32.mrb[0].mxu0
      %v3087 = vadd.f32 %v2944, %v3086
      %v3088 = vpop.f32.mrb[0].mxu0
      %v3089 = vadd.f32 %v2944, %v3088
      %3090 = vmatprep.mubr.bf16.mxu0 %v3013
      %3091 = vmatmul.mubr.bf16.gmra.mrb[0].mxu0 %v3012
      %v3092 = vpop.f32.mrb[0].mxu0
      %v3093 = vadd.f32 %v2949, %v3092
      %v3094 = vpop.f32.mrb[0].mxu0
      %v3095 = vadd.f32 %v2949, %v3094
      %v3096 = vpop.f32.mrb[0].mxu0
      %v3097 = vadd.f32 %v2954, %v3096
      %v3098 = vpop.f32.mrb[0].mxu0
      %v3099 = vadd.f32 %v2954, %v3098
      %3100 = vmatprep.mubr.bf16.mxu0 %v3016
      %3101 = vmatmul.mubr.bf16.gmra.mrb[0].mxu0 %v3015
      %v3102 = vpop.f32.mrb[0].mxu0
      %v3103 = vadd.f32 %v2959, %v3102
      %v3104 = vpop.f32.mrb[0].mxu0
      %v3105 = vadd.f32 %v2959, %v3104
      %v3106 = vpop.f32.mrb[0].mxu0
      %v3107 = vadd.f32 %v2964, %v3106
      %v3108 = vpop.f32.mrb[0].mxu0
      %v3109 = vadd.f32 %v2964, %v3108
      %3110 = vdwg.mxu0
      %3111 = vmatprep.subr.bf16.mxu0 %v2899
      %3112 = vmatpush1.bf16.msra.mxu0 %v2898
      %3113 = vmatprep.subr.bf16.mxu0 %v2901
      %3114 = vmatpush1.bf16.msra.mxu0 %v2900
      %3115 = vmatprep.subr.bf16.mxu0 0
      %3116 = vmatpush1.bf16.msra.mxu0 0
      %3117 = vmatprep.subr.bf16.mxu0 0
      %3118 = vmatpush1.bf16.msra.mxu0 0
      %3119 = vmatprep.subr.bf16.mxu0 0
      %3120 = vmatpush1.bf16.msra.mxu0 0
      %3121 = vmatprep.subr.bf16.mxu0 0
      %3122 = vmatpush1.bf16.msra.mxu0 0
      %3123 = vmatprep.subr.bf16.mxu0 0
      %3124 = vmatpush1.bf16.msra.mxu0 0
      %3125 = vmatprep.subr.bf16.mxu0 0
      %3126 = vmatpush1.bf16.msra.mxu0 0
      %3127 = vmatprep.subr.bf16.mxu0 0
      %3128 = vmatpush1.bf16.msra.mxu0 0
      %3129 = vmatprep.subr.bf16.mxu0 0
      %3130 = vmatpush1.bf16.msra.mxu0 0
      %3131 = vmatprep.subr.bf16.mxu0 0
      %3132 = vmatpush1.bf16.msra.mxu0 0
      %3133 = vmatprep.subr.bf16.mxu0 0
      %3134 = vmatpush1.bf16.msra.mxu0 0
      %3135 = vmatprep.subr.bf16.mxu0 0
      %3136 = vmatpush1.bf16.msra.mxu0 0
      %3137 = vmatprep.subr.bf16.mxu0 0
      %3138 = vmatpush1.bf16.msra.mxu0 0
      %3139 = vmatprep.subr.bf16.mxu0 0
      %3140 = vmatpush1.bf16.msra.mxu0 0
      %3141 = vmatprep.subr.bf16.mxu0 0
      %3142 = vmatpush1.bf16.msra.mxu0 0
      %3143 = vmatprep.mubr.bf16.mxu0 0
      %3144 = vmatmul.mubr.bf16.gmra.mrb[0].mxu0 %v3027
      %v3145 = vpop.f32.mrb[0].mxu0
      %v3146 = vadd.f32 %v3073, %v3145
      %v3147 = vpop.f32.mrb[0].mxu0
      %v3148 = vadd.f32 %v3075, %v3147
      %v3149 = vpop.f32.mrb[0].mxu0
      %v3150 = vadd.f32 %v3077, %v3149
      %v3151 = vpop.f32.mrb[0].mxu0
      %v3152 = vadd.f32 %v3079, %v3151
      %3153 = vmatprep.mubr.bf16.mxu0 0
      %3154 = vmatmul.mubr.bf16.gmra.mrb[0].mxu0 %v3030
      %v3155 = vpop.f32.mrb[0].mxu0
      %v3156 = vadd.f32 %v3083, %v3155
      %v3157 = vpop.f32.mrb[0].mxu0
      %v3158 = vadd.f32 %v3085, %v3157
      %v3159 = vpop.f32.mrb[0].mxu0
      %v3160 = vadd.f32 %v3087, %v3159
      %v3161 = vpop.f32.mrb[0].mxu0
      %v3162 = vadd.f32 %v3089, %v3161
      %3163 = vmatprep.mubr.bf16.mxu0 0
      %3164 = vmatmul.mubr.bf16.gmra.mrb[0].mxu0 %v3033
      %v3165 = vpop.f32.mrb[0].mxu0
      %v3166 = vadd.f32 %v3093, %v3165
      %v3167 = vpop.f32.mrb[0].mxu0
      %v3168 = vadd.f32 %v3095, %v3167
      %v3169 = vpop.f32.mrb[0].mxu0
      %v3170 = vadd.f32 %v3097, %v3169
      %v3171 = vpop.f32.mrb[0].mxu0
      %v3172 = vadd.f32 %v3099, %v3171
      %3173 = vmatprep.mubr.bf16.mxu0 0
      %3174 = vmatmul.mubr.bf16.gmra.mrb[0].mxu0 %v3036
      %v3175 = vpop.f32.mrb[0].mxu0
      %v3176 = vadd.f32 %v3103, %v3175
      %v3177 = vpop.f32.mrb[0].mxu0
      %v3178 = vadd.f32 %v3105, %v3177
      %v3179 = vpop.f32.mrb[0].mxu0
      %v3180 = vadd.f32 %v3107, %v3179
      %v3181 = vpop.f32.mrb[0].mxu0
      %v3182 = vadd.f32 %v3109, %v3181
      %3183 = vdwg.mxu0
      %v3184 = vadd.f32 %v3146, %v3148
      %3185 = vadd.xlane.f32.xlu0 %v3184
      %v3186 = vpop.xlane.xlu0 %3185
      %v3187 = vadd.f32 %v3150, %v3152
      %3188 = vadd.xlane.f32.xlu0 %v3187
      %v3189 = vpop.xlane.xlu0 %3188
      %v3190 = vadd.f32 %v3156, %v3158
      %3191 = vadd.xlane.f32.xlu0 %v3190
      %v3192 = vpop.xlane.xlu0 %3191
      %v3193 = vadd.f32 %v3160, %v3162
      %3194 = vadd.xlane.f32.xlu0 %v3193
      %v3195 = vpop.xlane.xlu0 %3194
      %v3196 = vmul.f32 %v3146, %v3146
      %v3197 = vmul.f32 %v3148, %v3148
      %v3198 = vmul.f32 %v3150, %v3150
      %v3199 = vmul.f32 %v3152, %v3152
      %v3200 = vmul.f32 %v3156, %v3156
      %v3201 = vmul.f32 %v3158, %v3158
      %v3202 = vmul.f32 %v3160, %v3160
      %v3203 = vmul.f32 %v3162, %v3162
      %v3204 = vadd.f32 %v3196, %v3197
      %3205 = vadd.xlane.f32.xlu0 %v3204
      %v3206 = vpop.xlane.xlu0 %3205
      %v3207 = vadd.f32 %v3198, %v3199
      %3208 = vadd.xlane.f32.xlu0 %v3207
      %v3209 = vpop.xlane.xlu0 %3208
      %v3210 = vadd.f32 %v3200, %v3201
      %3211 = vadd.xlane.f32.xlu0 %v3210
      %v3212 = vpop.xlane.xlu0 %3211
      %v3213 = vadd.f32 %v3202, %v3203
      %3214 = vadd.xlane.f32.xlu0 %v3213
      %v3215 = vpop.xlane.xlu0 %3214
      %3216 = vmatprep.subr.mxu0 0.0
      %3217 = vmatpush1.msra.mxu0 %v3186
      %3218 = vmatprep.subr.mxu0 0.0
      %3219 = vmatpush1.msra.mxu0 %v3189
      %3220 = vmatprep.subr.mxu0 0.0
      %3221 = vmatpush1.msra.mxu0 %v3192
      %3222 = vmatprep.subr.mxu0 0.0
      %3223 = vmatpush1.msra.mxu0 %v3195
      %3224 = vmatprep.subr.mxu0 0.0
      %3225 = vmatpush1.msra.mxu0 0.0
      %3226 = vmatprep.subr.mxu0 0.0
      %3227 = vmatpush1.msra.mxu0 0.0
      %3228 = vmatprep.subr.mxu0 0.0
      %3229 = vmatpush1.msra.mxu0 0.0
      %3230 = vmatprep.subr.mxu0 0.0
      %3231 = vmatpush1.msra.mxu0 0.0
      %3232 = vmatprep.subr.mxu0 0.0
      %3233 = vmatpush1.msra.mxu0 0.0
      %3234 = vmatprep.subr.mxu0 0.0
      %3235 = vmatpush1.msra.mxu0 0.0
      %3236 = vmatprep.subr.mxu0 0.0
      %3237 = vmatpush1.msra.mxu0 0.0
      %3238 = vmatprep.subr.mxu0 0.0
      %3239 = vmatpush1.msra.mxu0 0.0
      %3240 = vmatprep.subr.mxu0 0.0
      %3241 = vmatpush1.msra.mxu0 0.0
      %3242 = vmatprep.subr.mxu0 0.0
      %3243 = vmatpush1.msra.mxu0 0.0
      %3244 = vmatprep.subr.mxu0 0.0
      %3245 = vmatpush1.msra.mxu0 0.0
      %3246 = vmatprep.subr.mxu0 0.0
      %3247 = vmatpush1.msra.mxu0 0.0
      %3248 = vmatprep.subr.mxu0 0.0
      %3249 = vmatpush1.msra.mxu0 0.0
      %3250 = vmatprep.subr.mxu0 0.0
      %3251 = vmatpush1.msra.mxu0 0.0
      %3252 = vmatprep.subr.mxu0 0.0
      %3253 = vmatpush1.msra.mxu0 0.0
      %3254 = vmatprep.subr.mxu0 0.0
      %3255 = vmatpush1.msra.mxu0 0.0
      %3256 = vmatprep.subr.mxu0 0.0
      %3257 = vmatpush1.msra.mxu0 0.0
      %3258 = vmatprep.subr.mxu0 0.0
      %3259 = vmatpush1.msra.mxu0 0.0
      %3260 = vmatprep.subr.mxu0 0.0
      %3261 = vmatpush1.msra.mxu0 0.0
      %3262 = vmatprep.subr.mxu0 0.0
      %3263 = vmatpush1.msra.mxu0 0.0
      %3264 = vmatprep.subr.mxu0 0.0
      %3265 = vmatpush1.msra.mxu0 0.0
      %3266 = vmatprep.subr.mxu0 0.0
      %3267 = vmatpush1.msra.mxu0 0.0
      %3268 = vmatprep.subr.mxu0 0.0
      %3269 = vmatpush1.msra.mxu0 0.0
      %3270 = vmatprep.subr.mxu0 0.0
      %3271 = vmatpush1.msra.mxu0 0.0
      %3272 = vmatprep.subr.mxu0 0.0
      %3273 = vmatpush1.msra.mxu0 0.0
      %3274 = vmatprep.subr.mxu0 0.0
      %3275 = vmatpush1.msra.mxu0 0.0
      %3276 = vmatprep.subr.mxu0 0.0
      %3277 = vmatpush1.msra.mxu0 0.0
      %3278 = vmatprep.subr.mxu0 0.0
      %3279 = vmatpush1.msra.mxu0 0.0
      %3280 = vmatprep.mubr.f32.mxu0 0.0
      %3281 = vmatmul.mubr.f32.gmra.mrb[0].mxu0 %v1537
      %v3282 = vpop.f32.mrb[0].mxu0
      %v3283 = vadd.f32 0.0, %v3282
      %v3284 = vpop.f32.mrb[0].mxu0
      %3285 = vmatprep.mubr.f32.mxu0 0.0
      %3286 = vmatmul.mubr.f32.gmra.mrb[0].mxu0 %v1540
      %v3287 = vpop.f32.mrb[0].mxu0
      %v3288 = vadd.f32 0.0, %v3287
      %v3289 = vpop.f32.mrb[0].mxu0
      %3290 = vmatprep.mubr.f32.mxu0 0.0
      %3291 = vmatmul.mubr.f32.gmra.mrb[0].mxu0 %v1543
      %v3292 = vpop.f32.mrb[0].mxu0
      %v3293 = vadd.f32 0.0, %v3292
      %v3294 = vpop.f32.mrb[0].mxu0
      %3295 = vmatprep.mubr.f32.mxu0 0.0
      %3296 = vmatmul.mubr.f32.gmra.mrb[0].mxu0 %v1546
      %v3297 = vpop.f32.mrb[0].mxu0
      %v3298 = vadd.f32 0.0, %v3297
      %v3299 = vpop.f32.mrb[0].mxu0
      %3300 = vdwg.mxu0
      %3301 = vmatprep.subr.mxu0 0.0
      %3302 = vmatpush1.msra.mxu0 %v3206
      %3303 = vmatprep.subr.mxu0 0.0
      %3304 = vmatpush1.msra.mxu0 %v3209
      %3305 = vmatprep.subr.mxu0 0.0
      %3306 = vmatpush1.msra.mxu0 %v3212
      %3307 = vmatprep.subr.mxu0 0.0
      %3308 = vmatpush1.msra.mxu0 %v3215
      %3309 = vmatprep.subr.mxu0 0.0
      %3310 = vmatpush1.msra.mxu0 0.0
      %3311 = vmatprep.subr.mxu0 0.0
      %3312 = vmatpush1.msra.mxu0 0.0
      %3313 = vmatprep.subr.mxu0 0.0
      %3314 = vmatpush1.msra.mxu0 0.0
      %3315 = vmatprep.subr.mxu0 0.0
      %3316 = vmatpush1.msra.mxu0 0.0
      %3317 = vmatprep.subr.mxu0 0.0
      %3318 = vmatpush1.msra.mxu0 0.0
      %3319 = vmatprep.subr.mxu0 0.0
      %3320 = vmatpush1.msra.mxu0 0.0
      %3321 = vmatprep.subr.mxu0 0.0
      %3322 = vmatpush1.msra.mxu0 0.0
      %3323 = vmatprep.subr.mxu0 0.0
      %3324 = vmatpush1.msra.mxu0 0.0
      %3325 = vmatprep.subr.mxu0 0.0
      %3326 = vmatpush1.msra.mxu0 0.0
      %3327 = vmatprep.subr.mxu0 0.0
      %3328 = vmatpush1.msra.mxu0 0.0
      %3329 = vmatprep.subr.mxu0 0.0
      %3330 = vmatpush1.msra.mxu0 0.0
      %3331 = vmatprep.subr.mxu0 0.0
      %3332 = vmatpush1.msra.mxu0 0.0
      %3333 = vmatprep.subr.mxu0 0.0
      %3334 = vmatpush1.msra.mxu0 0.0
      %3335 = vmatprep.subr.mxu0 0.0
      %3336 = vmatpush1.msra.mxu0 0.0
      %3337 = vmatprep.subr.mxu0 0.0
      %3338 = vmatpush1.msra.mxu0 0.0
      %3339 = vmatprep.subr.mxu0 0.0
      %3340 = vmatpush1.msra.mxu0 0.0
      %3341 = vmatprep.subr.mxu0 0.0
      %3342 = vmatpush1.msra.mxu0 0.0
      %3343 = vmatprep.subr.mxu0 0.0
      %3344 = vmatpush1.msra.mxu0 0.0
      %3345 = vmatprep.subr.mxu0 0.0
      %3346 = vmatpush1.msra.mxu0 0.0
      %3347 = vmatprep.subr.mxu0 0.0
      %3348 = vmatpush1.msra.mxu0 0.0
      %3349 = vmatprep.subr.mxu0 0.0
      %3350 = vmatpush1.msra.mxu0 0.0
      %3351 = vmatprep.subr.mxu0 0.0
      %3352 = vmatpush1.msra.mxu0 0.0
      %3353 = vmatprep.subr.mxu0 0.0
      %3354 = vmatpush1.msra.mxu0 0.0
      %3355 = vmatprep.subr.mxu0 0.0
      %3356 = vmatpush1.msra.mxu0 0.0
      %3357 = vmatprep.subr.mxu0 0.0
      %3358 = vmatpush1.msra.mxu0 0.0
      %3359 = vmatprep.subr.mxu0 0.0
      %3360 = vmatpush1.msra.mxu0 0.0
      %3361 = vmatprep.subr.mxu0 0.0
      %3362 = vmatpush1.msra.mxu0 0.0
      %3363 = vmatprep.subr.mxu0 0.0
      %3364 = vmatpush1.msra.mxu0 0.0
      %3365 = vmatprep.mubr.f32.mxu0 0.0
      %3366 = vmatmul.mubr.f32.gmra.mrb[0].mxu0 %v1537
      %v3367 = vpop.f32.mrb[0].mxu0
      %v3368 = vadd.f32 0.0, %v3367
      %v3369 = vpop.f32.mrb[0].mxu0
      %3370 = vmatprep.mubr.f32.mxu0 0.0
      %3371 = vmatmul.mubr.f32.gmra.mrb[0].mxu0 %v1540
      %v3372 = vpop.f32.mrb[0].mxu0
      %v3373 = vadd.f32 0.0, %v3372
      %v3374 = vpop.f32.mrb[0].mxu0
      %3375 = vmatprep.mubr.f32.mxu0 0.0
      %3376 = vmatmul.mubr.f32.gmra.mrb[0].mxu0 %v1543
      %v3377 = vpop.f32.mrb[0].mxu0
      %v3378 = vadd.f32 0.0, %v3377
      %v3379 = vpop.f32.mrb[0].mxu0
      %3380 = vmatprep.mubr.f32.mxu0 0.0
      %3381 = vmatmul.mubr.f32.gmra.mrb[0].mxu0 %v1546
      %v3382 = vpop.f32.mrb[0].mxu0
      %v3383 = vadd.f32 0.0, %v3382
      %v3384 = vpop.f32.mrb[0].mxu0
      %3385 = vdwg.mxu0
      %v3386 = vmul.f32 %v3283, 0.0009765625
      %v3387 = vmul.f32 %v3288, 0.0009765625
      %v3388 = vmul.f32 %v3293, 0.0009765625
      %v3389 = vmul.f32 %v3298, 0.0009765625
      %v3390 = vmul.f32 %v3368, 0.0009765625
      %v3391 = vmul.f32 %v3373, 0.0009765625
      %v3392 = vmul.f32 %v3378, 0.0009765625
      %v3393 = vmul.f32 %v3383, 0.0009765625
      %v3394 = vmul.f32 %v3386, %v3386
      %v3395 = vmul.f32 %v3387, %v3387
      %v3396 = vmul.f32 %v3388, %v3388
      %v3397 = vmul.f32 %v3389, %v3389
      %v3398 = vsub.f32 %v3390, %v3394
      %v3399 = vsub.f32 %v3391, %v3395
      %v3400 = vsub.f32 %v3392, %v3396
      %v3401 = vsub.f32 %v3393, %v3397
      %v3402 = vmax.f32 %v3398, 0.0
      %v3403 = vmax.f32 %v3399, 0.0
      %v3404 = vmax.f32 %v3400, 0.0
      %v3405 = vmax.f32 %v3401, 0.0
      %v3406 = vadd.f32 %v3402, 1e-05
      %v3407 = vadd.f32 %v3403, 1e-05
      %v3408 = vadd.f32 %v3404, 1e-05
      %v3409 = vadd.f32 %v3405, 1e-05
      %v3410 = vrsqrt.pop %v3406
      %v3411 = vrsqrt.pop %v3407
      %v3412 = vrsqrt.pop %v3408
      %v3413 = vrsqrt.pop %v3409
      %v3414 = vld [vmem:[%s27] sm:$0xff]
      %v3415 = vld [vmem:[%s27 + $0x8] sm:$0xff]
      %v3416 = vld [vmem:[%s27 + $0x10] sm:$0xff]
      %v3417 = vld [vmem:[%s27 + $0x18] sm:$0xff]
      %v3418 = vmul.f32 %v3410, %v3414
      %v3419 = vmul.f32 %v3411, %v3415
      %v3420 = vmul.f32 %v3412, %v3416
      %v3421 = vmul.f32 %v3413, %v3417
      %v3422 = vld [vmem:[%s29] sm:$0xff]
      %v3423 = vld [vmem:[%s29 + $0x8] sm:$0xff]
      %v3424 = vld [vmem:[%s29 + $0x10] sm:$0xff]
      %v3425 = vld [vmem:[%s29 + $0x18] sm:$0xff]
      %v3426 = vmul.f32 %v3386, %v3418
      %v3427 = vmul.f32 %v3387, %v3419
      %v3428 = vmul.f32 %v3388, %v3420
      %v3429 = vmul.f32 %v3389, %v3421
      %v3430 = vsub.f32 %v3422, %v3426
      %v3431 = vsub.f32 %v3423, %v3427
      %v3432 = vsub.f32 %v3424, %v3428
      %v3433 = vsub.f32 %v3425, %v3429
      %3435 = vset.pattern.permute.xlu0 0
      %3436 = vperm.xlu0 %3435, %v3418
      %v3437 = vpop.permute.xlu0 %3436
      %3440 = vset.pattern.permute.xlu0 0
      %3441 = vperm.xlu0 %3440, %v3419
      %v3442 = vpop.permute.xlu0 %3441
      %3445 = vset.pattern.permute.xlu0 0
      %3446 = vperm.xlu0 %3445, %v3420
      %v3447 = vpop.permute.xlu0 %3446
      %3450 = vset.pattern.permute.xlu0 0
      %3451 = vperm.xlu0 %3450, %v3421
      %v3452 = vpop.permute.xlu0 %3451
      %v3454 = vmul.f32 %v3146, %v3437
      %v3455 = vmul.f32 %v3148, %v3437
      %v3456 = vmul.f32 %v3150, %v3442
      %v3457 = vmul.f32 %v3152, %v3442
      %v3458 = vmul.f32 %v3156, %v3447
      %v3459 = vmul.f32 %v3158, %v3447
      %v3460 = vmul.f32 %v3160, %v3452
      %v3461 = vmul.f32 %v3162, %v3452
      %3463 = vset.pattern.permute.xlu0 0
      %3464 = vperm.xlu0 %3463, %v3430
      %v3465 = vpop.permute.xlu0 %3464
      %3468 = vset.pattern.permute.xlu0 0
      %3469 = vperm.xlu0 %3468, %v3431
      %v3470 = vpop.permute.xlu0 %3469
      %3473 = vset.pattern.permute.xlu0 0
      %3474 = vperm.xlu0 %3473, %v3432
      %v3475 = vpop.permute.xlu0 %3474
      %3478 = vset.pattern.permute.xlu0 0
      %3479 = vperm.xlu0 %3478, %v3433
      %v3480 = vpop.permute.xlu0 %3479
      %v3482 = vadd.f32 %v3454, %v3465
      %v3483 = vadd.f32 %v3455, %v3465
      %v3484 = vadd.f32 %v3456, %v3470
      %v3485 = vadd.f32 %v3457, %v3470
      %v3486 = vadd.f32 %v3458, %v3475
      %v3487 = vadd.f32 %v3459, %v3475
      %v3488 = vadd.f32 %v3460, %v3480
      %v3489 = vadd.f32 %v3461, %v3480
      %v3490 = vmax.f32 %v3482, 0.0
      %v3491 = vmax.f32 %v3483, 0.0
      %v3492 = vmax.f32 %v3484, 0.0
      %v3493 = vmax.f32 %v3485, 0.0
      %v3494 = vmax.f32 %v3486, 0.0
      %v3495 = vmax.f32 %v3487, 0.0
      %v3496 = vmax.f32 %v3488, 0.0
      %v3497 = vmax.f32 %v3489, 0.0
      %v3498 = vadd.f32 %v3166, %v3168
      %3499 = vadd.xlane.f32.xlu0 %v3498
      %v3500 = vpop.xlane.xlu0 %3499
      %v3501 = vadd.f32 %v3170, %v3172
      %3502 = vadd.xlane.f32.xlu0 %v3501
      %v3503 = vpop.xlane.xlu0 %3502
      %v3504 = vadd.f32 %v3176, %v3178
      %3505 = vadd.xlane.f32.xlu0 %v3504
      %v3506 = vpop.xlane.xlu0 %3505
      %v3507 = vadd.f32 %v3180, %v3182
      %3508 = vadd.xlane.f32.xlu0 %v3507
      %v3509 = vpop.xlane.xlu0 %3508
      %v3510 = vmul.f32 %v3166, %v3166
      %v3511 = vmul.f32 %v3168, %v3168
      %v3512 = vmul.f32 %v3170, %v3170
      %v3513 = vmul.f32 %v3172, %v3172
      %v3514 = vmul.f32 %v3176, %v3176
      %v3515 = vmul.f32 %v3178, %v3178
      %v3516 = vmul.f32 %v3180, %v3180
      %v3517 = vmul.f32 %v3182, %v3182
      %v3518 = vadd.f32 %v3510, %v3511
      %3519 = vadd.xlane.f32.xlu0 %v3518
      %v3520 = vpop.xlane.xlu0 %3519
      %v3521 = vadd.f32 %v3512, %v3513
      %3522 = vadd.xlane.f32.xlu0 %v3521
      %v3523 = vpop.xlane.xlu0 %3522
      %v3524 = vadd.f32 %v3514, %v3515
      %3525 = vadd.xlane.f32.xlu0 %v3524
      %v3526 = vpop.xlane.xlu0 %3525
      %v3527 = vadd.f32 %v3516, %v3517
      %3528 = vadd.xlane.f32.xlu0 %v3527
      %v3529 = vpop.xlane.xlu0 %3528
      %3530 = vmatprep.subr.mxu0 0.0
      %3531 = vmatpush1.msra.mxu0 %v3500
      %3532 = vmatprep.subr.mxu0 0.0
      %3533 = vmatpush1.msra.mxu0 %v3503
      %3534 = vmatprep.subr.mxu0 0.0
      %3535 = vmatpush1.msra.mxu0 %v3506
      %3536 = vmatprep.subr.mxu0 0.0
      %3537 = vmatpush1.msra.mxu0 %v3509
      %3538 = vmatprep.subr.mxu0 0.0
      %3539 = vmatpush1.msra.mxu0 0.0
      %3540 = vmatprep.subr.mxu0 0.0
      %3541 = vmatpush1.msra.mxu0 0.0
      %3542 = vmatprep.subr.mxu0 0.0
      %3543 = vmatpush1.msra.mxu0 0.0
      %3544 = vmatprep.subr.mxu0 0.0
      %3545 = vmatpush1.msra.mxu0 0.0
      %3546 = vmatprep.subr.mxu0 0.0
      %3547 = vmatpush1.msra.mxu0 0.0
      %3548 = vmatprep.subr.mxu0 0.0
      %3549 = vmatpush1.msra.mxu0 0.0
      %3550 = vmatprep.subr.mxu0 0.0
      %3551 = vmatpush1.msra.mxu0 0.0
      %3552 = vmatprep.subr.mxu0 0.0
      %3553 = vmatpush1.msra.mxu0 0.0
      %3554 = vmatprep.subr.mxu0 0.0
      %3555 = vmatpush1.msra.mxu0 0.0
      %3556 = vmatprep.subr.mxu0 0.0
      %3557 = vmatpush1.msra.mxu0 0.0
      %3558 = vmatprep.subr.mxu0 0.0
      %3559 = vmatpush1.msra.mxu0 0.0
      %3560 = vmatprep.subr.mxu0 0.0
      %3561 = vmatpush1.msra.mxu0 0.0
      %3562 = vmatprep.subr.mxu0 0.0
      %3563 = vmatpush1.msra.mxu0 0.0
      %3564 = vmatprep.subr.mxu0 0.0
      %3565 = vmatpush1.msra.mxu0 0.0
      %3566 = vmatprep.subr.mxu0 0.0
      %3567 = vmatpush1.msra.mxu0 0.0
      %3568 = vmatprep.subr.mxu0 0.0
      %3569 = vmatpush1.msra.mxu0 0.0
      %3570 = vmatprep.subr.mxu0 0.0
      %3571 = vmatpush1.msra.mxu0 0.0
      %3572 = vmatprep.subr.mxu0 0.0
      %3573 = vmatpush1.msra.mxu0 0.0
      %3574 = vmatprep.subr.mxu0 0.0
      %3575 = vmatpush1.msra.mxu0 0.0
      %3576 = vmatprep.subr.mxu0 0.0
      %3577 = vmatpush1.msra.mxu0 0.0
      %3578 = vmatprep.subr.mxu0 0.0
      %3579 = vmatpush1.msra.mxu0 0.0
      %3580 = vmatprep.subr.mxu0 0.0
      %3581 = vmatpush1.msra.mxu0 0.0
      %3582 = vmatprep.subr.mxu0 0.0
      %3583 = vmatpush1.msra.mxu0 0.0
      %3584 = vmatprep.subr.mxu0 0.0
      %3585 = vmatpush1.msra.mxu0 0.0
      %3586 = vmatprep.subr.mxu0 0.0
      %3587 = vmatpush1.msra.mxu0 0.0
      %3588 = vmatprep.subr.mxu0 0.0
      %3589 = vmatpush1.msra.mxu0 0.0
      %3590 = vmatprep.subr.mxu0 0.0
      %3591 = vmatpush1.msra.mxu0 0.0
      %3592 = vmatprep.subr.mxu0 0.0
      %3593 = vmatpush1.msra.mxu0 0.0
      %3594 = vmatprep.mubr.f32.mxu0 0.0
      %3595 = vmatmul.mubr.f32.gmra.mrb[0].mxu0 %v1537
      %v3596 = vpop.f32.mrb[0].mxu0
      %v3597 = vadd.f32 0.0, %v3596
      %v3598 = vpop.f32.mrb[0].mxu0
      %3599 = vmatprep.mubr.f32.mxu0 0.0
      %3600 = vmatmul.mubr.f32.gmra.mrb[0].mxu0 %v1540
      %v3601 = vpop.f32.mrb[0].mxu0
      %v3602 = vadd.f32 0.0, %v3601
      %v3603 = vpop.f32.mrb[0].mxu0
      %3604 = vmatprep.mubr.f32.mxu0 0.0
      %3605 = vmatmul.mubr.f32.gmra.mrb[0].mxu0 %v1543
      %v3606 = vpop.f32.mrb[0].mxu0
      %v3607 = vadd.f32 0.0, %v3606
      %v3608 = vpop.f32.mrb[0].mxu0
      %3609 = vmatprep.mubr.f32.mxu0 0.0
      %3610 = vmatmul.mubr.f32.gmra.mrb[0].mxu0 %v1546
      %v3611 = vpop.f32.mrb[0].mxu0
      %v3612 = vadd.f32 0.0, %v3611
      %v3613 = vpop.f32.mrb[0].mxu0
      %3614 = vdwg.mxu0
      %3615 = vmatprep.subr.mxu0 0.0
      %3616 = vmatpush1.msra.mxu0 %v3520
      %3617 = vmatprep.subr.mxu0 0.0
      %3618 = vmatpush1.msra.mxu0 %v3523
      %3619 = vmatprep.subr.mxu0 0.0
      %3620 = vmatpush1.msra.mxu0 %v3526
      %3621 = vmatprep.subr.mxu0 0.0
      %3622 = vmatpush1.msra.mxu0 %v3529
      %3623 = vmatprep.subr.mxu0 0.0
      %3624 = vmatpush1.msra.mxu0 0.0
      %3625 = vmatprep.subr.mxu0 0.0
      %3626 = vmatpush1.msra.mxu0 0.0
      %3627 = vmatprep.subr.mxu0 0.0
      %3628 = vmatpush1.msra.mxu0 0.0
      %3629 = vmatprep.subr.mxu0 0.0
      %3630 = vmatpush1.msra.mxu0 0.0
      %3631 = vmatprep.subr.mxu0 0.0
      %3632 = vmatpush1.msra.mxu0 0.0
      %3633 = vmatprep.subr.mxu0 0.0
      %3634 = vmatpush1.msra.mxu0 0.0
      %3635 = vmatprep.subr.mxu0 0.0
      %3636 = vmatpush1.msra.mxu0 0.0
      %3637 = vmatprep.subr.mxu0 0.0
      %3638 = vmatpush1.msra.mxu0 0.0
      %3639 = vmatprep.subr.mxu0 0.0
      %3640 = vmatpush1.msra.mxu0 0.0
      %3641 = vmatprep.subr.mxu0 0.0
      %3642 = vmatpush1.msra.mxu0 0.0
      %3643 = vmatprep.subr.mxu0 0.0
      %3644 = vmatpush1.msra.mxu0 0.0
      %3645 = vmatprep.subr.mxu0 0.0
      %3646 = vmatpush1.msra.mxu0 0.0
      %3647 = vmatprep.subr.mxu0 0.0
      %3648 = vmatpush1.msra.mxu0 0.0
      %3649 = vmatprep.subr.mxu0 0.0
      %3650 = vmatpush1.msra.mxu0 0.0
      %3651 = vmatprep.subr.mxu0 0.0
      %3652 = vmatpush1.msra.mxu0 0.0
      %3653 = vmatprep.subr.mxu0 0.0
      %3654 = vmatpush1.msra.mxu0 0.0
      %3655 = vmatprep.subr.mxu0 0.0
      %3656 = vmatpush1.msra.mxu0 0.0
      %3657 = vmatprep.subr.mxu0 0.0
      %3658 = vmatpush1.msra.mxu0 0.0
      %3659 = vmatprep.subr.mxu0 0.0
      %3660 = vmatpush1.msra.mxu0 0.0
      %3661 = vmatprep.subr.mxu0 0.0
      %3662 = vmatpush1.msra.mxu0 0.0
      %3663 = vmatprep.subr.mxu0 0.0
      %3664 = vmatpush1.msra.mxu0 0.0
      %3665 = vmatprep.subr.mxu0 0.0
      %3666 = vmatpush1.msra.mxu0 0.0
      %3667 = vmatprep.subr.mxu0 0.0
      %3668 = vmatpush1.msra.mxu0 0.0
      %3669 = vmatprep.subr.mxu0 0.0
      %3670 = vmatpush1.msra.mxu0 0.0
      %3671 = vmatprep.subr.mxu0 0.0
      %3672 = vmatpush1.msra.mxu0 0.0
      %3673 = vmatprep.subr.mxu0 0.0
      %3674 = vmatpush1.msra.mxu0 0.0
      %3675 = vmatprep.subr.mxu0 0.0
      %3676 = vmatpush1.msra.mxu0 0.0
      %3677 = vmatprep.subr.mxu0 0.0
      %3678 = vmatpush1.msra.mxu0 0.0
      %3679 = vmatprep.mubr.f32.mxu0 0.0
      %3680 = vmatmul.mubr.f32.gmra.mrb[0].mxu0 %v1537
      %v3681 = vpop.f32.mrb[0].mxu0
      %v3682 = vadd.f32 0.0, %v3681
      %v3683 = vpop.f32.mrb[0].mxu0
      %3684 = vmatprep.mubr.f32.mxu0 0.0
      %3685 = vmatmul.mubr.f32.gmra.mrb[0].mxu0 %v1540
      %v3686 = vpop.f32.mrb[0].mxu0
      %v3687 = vadd.f32 0.0, %v3686
      %v3688 = vpop.f32.mrb[0].mxu0
      %3689 = vmatprep.mubr.f32.mxu0 0.0
      %3690 = vmatmul.mubr.f32.gmra.mrb[0].mxu0 %v1543
      %v3691 = vpop.f32.mrb[0].mxu0
      %v3692 = vadd.f32 0.0, %v3691
      %v3693 = vpop.f32.mrb[0].mxu0
      %3694 = vmatprep.mubr.f32.mxu0 0.0
      %3695 = vmatmul.mubr.f32.gmra.mrb[0].mxu0 %v1546
      %v3696 = vpop.f32.mrb[0].mxu0
      %v3697 = vadd.f32 0.0, %v3696
      %v3698 = vpop.f32.mrb[0].mxu0
      %3699 = vdwg.mxu0
      %v3700 = vmul.f32 %v3597, 0.0009765625
      %v3701 = vmul.f32 %v3602, 0.0009765625
      %v3702 = vmul.f32 %v3607, 0.0009765625
      %v3703 = vmul.f32 %v3612, 0.0009765625
      %v3704 = vmul.f32 %v3682, 0.0009765625
      %v3705 = vmul.f32 %v3687, 0.0009765625
      %v3706 = vmul.f32 %v3692, 0.0009765625
      %v3707 = vmul.f32 %v3697, 0.0009765625
      %v3708 = vmul.f32 %v3700, %v3700
      %v3709 = vmul.f32 %v3701, %v3701
      %v3710 = vmul.f32 %v3702, %v3702
      %v3711 = vmul.f32 %v3703, %v3703
      %v3712 = vsub.f32 %v3704, %v3708
      %v3713 = vsub.f32 %v3705, %v3709
      %v3714 = vsub.f32 %v3706, %v3710
      %v3715 = vsub.f32 %v3707, %v3711
      %v3716 = vmax.f32 %v3712, 0.0
      %v3717 = vmax.f32 %v3713, 0.0
      %v3718 = vmax.f32 %v3714, 0.0
      %v3719 = vmax.f32 %v3715, 0.0
      %v3720 = vadd.f32 %v3716, 1e-05
      %v3721 = vadd.f32 %v3717, 1e-05
      %v3722 = vadd.f32 %v3718, 1e-05
      %v3723 = vadd.f32 %v3719, 1e-05
      %v3724 = vrsqrt.pop %v3720
      %v3725 = vrsqrt.pop %v3721
      %v3726 = vrsqrt.pop %v3722
      %v3727 = vrsqrt.pop %v3723
      %v3728 = vld [vmem:[%s31] sm:$0xff]
      %v3729 = vld [vmem:[%s31 + $0x8] sm:$0xff]
      %v3730 = vld [vmem:[%s31 + $0x10] sm:$0xff]
      %v3731 = vld [vmem:[%s31 + $0x18] sm:$0xff]
      %v3732 = vmul.f32 %v3724, %v3728
      %v3733 = vmul.f32 %v3725, %v3729
      %v3734 = vmul.f32 %v3726, %v3730
      %v3735 = vmul.f32 %v3727, %v3731
      %v3736 = vld [vmem:[%s33] sm:$0xff]
      %v3737 = vld [vmem:[%s33 + $0x8] sm:$0xff]
      %v3738 = vld [vmem:[%s33 + $0x10] sm:$0xff]
      %v3739 = vld [vmem:[%s33 + $0x18] sm:$0xff]
      %v3740 = vmul.f32 %v3700, %v3732
      %v3741 = vmul.f32 %v3701, %v3733
      %v3742 = vmul.f32 %v3702, %v3734
      %v3743 = vmul.f32 %v3703, %v3735
      %v3744 = vsub.f32 %v3736, %v3740
      %v3745 = vsub.f32 %v3737, %v3741
      %v3746 = vsub.f32 %v3738, %v3742
      %v3747 = vsub.f32 %v3739, %v3743
      %3749 = vset.pattern.permute.xlu0 0
      %3750 = vperm.xlu0 %3749, %v3732
      %v3751 = vpop.permute.xlu0 %3750
      %3754 = vset.pattern.permute.xlu0 0
      %3755 = vperm.xlu0 %3754, %v3733
      %v3756 = vpop.permute.xlu0 %3755
      %3759 = vset.pattern.permute.xlu0 0
      %3760 = vperm.xlu0 %3759, %v3734
      %v3761 = vpop.permute.xlu0 %3760
      %3764 = vset.pattern.permute.xlu0 0
      %3765 = vperm.xlu0 %3764, %v3735
      %v3766 = vpop.permute.xlu0 %3765
      %v3768 = vmul.f32 %v3166, %v3751
      %v3769 = vmul.f32 %v3168, %v3751
      %v3770 = vmul.f32 %v3170, %v3756
      %v3771 = vmul.f32 %v3172, %v3756
      %v3772 = vmul.f32 %v3176, %v3761
      %v3773 = vmul.f32 %v3178, %v3761
      %v3774 = vmul.f32 %v3180, %v3766
      %v3775 = vmul.f32 %v3182, %v3766
      %3777 = vset.pattern.permute.xlu0 0
      %3778 = vperm.xlu0 %3777, %v3744
      %v3779 = vpop.permute.xlu0 %3778
      %3782 = vset.pattern.permute.xlu0 0
      %3783 = vperm.xlu0 %3782, %v3745
      %v3784 = vpop.permute.xlu0 %3783
      %3787 = vset.pattern.permute.xlu0 0
      %3788 = vperm.xlu0 %3787, %v3746
      %v3789 = vpop.permute.xlu0 %3788
      %3792 = vset.pattern.permute.xlu0 0
      %3793 = vperm.xlu0 %3792, %v3747
      %v3794 = vpop.permute.xlu0 %3793
      %v3796 = vadd.f32 %v3768, %v3779
      %v3797 = vadd.f32 %v3769, %v3779
      %v3798 = vadd.f32 %v3770, %v3784
      %v3799 = vadd.f32 %v3771, %v3784
      %v3800 = vadd.f32 %v3772, %v3789
      %v3801 = vadd.f32 %v3773, %v3789
      %v3802 = vadd.f32 %v3774, %v3794
      %v3803 = vadd.f32 %v3775, %v3794
      %v3804 = vmax.f32 %v3796, 0.0
      %v3805 = vmax.f32 %v3797, 0.0
      %v3806 = vmax.f32 %v3798, 0.0
      %v3807 = vmax.f32 %v3799, 0.0
      %v3808 = vmax.f32 %v3800, 0.0
      %v3809 = vmax.f32 %v3801, 0.0
      %v3810 = vmax.f32 %v3802, 0.0
      %v3811 = vmax.f32 %v3803, 0.0
      %3812 = vrot.lane.b32.xlu0 %v3490, 17
      %v3813 = vpop.permute.xlu0 %3812
      %3814 = vrot.lane.b32.xlu0 %v3492, 17
      %v3815 = vpop.permute.xlu0 %3814
      %3816 = vrot.lane.b32.xlu0 %v3494, 17
      %v3817 = vpop.permute.xlu0 %3816
      %3818 = vrot.lane.b32.xlu0 %v3496, 17
      %v3819 = vpop.permute.xlu0 %3818
      %3820 = vrot.lane.b32.xlu0 %v3491, 17
      %v3821 = vpop.permute.xlu0 %3820
      %3822 = vrot.lane.b32.xlu0 %v3493, 17
      %v3823 = vpop.permute.xlu0 %3822
      %3824 = vrot.lane.b32.xlu0 %v3495, 17
      %v3825 = vpop.permute.xlu0 %3824
      %3826 = vrot.lane.b32.xlu0 %v3497, 17
      %v3827 = vpop.permute.xlu0 %3826
      %v3828 = vsel %vm977, %v3813, %v3821
      %v3829 = vsel %vm977, %v3815, %v3823
      %v3830 = vsel %vm977, %v3817, %v3825
      %v3831 = vsel %vm977, %v3819, %v3827
      %v3832 = vsel %vm977, %v3821, %v3813
      %v3833 = vsel %vm977, %v3823, %v3815
      %v3834 = vsel %vm977, %v3825, %v3817
      %v3835 = vsel %vm977, %v3827, %v3819
      %v3836 = vmul.f32 %v3832, %v991
      %v3837 = vmul.f32 %v3828, %v995
      %v3838 = vmul.f32 %v3833, %v991
      %v3839 = vmul.f32 %v3829, %v995
      %v3840 = vmul.f32 %v3834, %v991
      %v3841 = vmul.f32 %v3830, %v995
      %v3842 = vmul.f32 %v3835, %v991
      %v3843 = vmul.f32 %v3831, %v995
      %v3844 = vpack.c.bf16 %v3838, %v3836
      %v3845 = vpack.c.bf16 %v3839, %v3837
      %v3846 = vpack.c.bf16 %v3842, %v3840
      %v3847 = vpack.c.bf16 %v3843, %v3841
      %3848 = vrot.lane.b32.xlu0 %v3490, 16
      %v3849 = vpop.permute.xlu0 %3848
      %3850 = vrot.lane.b32.xlu0 %v3492, 16
      %v3851 = vpop.permute.xlu0 %3850
      %3852 = vrot.lane.b32.xlu0 %v3494, 16
      %v3853 = vpop.permute.xlu0 %3852
      %3854 = vrot.lane.b32.xlu0 %v3496, 16
      %v3855 = vpop.permute.xlu0 %3854
      %3856 = vrot.lane.b32.xlu0 %v3491, 16
      %v3857 = vpop.permute.xlu0 %3856
      %3858 = vrot.lane.b32.xlu0 %v3493, 16
      %v3859 = vpop.permute.xlu0 %3858
      %3860 = vrot.lane.b32.xlu0 %v3495, 16
      %v3861 = vpop.permute.xlu0 %3860
      %3862 = vrot.lane.b32.xlu0 %v3497, 16
      %v3863 = vpop.permute.xlu0 %3862
      %v3864 = vsel %vm1024, %v3849, %v3857
      %v3865 = vsel %vm1024, %v3851, %v3859
      %v3866 = vsel %vm1024, %v3853, %v3861
      %v3867 = vsel %vm1024, %v3855, %v3863
      %v3868 = vsel %vm1024, %v3857, %v3849
      %v3869 = vsel %vm1024, %v3859, %v3851
      %v3870 = vsel %vm1024, %v3861, %v3853
      %v3871 = vsel %vm1024, %v3863, %v3855
      %v3872 = vmul.f32 %v3868, %v1036
      %v3873 = vmul.f32 %v3864, %v1040
      %v3874 = vmul.f32 %v3869, %v1036
      %v3875 = vmul.f32 %v3865, %v1040
      %v3876 = vmul.f32 %v3870, %v1036
      %v3877 = vmul.f32 %v3866, %v1040
      %v3878 = vmul.f32 %v3871, %v1036
      %v3879 = vmul.f32 %v3867, %v1040
      %v3880 = vpack.c.bf16 %v3874, %v3872
      %v3881 = vpack.c.bf16 %v3875, %v3873
      %v3882 = vpack.c.bf16 %v3878, %v3876
      %v3883 = vpack.c.bf16 %v3879, %v3877
      %3884 = vrot.lane.b32.xlu0 %v3490, 15
      %v3885 = vpop.permute.xlu0 %3884
      %3886 = vrot.lane.b32.xlu0 %v3492, 15
      %v3887 = vpop.permute.xlu0 %3886
      %3888 = vrot.lane.b32.xlu0 %v3494, 15
      %v3889 = vpop.permute.xlu0 %3888
      %3890 = vrot.lane.b32.xlu0 %v3496, 15
      %v3891 = vpop.permute.xlu0 %3890
      %3892 = vrot.lane.b32.xlu0 %v3491, 15
      %v3893 = vpop.permute.xlu0 %3892
      %3894 = vrot.lane.b32.xlu0 %v3493, 15
      %v3895 = vpop.permute.xlu0 %3894
      %3896 = vrot.lane.b32.xlu0 %v3495, 15
      %v3897 = vpop.permute.xlu0 %3896
      %3898 = vrot.lane.b32.xlu0 %v3497, 15
      %v3899 = vpop.permute.xlu0 %3898
      %v3900 = vsel %vm1069, %v3885, %v3893
      %v3901 = vsel %vm1069, %v3887, %v3895
      %v3902 = vsel %vm1069, %v3889, %v3897
      %v3903 = vsel %vm1069, %v3891, %v3899
      %v3904 = vsel %vm1069, %v3893, %v3885
      %v3905 = vsel %vm1069, %v3895, %v3887
      %v3906 = vsel %vm1069, %v3897, %v3889
      %v3907 = vsel %vm1069, %v3899, %v3891
      %v3908 = vmul.f32 %v3904, %v1081
      %v3909 = vmul.f32 %v3900, %v1085
      %v3910 = vmul.f32 %v3905, %v1081
      %v3911 = vmul.f32 %v3901, %v1085
      %v3912 = vmul.f32 %v3906, %v1081
      %v3913 = vmul.f32 %v3902, %v1085
      %v3914 = vmul.f32 %v3907, %v1081
      %v3915 = vmul.f32 %v3903, %v1085
      %v3916 = vpack.c.bf16 %v3910, %v3908
      %v3917 = vpack.c.bf16 %v3911, %v3909
      %v3918 = vpack.c.bf16 %v3914, %v3912
      %v3919 = vpack.c.bf16 %v3915, %v3913
      %3920 = vrot.lane.b32.xlu0 %v3490, 1
      %v3921 = vpop.permute.xlu0 %3920
      %3922 = vrot.lane.b32.xlu0 %v3492, 1
      %v3923 = vpop.permute.xlu0 %3922
      %3924 = vrot.lane.b32.xlu0 %v3494, 1
      %v3925 = vpop.permute.xlu0 %3924
      %3926 = vrot.lane.b32.xlu0 %v3496, 1
      %v3927 = vpop.permute.xlu0 %3926
      %3928 = vrot.lane.b32.xlu0 %v3491, 1
      %v3929 = vpop.permute.xlu0 %3928
      %3930 = vrot.lane.b32.xlu0 %v3493, 1
      %v3931 = vpop.permute.xlu0 %3930
      %3932 = vrot.lane.b32.xlu0 %v3495, 1
      %v3933 = vpop.permute.xlu0 %3932
      %3934 = vrot.lane.b32.xlu0 %v3497, 1
      %v3935 = vpop.permute.xlu0 %3934
      %v3936 = vsel %vm1114, %v3921, %v3929
      %v3937 = vsel %vm1114, %v3923, %v3931
      %v3938 = vsel %vm1114, %v3925, %v3933
      %v3939 = vsel %vm1114, %v3927, %v3935
      %v3940 = vsel %vm1114, %v3929, %v3921
      %v3941 = vsel %vm1114, %v3931, %v3923
      %v3942 = vsel %vm1114, %v3933, %v3925
      %v3943 = vsel %vm1114, %v3935, %v3927
      %v3944 = vmul.f32 %v3940, %v1126
      %v3945 = vmul.f32 %v3936, %v1130
      %v3946 = vmul.f32 %v3941, %v1126
      %v3947 = vmul.f32 %v3937, %v1130
      %v3948 = vmul.f32 %v3942, %v1126
      %v3949 = vmul.f32 %v3938, %v1130
      %v3950 = vmul.f32 %v3943, %v1126
      %v3951 = vmul.f32 %v3939, %v1130
      %v3952 = vpack.c.bf16 %v3946, %v3944
      %v3953 = vpack.c.bf16 %v3947, %v3945
      %v3954 = vpack.c.bf16 %v3950, %v3948
      %v3955 = vpack.c.bf16 %v3951, %v3949
      %v3956 = vpack.c.bf16 %v3492, %v3490
      %v3957 = vpack.c.bf16 %v3493, %v3491
      %v3958 = vpack.c.bf16 %v3496, %v3494
      %v3959 = vpack.c.bf16 %v3497, %v3495
      %3960 = vrot.lane.b32.xlu0 %v3490, 127
      %v3961 = vpop.permute.xlu0 %3960
      %3962 = vrot.lane.b32.xlu0 %v3492, 127
      %v3963 = vpop.permute.xlu0 %3962
      %3964 = vrot.lane.b32.xlu0 %v3494, 127
      %v3965 = vpop.permute.xlu0 %3964
      %3966 = vrot.lane.b32.xlu0 %v3496, 127
      %v3967 = vpop.permute.xlu0 %3966
      %3968 = vrot.lane.b32.xlu0 %v3491, 127
      %v3969 = vpop.permute.xlu0 %3968
      %3970 = vrot.lane.b32.xlu0 %v3493, 127
      %v3971 = vpop.permute.xlu0 %3970
      %3972 = vrot.lane.b32.xlu0 %v3495, 127
      %v3973 = vpop.permute.xlu0 %3972
      %3974 = vrot.lane.b32.xlu0 %v3497, 127
      %v3975 = vpop.permute.xlu0 %3974
      %v3976 = vsel %vm1163, %v3961, %v3969
      %v3977 = vsel %vm1163, %v3963, %v3971
      %v3978 = vsel %vm1163, %v3965, %v3973
      %v3979 = vsel %vm1163, %v3967, %v3975
      %v3980 = vsel %vm1163, %v3969, %v3961
      %v3981 = vsel %vm1163, %v3971, %v3963
      %v3982 = vsel %vm1163, %v3973, %v3965
      %v3983 = vsel %vm1163, %v3975, %v3967
      %v3984 = vmul.f32 %v3976, %v1175
      %v3985 = vmul.f32 %v3980, %v1179
      %v3986 = vmul.f32 %v3977, %v1175
      %v3987 = vmul.f32 %v3981, %v1179
      %v3988 = vmul.f32 %v3978, %v1175
      %v3989 = vmul.f32 %v3982, %v1179
      %v3990 = vmul.f32 %v3979, %v1175
      %v3991 = vmul.f32 %v3983, %v1179
      %v3992 = vpack.c.bf16 %v3986, %v3984
      %v3993 = vpack.c.bf16 %v3987, %v3985
      %v3994 = vpack.c.bf16 %v3990, %v3988
      %v3995 = vpack.c.bf16 %v3991, %v3989
      %3996 = vrot.lane.b32.xlu0 %v3490, 113
      %v3997 = vpop.permute.xlu0 %3996
      %3998 = vrot.lane.b32.xlu0 %v3492, 113
      %v3999 = vpop.permute.xlu0 %3998
      %4000 = vrot.lane.b32.xlu0 %v3494, 113
      %v4001 = vpop.permute.xlu0 %4000
      %4002 = vrot.lane.b32.xlu0 %v3496, 113
      %v4003 = vpop.permute.xlu0 %4002
      %4004 = vrot.lane.b32.xlu0 %v3491, 113
      %v4005 = vpop.permute.xlu0 %4004
      %4006 = vrot.lane.b32.xlu0 %v3493, 113
      %v4007 = vpop.permute.xlu0 %4006
      %4008 = vrot.lane.b32.xlu0 %v3495, 113
      %v4009 = vpop.permute.xlu0 %4008
      %4010 = vrot.lane.b32.xlu0 %v3497, 113
      %v4011 = vpop.permute.xlu0 %4010
      %v4012 = vsel %vm1208, %v3997, %v4005
      %v4013 = vsel %vm1208, %v3999, %v4007
      %v4014 = vsel %vm1208, %v4001, %v4009
      %v4015 = vsel %vm1208, %v4003, %v4011
      %v4016 = vsel %vm1208, %v4005, %v3997
      %v4017 = vsel %vm1208, %v4007, %v3999
      %v4018 = vsel %vm1208, %v4009, %v4001
      %v4019 = vsel %vm1208, %v4011, %v4003
      %v4020 = vmul.f32 %v4012, %v1220
      %v4021 = vmul.f32 %v4016, %v1224
      %v4022 = vmul.f32 %v4013, %v1220
      %v4023 = vmul.f32 %v4017, %v1224
      %v4024 = vmul.f32 %v4014, %v1220
      %v4025 = vmul.f32 %v4018, %v1224
      %v4026 = vmul.f32 %v4015, %v1220
      %v4027 = vmul.f32 %v4019, %v1224
      %v4028 = vpack.c.bf16 %v4022, %v4020
      %v4029 = vpack.c.bf16 %v4023, %v4021
      %v4030 = vpack.c.bf16 %v4026, %v4024
      %v4031 = vpack.c.bf16 %v4027, %v4025
      %4032 = vrot.lane.b32.xlu0 %v3490, 112
      %v4033 = vpop.permute.xlu0 %4032
      %4034 = vrot.lane.b32.xlu0 %v3492, 112
      %v4035 = vpop.permute.xlu0 %4034
      %4036 = vrot.lane.b32.xlu0 %v3494, 112
      %v4037 = vpop.permute.xlu0 %4036
      %4038 = vrot.lane.b32.xlu0 %v3496, 112
      %v4039 = vpop.permute.xlu0 %4038
      %4040 = vrot.lane.b32.xlu0 %v3491, 112
      %v4041 = vpop.permute.xlu0 %4040
      %4042 = vrot.lane.b32.xlu0 %v3493, 112
      %v4043 = vpop.permute.xlu0 %4042
      %4044 = vrot.lane.b32.xlu0 %v3495, 112
      %v4045 = vpop.permute.xlu0 %4044
      %4046 = vrot.lane.b32.xlu0 %v3497, 112
      %v4047 = vpop.permute.xlu0 %4046
      %v4048 = vsel %vm1253, %v4033, %v4041
      %v4049 = vsel %vm1253, %v4035, %v4043
      %v4050 = vsel %vm1253, %v4037, %v4045
      %v4051 = vsel %vm1253, %v4039, %v4047
      %v4052 = vsel %vm1253, %v4041, %v4033
      %v4053 = vsel %vm1253, %v4043, %v4035
      %v4054 = vsel %vm1253, %v4045, %v4037
      %v4055 = vsel %vm1253, %v4047, %v4039
      %v4056 = vmul.f32 %v4048, %v1265
      %v4057 = vmul.f32 %v4052, %v1269
      %v4058 = vmul.f32 %v4049, %v1265
      %v4059 = vmul.f32 %v4053, %v1269
      %v4060 = vmul.f32 %v4050, %v1265
      %v4061 = vmul.f32 %v4054, %v1269
      %v4062 = vmul.f32 %v4051, %v1265
      %v4063 = vmul.f32 %v4055, %v1269
      %v4064 = vpack.c.bf16 %v4058, %v4056
      %v4065 = vpack.c.bf16 %v4059, %v4057
      %v4066 = vpack.c.bf16 %v4062, %v4060
      %v4067 = vpack.c.bf16 %v4063, %v4061
      %4068 = vrot.lane.b32.xlu0 %v3490, 111
      %v4069 = vpop.permute.xlu0 %4068
      %4070 = vrot.lane.b32.xlu0 %v3492, 111
      %v4071 = vpop.permute.xlu0 %4070
      %4072 = vrot.lane.b32.xlu0 %v3494, 111
      %v4073 = vpop.permute.xlu0 %4072
      %4074 = vrot.lane.b32.xlu0 %v3496, 111
      %v4075 = vpop.permute.xlu0 %4074
      %4076 = vrot.lane.b32.xlu0 %v3491, 111
      %v4077 = vpop.permute.xlu0 %4076
      %4078 = vrot.lane.b32.xlu0 %v3493, 111
      %v4079 = vpop.permute.xlu0 %4078
      %4080 = vrot.lane.b32.xlu0 %v3495, 111
      %v4081 = vpop.permute.xlu0 %4080
      %4082 = vrot.lane.b32.xlu0 %v3497, 111
      %v4083 = vpop.permute.xlu0 %4082
      %v4084 = vsel %vm1298, %v4069, %v4077
      %v4085 = vsel %vm1298, %v4071, %v4079
      %v4086 = vsel %vm1298, %v4073, %v4081
      %v4087 = vsel %vm1298, %v4075, %v4083
      %v4088 = vsel %vm1298, %v4077, %v4069
      %v4089 = vsel %vm1298, %v4079, %v4071
      %v4090 = vsel %vm1298, %v4081, %v4073
      %v4091 = vsel %vm1298, %v4083, %v4075
      %v4092 = vmul.f32 %v4084, %v1312
      %v4093 = vmul.f32 %v4088, %v1316
      %v4094 = vmul.f32 %v4085, %v1312
      %v4095 = vmul.f32 %v4089, %v1316
      %v4096 = vmul.f32 %v4086, %v1312
      %v4097 = vmul.f32 %v4090, %v1316
      %v4098 = vmul.f32 %v4087, %v1312
      %v4099 = vmul.f32 %v4091, %v1316
      %v4100 = vpack.c.bf16 %v4094, %v4092
      %v4101 = vpack.c.bf16 %v4095, %v4093
      %v4102 = vpack.c.bf16 %v4098, %v4096
      %v4103 = vpack.c.bf16 %v4099, %v4097
      %v4104 = vld [vmem:[%s35] sm:$0xff]
      %v4105 = vld [vmem:[%s35 + $0x8] sm:$0xf]
      %v4106 = vld [vmem:[%s35 + $0xc] sm:$0xff]
      %v4107 = vld [vmem:[%s35 + $0x14] sm:$0xf]
      %v4108 = vld [vmem:[%s35 + $0x18] sm:$0xff]
      %v4109 = vld [vmem:[%s35 + $0x20] sm:$0xf]
      %v4110 = vld [vmem:[%s35 + $0x24] sm:$0xff]
      %v4111 = vld [vmem:[%s35 + $0x2c] sm:$0xf]
      %v4112 = vld [vmem:[%s37] sm:$0xff]
      %v4113 = vld [vmem:[%s37 + $0x8] sm:$0xff]
      %v4114 = vld [vmem:[%s37 + $0x10] sm:$0xff]
      %v4115 = vld [vmem:[%s37 + $0x18] sm:$0xff]
      %4117 = vset.pattern.permute.xlu0 0
      %4118 = vperm.xlu0 %4117, %v4112
      %v4119 = vpop.permute.xlu0 %4118
      %4122 = vset.pattern.permute.xlu0 0
      %4123 = vperm.xlu0 %4122, %v4113
      %v4124 = vpop.permute.xlu0 %4123
      %4127 = vset.pattern.permute.xlu0 0
      %4128 = vperm.xlu0 %4127, %v4114
      %v4129 = vpop.permute.xlu0 %4128
      %4132 = vset.pattern.permute.xlu0 0
      %4133 = vperm.xlu0 %4132, %v4115
      %v4134 = vpop.permute.xlu0 %4133
      %v4144 = vunpack.c.l.b16 %v4104
      %v4145 = vunpack.c.h.b16 %v4104
      %v4146 = vunpack.c.l.b16 %v4105
      %v4147 = vunpack.c.l.b16 %v4106
      %v4148 = vunpack.c.h.b16 %v4106
      %v4149 = vunpack.c.l.b16 %v4107
      %v4150 = vunpack.c.l.b16 %v4108
      %v4151 = vunpack.c.h.b16 %v4108
      %v4152 = vunpack.c.l.b16 %v4109
      %v4153 = vunpack.c.l.b16 %v4110
      %v4154 = vunpack.c.h.b16 %v4110
      %v4155 = vunpack.c.l.b16 %v4111
      %v4156 = vpack.c.b16 %v4147, %v4144
      %v4157 = vpack.c.b16 %v4148, %v4145
      %v4158 = vpack.c.b16 %v4149, %v4146
      %v4159 = vpack.c.b16 %v4153, %v4150
      %v4160 = vpack.c.b16 %v4154, %v4151
      %v4161 = vpack.c.b16 %v4155, %v4152
      %v4167 = vsel %vm1391, %v4158, 0
      %v4170 = vsel %vm1391, %v4161, 0
      %4172 = vmatprep.subr.bf16.mxu0 %v3845
      %4173 = vmatpush1.bf16.msra.mxu0 %v3844
      %4174 = vmatprep.subr.bf16.mxu0 %v3847
      %4175 = vmatpush1.bf16.msra.mxu0 %v3846
      %4176 = vmatprep.subr.bf16.mxu0 %v3881
      %4177 = vmatpush1.bf16.msra.mxu0 %v3880
      %4178 = vmatprep.subr.bf16.mxu0 %v3883
      %4179 = vmatpush1.bf16.msra.mxu0 %v3882
      %4180 = vmatprep.subr.bf16.mxu0 %v3917
      %4181 = vmatpush1.bf16.msra.mxu0 %v3916
      %4182 = vmatprep.subr.bf16.mxu0 %v3919
      %4183 = vmatpush1.bf16.msra.mxu0 %v3918
      %4184 = vmatprep.subr.bf16.mxu0 %v3953
      %4185 = vmatpush1.bf16.msra.mxu0 %v3952
      %4186 = vmatprep.subr.bf16.mxu0 %v3955
      %4187 = vmatpush1.bf16.msra.mxu0 %v3954
      %4188 = vmatprep.subr.bf16.mxu0 %v3957
      %4189 = vmatpush1.bf16.msra.mxu0 %v3956
      %4190 = vmatprep.subr.bf16.mxu0 %v3959
      %4191 = vmatpush1.bf16.msra.mxu0 %v3958
      %4192 = vmatprep.subr.bf16.mxu0 %v3993
      %4193 = vmatpush1.bf16.msra.mxu0 %v3992
      %4194 = vmatprep.subr.bf16.mxu0 %v3995
      %4195 = vmatpush1.bf16.msra.mxu0 %v3994
      %4196 = vmatprep.subr.bf16.mxu0 %v4029
      %4197 = vmatpush1.bf16.msra.mxu0 %v4028
      %4198 = vmatprep.subr.bf16.mxu0 %v4031
      %4199 = vmatpush1.bf16.msra.mxu0 %v4030
      %4200 = vmatprep.subr.bf16.mxu0 %v4065
      %4201 = vmatpush1.bf16.msra.mxu0 %v4064
      %4202 = vmatprep.subr.bf16.mxu0 %v4067
      %4203 = vmatpush1.bf16.msra.mxu0 %v4066
      %4204 = vmatprep.mubr.bf16.mxu0 %v4157
      %4205 = vmatmul.mubr.bf16.gmra.mrb[0].mxu0 %v4156
      %v4206 = vpop.f32.mrb[0].mxu0
      %v4207 = vadd.f32 %v4119, %v4206
      %v4208 = vpop.f32.mrb[0].mxu0
      %v4209 = vadd.f32 %v4119, %v4208
      %v4210 = vpop.f32.mrb[0].mxu0
      %v4211 = vadd.f32 %v4124, %v4210
      %v4212 = vpop.f32.mrb[0].mxu0
      %v4213 = vadd.f32 %v4124, %v4212
      %4214 = vmatprep.mubr.bf16.mxu0 %v4160
      %4215 = vmatmul.mubr.bf16.gmra.mrb[0].mxu0 %v4159
      %v4216 = vpop.f32.mrb[0].mxu0
      %v4217 = vadd.f32 %v4129, %v4216
      %v4218 = vpop.f32.mrb[0].mxu0
      %v4219 = vadd.f32 %v4129, %v4218
      %v4220 = vpop.f32.mrb[0].mxu0
      %v4221 = vadd.f32 %v4134, %v4220
      %v4222 = vpop.f32.mrb[0].mxu0
      %v4223 = vadd.f32 %v4134, %v4222
      %4224 = vdwg.mxu0
      %4225 = vmatprep.subr.bf16.mxu0 %v4101
      %4226 = vmatpush1.bf16.msra.mxu0 %v4100
      %4227 = vmatprep.subr.bf16.mxu0 %v4103
      %4228 = vmatpush1.bf16.msra.mxu0 %v4102
      %4229 = vmatprep.subr.bf16.mxu0 0
      %4230 = vmatpush1.bf16.msra.mxu0 0
      %4231 = vmatprep.subr.bf16.mxu0 0
      %4232 = vmatpush1.bf16.msra.mxu0 0
      %4233 = vmatprep.subr.bf16.mxu0 0
      %4234 = vmatpush1.bf16.msra.mxu0 0
      %4235 = vmatprep.subr.bf16.mxu0 0
      %4236 = vmatpush1.bf16.msra.mxu0 0
      %4237 = vmatprep.subr.bf16.mxu0 0
      %4238 = vmatpush1.bf16.msra.mxu0 0
      %4239 = vmatprep.subr.bf16.mxu0 0
      %4240 = vmatpush1.bf16.msra.mxu0 0
      %4241 = vmatprep.subr.bf16.mxu0 0
      %4242 = vmatpush1.bf16.msra.mxu0 0
      %4243 = vmatprep.subr.bf16.mxu0 0
      %4244 = vmatpush1.bf16.msra.mxu0 0
      %4245 = vmatprep.subr.bf16.mxu0 0
      %4246 = vmatpush1.bf16.msra.mxu0 0
      %4247 = vmatprep.subr.bf16.mxu0 0
      %4248 = vmatpush1.bf16.msra.mxu0 0
      %4249 = vmatprep.subr.bf16.mxu0 0
      %4250 = vmatpush1.bf16.msra.mxu0 0
      %4251 = vmatprep.subr.bf16.mxu0 0
      %4252 = vmatpush1.bf16.msra.mxu0 0
      %4253 = vmatprep.subr.bf16.mxu0 0
      %4254 = vmatpush1.bf16.msra.mxu0 0
      %4255 = vmatprep.subr.bf16.mxu0 0
      %4256 = vmatpush1.bf16.msra.mxu0 0
      %4257 = vmatprep.mubr.bf16.mxu0 0
      %4258 = vmatmul.mubr.bf16.gmra.mrb[0].mxu0 %v4167
      %v4259 = vpop.f32.mrb[0].mxu0
      %v4260 = vadd.f32 %v4207, %v4259
      %v4261 = vpop.f32.mrb[0].mxu0
      %v4262 = vadd.f32 %v4209, %v4261
      %v4263 = vpop.f32.mrb[0].mxu0
      %v4264 = vadd.f32 %v4211, %v4263
      %v4265 = vpop.f32.mrb[0].mxu0
      %v4266 = vadd.f32 %v4213, %v4265
      %4267 = vmatprep.mubr.bf16.mxu0 0
      %4268 = vmatmul.mubr.bf16.gmra.mrb[0].mxu0 %v4170
      %v4269 = vpop.f32.mrb[0].mxu0
      %v4270 = vadd.f32 %v4217, %v4269
      %v4271 = vpop.f32.mrb[0].mxu0
      %v4272 = vadd.f32 %v4219, %v4271
      %v4273 = vpop.f32.mrb[0].mxu0
      %v4274 = vadd.f32 %v4221, %v4273
      %v4275 = vpop.f32.mrb[0].mxu0
      %v4276 = vadd.f32 %v4223, %v4275
      %4277 = vdwg.mxu0
      %v4278 = vadd.f32 %v4260, %v4262
      %4279 = vadd.xlane.f32.xlu0 %v4278
      %v4280 = vpop.xlane.xlu0 %4279
      %v4281 = vadd.f32 %v4264, %v4266
      %4282 = vadd.xlane.f32.xlu0 %v4281
      %v4283 = vpop.xlane.xlu0 %4282
      %v4284 = vadd.f32 %v4270, %v4272
      %4285 = vadd.xlane.f32.xlu0 %v4284
      %v4286 = vpop.xlane.xlu0 %4285
      %v4287 = vadd.f32 %v4274, %v4276
      %4288 = vadd.xlane.f32.xlu0 %v4287
      %v4289 = vpop.xlane.xlu0 %4288
      %v4290 = vmul.f32 %v4260, %v4260
      %v4291 = vmul.f32 %v4262, %v4262
      %v4292 = vmul.f32 %v4264, %v4264
      %v4293 = vmul.f32 %v4266, %v4266
      %v4294 = vmul.f32 %v4270, %v4270
      %v4295 = vmul.f32 %v4272, %v4272
      %v4296 = vmul.f32 %v4274, %v4274
      %v4297 = vmul.f32 %v4276, %v4276
      %v4298 = vadd.f32 %v4290, %v4291
      %4299 = vadd.xlane.f32.xlu0 %v4298
      %v4300 = vpop.xlane.xlu0 %4299
      %v4301 = vadd.f32 %v4292, %v4293
      %4302 = vadd.xlane.f32.xlu0 %v4301
      %v4303 = vpop.xlane.xlu0 %4302
      %v4304 = vadd.f32 %v4294, %v4295
      %4305 = vadd.xlane.f32.xlu0 %v4304
      %v4306 = vpop.xlane.xlu0 %4305
      %v4307 = vadd.f32 %v4296, %v4297
      %4308 = vadd.xlane.f32.xlu0 %v4307
      %v4309 = vpop.xlane.xlu0 %4308
      %4310 = vmatprep.subr.mxu0 0.0
      %4311 = vmatpush1.msra.mxu0 %v4280
      %4312 = vmatprep.subr.mxu0 0.0
      %4313 = vmatpush1.msra.mxu0 %v4283
      %4314 = vmatprep.subr.mxu0 0.0
      %4315 = vmatpush1.msra.mxu0 %v4286
      %4316 = vmatprep.subr.mxu0 0.0
      %4317 = vmatpush1.msra.mxu0 %v4289
      %4318 = vmatprep.subr.mxu0 0.0
      %4319 = vmatpush1.msra.mxu0 0.0
      %4320 = vmatprep.subr.mxu0 0.0
      %4321 = vmatpush1.msra.mxu0 0.0
      %4322 = vmatprep.subr.mxu0 0.0
      %4323 = vmatpush1.msra.mxu0 0.0
      %4324 = vmatprep.subr.mxu0 0.0
      %4325 = vmatpush1.msra.mxu0 0.0
      %4326 = vmatprep.subr.mxu0 0.0
      %4327 = vmatpush1.msra.mxu0 0.0
      %4328 = vmatprep.subr.mxu0 0.0
      %4329 = vmatpush1.msra.mxu0 0.0
      %4330 = vmatprep.subr.mxu0 0.0
      %4331 = vmatpush1.msra.mxu0 0.0
      %4332 = vmatprep.subr.mxu0 0.0
      %4333 = vmatpush1.msra.mxu0 0.0
      %4334 = vmatprep.subr.mxu0 0.0
      %4335 = vmatpush1.msra.mxu0 0.0
      %4336 = vmatprep.subr.mxu0 0.0
      %4337 = vmatpush1.msra.mxu0 0.0
      %4338 = vmatprep.subr.mxu0 0.0
      %4339 = vmatpush1.msra.mxu0 0.0
      %4340 = vmatprep.subr.mxu0 0.0
      %4341 = vmatpush1.msra.mxu0 0.0
      %4342 = vmatprep.subr.mxu0 0.0
      %4343 = vmatpush1.msra.mxu0 0.0
      %4344 = vmatprep.subr.mxu0 0.0
      %4345 = vmatpush1.msra.mxu0 0.0
      %4346 = vmatprep.subr.mxu0 0.0
      %4347 = vmatpush1.msra.mxu0 0.0
      %4348 = vmatprep.subr.mxu0 0.0
      %4349 = vmatpush1.msra.mxu0 0.0
      %4350 = vmatprep.subr.mxu0 0.0
      %4351 = vmatpush1.msra.mxu0 0.0
      %4352 = vmatprep.subr.mxu0 0.0
      %4353 = vmatpush1.msra.mxu0 0.0
      %4354 = vmatprep.subr.mxu0 0.0
      %4355 = vmatpush1.msra.mxu0 0.0
      %4356 = vmatprep.subr.mxu0 0.0
      %4357 = vmatpush1.msra.mxu0 0.0
      %4358 = vmatprep.subr.mxu0 0.0
      %4359 = vmatpush1.msra.mxu0 0.0
      %4360 = vmatprep.subr.mxu0 0.0
      %4361 = vmatpush1.msra.mxu0 0.0
      %4362 = vmatprep.subr.mxu0 0.0
      %4363 = vmatpush1.msra.mxu0 0.0
      %4364 = vmatprep.subr.mxu0 0.0
      %4365 = vmatpush1.msra.mxu0 0.0
      %4366 = vmatprep.subr.mxu0 0.0
      %4367 = vmatpush1.msra.mxu0 0.0
      %4368 = vmatprep.subr.mxu0 0.0
      %4369 = vmatpush1.msra.mxu0 0.0
      %4370 = vmatprep.subr.mxu0 0.0
      %4371 = vmatpush1.msra.mxu0 0.0
      %4372 = vmatprep.subr.mxu0 0.0
      %4373 = vmatpush1.msra.mxu0 0.0
      %4374 = vmatprep.mubr.f32.mxu0 0.0
      %4375 = vmatmul.mubr.f32.gmra.mrb[0].mxu0 %v1537
      %v4376 = vpop.f32.mrb[0].mxu0
      %v4377 = vadd.f32 0.0, %v4376
      %v4378 = vpop.f32.mrb[0].mxu0
      %4379 = vmatprep.mubr.f32.mxu0 0.0
      %4380 = vmatmul.mubr.f32.gmra.mrb[0].mxu0 %v1540
      %v4381 = vpop.f32.mrb[0].mxu0
      %v4382 = vadd.f32 0.0, %v4381
      %v4383 = vpop.f32.mrb[0].mxu0
      %4384 = vmatprep.mubr.f32.mxu0 0.0
      %4385 = vmatmul.mubr.f32.gmra.mrb[0].mxu0 %v1543
      %v4386 = vpop.f32.mrb[0].mxu0
      %v4387 = vadd.f32 0.0, %v4386
      %v4388 = vpop.f32.mrb[0].mxu0
      %4389 = vmatprep.mubr.f32.mxu0 0.0
      %4390 = vmatmul.mubr.f32.gmra.mrb[0].mxu0 %v1546
      %v4391 = vpop.f32.mrb[0].mxu0
      %v4392 = vadd.f32 0.0, %v4391
      %v4393 = vpop.f32.mrb[0].mxu0
      %4394 = vdwg.mxu0
      %4395 = vmatprep.subr.mxu0 0.0
      %4396 = vmatpush1.msra.mxu0 %v4300
      %4397 = vmatprep.subr.mxu0 0.0
      %4398 = vmatpush1.msra.mxu0 %v4303
      %4399 = vmatprep.subr.mxu0 0.0
      %4400 = vmatpush1.msra.mxu0 %v4306
      %4401 = vmatprep.subr.mxu0 0.0
      %4402 = vmatpush1.msra.mxu0 %v4309
      %4403 = vmatprep.subr.mxu0 0.0
      %4404 = vmatpush1.msra.mxu0 0.0
      %4405 = vmatprep.subr.mxu0 0.0
      %4406 = vmatpush1.msra.mxu0 0.0
      %4407 = vmatprep.subr.mxu0 0.0
      %4408 = vmatpush1.msra.mxu0 0.0
      %4409 = vmatprep.subr.mxu0 0.0
      %4410 = vmatpush1.msra.mxu0 0.0
      %4411 = vmatprep.subr.mxu0 0.0
      %4412 = vmatpush1.msra.mxu0 0.0
      %4413 = vmatprep.subr.mxu0 0.0
      %4414 = vmatpush1.msra.mxu0 0.0
      %4415 = vmatprep.subr.mxu0 0.0
      %4416 = vmatpush1.msra.mxu0 0.0
      %4417 = vmatprep.subr.mxu0 0.0
      %4418 = vmatpush1.msra.mxu0 0.0
      %4419 = vmatprep.subr.mxu0 0.0
      %4420 = vmatpush1.msra.mxu0 0.0
      %4421 = vmatprep.subr.mxu0 0.0
      %4422 = vmatpush1.msra.mxu0 0.0
      %4423 = vmatprep.subr.mxu0 0.0
      %4424 = vmatpush1.msra.mxu0 0.0
      %4425 = vmatprep.subr.mxu0 0.0
      %4426 = vmatpush1.msra.mxu0 0.0
      %4427 = vmatprep.subr.mxu0 0.0
      %4428 = vmatpush1.msra.mxu0 0.0
      %4429 = vmatprep.subr.mxu0 0.0
      %4430 = vmatpush1.msra.mxu0 0.0
      %4431 = vmatprep.subr.mxu0 0.0
      %4432 = vmatpush1.msra.mxu0 0.0
      %4433 = vmatprep.subr.mxu0 0.0
      %4434 = vmatpush1.msra.mxu0 0.0
      %4435 = vmatprep.subr.mxu0 0.0
      %4436 = vmatpush1.msra.mxu0 0.0
      %4437 = vmatprep.subr.mxu0 0.0
      %4438 = vmatpush1.msra.mxu0 0.0
      %4439 = vmatprep.subr.mxu0 0.0
      %4440 = vmatpush1.msra.mxu0 0.0
      %4441 = vmatprep.subr.mxu0 0.0
      %4442 = vmatpush1.msra.mxu0 0.0
      %4443 = vmatprep.subr.mxu0 0.0
      %4444 = vmatpush1.msra.mxu0 0.0
      %4445 = vmatprep.subr.mxu0 0.0
      %4446 = vmatpush1.msra.mxu0 0.0
      %4447 = vmatprep.subr.mxu0 0.0
      %4448 = vmatpush1.msra.mxu0 0.0
      %4449 = vmatprep.subr.mxu0 0.0
      %4450 = vmatpush1.msra.mxu0 0.0
      %4451 = vmatprep.subr.mxu0 0.0
      %4452 = vmatpush1.msra.mxu0 0.0
      %4453 = vmatprep.subr.mxu0 0.0
      %4454 = vmatpush1.msra.mxu0 0.0
      %4455 = vmatprep.subr.mxu0 0.0
      %4456 = vmatpush1.msra.mxu0 0.0
      %4457 = vmatprep.subr.mxu0 0.0
      %4458 = vmatpush1.msra.mxu0 0.0
      %4459 = vmatprep.mubr.f32.mxu0 0.0
      %4460 = vmatmul.mubr.f32.gmra.mrb[0].mxu0 %v1537
      %v4461 = vpop.f32.mrb[0].mxu0
      %v4462 = vadd.f32 0.0, %v4461
      %v4463 = vpop.f32.mrb[0].mxu0
      %4464 = vmatprep.mubr.f32.mxu0 0.0
      %4465 = vmatmul.mubr.f32.gmra.mrb[0].mxu0 %v1540
      %v4466 = vpop.f32.mrb[0].mxu0
      %v4467 = vadd.f32 0.0, %v4466
      %v4468 = vpop.f32.mrb[0].mxu0
      %4469 = vmatprep.mubr.f32.mxu0 0.0
      %4470 = vmatmul.mubr.f32.gmra.mrb[0].mxu0 %v1543
      %v4471 = vpop.f32.mrb[0].mxu0
      %v4472 = vadd.f32 0.0, %v4471
      %v4473 = vpop.f32.mrb[0].mxu0
      %4474 = vmatprep.mubr.f32.mxu0 0.0
      %4475 = vmatmul.mubr.f32.gmra.mrb[0].mxu0 %v1546
      %v4476 = vpop.f32.mrb[0].mxu0
      %v4477 = vadd.f32 0.0, %v4476
      %v4478 = vpop.f32.mrb[0].mxu0
      %4479 = vdwg.mxu0
      %v4480 = vmul.f32 %v4377, 0.0009765625
      %v4481 = vmul.f32 %v4382, 0.0009765625
      %v4482 = vmul.f32 %v4387, 0.0009765625
      %v4483 = vmul.f32 %v4392, 0.0009765625
      %v4484 = vmul.f32 %v4462, 0.0009765625
      %v4485 = vmul.f32 %v4467, 0.0009765625
      %v4486 = vmul.f32 %v4472, 0.0009765625
      %v4487 = vmul.f32 %v4477, 0.0009765625
      %v4488 = vmul.f32 %v4480, %v4480
      %v4489 = vmul.f32 %v4481, %v4481
      %v4490 = vmul.f32 %v4482, %v4482
      %v4491 = vmul.f32 %v4483, %v4483
      %v4492 = vsub.f32 %v4484, %v4488
      %v4493 = vsub.f32 %v4485, %v4489
      %v4494 = vsub.f32 %v4486, %v4490
      %v4495 = vsub.f32 %v4487, %v4491
      %v4496 = vmax.f32 %v4492, 0.0
      %v4497 = vmax.f32 %v4493, 0.0
      %v4498 = vmax.f32 %v4494, 0.0
      %v4499 = vmax.f32 %v4495, 0.0
      %v4500 = vadd.f32 %v4496, 1e-05
      %v4501 = vadd.f32 %v4497, 1e-05
      %v4502 = vadd.f32 %v4498, 1e-05
      %v4503 = vadd.f32 %v4499, 1e-05
      %v4504 = vrsqrt.pop %v4500
      %v4505 = vrsqrt.pop %v4501
      %v4506 = vrsqrt.pop %v4502
      %v4507 = vrsqrt.pop %v4503
      %v4508 = vld [vmem:[%s39] sm:$0xff]
      %v4509 = vld [vmem:[%s39 + $0x8] sm:$0xff]
      %v4510 = vld [vmem:[%s39 + $0x10] sm:$0xff]
      %v4511 = vld [vmem:[%s39 + $0x18] sm:$0xff]
      %v4512 = vmul.f32 %v4504, %v4508
      %v4513 = vmul.f32 %v4505, %v4509
      %v4514 = vmul.f32 %v4506, %v4510
      %v4515 = vmul.f32 %v4507, %v4511
      %v4516 = vld [vmem:[%s41] sm:$0xff]
      %v4517 = vld [vmem:[%s41 + $0x8] sm:$0xff]
      %v4518 = vld [vmem:[%s41 + $0x10] sm:$0xff]
      %v4519 = vld [vmem:[%s41 + $0x18] sm:$0xff]
      %v4520 = vmul.f32 %v4480, %v4512
      %v4521 = vmul.f32 %v4481, %v4513
      %v4522 = vmul.f32 %v4482, %v4514
      %v4523 = vmul.f32 %v4483, %v4515
      %v4524 = vsub.f32 %v4516, %v4520
      %v4525 = vsub.f32 %v4517, %v4521
      %v4526 = vsub.f32 %v4518, %v4522
      %v4527 = vsub.f32 %v4519, %v4523
      %4529 = vset.pattern.permute.xlu0 0
      %4530 = vperm.xlu0 %4529, %v4512
      %v4531 = vpop.permute.xlu0 %4530
      %4534 = vset.pattern.permute.xlu0 0
      %4535 = vperm.xlu0 %4534, %v4513
      %v4536 = vpop.permute.xlu0 %4535
      %4539 = vset.pattern.permute.xlu0 0
      %4540 = vperm.xlu0 %4539, %v4514
      %v4541 = vpop.permute.xlu0 %4540
      %4544 = vset.pattern.permute.xlu0 0
      %4545 = vperm.xlu0 %4544, %v4515
      %v4546 = vpop.permute.xlu0 %4545
      %v4548 = vmul.f32 %v4260, %v4531
      %v4549 = vmul.f32 %v4262, %v4531
      %v4550 = vmul.f32 %v4264, %v4536
      %v4551 = vmul.f32 %v4266, %v4536
      %v4552 = vmul.f32 %v4270, %v4541
      %v4553 = vmul.f32 %v4272, %v4541
      %v4554 = vmul.f32 %v4274, %v4546
      %v4555 = vmul.f32 %v4276, %v4546
      %4557 = vset.pattern.permute.xlu0 0
      %4558 = vperm.xlu0 %4557, %v4524
      %v4559 = vpop.permute.xlu0 %4558
      %4562 = vset.pattern.permute.xlu0 0
      %4563 = vperm.xlu0 %4562, %v4525
      %v4564 = vpop.permute.xlu0 %4563
      %4567 = vset.pattern.permute.xlu0 0
      %4568 = vperm.xlu0 %4567, %v4526
      %v4569 = vpop.permute.xlu0 %4568
      %4572 = vset.pattern.permute.xlu0 0
      %4573 = vperm.xlu0 %4572, %v4527
      %v4574 = vpop.permute.xlu0 %4573
      %v4576 = vadd.f32 %v4548, %v4559
      %v4577 = vadd.f32 %v4549, %v4559
      %v4578 = vadd.f32 %v4550, %v4564
      %v4579 = vadd.f32 %v4551, %v4564
      %v4580 = vadd.f32 %v4552, %v4569
      %v4581 = vadd.f32 %v4553, %v4569
      %v4582 = vadd.f32 %v4554, %v4574
      %v4583 = vadd.f32 %v4555, %v4574
      %v4584 = vmax.f32 %v4576, 0.0
      %v4585 = vmax.f32 %v4577, 0.0
      %v4586 = vmax.f32 %v4578, 0.0
      %v4587 = vmax.f32 %v4579, 0.0
      %v4588 = vmax.f32 %v4580, 0.0
      %v4589 = vmax.f32 %v4581, 0.0
      %v4590 = vmax.f32 %v4582, 0.0
      %v4591 = vmax.f32 %v4583, 0.0
      %4592 = vrot.lane.b32.xlu0 %v4584, 17
      %v4593 = vpop.permute.xlu0 %4592
      %4594 = vrot.lane.b32.xlu0 %v4586, 17
      %v4595 = vpop.permute.xlu0 %4594
      %4596 = vrot.lane.b32.xlu0 %v4588, 17
      %v4597 = vpop.permute.xlu0 %4596
      %4598 = vrot.lane.b32.xlu0 %v4590, 17
      %v4599 = vpop.permute.xlu0 %4598
      %4600 = vrot.lane.b32.xlu0 %v4585, 17
      %v4601 = vpop.permute.xlu0 %4600
      %4602 = vrot.lane.b32.xlu0 %v4587, 17
      %v4603 = vpop.permute.xlu0 %4602
      %4604 = vrot.lane.b32.xlu0 %v4589, 17
      %v4605 = vpop.permute.xlu0 %4604
      %4606 = vrot.lane.b32.xlu0 %v4591, 17
      %v4607 = vpop.permute.xlu0 %4606
      %v4608 = vsel %vm977, %v4593, %v4601
      %v4609 = vsel %vm977, %v4595, %v4603
      %v4610 = vsel %vm977, %v4597, %v4605
      %v4611 = vsel %vm977, %v4599, %v4607
      %v4612 = vsel %vm977, %v4601, %v4593
      %v4613 = vsel %vm977, %v4603, %v4595
      %v4614 = vsel %vm977, %v4605, %v4597
      %v4615 = vsel %vm977, %v4607, %v4599
      %v4616 = vmul.f32 %v4612, %v991
      %v4617 = vmul.f32 %v4608, %v995
      %v4618 = vmul.f32 %v4613, %v991
      %v4619 = vmul.f32 %v4609, %v995
      %v4620 = vmul.f32 %v4614, %v991
      %v4621 = vmul.f32 %v4610, %v995
      %v4622 = vmul.f32 %v4615, %v991
      %v4623 = vmul.f32 %v4611, %v995
      %v4624 = vpack.c.bf16 %v4618, %v4616
      %v4625 = vpack.c.bf16 %v4619, %v4617
      %v4626 = vpack.c.bf16 %v4622, %v4620
      %v4627 = vpack.c.bf16 %v4623, %v4621
      %4628 = vrot.lane.b32.xlu0 %v4584, 16
      %v4629 = vpop.permute.xlu0 %4628
      %4630 = vrot.lane.b32.xlu0 %v4586, 16
      %v4631 = vpop.permute.xlu0 %4630
      %4632 = vrot.lane.b32.xlu0 %v4588, 16
      %v4633 = vpop.permute.xlu0 %4632
      %4634 = vrot.lane.b32.xlu0 %v4590, 16
      %v4635 = vpop.permute.xlu0 %4634
      %4636 = vrot.lane.b32.xlu0 %v4585, 16
      %v4637 = vpop.permute.xlu0 %4636
      %4638 = vrot.lane.b32.xlu0 %v4587, 16
      %v4639 = vpop.permute.xlu0 %4638
      %4640 = vrot.lane.b32.xlu0 %v4589, 16
      %v4641 = vpop.permute.xlu0 %4640
      %4642 = vrot.lane.b32.xlu0 %v4591, 16
      %v4643 = vpop.permute.xlu0 %4642
      %v4644 = vsel %vm1024, %v4629, %v4637
      %v4645 = vsel %vm1024, %v4631, %v4639
      %v4646 = vsel %vm1024, %v4633, %v4641
      %v4647 = vsel %vm1024, %v4635, %v4643
      %v4648 = vsel %vm1024, %v4637, %v4629
      %v4649 = vsel %vm1024, %v4639, %v4631
      %v4650 = vsel %vm1024, %v4641, %v4633
      %v4651 = vsel %vm1024, %v4643, %v4635
      %v4652 = vmul.f32 %v4648, %v1036
      %v4653 = vmul.f32 %v4644, %v1040
      %v4654 = vmul.f32 %v4649, %v1036
      %v4655 = vmul.f32 %v4645, %v1040
      %v4656 = vmul.f32 %v4650, %v1036
      %v4657 = vmul.f32 %v4646, %v1040
      %v4658 = vmul.f32 %v4651, %v1036
      %v4659 = vmul.f32 %v4647, %v1040
      %v4660 = vpack.c.bf16 %v4654, %v4652
      %v4661 = vpack.c.bf16 %v4655, %v4653
      %v4662 = vpack.c.bf16 %v4658, %v4656
      %v4663 = vpack.c.bf16 %v4659, %v4657
      %4664 = vrot.lane.b32.xlu0 %v4584, 15
      %v4665 = vpop.permute.xlu0 %4664
      %4666 = vrot.lane.b32.xlu0 %v4586, 15
      %v4667 = vpop.permute.xlu0 %4666
      %4668 = vrot.lane.b32.xlu0 %v4588, 15
      %v4669 = vpop.permute.xlu0 %4668
      %4670 = vrot.lane.b32.xlu0 %v4590, 15
      %v4671 = vpop.permute.xlu0 %4670
      %4672 = vrot.lane.b32.xlu0 %v4585, 15
      %v4673 = vpop.permute.xlu0 %4672
      %4674 = vrot.lane.b32.xlu0 %v4587, 15
      %v4675 = vpop.permute.xlu0 %4674
      %4676 = vrot.lane.b32.xlu0 %v4589, 15
      %v4677 = vpop.permute.xlu0 %4676
      %4678 = vrot.lane.b32.xlu0 %v4591, 15
      %v4679 = vpop.permute.xlu0 %4678
      %v4680 = vsel %vm1069, %v4665, %v4673
      %v4681 = vsel %vm1069, %v4667, %v4675
      %v4682 = vsel %vm1069, %v4669, %v4677
      %v4683 = vsel %vm1069, %v4671, %v4679
      %v4684 = vsel %vm1069, %v4673, %v4665
      %v4685 = vsel %vm1069, %v4675, %v4667
      %v4686 = vsel %vm1069, %v4677, %v4669
      %v4687 = vsel %vm1069, %v4679, %v4671
      %v4688 = vmul.f32 %v4684, %v1081
      %v4689 = vmul.f32 %v4680, %v1085
      %v4690 = vmul.f32 %v4685, %v1081
      %v4691 = vmul.f32 %v4681, %v1085
      %v4692 = vmul.f32 %v4686, %v1081
      %v4693 = vmul.f32 %v4682, %v1085
      %v4694 = vmul.f32 %v4687, %v1081
      %v4695 = vmul.f32 %v4683, %v1085
      %v4696 = vpack.c.bf16 %v4690, %v4688
      %v4697 = vpack.c.bf16 %v4691, %v4689
      %v4698 = vpack.c.bf16 %v4694, %v4692
      %v4699 = vpack.c.bf16 %v4695, %v4693
      %4700 = vrot.lane.b32.xlu0 %v4584, 1
      %v4701 = vpop.permute.xlu0 %4700
      %4702 = vrot.lane.b32.xlu0 %v4586, 1
      %v4703 = vpop.permute.xlu0 %4702
      %4704 = vrot.lane.b32.xlu0 %v4588, 1
      %v4705 = vpop.permute.xlu0 %4704
      %4706 = vrot.lane.b32.xlu0 %v4590, 1
      %v4707 = vpop.permute.xlu0 %4706
      %4708 = vrot.lane.b32.xlu0 %v4585, 1
      %v4709 = vpop.permute.xlu0 %4708
      %4710 = vrot.lane.b32.xlu0 %v4587, 1
      %v4711 = vpop.permute.xlu0 %4710
      %4712 = vrot.lane.b32.xlu0 %v4589, 1
      %v4713 = vpop.permute.xlu0 %4712
      %4714 = vrot.lane.b32.xlu0 %v4591, 1
      %v4715 = vpop.permute.xlu0 %4714
      %v4716 = vsel %vm1114, %v4701, %v4709
      %v4717 = vsel %vm1114, %v4703, %v4711
      %v4718 = vsel %vm1114, %v4705, %v4713
      %v4719 = vsel %vm1114, %v4707, %v4715
      %v4720 = vsel %vm1114, %v4709, %v4701
      %v4721 = vsel %vm1114, %v4711, %v4703
      %v4722 = vsel %vm1114, %v4713, %v4705
      %v4723 = vsel %vm1114, %v4715, %v4707
      %v4724 = vmul.f32 %v4720, %v1126
      %v4725 = vmul.f32 %v4716, %v1130
      %v4726 = vmul.f32 %v4721, %v1126
      %v4727 = vmul.f32 %v4717, %v1130
      %v4728 = vmul.f32 %v4722, %v1126
      %v4729 = vmul.f32 %v4718, %v1130
      %v4730 = vmul.f32 %v4723, %v1126
      %v4731 = vmul.f32 %v4719, %v1130
      %v4732 = vpack.c.bf16 %v4726, %v4724
      %v4733 = vpack.c.bf16 %v4727, %v4725
      %v4734 = vpack.c.bf16 %v4730, %v4728
      %v4735 = vpack.c.bf16 %v4731, %v4729
      %v4736 = vpack.c.bf16 %v4586, %v4584
      %v4737 = vpack.c.bf16 %v4587, %v4585
      %v4738 = vpack.c.bf16 %v4590, %v4588
      %v4739 = vpack.c.bf16 %v4591, %v4589
      %4740 = vrot.lane.b32.xlu0 %v4584, 127
      %v4741 = vpop.permute.xlu0 %4740
      %4742 = vrot.lane.b32.xlu0 %v4586, 127
      %v4743 = vpop.permute.xlu0 %4742
      %4744 = vrot.lane.b32.xlu0 %v4588, 127
      %v4745 = vpop.permute.xlu0 %4744
      %4746 = vrot.lane.b32.xlu0 %v4590, 127
      %v4747 = vpop.permute.xlu0 %4746
      %4748 = vrot.lane.b32.xlu0 %v4585, 127
      %v4749 = vpop.permute.xlu0 %4748
      %4750 = vrot.lane.b32.xlu0 %v4587, 127
      %v4751 = vpop.permute.xlu0 %4750
      %4752 = vrot.lane.b32.xlu0 %v4589, 127
      %v4753 = vpop.permute.xlu0 %4752
      %4754 = vrot.lane.b32.xlu0 %v4591, 127
      %v4755 = vpop.permute.xlu0 %4754
      %v4756 = vsel %vm1163, %v4741, %v4749
      %v4757 = vsel %vm1163, %v4743, %v4751
      %v4758 = vsel %vm1163, %v4745, %v4753
      %v4759 = vsel %vm1163, %v4747, %v4755
      %v4760 = vsel %vm1163, %v4749, %v4741
      %v4761 = vsel %vm1163, %v4751, %v4743
      %v4762 = vsel %vm1163, %v4753, %v4745
      %v4763 = vsel %vm1163, %v4755, %v4747
      %v4764 = vmul.f32 %v4756, %v1175
      %v4765 = vmul.f32 %v4760, %v1179
      %v4766 = vmul.f32 %v4757, %v1175
      %v4767 = vmul.f32 %v4761, %v1179
      %v4768 = vmul.f32 %v4758, %v1175
      %v4769 = vmul.f32 %v4762, %v1179
      %v4770 = vmul.f32 %v4759, %v1175
      %v4771 = vmul.f32 %v4763, %v1179
      %v4772 = vpack.c.bf16 %v4766, %v4764
      %v4773 = vpack.c.bf16 %v4767, %v4765
      %v4774 = vpack.c.bf16 %v4770, %v4768
      %v4775 = vpack.c.bf16 %v4771, %v4769
      %4776 = vrot.lane.b32.xlu0 %v4584, 113
      %v4777 = vpop.permute.xlu0 %4776
      %4778 = vrot.lane.b32.xlu0 %v4586, 113
      %v4779 = vpop.permute.xlu0 %4778
      %4780 = vrot.lane.b32.xlu0 %v4588, 113
      %v4781 = vpop.permute.xlu0 %4780
      %4782 = vrot.lane.b32.xlu0 %v4590, 113
      %v4783 = vpop.permute.xlu0 %4782
      %4784 = vrot.lane.b32.xlu0 %v4585, 113
      %v4785 = vpop.permute.xlu0 %4784
      %4786 = vrot.lane.b32.xlu0 %v4587, 113
      %v4787 = vpop.permute.xlu0 %4786
      %4788 = vrot.lane.b32.xlu0 %v4589, 113
      %v4789 = vpop.permute.xlu0 %4788
      %4790 = vrot.lane.b32.xlu0 %v4591, 113
      %v4791 = vpop.permute.xlu0 %4790
      %v4792 = vsel %vm1208, %v4777, %v4785
      %v4793 = vsel %vm1208, %v4779, %v4787
      %v4794 = vsel %vm1208, %v4781, %v4789
      %v4795 = vsel %vm1208, %v4783, %v4791
      %v4796 = vsel %vm1208, %v4785, %v4777
      %v4797 = vsel %vm1208, %v4787, %v4779
      %v4798 = vsel %vm1208, %v4789, %v4781
      %v4799 = vsel %vm1208, %v4791, %v4783
      %v4800 = vmul.f32 %v4792, %v1220
      %v4801 = vmul.f32 %v4796, %v1224
      %v4802 = vmul.f32 %v4793, %v1220
      %v4803 = vmul.f32 %v4797, %v1224
      %v4804 = vmul.f32 %v4794, %v1220
      %v4805 = vmul.f32 %v4798, %v1224
      %v4806 = vmul.f32 %v4795, %v1220
      %v4807 = vmul.f32 %v4799, %v1224
      %v4808 = vpack.c.bf16 %v4802, %v4800
      %v4809 = vpack.c.bf16 %v4803, %v4801
      %v4810 = vpack.c.bf16 %v4806, %v4804
      %v4811 = vpack.c.bf16 %v4807, %v4805
      %4812 = vrot.lane.b32.xlu0 %v4584, 112
      %v4813 = vpop.permute.xlu0 %4812
      %4814 = vrot.lane.b32.xlu0 %v4586, 112
      %v4815 = vpop.permute.xlu0 %4814
      %4816 = vrot.lane.b32.xlu0 %v4588, 112
      %v4817 = vpop.permute.xlu0 %4816
      %4818 = vrot.lane.b32.xlu0 %v4590, 112
      %v4819 = vpop.permute.xlu0 %4818
      %4820 = vrot.lane.b32.xlu0 %v4585, 112
      %v4821 = vpop.permute.xlu0 %4820
      %4822 = vrot.lane.b32.xlu0 %v4587, 112
      %v4823 = vpop.permute.xlu0 %4822
      %4824 = vrot.lane.b32.xlu0 %v4589, 112
      %v4825 = vpop.permute.xlu0 %4824
      %4826 = vrot.lane.b32.xlu0 %v4591, 112
      %v4827 = vpop.permute.xlu0 %4826
      %v4828 = vsel %vm1253, %v4813, %v4821
      %v4829 = vsel %vm1253, %v4815, %v4823
      %v4830 = vsel %vm1253, %v4817, %v4825
      %v4831 = vsel %vm1253, %v4819, %v4827
      %v4832 = vsel %vm1253, %v4821, %v4813
      %v4833 = vsel %vm1253, %v4823, %v4815
      %v4834 = vsel %vm1253, %v4825, %v4817
      %v4835 = vsel %vm1253, %v4827, %v4819
      %v4836 = vmul.f32 %v4828, %v1265
      %v4837 = vmul.f32 %v4832, %v1269
      %v4838 = vmul.f32 %v4829, %v1265
      %v4839 = vmul.f32 %v4833, %v1269
      %v4840 = vmul.f32 %v4830, %v1265
      %v4841 = vmul.f32 %v4834, %v1269
      %v4842 = vmul.f32 %v4831, %v1265
      %v4843 = vmul.f32 %v4835, %v1269
      %v4844 = vpack.c.bf16 %v4838, %v4836
      %v4845 = vpack.c.bf16 %v4839, %v4837
      %v4846 = vpack.c.bf16 %v4842, %v4840
      %v4847 = vpack.c.bf16 %v4843, %v4841
      %4848 = vrot.lane.b32.xlu0 %v4584, 111
      %v4849 = vpop.permute.xlu0 %4848
      %4850 = vrot.lane.b32.xlu0 %v4586, 111
      %v4851 = vpop.permute.xlu0 %4850
      %4852 = vrot.lane.b32.xlu0 %v4588, 111
      %v4853 = vpop.permute.xlu0 %4852
      %4854 = vrot.lane.b32.xlu0 %v4590, 111
      %v4855 = vpop.permute.xlu0 %4854
      %4856 = vrot.lane.b32.xlu0 %v4585, 111
      %v4857 = vpop.permute.xlu0 %4856
      %4858 = vrot.lane.b32.xlu0 %v4587, 111
      %v4859 = vpop.permute.xlu0 %4858
      %4860 = vrot.lane.b32.xlu0 %v4589, 111
      %v4861 = vpop.permute.xlu0 %4860
      %4862 = vrot.lane.b32.xlu0 %v4591, 111
      %v4863 = vpop.permute.xlu0 %4862
      %v4864 = vsel %vm1298, %v4849, %v4857
      %v4865 = vsel %vm1298, %v4851, %v4859
      %v4866 = vsel %vm1298, %v4853, %v4861
      %v4867 = vsel %vm1298, %v4855, %v4863
      %v4868 = vsel %vm1298, %v4857, %v4849
      %v4869 = vsel %vm1298, %v4859, %v4851
      %v4870 = vsel %vm1298, %v4861, %v4853
      %v4871 = vsel %vm1298, %v4863, %v4855
      %v4872 = vmul.f32 %v4864, %v1312
      %v4873 = vmul.f32 %v4868, %v1316
      %v4874 = vmul.f32 %v4865, %v1312
      %v4875 = vmul.f32 %v4869, %v1316
      %v4876 = vmul.f32 %v4866, %v1312
      %v4877 = vmul.f32 %v4870, %v1316
      %v4878 = vmul.f32 %v4867, %v1312
      %v4879 = vmul.f32 %v4871, %v1316
      %v4880 = vpack.c.bf16 %v4874, %v4872
      %v4881 = vpack.c.bf16 %v4875, %v4873
      %v4882 = vpack.c.bf16 %v4878, %v4876
      %v4883 = vpack.c.bf16 %v4879, %v4877
      %v4884 = vld [vmem:[%s43] sm:$0xff]
      %v4885 = vld [vmem:[%s43 + $0x8] sm:$0xf]
      %v4886 = vld [vmem:[%s43 + $0xc] sm:$0xff]
      %v4887 = vld [vmem:[%s43 + $0x14] sm:$0xf]
      %v4888 = vld [vmem:[%s43 + $0x18] sm:$0x77]
      %v4889 = vld [vmem:[%s43 + $0x20] sm:$0x7]
      %v4890 = vld [vmem:[%s45] sm:$0xff]
      %v4891 = vld [vmem:[%s45 + $0x8] sm:$0xff]
      %v4892 = vld [vmem:[%s45 + $0x10] sm:$0x1f]
      %4894 = vset.pattern.permute.xlu0 0
      %4895 = vperm.xlu0 %4894, %v4890
      %v4896 = vpop.permute.xlu0 %4895
      %4899 = vset.pattern.permute.xlu0 0
      %4900 = vperm.xlu0 %4899, %v4891
      %v4901 = vpop.permute.xlu0 %4900
      %4904 = vset.pattern.permute.xlu0 0
      %4905 = vperm.xlu0 %4904, %v4892
      %v4906 = vpop.permute.xlu0 %4905
      %v4914 = vunpack.c.l.b16 %v4884
      %v4915 = vunpack.c.h.b16 %v4884
      %v4916 = vunpack.c.l.b16 %v4885
      %v4917 = vunpack.c.l.b16 %v4886
      %v4918 = vunpack.c.h.b16 %v4886
      %v4919 = vunpack.c.l.b16 %v4887
      %v4920 = vunpack.c.l.b16 %v4888
      %v4921 = vunpack.c.h.b16 %v4888
      %v4922 = vunpack.c.l.b16 %v4889
      %v4923 = vpack.c.b16 %v4917, %v4914
      %v4924 = vpack.c.b16 %v4918, %v4915
      %v4925 = vpack.c.b16 %v4919, %v4916
      %v4926 = vpack.c.b16 %v4920, %v4920
      %v4927 = vpack.c.b16 %v4921, %v4921
      %v4928 = vpack.c.b16 %v4922, %v4922
      %v4934 = vsel %vm1391, %v4925, 0
      %v4937 = vsel %vm1391, %v4928, 0
      %4939 = vmatprep.subr.bf16.mxu0 %v4625
      %4940 = vmatpush1.bf16.msra.mxu0 %v4624
      %4941 = vmatprep.subr.bf16.mxu0 %v4627
      %4942 = vmatpush1.bf16.msra.mxu0 %v4626
      %4943 = vmatprep.subr.bf16.mxu0 %v4661
      %4944 = vmatpush1.bf16.msra.mxu0 %v4660
      %4945 = vmatprep.subr.bf16.mxu0 %v4663
      %4946 = vmatpush1.bf16.msra.mxu0 %v4662
      %4947 = vmatprep.subr.bf16.mxu0 %v4697
      %4948 = vmatpush1.bf16.msra.mxu0 %v4696
      %4949 = vmatprep.subr.bf16.mxu0 %v4699
      %4950 = vmatpush1.bf16.msra.mxu0 %v4698
      %4951 = vmatprep.subr.bf16.mxu0 %v4733
      %4952 = vmatpush1.bf16.msra.mxu0 %v4732
      %4953 = vmatprep.subr.bf16.mxu0 %v4735
      %4954 = vmatpush1.bf16.msra.mxu0 %v4734
      %4955 = vmatprep.subr.bf16.mxu0 %v4737
      %4956 = vmatpush1.bf16.msra.mxu0 %v4736
      %4957 = vmatprep.subr.bf16.mxu0 %v4739
      %4958 = vmatpush1.bf16.msra.mxu0 %v4738
      %4959 = vmatprep.subr.bf16.mxu0 %v4773
      %4960 = vmatpush1.bf16.msra.mxu0 %v4772
      %4961 = vmatprep.subr.bf16.mxu0 %v4775
      %4962 = vmatpush1.bf16.msra.mxu0 %v4774
      %4963 = vmatprep.subr.bf16.mxu0 %v4809
      %4964 = vmatpush1.bf16.msra.mxu0 %v4808
      %4965 = vmatprep.subr.bf16.mxu0 %v4811
      %4966 = vmatpush1.bf16.msra.mxu0 %v4810
      %4967 = vmatprep.subr.bf16.mxu0 %v4845
      %4968 = vmatpush1.bf16.msra.mxu0 %v4844
      %4969 = vmatprep.subr.bf16.mxu0 %v4847
      %4970 = vmatpush1.bf16.msra.mxu0 %v4846
      %4971 = vmatprep.mubr.bf16.mxu0 %v4924
      %4972 = vmatmul.mubr.bf16.gmra.mrb[0].mxu0 %v4923
      %v4973 = vpop.f32.mrb[0].mxu0
      %v4974 = vadd.f32 %v4896, %v4973
      %v4975 = vpop.f32.mrb[0].mxu0
      %v4976 = vadd.f32 %v4896, %v4975
      %v4977 = vpop.f32.mrb[0].mxu0
      %v4978 = vadd.f32 %v4901, %v4977
      %v4979 = vpop.f32.mrb[0].mxu0
      %v4980 = vadd.f32 %v4901, %v4979
      %4981 = vmatprep.mubr.bf16.mxu0 %v4927
      %4982 = vmatmul.mubr.bf16.gmra.mrb[0].mxu0 %v4926
      %v4983 = vpop.f32.mrb[0].mxu0
      %v4984 = vadd.f32 %v4906, %v4983
      %v4985 = vpop.f32.mrb[0].mxu0
      %v4986 = vadd.f32 %v4906, %v4985
      %v4987 = vpop.f32.mrb[0].mxu0
      %v4988 = vpop.f32.mrb[0].mxu0
      %4989 = vdwg.mxu0
      %4990 = vmatprep.subr.bf16.mxu0 %v4881
      %4991 = vmatpush1.bf16.msra.mxu0 %v4880
      %4992 = vmatprep.subr.bf16.mxu0 %v4883
      %4993 = vmatpush1.bf16.msra.mxu0 %v4882
      %4994 = vmatprep.subr.bf16.mxu0 0
      %4995 = vmatpush1.bf16.msra.mxu0 0
      %4996 = vmatprep.subr.bf16.mxu0 0
      %4997 = vmatpush1.bf16.msra.mxu0 0
      %4998 = vmatprep.subr.bf16.mxu0 0
      %4999 = vmatpush1.bf16.msra.mxu0 0
      %5000 = vmatprep.subr.bf16.mxu0 0
      %5001 = vmatpush1.bf16.msra.mxu0 0
      %5002 = vmatprep.subr.bf16.mxu0 0
      %5003 = vmatpush1.bf16.msra.mxu0 0
      %5004 = vmatprep.subr.bf16.mxu0 0
      %5005 = vmatpush1.bf16.msra.mxu0 0
      %5006 = vmatprep.subr.bf16.mxu0 0
      %5007 = vmatpush1.bf16.msra.mxu0 0
      %5008 = vmatprep.subr.bf16.mxu0 0
      %5009 = vmatpush1.bf16.msra.mxu0 0
      %5010 = vmatprep.subr.bf16.mxu0 0
      %5011 = vmatpush1.bf16.msra.mxu0 0
      %5012 = vmatprep.subr.bf16.mxu0 0
      %5013 = vmatpush1.bf16.msra.mxu0 0
      %5014 = vmatprep.subr.bf16.mxu0 0
      %5015 = vmatpush1.bf16.msra.mxu0 0
      %5016 = vmatprep.subr.bf16.mxu0 0
      %5017 = vmatpush1.bf16.msra.mxu0 0
      %5018 = vmatprep.subr.bf16.mxu0 0
      %5019 = vmatpush1.bf16.msra.mxu0 0
      %5020 = vmatprep.subr.bf16.mxu0 0
      %5021 = vmatpush1.bf16.msra.mxu0 0
      %5022 = vmatprep.mubr.bf16.mxu0 0
      %5023 = vmatmul.mubr.bf16.gmra.mrb[0].mxu0 %v4934
      %v5024 = vpop.f32.mrb[0].mxu0
      %v5025 = vadd.f32 %v4974, %v5024
      %v5026 = vpop.f32.mrb[0].mxu0
      %v5027 = vadd.f32 %v4976, %v5026
      %v5028 = vpop.f32.mrb[0].mxu0
      %v5029 = vadd.f32 %v4978, %v5028
      %v5030 = vpop.f32.mrb[0].mxu0
      %v5031 = vadd.f32 %v4980, %v5030
      %5032 = vmatprep.mubr.bf16.mxu0 0
      %5033 = vmatmul.mubr.bf16.gmra.mrb[0].mxu0 %v4937
      %v5034 = vpop.f32.mrb[0].mxu0
      %v5035 = vadd.f32 %v4984, %v5034
      %v5036 = vpop.f32.mrb[0].mxu0
      %v5037 = vadd.f32 %v4986, %v5036
      %v5038 = vpop.f32.mrb[0].mxu0
      %v5039 = vpop.f32.mrb[0].mxu0
      %5040 = vdwg.mxu0
      %5041 = vst [vmem:[%s938] sm:$0xff] %v5025
      %5042 = vst [vmem:[%s938 + $0x8] sm:$0xff] %v5027
      %5043 = vst [vmem:[%s938 + $0x10] sm:$0xff] %v5029
      %5044 = vst [vmem:[%s938 + $0x18] sm:$0xff] %v5031
      %5045 = vst [vmem:[%s938 + $0x20] sm:$0x1f] %v5035
      %5046 = vst [vmem:[%s938 + $0x28] sm:$0x1f] %v5037
      %5047 = vrot.lane.b32.xlu0 %v3804, 17
      %v5048 = vpop.permute.xlu0 %5047
      %5049 = vrot.lane.b32.xlu0 %v3806, 17
      %v5050 = vpop.permute.xlu0 %5049
      %5051 = vrot.lane.b32.xlu0 %v3808, 17
      %v5052 = vpop.permute.xlu0 %5051
      %5053 = vrot.lane.b32.xlu0 %v3810, 17
      %v5054 = vpop.permute.xlu0 %5053
      %5055 = vrot.lane.b32.xlu0 %v3805, 17
      %v5056 = vpop.permute.xlu0 %5055
      %5057 = vrot.lane.b32.xlu0 %v3807, 17
      %v5058 = vpop.permute.xlu0 %5057
      %5059 = vrot.lane.b32.xlu0 %v3809, 17
      %v5060 = vpop.permute.xlu0 %5059
      %5061 = vrot.lane.b32.xlu0 %v3811, 17
      %v5062 = vpop.permute.xlu0 %5061
      %v5063 = vsel %vm977, %v5048, %v5056
      %v5064 = vsel %vm977, %v5050, %v5058
      %v5065 = vsel %vm977, %v5052, %v5060
      %v5066 = vsel %vm977, %v5054, %v5062
      %v5067 = vsel %vm977, %v5056, %v5048
      %v5068 = vsel %vm977, %v5058, %v5050
      %v5069 = vsel %vm977, %v5060, %v5052
      %v5070 = vsel %vm977, %v5062, %v5054
      %v5071 = vmul.f32 %v5067, %v991
      %v5072 = vmul.f32 %v5063, %v995
      %v5073 = vmul.f32 %v5068, %v991
      %v5074 = vmul.f32 %v5064, %v995
      %v5075 = vmul.f32 %v5069, %v991
      %v5076 = vmul.f32 %v5065, %v995
      %v5077 = vmul.f32 %v5070, %v991
      %v5078 = vmul.f32 %v5066, %v995
      %v5079 = vpack.c.bf16 %v5073, %v5071
      %v5080 = vpack.c.bf16 %v5074, %v5072
      %v5081 = vpack.c.bf16 %v5077, %v5075
      %v5082 = vpack.c.bf16 %v5078, %v5076
      %5083 = vrot.lane.b32.xlu0 %v3804, 16
      %v5084 = vpop.permute.xlu0 %5083
      %5085 = vrot.lane.b32.xlu0 %v3806, 16
      %v5086 = vpop.permute.xlu0 %5085
      %5087 = vrot.lane.b32.xlu0 %v3808, 16
      %v5088 = vpop.permute.xlu0 %5087
      %5089 = vrot.lane.b32.xlu0 %v3810, 16
      %v5090 = vpop.permute.xlu0 %5089
      %5091 = vrot.lane.b32.xlu0 %v3805, 16
      %v5092 = vpop.permute.xlu0 %5091
      %5093 = vrot.lane.b32.xlu0 %v3807, 16
      %v5094 = vpop.permute.xlu0 %5093
      %5095 = vrot.lane.b32.xlu0 %v3809, 16
      %v5096 = vpop.permute.xlu0 %5095
      %5097 = vrot.lane.b32.xlu0 %v3811, 16
      %v5098 = vpop.permute.xlu0 %5097
      %v5099 = vsel %vm1024, %v5084, %v5092
      %v5100 = vsel %vm1024, %v5086, %v5094
      %v5101 = vsel %vm1024, %v5088, %v5096
      %v5102 = vsel %vm1024, %v5090, %v5098
      %v5103 = vsel %vm1024, %v5092, %v5084
      %v5104 = vsel %vm1024, %v5094, %v5086
      %v5105 = vsel %vm1024, %v5096, %v5088
      %v5106 = vsel %vm1024, %v5098, %v5090
      %v5107 = vmul.f32 %v5103, %v1036
      %v5108 = vmul.f32 %v5099, %v1040
      %v5109 = vmul.f32 %v5104, %v1036
      %v5110 = vmul.f32 %v5100, %v1040
      %v5111 = vmul.f32 %v5105, %v1036
      %v5112 = vmul.f32 %v5101, %v1040
      %v5113 = vmul.f32 %v5106, %v1036
      %v5114 = vmul.f32 %v5102, %v1040
      %v5115 = vpack.c.bf16 %v5109, %v5107
      %v5116 = vpack.c.bf16 %v5110, %v5108
      %v5117 = vpack.c.bf16 %v5113, %v5111
      %v5118 = vpack.c.bf16 %v5114, %v5112
      %5119 = vrot.lane.b32.xlu0 %v3804, 15
      %v5120 = vpop.permute.xlu0 %5119
      %5121 = vrot.lane.b32.xlu0 %v3806, 15
      %v5122 = vpop.permute.xlu0 %5121
      %5123 = vrot.lane.b32.xlu0 %v3808, 15
      %v5124 = vpop.permute.xlu0 %5123
      %5125 = vrot.lane.b32.xlu0 %v3810, 15
      %v5126 = vpop.permute.xlu0 %5125
      %5127 = vrot.lane.b32.xlu0 %v3805, 15
      %v5128 = vpop.permute.xlu0 %5127
      %5129 = vrot.lane.b32.xlu0 %v3807, 15
      %v5130 = vpop.permute.xlu0 %5129
      %5131 = vrot.lane.b32.xlu0 %v3809, 15
      %v5132 = vpop.permute.xlu0 %5131
      %5133 = vrot.lane.b32.xlu0 %v3811, 15
      %v5134 = vpop.permute.xlu0 %5133
      %v5135 = vsel %vm1069, %v5120, %v5128
      %v5136 = vsel %vm1069, %v5122, %v5130
      %v5137 = vsel %vm1069, %v5124, %v5132
      %v5138 = vsel %vm1069, %v5126, %v5134
      %v5139 = vsel %vm1069, %v5128, %v5120
      %v5140 = vsel %vm1069, %v5130, %v5122
      %v5141 = vsel %vm1069, %v5132, %v5124
      %v5142 = vsel %vm1069, %v5134, %v5126
      %v5143 = vmul.f32 %v5139, %v1081
      %v5144 = vmul.f32 %v5135, %v1085
      %v5145 = vmul.f32 %v5140, %v1081
      %v5146 = vmul.f32 %v5136, %v1085
      %v5147 = vmul.f32 %v5141, %v1081
      %v5148 = vmul.f32 %v5137, %v1085
      %v5149 = vmul.f32 %v5142, %v1081
      %v5150 = vmul.f32 %v5138, %v1085
      %v5151 = vpack.c.bf16 %v5145, %v5143
      %v5152 = vpack.c.bf16 %v5146, %v5144
      %v5153 = vpack.c.bf16 %v5149, %v5147
      %v5154 = vpack.c.bf16 %v5150, %v5148
      %5155 = vrot.lane.b32.xlu0 %v3804, 1
      %v5156 = vpop.permute.xlu0 %5155
      %5157 = vrot.lane.b32.xlu0 %v3806, 1
      %v5158 = vpop.permute.xlu0 %5157
      %5159 = vrot.lane.b32.xlu0 %v3808, 1
      %v5160 = vpop.permute.xlu0 %5159
      %5161 = vrot.lane.b32.xlu0 %v3810, 1
      %v5162 = vpop.permute.xlu0 %5161
      %5163 = vrot.lane.b32.xlu0 %v3805, 1
      %v5164 = vpop.permute.xlu0 %5163
      %5165 = vrot.lane.b32.xlu0 %v3807, 1
      %v5166 = vpop.permute.xlu0 %5165
      %5167 = vrot.lane.b32.xlu0 %v3809, 1
      %v5168 = vpop.permute.xlu0 %5167
      %5169 = vrot.lane.b32.xlu0 %v3811, 1
      %v5170 = vpop.permute.xlu0 %5169
      %v5171 = vsel %vm1114, %v5156, %v5164
      %v5172 = vsel %vm1114, %v5158, %v5166
      %v5173 = vsel %vm1114, %v5160, %v5168
      %v5174 = vsel %vm1114, %v5162, %v5170
      %v5175 = vsel %vm1114, %v5164, %v5156
      %v5176 = vsel %vm1114, %v5166, %v5158
      %v5177 = vsel %vm1114, %v5168, %v5160
      %v5178 = vsel %vm1114, %v5170, %v5162
      %v5179 = vmul.f32 %v5175, %v1126
      %v5180 = vmul.f32 %v5171, %v1130
      %v5181 = vmul.f32 %v5176, %v1126
      %v5182 = vmul.f32 %v5172, %v1130
      %v5183 = vmul.f32 %v5177, %v1126
      %v5184 = vmul.f32 %v5173, %v1130
      %v5185 = vmul.f32 %v5178, %v1126
      %v5186 = vmul.f32 %v5174, %v1130
      %v5187 = vpack.c.bf16 %v5181, %v5179
      %v5188 = vpack.c.bf16 %v5182, %v5180
      %v5189 = vpack.c.bf16 %v5185, %v5183
      %v5190 = vpack.c.bf16 %v5186, %v5184
      %v5191 = vpack.c.bf16 %v3806, %v3804
      %v5192 = vpack.c.bf16 %v3807, %v3805
      %v5193 = vpack.c.bf16 %v3810, %v3808
      %v5194 = vpack.c.bf16 %v3811, %v3809
      %5195 = vrot.lane.b32.xlu0 %v3804, 127
      %v5196 = vpop.permute.xlu0 %5195
      %5197 = vrot.lane.b32.xlu0 %v3806, 127
      %v5198 = vpop.permute.xlu0 %5197
      %5199 = vrot.lane.b32.xlu0 %v3808, 127
      %v5200 = vpop.permute.xlu0 %5199
      %5201 = vrot.lane.b32.xlu0 %v3810, 127
      %v5202 = vpop.permute.xlu0 %5201
      %5203 = vrot.lane.b32.xlu0 %v3805, 127
      %v5204 = vpop.permute.xlu0 %5203
      %5205 = vrot.lane.b32.xlu0 %v3807, 127
      %v5206 = vpop.permute.xlu0 %5205
      %5207 = vrot.lane.b32.xlu0 %v3809, 127
      %v5208 = vpop.permute.xlu0 %5207
      %5209 = vrot.lane.b32.xlu0 %v3811, 127
      %v5210 = vpop.permute.xlu0 %5209
      %v5211 = vsel %vm1163, %v5196, %v5204
      %v5212 = vsel %vm1163, %v5198, %v5206
      %v5213 = vsel %vm1163, %v5200, %v5208
      %v5214 = vsel %vm1163, %v5202, %v5210
      %v5215 = vsel %vm1163, %v5204, %v5196
      %v5216 = vsel %vm1163, %v5206, %v5198
      %v5217 = vsel %vm1163, %v5208, %v5200
      %v5218 = vsel %vm1163, %v5210, %v5202
      %v5219 = vmul.f32 %v5211, %v1175
      %v5220 = vmul.f32 %v5215, %v1179
      %v5221 = vmul.f32 %v5212, %v1175
      %v5222 = vmul.f32 %v5216, %v1179
      %v5223 = vmul.f32 %v5213, %v1175
      %v5224 = vmul.f32 %v5217, %v1179
      %v5225 = vmul.f32 %v5214, %v1175
      %v5226 = vmul.f32 %v5218, %v1179
      %v5227 = vpack.c.bf16 %v5221, %v5219
      %v5228 = vpack.c.bf16 %v5222, %v5220
      %v5229 = vpack.c.bf16 %v5225, %v5223
      %v5230 = vpack.c.bf16 %v5226, %v5224
      %5231 = vrot.lane.b32.xlu0 %v3804, 113
      %v5232 = vpop.permute.xlu0 %5231
      %5233 = vrot.lane.b32.xlu0 %v3806, 113
      %v5234 = vpop.permute.xlu0 %5233
      %5235 = vrot.lane.b32.xlu0 %v3808, 113
      %v5236 = vpop.permute.xlu0 %5235
      %5237 = vrot.lane.b32.xlu0 %v3810, 113
      %v5238 = vpop.permute.xlu0 %5237
      %5239 = vrot.lane.b32.xlu0 %v3805, 113
      %v5240 = vpop.permute.xlu0 %5239
      %5241 = vrot.lane.b32.xlu0 %v3807, 113
      %v5242 = vpop.permute.xlu0 %5241
      %5243 = vrot.lane.b32.xlu0 %v3809, 113
      %v5244 = vpop.permute.xlu0 %5243
      %5245 = vrot.lane.b32.xlu0 %v3811, 113
      %v5246 = vpop.permute.xlu0 %5245
      %v5247 = vsel %vm1208, %v5232, %v5240
      %v5248 = vsel %vm1208, %v5234, %v5242
      %v5249 = vsel %vm1208, %v5236, %v5244
      %v5250 = vsel %vm1208, %v5238, %v5246
      %v5251 = vsel %vm1208, %v5240, %v5232
      %v5252 = vsel %vm1208, %v5242, %v5234
      %v5253 = vsel %vm1208, %v5244, %v5236
      %v5254 = vsel %vm1208, %v5246, %v5238
      %v5255 = vmul.f32 %v5247, %v1220
      %v5256 = vmul.f32 %v5251, %v1224
      %v5257 = vmul.f32 %v5248, %v1220
      %v5258 = vmul.f32 %v5252, %v1224
      %v5259 = vmul.f32 %v5249, %v1220
      %v5260 = vmul.f32 %v5253, %v1224
      %v5261 = vmul.f32 %v5250, %v1220
      %v5262 = vmul.f32 %v5254, %v1224
      %v5263 = vpack.c.bf16 %v5257, %v5255
      %v5264 = vpack.c.bf16 %v5258, %v5256
      %v5265 = vpack.c.bf16 %v5261, %v5259
      %v5266 = vpack.c.bf16 %v5262, %v5260
      %5267 = vrot.lane.b32.xlu0 %v3804, 112
      %v5268 = vpop.permute.xlu0 %5267
      %5269 = vrot.lane.b32.xlu0 %v3806, 112
      %v5270 = vpop.permute.xlu0 %5269
      %5271 = vrot.lane.b32.xlu0 %v3808, 112
      %v5272 = vpop.permute.xlu0 %5271
      %5273 = vrot.lane.b32.xlu0 %v3810, 112
      %v5274 = vpop.permute.xlu0 %5273
      %5275 = vrot.lane.b32.xlu0 %v3805, 112
      %v5276 = vpop.permute.xlu0 %5275
      %5277 = vrot.lane.b32.xlu0 %v3807, 112
      %v5278 = vpop.permute.xlu0 %5277
      %5279 = vrot.lane.b32.xlu0 %v3809, 112
      %v5280 = vpop.permute.xlu0 %5279
      %5281 = vrot.lane.b32.xlu0 %v3811, 112
      %v5282 = vpop.permute.xlu0 %5281
      %v5283 = vsel %vm1253, %v5268, %v5276
      %v5284 = vsel %vm1253, %v5270, %v5278
      %v5285 = vsel %vm1253, %v5272, %v5280
      %v5286 = vsel %vm1253, %v5274, %v5282
      %v5287 = vsel %vm1253, %v5276, %v5268
      %v5288 = vsel %vm1253, %v5278, %v5270
      %v5289 = vsel %vm1253, %v5280, %v5272
      %v5290 = vsel %vm1253, %v5282, %v5274
      %v5291 = vmul.f32 %v5283, %v1265
      %v5292 = vmul.f32 %v5287, %v1269
      %v5293 = vmul.f32 %v5284, %v1265
      %v5294 = vmul.f32 %v5288, %v1269
      %v5295 = vmul.f32 %v5285, %v1265
      %v5296 = vmul.f32 %v5289, %v1269
      %v5297 = vmul.f32 %v5286, %v1265
      %v5298 = vmul.f32 %v5290, %v1269
      %v5299 = vpack.c.bf16 %v5293, %v5291
      %v5300 = vpack.c.bf16 %v5294, %v5292
      %v5301 = vpack.c.bf16 %v5297, %v5295
      %v5302 = vpack.c.bf16 %v5298, %v5296
      %5303 = vrot.lane.b32.xlu0 %v3804, 111
      %v5304 = vpop.permute.xlu0 %5303
      %5305 = vrot.lane.b32.xlu0 %v3806, 111
      %v5306 = vpop.permute.xlu0 %5305
      %5307 = vrot.lane.b32.xlu0 %v3808, 111
      %v5308 = vpop.permute.xlu0 %5307
      %5309 = vrot.lane.b32.xlu0 %v3810, 111
      %v5310 = vpop.permute.xlu0 %5309
      %5311 = vrot.lane.b32.xlu0 %v3805, 111
      %v5312 = vpop.permute.xlu0 %5311
      %5313 = vrot.lane.b32.xlu0 %v3807, 111
      %v5314 = vpop.permute.xlu0 %5313
      %5315 = vrot.lane.b32.xlu0 %v3809, 111
      %v5316 = vpop.permute.xlu0 %5315
      %5317 = vrot.lane.b32.xlu0 %v3811, 111
      %v5318 = vpop.permute.xlu0 %5317
      %v5319 = vsel %vm1298, %v5304, %v5312
      %v5320 = vsel %vm1298, %v5306, %v5314
      %v5321 = vsel %vm1298, %v5308, %v5316
      %v5322 = vsel %vm1298, %v5310, %v5318
      %v5323 = vsel %vm1298, %v5312, %v5304
      %v5324 = vsel %vm1298, %v5314, %v5306
      %v5325 = vsel %vm1298, %v5316, %v5308
      %v5326 = vsel %vm1298, %v5318, %v5310
      %v5327 = vmul.f32 %v5319, %v1312
      %v5328 = vmul.f32 %v5323, %v1316
      %v5329 = vmul.f32 %v5320, %v1312
      %v5330 = vmul.f32 %v5324, %v1316
      %v5331 = vmul.f32 %v5321, %v1312
      %v5332 = vmul.f32 %v5325, %v1316
      %v5333 = vmul.f32 %v5322, %v1312
      %v5334 = vmul.f32 %v5326, %v1316
      %v5335 = vpack.c.bf16 %v5329, %v5327
      %v5336 = vpack.c.bf16 %v5330, %v5328
      %v5337 = vpack.c.bf16 %v5333, %v5331
      %v5338 = vpack.c.bf16 %v5334, %v5332
      %v5339 = vld [vmem:[%s47] sm:$0xff]
      %v5340 = vld [vmem:[%s47 + $0x8] sm:$0xf]
      %v5341 = vld [vmem:[%s47 + $0xc] sm:$0xff]
      %v5342 = vld [vmem:[%s47 + $0x14] sm:$0xf]
      %v5343 = vld [vmem:[%s47 + $0x18] sm:$0xff]
      %v5344 = vld [vmem:[%s47 + $0x20] sm:$0xf]
      %v5345 = vld [vmem:[%s47 + $0x24] sm:$0xff]
      %v5346 = vld [vmem:[%s47 + $0x2c] sm:$0xf]
      %v5347 = vld [vmem:[%s49] sm:$0xff]
      %v5348 = vld [vmem:[%s49 + $0x8] sm:$0xff]
      %v5349 = vld [vmem:[%s49 + $0x10] sm:$0xff]
      %v5350 = vld [vmem:[%s49 + $0x18] sm:$0xff]
      %5352 = vset.pattern.permute.xlu0 0
      %5353 = vperm.xlu0 %5352, %v5347
      %v5354 = vpop.permute.xlu0 %5353
      %5357 = vset.pattern.permute.xlu0 0
      %5358 = vperm.xlu0 %5357, %v5348
      %v5359 = vpop.permute.xlu0 %5358
      %5362 = vset.pattern.permute.xlu0 0
      %5363 = vperm.xlu0 %5362, %v5349
      %v5364 = vpop.permute.xlu0 %5363
      %5367 = vset.pattern.permute.xlu0 0
      %5368 = vperm.xlu0 %5367, %v5350
      %v5369 = vpop.permute.xlu0 %5368
      %v5379 = vunpack.c.l.b16 %v5339
      %v5380 = vunpack.c.h.b16 %v5339
      %v5381 = vunpack.c.l.b16 %v5340
      %v5382 = vunpack.c.l.b16 %v5341
      %v5383 = vunpack.c.h.b16 %v5341
      %v5384 = vunpack.c.l.b16 %v5342
      %v5385 = vunpack.c.l.b16 %v5343
      %v5386 = vunpack.c.h.b16 %v5343
      %v5387 = vunpack.c.l.b16 %v5344
      %v5388 = vunpack.c.l.b16 %v5345
      %v5389 = vunpack.c.h.b16 %v5345
      %v5390 = vunpack.c.l.b16 %v5346
      %v5391 = vpack.c.b16 %v5382, %v5379
      %v5392 = vpack.c.b16 %v5383, %v5380
      %v5393 = vpack.c.b16 %v5384, %v5381
      %v5394 = vpack.c.b16 %v5388, %v5385
      %v5395 = vpack.c.b16 %v5389, %v5386
      %v5396 = vpack.c.b16 %v5390, %v5387
      %v5402 = vsel %vm1391, %v5393, 0
      %v5405 = vsel %vm1391, %v5396, 0
      %5407 = vmatprep.subr.bf16.mxu0 %v5080
      %5408 = vmatpush1.bf16.msra.mxu0 %v5079
      %5409 = vmatprep.subr.bf16.mxu0 %v5082
      %5410 = vmatpush1.bf16.msra.mxu0 %v5081
      %5411 = vmatprep.subr.bf16.mxu0 %v5116
      %5412 = vmatpush1.bf16.msra.mxu0 %v5115
      %5413 = vmatprep.subr.bf16.mxu0 %v5118
      %5414 = vmatpush1.bf16.msra.mxu0 %v5117
      %5415 = vmatprep.subr.bf16.mxu0 %v5152
      %5416 = vmatpush1.bf16.msra.mxu0 %v5151
      %5417 = vmatprep.subr.bf16.mxu0 %v5154
      %5418 = vmatpush1.bf16.msra.mxu0 %v5153
      %5419 = vmatprep.subr.bf16.mxu0 %v5188
      %5420 = vmatpush1.bf16.msra.mxu0 %v5187
      %5421 = vmatprep.subr.bf16.mxu0 %v5190
      %5422 = vmatpush1.bf16.msra.mxu0 %v5189
      %5423 = vmatprep.subr.bf16.mxu0 %v5192
      %5424 = vmatpush1.bf16.msra.mxu0 %v5191
      %5425 = vmatprep.subr.bf16.mxu0 %v5194
      %5426 = vmatpush1.bf16.msra.mxu0 %v5193
      %5427 = vmatprep.subr.bf16.mxu0 %v5228
      %5428 = vmatpush1.bf16.msra.mxu0 %v5227
      %5429 = vmatprep.subr.bf16.mxu0 %v5230
      %5430 = vmatpush1.bf16.msra.mxu0 %v5229
      %5431 = vmatprep.subr.bf16.mxu0 %v5264
      %5432 = vmatpush1.bf16.msra.mxu0 %v5263
      %5433 = vmatprep.subr.bf16.mxu0 %v5266
      %5434 = vmatpush1.bf16.msra.mxu0 %v5265
      %5435 = vmatprep.subr.bf16.mxu0 %v5300
      %5436 = vmatpush1.bf16.msra.mxu0 %v5299
      %5437 = vmatprep.subr.bf16.mxu0 %v5302
      %5438 = vmatpush1.bf16.msra.mxu0 %v5301
      %5439 = vmatprep.mubr.bf16.mxu0 %v5392
      %5440 = vmatmul.mubr.bf16.gmra.mrb[0].mxu0 %v5391
      %v5441 = vpop.f32.mrb[0].mxu0
      %v5442 = vadd.f32 %v5354, %v5441
      %v5443 = vpop.f32.mrb[0].mxu0
      %v5444 = vadd.f32 %v5354, %v5443
      %v5445 = vpop.f32.mrb[0].mxu0
      %v5446 = vadd.f32 %v5359, %v5445
      %v5447 = vpop.f32.mrb[0].mxu0
      %v5448 = vadd.f32 %v5359, %v5447
      %5449 = vmatprep.mubr.bf16.mxu0 %v5395
      %5450 = vmatmul.mubr.bf16.gmra.mrb[0].mxu0 %v5394
      %v5451 = vpop.f32.mrb[0].mxu0
      %v5452 = vadd.f32 %v5364, %v5451
      %v5453 = vpop.f32.mrb[0].mxu0
      %v5454 = vadd.f32 %v5364, %v5453
      %v5455 = vpop.f32.mrb[0].mxu0
      %v5456 = vadd.f32 %v5369, %v5455
      %v5457 = vpop.f32.mrb[0].mxu0
      %v5458 = vadd.f32 %v5369, %v5457
      %5459 = vdwg.mxu0
      %5460 = vmatprep.subr.bf16.mxu0 %v5336
      %5461 = vmatpush1.bf16.msra.mxu0 %v5335
      %5462 = vmatprep.subr.bf16.mxu0 %v5338
      %5463 = vmatpush1.bf16.msra.mxu0 %v5337
      %5464 = vmatprep.subr.bf16.mxu0 0
      %5465 = vmatpush1.bf16.msra.mxu0 0
      %5466 = vmatprep.subr.bf16.mxu0 0
      %5467 = vmatpush1.bf16.msra.mxu0 0
      %5468 = vmatprep.subr.bf16.mxu0 0
      %5469 = vmatpush1.bf16.msra.mxu0 0
      %5470 = vmatprep.subr.bf16.mxu0 0
      %5471 = vmatpush1.bf16.msra.mxu0 0
      %5472 = vmatprep.subr.bf16.mxu0 0
      %5473 = vmatpush1.bf16.msra.mxu0 0
      %5474 = vmatprep.subr.bf16.mxu0 0
      %5475 = vmatpush1.bf16.msra.mxu0 0
      %5476 = vmatprep.subr.bf16.mxu0 0
      %5477 = vmatpush1.bf16.msra.mxu0 0
      %5478 = vmatprep.subr.bf16.mxu0 0
      %5479 = vmatpush1.bf16.msra.mxu0 0
      %5480 = vmatprep.subr.bf16.mxu0 0
      %5481 = vmatpush1.bf16.msra.mxu0 0
      %5482 = vmatprep.subr.bf16.mxu0 0
      %5483 = vmatpush1.bf16.msra.mxu0 0
      %5484 = vmatprep.subr.bf16.mxu0 0
      %5485 = vmatpush1.bf16.msra.mxu0 0
      %5486 = vmatprep.subr.bf16.mxu0 0
      %5487 = vmatpush1.bf16.msra.mxu0 0
      %5488 = vmatprep.subr.bf16.mxu0 0
      %5489 = vmatpush1.bf16.msra.mxu0 0
      %5490 = vmatprep.subr.bf16.mxu0 0
      %5491 = vmatpush1.bf16.msra.mxu0 0
      %5492 = vmatprep.mubr.bf16.mxu0 0
      %5493 = vmatmul.mubr.bf16.gmra.mrb[0].mxu0 %v5402
      %v5494 = vpop.f32.mrb[0].mxu0
      %v5495 = vadd.f32 %v5442, %v5494
      %v5496 = vpop.f32.mrb[0].mxu0
      %v5497 = vadd.f32 %v5444, %v5496
      %v5498 = vpop.f32.mrb[0].mxu0
      %v5499 = vadd.f32 %v5446, %v5498
      %v5500 = vpop.f32.mrb[0].mxu0
      %v5501 = vadd.f32 %v5448, %v5500
      %5502 = vmatprep.mubr.bf16.mxu0 0
      %5503 = vmatmul.mubr.bf16.gmra.mrb[0].mxu0 %v5405
      %v5504 = vpop.f32.mrb[0].mxu0
      %v5505 = vadd.f32 %v5452, %v5504
      %v5506 = vpop.f32.mrb[0].mxu0
      %v5507 = vadd.f32 %v5454, %v5506
      %v5508 = vpop.f32.mrb[0].mxu0
      %v5509 = vadd.f32 %v5456, %v5508
      %v5510 = vpop.f32.mrb[0].mxu0
      %v5511 = vadd.f32 %v5458, %v5510
      %5512 = vdwg.mxu0
      %v5513 = vadd.f32 %v5495, %v5497
      %5514 = vadd.xlane.f32.xlu0 %v5513
      %v5515 = vpop.xlane.xlu0 %5514
      %v5516 = vadd.f32 %v5499, %v5501
      %5517 = vadd.xlane.f32.xlu0 %v5516
      %v5518 = vpop.xlane.xlu0 %5517
      %v5519 = vadd.f32 %v5505, %v5507
      %5520 = vadd.xlane.f32.xlu0 %v5519
      %v5521 = vpop.xlane.xlu0 %5520
      %v5522 = vadd.f32 %v5509, %v5511
      %5523 = vadd.xlane.f32.xlu0 %v5522
      %v5524 = vpop.xlane.xlu0 %5523
      %v5525 = vmul.f32 %v5495, %v5495
      %v5526 = vmul.f32 %v5497, %v5497
      %v5527 = vmul.f32 %v5499, %v5499
      %v5528 = vmul.f32 %v5501, %v5501
      %v5529 = vmul.f32 %v5505, %v5505
      %v5530 = vmul.f32 %v5507, %v5507
      %v5531 = vmul.f32 %v5509, %v5509
      %v5532 = vmul.f32 %v5511, %v5511
      %v5533 = vadd.f32 %v5525, %v5526
      %5534 = vadd.xlane.f32.xlu0 %v5533
      %v5535 = vpop.xlane.xlu0 %5534
      %v5536 = vadd.f32 %v5527, %v5528
      %5537 = vadd.xlane.f32.xlu0 %v5536
      %v5538 = vpop.xlane.xlu0 %5537
      %v5539 = vadd.f32 %v5529, %v5530
      %5540 = vadd.xlane.f32.xlu0 %v5539
      %v5541 = vpop.xlane.xlu0 %5540
      %v5542 = vadd.f32 %v5531, %v5532
      %5543 = vadd.xlane.f32.xlu0 %v5542
      %v5544 = vpop.xlane.xlu0 %5543
      %5545 = vmatprep.subr.mxu0 0.0
      %5546 = vmatpush1.msra.mxu0 %v5515
      %5547 = vmatprep.subr.mxu0 0.0
      %5548 = vmatpush1.msra.mxu0 %v5518
      %5549 = vmatprep.subr.mxu0 0.0
      %5550 = vmatpush1.msra.mxu0 %v5521
      %5551 = vmatprep.subr.mxu0 0.0
      %5552 = vmatpush1.msra.mxu0 %v5524
      %5553 = vmatprep.subr.mxu0 0.0
      %5554 = vmatpush1.msra.mxu0 0.0
      %5555 = vmatprep.subr.mxu0 0.0
      %5556 = vmatpush1.msra.mxu0 0.0
      %5557 = vmatprep.subr.mxu0 0.0
      %5558 = vmatpush1.msra.mxu0 0.0
      %5559 = vmatprep.subr.mxu0 0.0
      %5560 = vmatpush1.msra.mxu0 0.0
      %5561 = vmatprep.subr.mxu0 0.0
      %5562 = vmatpush1.msra.mxu0 0.0
      %5563 = vmatprep.subr.mxu0 0.0
      %5564 = vmatpush1.msra.mxu0 0.0
      %5565 = vmatprep.subr.mxu0 0.0
      %5566 = vmatpush1.msra.mxu0 0.0
      %5567 = vmatprep.subr.mxu0 0.0
      %5568 = vmatpush1.msra.mxu0 0.0
      %5569 = vmatprep.subr.mxu0 0.0
      %5570 = vmatpush1.msra.mxu0 0.0
      %5571 = vmatprep.subr.mxu0 0.0
      %5572 = vmatpush1.msra.mxu0 0.0
      %5573 = vmatprep.subr.mxu0 0.0
      %5574 = vmatpush1.msra.mxu0 0.0
      %5575 = vmatprep.subr.mxu0 0.0
      %5576 = vmatpush1.msra.mxu0 0.0
      %5577 = vmatprep.subr.mxu0 0.0
      %5578 = vmatpush1.msra.mxu0 0.0
      %5579 = vmatprep.subr.mxu0 0.0
      %5580 = vmatpush1.msra.mxu0 0.0
      %5581 = vmatprep.subr.mxu0 0.0
      %5582 = vmatpush1.msra.mxu0 0.0
      %5583 = vmatprep.subr.mxu0 0.0
      %5584 = vmatpush1.msra.mxu0 0.0
      %5585 = vmatprep.subr.mxu0 0.0
      %5586 = vmatpush1.msra.mxu0 0.0
      %5587 = vmatprep.subr.mxu0 0.0
      %5588 = vmatpush1.msra.mxu0 0.0
      %5589 = vmatprep.subr.mxu0 0.0
      %5590 = vmatpush1.msra.mxu0 0.0
      %5591 = vmatprep.subr.mxu0 0.0
      %5592 = vmatpush1.msra.mxu0 0.0
      %5593 = vmatprep.subr.mxu0 0.0
      %5594 = vmatpush1.msra.mxu0 0.0
      %5595 = vmatprep.subr.mxu0 0.0
      %5596 = vmatpush1.msra.mxu0 0.0
      %5597 = vmatprep.subr.mxu0 0.0
      %5598 = vmatpush1.msra.mxu0 0.0
      %5599 = vmatprep.subr.mxu0 0.0
      %5600 = vmatpush1.msra.mxu0 0.0
      %5601 = vmatprep.subr.mxu0 0.0
      %5602 = vmatpush1.msra.mxu0 0.0
      %5603 = vmatprep.subr.mxu0 0.0
      %5604 = vmatpush1.msra.mxu0 0.0
      %5605 = vmatprep.subr.mxu0 0.0
      %5606 = vmatpush1.msra.mxu0 0.0
      %5607 = vmatprep.subr.mxu0 0.0
      %5608 = vmatpush1.msra.mxu0 0.0
      %5609 = vmatprep.mubr.f32.mxu0 0.0
      %5610 = vmatmul.mubr.f32.gmra.mrb[0].mxu0 %v1537
      %v5611 = vpop.f32.mrb[0].mxu0
      %v5612 = vadd.f32 0.0, %v5611
      %v5613 = vpop.f32.mrb[0].mxu0
      %5614 = vmatprep.mubr.f32.mxu0 0.0
      %5615 = vmatmul.mubr.f32.gmra.mrb[0].mxu0 %v1540
      %v5616 = vpop.f32.mrb[0].mxu0
      %v5617 = vadd.f32 0.0, %v5616
      %v5618 = vpop.f32.mrb[0].mxu0
      %5619 = vmatprep.mubr.f32.mxu0 0.0
      %5620 = vmatmul.mubr.f32.gmra.mrb[0].mxu0 %v1543
      %v5621 = vpop.f32.mrb[0].mxu0
      %v5622 = vadd.f32 0.0, %v5621
      %v5623 = vpop.f32.mrb[0].mxu0
      %5624 = vmatprep.mubr.f32.mxu0 0.0
      %5625 = vmatmul.mubr.f32.gmra.mrb[0].mxu0 %v1546
      %v5626 = vpop.f32.mrb[0].mxu0
      %v5627 = vadd.f32 0.0, %v5626
      %v5628 = vpop.f32.mrb[0].mxu0
      %5629 = vdwg.mxu0
      %5630 = vmatprep.subr.mxu0 0.0
      %5631 = vmatpush1.msra.mxu0 %v5535
      %5632 = vmatprep.subr.mxu0 0.0
      %5633 = vmatpush1.msra.mxu0 %v5538
      %5634 = vmatprep.subr.mxu0 0.0
      %5635 = vmatpush1.msra.mxu0 %v5541
      %5636 = vmatprep.subr.mxu0 0.0
      %5637 = vmatpush1.msra.mxu0 %v5544
      %5638 = vmatprep.subr.mxu0 0.0
      %5639 = vmatpush1.msra.mxu0 0.0
      %5640 = vmatprep.subr.mxu0 0.0
      %5641 = vmatpush1.msra.mxu0 0.0
      %5642 = vmatprep.subr.mxu0 0.0
      %5643 = vmatpush1.msra.mxu0 0.0
      %5644 = vmatprep.subr.mxu0 0.0
      %5645 = vmatpush1.msra.mxu0 0.0
      %5646 = vmatprep.subr.mxu0 0.0
      %5647 = vmatpush1.msra.mxu0 0.0
      %5648 = vmatprep.subr.mxu0 0.0
      %5649 = vmatpush1.msra.mxu0 0.0
      %5650 = vmatprep.subr.mxu0 0.0
      %5651 = vmatpush1.msra.mxu0 0.0
      %5652 = vmatprep.subr.mxu0 0.0
      %5653 = vmatpush1.msra.mxu0 0.0
      %5654 = vmatprep.subr.mxu0 0.0
      %5655 = vmatpush1.msra.mxu0 0.0
      %5656 = vmatprep.subr.mxu0 0.0
      %5657 = vmatpush1.msra.mxu0 0.0
      %5658 = vmatprep.subr.mxu0 0.0
      %5659 = vmatpush1.msra.mxu0 0.0
      %5660 = vmatprep.subr.mxu0 0.0
      %5661 = vmatpush1.msra.mxu0 0.0
      %5662 = vmatprep.subr.mxu0 0.0
      %5663 = vmatpush1.msra.mxu0 0.0
      %5664 = vmatprep.subr.mxu0 0.0
      %5665 = vmatpush1.msra.mxu0 0.0
      %5666 = vmatprep.subr.mxu0 0.0
      %5667 = vmatpush1.msra.mxu0 0.0
      %5668 = vmatprep.subr.mxu0 0.0
      %5669 = vmatpush1.msra.mxu0 0.0
      %5670 = vmatprep.subr.mxu0 0.0
      %5671 = vmatpush1.msra.mxu0 0.0
      %5672 = vmatprep.subr.mxu0 0.0
      %5673 = vmatpush1.msra.mxu0 0.0
      %5674 = vmatprep.subr.mxu0 0.0
      %5675 = vmatpush1.msra.mxu0 0.0
      %5676 = vmatprep.subr.mxu0 0.0
      %5677 = vmatpush1.msra.mxu0 0.0
      %5678 = vmatprep.subr.mxu0 0.0
      %5679 = vmatpush1.msra.mxu0 0.0
      %5680 = vmatprep.subr.mxu0 0.0
      %5681 = vmatpush1.msra.mxu0 0.0
      %5682 = vmatprep.subr.mxu0 0.0
      %5683 = vmatpush1.msra.mxu0 0.0
      %5684 = vmatprep.subr.mxu0 0.0
      %5685 = vmatpush1.msra.mxu0 0.0
      %5686 = vmatprep.subr.mxu0 0.0
      %5687 = vmatpush1.msra.mxu0 0.0
      %5688 = vmatprep.subr.mxu0 0.0
      %5689 = vmatpush1.msra.mxu0 0.0
      %5690 = vmatprep.subr.mxu0 0.0
      %5691 = vmatpush1.msra.mxu0 0.0
      %5692 = vmatprep.subr.mxu0 0.0
      %5693 = vmatpush1.msra.mxu0 0.0
      %5694 = vmatprep.mubr.f32.mxu0 0.0
      %5695 = vmatmul.mubr.f32.gmra.mrb[0].mxu0 %v1537
      %v5696 = vpop.f32.mrb[0].mxu0
      %v5697 = vadd.f32 0.0, %v5696
      %v5698 = vpop.f32.mrb[0].mxu0
      %5699 = vmatprep.mubr.f32.mxu0 0.0
      %5700 = vmatmul.mubr.f32.gmra.mrb[0].mxu0 %v1540
      %v5701 = vpop.f32.mrb[0].mxu0
      %v5702 = vadd.f32 0.0, %v5701
      %v5703 = vpop.f32.mrb[0].mxu0
      %5704 = vmatprep.mubr.f32.mxu0 0.0
      %5705 = vmatmul.mubr.f32.gmra.mrb[0].mxu0 %v1543
      %v5706 = vpop.f32.mrb[0].mxu0
      %v5707 = vadd.f32 0.0, %v5706
      %v5708 = vpop.f32.mrb[0].mxu0
      %5709 = vmatprep.mubr.f32.mxu0 0.0
      %5710 = vmatmul.mubr.f32.gmra.mrb[0].mxu0 %v1546
      %v5711 = vpop.f32.mrb[0].mxu0
      %v5712 = vadd.f32 0.0, %v5711
      %v5713 = vpop.f32.mrb[0].mxu0
      %5714 = vdwg.mxu0
      %v5715 = vmul.f32 %v5612, 0.0009765625
      %v5716 = vmul.f32 %v5617, 0.0009765625
      %v5717 = vmul.f32 %v5622, 0.0009765625
      %v5718 = vmul.f32 %v5627, 0.0009765625
      %v5719 = vmul.f32 %v5697, 0.0009765625
      %v5720 = vmul.f32 %v5702, 0.0009765625
      %v5721 = vmul.f32 %v5707, 0.0009765625
      %v5722 = vmul.f32 %v5712, 0.0009765625
      %v5723 = vmul.f32 %v5715, %v5715
      %v5724 = vmul.f32 %v5716, %v5716
      %v5725 = vmul.f32 %v5717, %v5717
      %v5726 = vmul.f32 %v5718, %v5718
      %v5727 = vsub.f32 %v5719, %v5723
      %v5728 = vsub.f32 %v5720, %v5724
      %v5729 = vsub.f32 %v5721, %v5725
      %v5730 = vsub.f32 %v5722, %v5726
      %v5731 = vmax.f32 %v5727, 0.0
      %v5732 = vmax.f32 %v5728, 0.0
      %v5733 = vmax.f32 %v5729, 0.0
      %v5734 = vmax.f32 %v5730, 0.0
      %v5735 = vadd.f32 %v5731, 1e-05
      %v5736 = vadd.f32 %v5732, 1e-05
      %v5737 = vadd.f32 %v5733, 1e-05
      %v5738 = vadd.f32 %v5734, 1e-05
      %v5739 = vrsqrt.pop %v5735
      %v5740 = vrsqrt.pop %v5736
      %v5741 = vrsqrt.pop %v5737
      %v5742 = vrsqrt.pop %v5738
      %v5743 = vld [vmem:[%s51] sm:$0xff]
      %v5744 = vld [vmem:[%s51 + $0x8] sm:$0xff]
      %v5745 = vld [vmem:[%s51 + $0x10] sm:$0xff]
      %v5746 = vld [vmem:[%s51 + $0x18] sm:$0xff]
      %v5747 = vmul.f32 %v5739, %v5743
      %v5748 = vmul.f32 %v5740, %v5744
      %v5749 = vmul.f32 %v5741, %v5745
      %v5750 = vmul.f32 %v5742, %v5746
      %v5751 = vld [vmem:[%s53] sm:$0xff]
      %v5752 = vld [vmem:[%s53 + $0x8] sm:$0xff]
      %v5753 = vld [vmem:[%s53 + $0x10] sm:$0xff]
      %v5754 = vld [vmem:[%s53 + $0x18] sm:$0xff]
      %v5755 = vmul.f32 %v5715, %v5747
      %v5756 = vmul.f32 %v5716, %v5748
      %v5757 = vmul.f32 %v5717, %v5749
      %v5758 = vmul.f32 %v5718, %v5750
      %v5759 = vsub.f32 %v5751, %v5755
      %v5760 = vsub.f32 %v5752, %v5756
      %v5761 = vsub.f32 %v5753, %v5757
      %v5762 = vsub.f32 %v5754, %v5758
      %5764 = vset.pattern.permute.xlu0 0
      %5765 = vperm.xlu0 %5764, %v5747
      %v5766 = vpop.permute.xlu0 %5765
      %5769 = vset.pattern.permute.xlu0 0
      %5770 = vperm.xlu0 %5769, %v5748
      %v5771 = vpop.permute.xlu0 %5770
      %5774 = vset.pattern.permute.xlu0 0
      %5775 = vperm.xlu0 %5774, %v5749
      %v5776 = vpop.permute.xlu0 %5775
      %5779 = vset.pattern.permute.xlu0 0
      %5780 = vperm.xlu0 %5779, %v5750
      %v5781 = vpop.permute.xlu0 %5780
      %v5783 = vmul.f32 %v5495, %v5766
      %v5784 = vmul.f32 %v5497, %v5766
      %v5785 = vmul.f32 %v5499, %v5771
      %v5786 = vmul.f32 %v5501, %v5771
      %v5787 = vmul.f32 %v5505, %v5776
      %v5788 = vmul.f32 %v5507, %v5776
      %v5789 = vmul.f32 %v5509, %v5781
      %v5790 = vmul.f32 %v5511, %v5781
      %5792 = vset.pattern.permute.xlu0 0
      %5793 = vperm.xlu0 %5792, %v5759
      %v5794 = vpop.permute.xlu0 %5793
      %5797 = vset.pattern.permute.xlu0 0
      %5798 = vperm.xlu0 %5797, %v5760
      %v5799 = vpop.permute.xlu0 %5798
      %5802 = vset.pattern.permute.xlu0 0
      %5803 = vperm.xlu0 %5802, %v5761
      %v5804 = vpop.permute.xlu0 %5803
      %5807 = vset.pattern.permute.xlu0 0
      %5808 = vperm.xlu0 %5807, %v5762
      %v5809 = vpop.permute.xlu0 %5808
      %v5811 = vadd.f32 %v5783, %v5794
      %v5812 = vadd.f32 %v5784, %v5794
      %v5813 = vadd.f32 %v5785, %v5799
      %v5814 = vadd.f32 %v5786, %v5799
      %v5815 = vadd.f32 %v5787, %v5804
      %v5816 = vadd.f32 %v5788, %v5804
      %v5817 = vadd.f32 %v5789, %v5809
      %v5818 = vadd.f32 %v5790, %v5809
      %v5819 = vmax.f32 %v5811, 0.0
      %v5820 = vmax.f32 %v5812, 0.0
      %v5821 = vmax.f32 %v5813, 0.0
      %v5822 = vmax.f32 %v5814, 0.0
      %v5823 = vmax.f32 %v5815, 0.0
      %v5824 = vmax.f32 %v5816, 0.0
      %v5825 = vmax.f32 %v5817, 0.0
      %v5826 = vmax.f32 %v5818, 0.0
      %5827 = vrot.lane.b32.xlu0 %v5819, 17
      %v5828 = vpop.permute.xlu0 %5827
      %5829 = vrot.lane.b32.xlu0 %v5821, 17
      %v5830 = vpop.permute.xlu0 %5829
      %5831 = vrot.lane.b32.xlu0 %v5823, 17
      %v5832 = vpop.permute.xlu0 %5831
      %5833 = vrot.lane.b32.xlu0 %v5825, 17
      %v5834 = vpop.permute.xlu0 %5833
      %5835 = vrot.lane.b32.xlu0 %v5820, 17
      %v5836 = vpop.permute.xlu0 %5835
      %5837 = vrot.lane.b32.xlu0 %v5822, 17
      %v5838 = vpop.permute.xlu0 %5837
      %5839 = vrot.lane.b32.xlu0 %v5824, 17
      %v5840 = vpop.permute.xlu0 %5839
      %5841 = vrot.lane.b32.xlu0 %v5826, 17
      %v5842 = vpop.permute.xlu0 %5841
      %v5843 = vsel %vm977, %v5828, %v5836
      %v5844 = vsel %vm977, %v5830, %v5838
      %v5845 = vsel %vm977, %v5832, %v5840
      %v5846 = vsel %vm977, %v5834, %v5842
      %v5847 = vsel %vm977, %v5836, %v5828
      %v5848 = vsel %vm977, %v5838, %v5830
      %v5849 = vsel %vm977, %v5840, %v5832
      %v5850 = vsel %vm977, %v5842, %v5834
      %v5851 = vmul.f32 %v5847, %v991
      %v5852 = vmul.f32 %v5843, %v995
      %v5853 = vmul.f32 %v5848, %v991
      %v5854 = vmul.f32 %v5844, %v995
      %v5855 = vmul.f32 %v5849, %v991
      %v5856 = vmul.f32 %v5845, %v995
      %v5857 = vmul.f32 %v5850, %v991
      %v5858 = vmul.f32 %v5846, %v995
      %v5859 = vpack.c.bf16 %v5853, %v5851
      %v5860 = vpack.c.bf16 %v5854, %v5852
      %v5861 = vpack.c.bf16 %v5857, %v5855
      %v5862 = vpack.c.bf16 %v5858, %v5856
      %5863 = vrot.lane.b32.xlu0 %v5819, 16
      %v5864 = vpop.permute.xlu0 %5863
      %5865 = vrot.lane.b32.xlu0 %v5821, 16
      %v5866 = vpop.permute.xlu0 %5865
      %5867 = vrot.lane.b32.xlu0 %v5823, 16
      %v5868 = vpop.permute.xlu0 %5867
      %5869 = vrot.lane.b32.xlu0 %v5825, 16
      %v5870 = vpop.permute.xlu0 %5869
      %5871 = vrot.lane.b32.xlu0 %v5820, 16
      %v5872 = vpop.permute.xlu0 %5871
      %5873 = vrot.lane.b32.xlu0 %v5822, 16
      %v5874 = vpop.permute.xlu0 %5873
      %5875 = vrot.lane.b32.xlu0 %v5824, 16
      %v5876 = vpop.permute.xlu0 %5875
      %5877 = vrot.lane.b32.xlu0 %v5826, 16
      %v5878 = vpop.permute.xlu0 %5877
      %v5879 = vsel %vm1024, %v5864, %v5872
      %v5880 = vsel %vm1024, %v5866, %v5874
      %v5881 = vsel %vm1024, %v5868, %v5876
      %v5882 = vsel %vm1024, %v5870, %v5878
      %v5883 = vsel %vm1024, %v5872, %v5864
      %v5884 = vsel %vm1024, %v5874, %v5866
      %v5885 = vsel %vm1024, %v5876, %v5868
      %v5886 = vsel %vm1024, %v5878, %v5870
      %v5887 = vmul.f32 %v5883, %v1036
      %v5888 = vmul.f32 %v5879, %v1040
      %v5889 = vmul.f32 %v5884, %v1036
      %v5890 = vmul.f32 %v5880, %v1040
      %v5891 = vmul.f32 %v5885, %v1036
      %v5892 = vmul.f32 %v5881, %v1040
      %v5893 = vmul.f32 %v5886, %v1036
      %v5894 = vmul.f32 %v5882, %v1040
      %v5895 = vpack.c.bf16 %v5889, %v5887
      %v5896 = vpack.c.bf16 %v5890, %v5888
      %v5897 = vpack.c.bf16 %v5893, %v5891
      %v5898 = vpack.c.bf16 %v5894, %v5892
      %5899 = vrot.lane.b32.xlu0 %v5819, 15
      %v5900 = vpop.permute.xlu0 %5899
      %5901 = vrot.lane.b32.xlu0 %v5821, 15
      %v5902 = vpop.permute.xlu0 %5901
      %5903 = vrot.lane.b32.xlu0 %v5823, 15
      %v5904 = vpop.permute.xlu0 %5903
      %5905 = vrot.lane.b32.xlu0 %v5825, 15
      %v5906 = vpop.permute.xlu0 %5905
      %5907 = vrot.lane.b32.xlu0 %v5820, 15
      %v5908 = vpop.permute.xlu0 %5907
      %5909 = vrot.lane.b32.xlu0 %v5822, 15
      %v5910 = vpop.permute.xlu0 %5909
      %5911 = vrot.lane.b32.xlu0 %v5824, 15
      %v5912 = vpop.permute.xlu0 %5911
      %5913 = vrot.lane.b32.xlu0 %v5826, 15
      %v5914 = vpop.permute.xlu0 %5913
      %v5915 = vsel %vm1069, %v5900, %v5908
      %v5916 = vsel %vm1069, %v5902, %v5910
      %v5917 = vsel %vm1069, %v5904, %v5912
      %v5918 = vsel %vm1069, %v5906, %v5914
      %v5919 = vsel %vm1069, %v5908, %v5900
      %v5920 = vsel %vm1069, %v5910, %v5902
      %v5921 = vsel %vm1069, %v5912, %v5904
      %v5922 = vsel %vm1069, %v5914, %v5906
      %v5923 = vmul.f32 %v5919, %v1081
      %v5924 = vmul.f32 %v5915, %v1085
      %v5925 = vmul.f32 %v5920, %v1081
      %v5926 = vmul.f32 %v5916, %v1085
      %v5927 = vmul.f32 %v5921, %v1081
      %v5928 = vmul.f32 %v5917, %v1085
      %v5929 = vmul.f32 %v5922, %v1081
      %v5930 = vmul.f32 %v5918, %v1085
      %v5931 = vpack.c.bf16 %v5925, %v5923
      %v5932 = vpack.c.bf16 %v5926, %v5924
      %v5933 = vpack.c.bf16 %v5929, %v5927
      %v5934 = vpack.c.bf16 %v5930, %v5928
      %5935 = vrot.lane.b32.xlu0 %v5819, 1
      %v5936 = vpop.permute.xlu0 %5935
      %5937 = vrot.lane.b32.xlu0 %v5821, 1
      %v5938 = vpop.permute.xlu0 %5937
      %5939 = vrot.lane.b32.xlu0 %v5823, 1
      %v5940 = vpop.permute.xlu0 %5939
      %5941 = vrot.lane.b32.xlu0 %v5825, 1
      %v5942 = vpop.permute.xlu0 %5941
      %5943 = vrot.lane.b32.xlu0 %v5820, 1
      %v5944 = vpop.permute.xlu0 %5943
      %5945 = vrot.lane.b32.xlu0 %v5822, 1
      %v5946 = vpop.permute.xlu0 %5945
      %5947 = vrot.lane.b32.xlu0 %v5824, 1
      %v5948 = vpop.permute.xlu0 %5947
      %5949 = vrot.lane.b32.xlu0 %v5826, 1
      %v5950 = vpop.permute.xlu0 %5949
      %v5951 = vsel %vm1114, %v5936, %v5944
      %v5952 = vsel %vm1114, %v5938, %v5946
      %v5953 = vsel %vm1114, %v5940, %v5948
      %v5954 = vsel %vm1114, %v5942, %v5950
      %v5955 = vsel %vm1114, %v5944, %v5936
      %v5956 = vsel %vm1114, %v5946, %v5938
      %v5957 = vsel %vm1114, %v5948, %v5940
      %v5958 = vsel %vm1114, %v5950, %v5942
      %v5959 = vmul.f32 %v5955, %v1126
      %v5960 = vmul.f32 %v5951, %v1130
      %v5961 = vmul.f32 %v5956, %v1126
      %v5962 = vmul.f32 %v5952, %v1130
      %v5963 = vmul.f32 %v5957, %v1126
      %v5964 = vmul.f32 %v5953, %v1130
      %v5965 = vmul.f32 %v5958, %v1126
      %v5966 = vmul.f32 %v5954, %v1130
      %v5967 = vpack.c.bf16 %v5961, %v5959
      %v5968 = vpack.c.bf16 %v5962, %v5960
      %v5969 = vpack.c.bf16 %v5965, %v5963
      %v5970 = vpack.c.bf16 %v5966, %v5964
      %v5971 = vpack.c.bf16 %v5821, %v5819
      %v5972 = vpack.c.bf16 %v5822, %v5820
      %v5973 = vpack.c.bf16 %v5825, %v5823
      %v5974 = vpack.c.bf16 %v5826, %v5824
      %5975 = vrot.lane.b32.xlu0 %v5819, 127
      %v5976 = vpop.permute.xlu0 %5975
      %5977 = vrot.lane.b32.xlu0 %v5821, 127
      %v5978 = vpop.permute.xlu0 %5977
      %5979 = vrot.lane.b32.xlu0 %v5823, 127
      %v5980 = vpop.permute.xlu0 %5979
      %5981 = vrot.lane.b32.xlu0 %v5825, 127
      %v5982 = vpop.permute.xlu0 %5981
      %5983 = vrot.lane.b32.xlu0 %v5820, 127
      %v5984 = vpop.permute.xlu0 %5983
      %5985 = vrot.lane.b32.xlu0 %v5822, 127
      %v5986 = vpop.permute.xlu0 %5985
      %5987 = vrot.lane.b32.xlu0 %v5824, 127
      %v5988 = vpop.permute.xlu0 %5987
      %5989 = vrot.lane.b32.xlu0 %v5826, 127
      %v5990 = vpop.permute.xlu0 %5989
      %v5991 = vsel %vm1163, %v5976, %v5984
      %v5992 = vsel %vm1163, %v5978, %v5986
      %v5993 = vsel %vm1163, %v5980, %v5988
      %v5994 = vsel %vm1163, %v5982, %v5990
      %v5995 = vsel %vm1163, %v5984, %v5976
      %v5996 = vsel %vm1163, %v5986, %v5978
      %v5997 = vsel %vm1163, %v5988, %v5980
      %v5998 = vsel %vm1163, %v5990, %v5982
      %v5999 = vmul.f32 %v5991, %v1175
      %v6000 = vmul.f32 %v5995, %v1179
      %v6001 = vmul.f32 %v5992, %v1175
      %v6002 = vmul.f32 %v5996, %v1179
      %v6003 = vmul.f32 %v5993, %v1175
      %v6004 = vmul.f32 %v5997, %v1179
      %v6005 = vmul.f32 %v5994, %v1175
      %v6006 = vmul.f32 %v5998, %v1179
      %v6007 = vpack.c.bf16 %v6001, %v5999
      %v6008 = vpack.c.bf16 %v6002, %v6000
      %v6009 = vpack.c.bf16 %v6005, %v6003
      %v6010 = vpack.c.bf16 %v6006, %v6004
      %6011 = vrot.lane.b32.xlu0 %v5819, 113
      %v6012 = vpop.permute.xlu0 %6011
      %6013 = vrot.lane.b32.xlu0 %v5821, 113
      %v6014 = vpop.permute.xlu0 %6013
      %6015 = vrot.lane.b32.xlu0 %v5823, 113
      %v6016 = vpop.permute.xlu0 %6015
      %6017 = vrot.lane.b32.xlu0 %v5825, 113
      %v6018 = vpop.permute.xlu0 %6017
      %6019 = vrot.lane.b32.xlu0 %v5820, 113
      %v6020 = vpop.permute.xlu0 %6019
      %6021 = vrot.lane.b32.xlu0 %v5822, 113
      %v6022 = vpop.permute.xlu0 %6021
      %6023 = vrot.lane.b32.xlu0 %v5824, 113
      %v6024 = vpop.permute.xlu0 %6023
      %6025 = vrot.lane.b32.xlu0 %v5826, 113
      %v6026 = vpop.permute.xlu0 %6025
      %v6027 = vsel %vm1208, %v6012, %v6020
      %v6028 = vsel %vm1208, %v6014, %v6022
      %v6029 = vsel %vm1208, %v6016, %v6024
      %v6030 = vsel %vm1208, %v6018, %v6026
      %v6031 = vsel %vm1208, %v6020, %v6012
      %v6032 = vsel %vm1208, %v6022, %v6014
      %v6033 = vsel %vm1208, %v6024, %v6016
      %v6034 = vsel %vm1208, %v6026, %v6018
      %v6035 = vmul.f32 %v6027, %v1220
      %v6036 = vmul.f32 %v6031, %v1224
      %v6037 = vmul.f32 %v6028, %v1220
      %v6038 = vmul.f32 %v6032, %v1224
      %v6039 = vmul.f32 %v6029, %v1220
      %v6040 = vmul.f32 %v6033, %v1224
      %v6041 = vmul.f32 %v6030, %v1220
      %v6042 = vmul.f32 %v6034, %v1224
      %v6043 = vpack.c.bf16 %v6037, %v6035
      %v6044 = vpack.c.bf16 %v6038, %v6036
      %v6045 = vpack.c.bf16 %v6041, %v6039
      %v6046 = vpack.c.bf16 %v6042, %v6040
      %6047 = vrot.lane.b32.xlu0 %v5819, 112
      %v6048 = vpop.permute.xlu0 %6047
      %6049 = vrot.lane.b32.xlu0 %v5821, 112
      %v6050 = vpop.permute.xlu0 %6049
      %6051 = vrot.lane.b32.xlu0 %v5823, 112
      %v6052 = vpop.permute.xlu0 %6051
      %6053 = vrot.lane.b32.xlu0 %v5825, 112
      %v6054 = vpop.permute.xlu0 %6053
      %6055 = vrot.lane.b32.xlu0 %v5820, 112
      %v6056 = vpop.permute.xlu0 %6055
      %6057 = vrot.lane.b32.xlu0 %v5822, 112
      %v6058 = vpop.permute.xlu0 %6057
      %6059 = vrot.lane.b32.xlu0 %v5824, 112
      %v6060 = vpop.permute.xlu0 %6059
      %6061 = vrot.lane.b32.xlu0 %v5826, 112
      %v6062 = vpop.permute.xlu0 %6061
      %v6063 = vsel %vm1253, %v6048, %v6056
      %v6064 = vsel %vm1253, %v6050, %v6058
      %v6065 = vsel %vm1253, %v6052, %v6060
      %v6066 = vsel %vm1253, %v6054, %v6062
      %v6067 = vsel %vm1253, %v6056, %v6048
      %v6068 = vsel %vm1253, %v6058, %v6050
      %v6069 = vsel %vm1253, %v6060, %v6052
      %v6070 = vsel %vm1253, %v6062, %v6054
      %v6071 = vmul.f32 %v6063, %v1265
      %v6072 = vmul.f32 %v6067, %v1269
      %v6073 = vmul.f32 %v6064, %v1265
      %v6074 = vmul.f32 %v6068, %v1269
      %v6075 = vmul.f32 %v6065, %v1265
      %v6076 = vmul.f32 %v6069, %v1269
      %v6077 = vmul.f32 %v6066, %v1265
      %v6078 = vmul.f32 %v6070, %v1269
      %v6079 = vpack.c.bf16 %v6073, %v6071
      %v6080 = vpack.c.bf16 %v6074, %v6072
      %v6081 = vpack.c.bf16 %v6077, %v6075
      %v6082 = vpack.c.bf16 %v6078, %v6076
      %6083 = vrot.lane.b32.xlu0 %v5819, 111
      %v6084 = vpop.permute.xlu0 %6083
      %6085 = vrot.lane.b32.xlu0 %v5821, 111
      %v6086 = vpop.permute.xlu0 %6085
      %6087 = vrot.lane.b32.xlu0 %v5823, 111
      %v6088 = vpop.permute.xlu0 %6087
      %6089 = vrot.lane.b32.xlu0 %v5825, 111
      %v6090 = vpop.permute.xlu0 %6089
      %6091 = vrot.lane.b32.xlu0 %v5820, 111
      %v6092 = vpop.permute.xlu0 %6091
      %6093 = vrot.lane.b32.xlu0 %v5822, 111
      %v6094 = vpop.permute.xlu0 %6093
      %6095 = vrot.lane.b32.xlu0 %v5824, 111
      %v6096 = vpop.permute.xlu0 %6095
      %6097 = vrot.lane.b32.xlu0 %v5826, 111
      %v6098 = vpop.permute.xlu0 %6097
      %v6099 = vsel %vm1298, %v6084, %v6092
      %v6100 = vsel %vm1298, %v6086, %v6094
      %v6101 = vsel %vm1298, %v6088, %v6096
      %v6102 = vsel %vm1298, %v6090, %v6098
      %v6103 = vsel %vm1298, %v6092, %v6084
      %v6104 = vsel %vm1298, %v6094, %v6086
      %v6105 = vsel %vm1298, %v6096, %v6088
      %v6106 = vsel %vm1298, %v6098, %v6090
      %v6107 = vmul.f32 %v6099, %v1312
      %v6108 = vmul.f32 %v6103, %v1316
      %v6109 = vmul.f32 %v6100, %v1312
      %v6110 = vmul.f32 %v6104, %v1316
      %v6111 = vmul.f32 %v6101, %v1312
      %v6112 = vmul.f32 %v6105, %v1316
      %v6113 = vmul.f32 %v6102, %v1312
      %v6114 = vmul.f32 %v6106, %v1316
      %v6115 = vpack.c.bf16 %v6109, %v6107
      %v6116 = vpack.c.bf16 %v6110, %v6108
      %v6117 = vpack.c.bf16 %v6113, %v6111
      %v6118 = vpack.c.bf16 %v6114, %v6112
      %v6119 = vld [vmem:[%s55] sm:$0xff]
      %v6120 = vld [vmem:[%s55 + $0x8] sm:$0xf]
      %v6121 = vld [vmem:[%s55 + $0xc] sm:$0x33]
      %v6122 = vld [vmem:[%s55 + $0x14] sm:$0x3]
      %v6123 = vld [vmem:[%s57] sm:$0xff]
      %v6124 = vld [vmem:[%s57 + $0x8] sm:$0xf]
      %6126 = vset.pattern.permute.xlu0 0
      %6127 = vperm.xlu0 %6126, %v6123
      %v6128 = vpop.permute.xlu0 %6127
      %6131 = vset.pattern.permute.xlu0 0
      %6132 = vperm.xlu0 %6131, %v6124
      %v6133 = vpop.permute.xlu0 %6132
      %v6139 = vunpack.c.l.b16 %v6119
      %v6140 = vunpack.c.h.b16 %v6119
      %v6141 = vunpack.c.l.b16 %v6120
      %v6142 = vunpack.c.l.b16 %v6121
      %v6143 = vunpack.c.h.b16 %v6121
      %v6144 = vunpack.c.l.b16 %v6122
      %v6145 = vpack.c.b16 %v6142, %v6139
      %v6146 = vpack.c.b16 %v6143, %v6140
      %v6147 = vpack.c.b16 %v6144, %v6141
      %v6151 = vsel %vm1391, %v6147, 0
      %6153 = vmatprep.subr.bf16.mxu0 %v5860
      %6154 = vmatpush1.bf16.msra.mxu0 %v5859
      %6155 = vmatprep.subr.bf16.mxu0 %v5862
      %6156 = vmatpush1.bf16.msra.mxu0 %v5861
      %6157 = vmatprep.subr.bf16.mxu0 %v5896
      %6158 = vmatpush1.bf16.msra.mxu0 %v5895
      %6159 = vmatprep.subr.bf16.mxu0 %v5898
      %6160 = vmatpush1.bf16.msra.mxu0 %v5897
      %6161 = vmatprep.subr.bf16.mxu0 %v5932
      %6162 = vmatpush1.bf16.msra.mxu0 %v5931
      %6163 = vmatprep.subr.bf16.mxu0 %v5934
      %6164 = vmatpush1.bf16.msra.mxu0 %v5933
      %6165 = vmatprep.subr.bf16.mxu0 %v5968
      %6166 = vmatpush1.bf16.msra.mxu0 %v5967
      %6167 = vmatprep.subr.bf16.mxu0 %v5970
      %6168 = vmatpush1.bf16.msra.mxu0 %v5969
      %6169 = vmatprep.subr.bf16.mxu0 %v5972
      %6170 = vmatpush1.bf16.msra.mxu0 %v5971
      %6171 = vmatprep.subr.bf16.mxu0 %v5974
      %6172 = vmatpush1.bf16.msra.mxu0 %v5973
      %6173 = vmatprep.subr.bf16.mxu0 %v6008
      %6174 = vmatpush1.bf16.msra.mxu0 %v6007
      %6175 = vmatprep.subr.bf16.mxu0 %v6010
      %6176 = vmatpush1.bf16.msra.mxu0 %v6009
      %6177 = vmatprep.subr.bf16.mxu0 %v6044
      %6178 = vmatpush1.bf16.msra.mxu0 %v6043
      %6179 = vmatprep.subr.bf16.mxu0 %v6046
      %6180 = vmatpush1.bf16.msra.mxu0 %v6045
      %6181 = vmatprep.subr.bf16.mxu0 %v6080
      %6182 = vmatpush1.bf16.msra.mxu0 %v6079
      %6183 = vmatprep.subr.bf16.mxu0 %v6082
      %6184 = vmatpush1.bf16.msra.mxu0 %v6081
      %6185 = vmatprep.mubr.bf16.mxu0 %v6146
      %6186 = vmatmul.mubr.bf16.gmra.mrb[0].mxu0 %v6145
      %v6187 = vpop.f32.mrb[0].mxu0
      %v6188 = vadd.f32 %v6128, %v6187
      %v6189 = vpop.f32.mrb[0].mxu0
      %v6190 = vadd.f32 %v6128, %v6189
      %v6191 = vpop.f32.mrb[0].mxu0
      %v6192 = vadd.f32 %v6133, %v6191
      %v6193 = vpop.f32.mrb[0].mxu0
      %v6194 = vadd.f32 %v6133, %v6193
      %6195 = vdwg.mxu0
      %6196 = vmatprep.subr.bf16.mxu0 %v6116
      %6197 = vmatpush1.bf16.msra.mxu0 %v6115
      %6198 = vmatprep.subr.bf16.mxu0 %v6118
      %6199 = vmatpush1.bf16.msra.mxu0 %v6117
      %6200 = vmatprep.subr.bf16.mxu0 0
      %6201 = vmatpush1.bf16.msra.mxu0 0
      %6202 = vmatprep.subr.bf16.mxu0 0
      %6203 = vmatpush1.bf16.msra.mxu0 0
      %6204 = vmatprep.subr.bf16.mxu0 0
      %6205 = vmatpush1.bf16.msra.mxu0 0
      %6206 = vmatprep.subr.bf16.mxu0 0
      %6207 = vmatpush1.bf16.msra.mxu0 0
      %6208 = vmatprep.subr.bf16.mxu0 0
      %6209 = vmatpush1.bf16.msra.mxu0 0
      %6210 = vmatprep.subr.bf16.mxu0 0
      %6211 = vmatpush1.bf16.msra.mxu0 0
      %6212 = vmatprep.subr.bf16.mxu0 0
      %6213 = vmatpush1.bf16.msra.mxu0 0
      %6214 = vmatprep.subr.bf16.mxu0 0
      %6215 = vmatpush1.bf16.msra.mxu0 0
      %6216 = vmatprep.subr.bf16.mxu0 0
      %6217 = vmatpush1.bf16.msra.mxu0 0
      %6218 = vmatprep.subr.bf16.mxu0 0
      %6219 = vmatpush1.bf16.msra.mxu0 0
      %6220 = vmatprep.subr.bf16.mxu0 0
      %6221 = vmatpush1.bf16.msra.mxu0 0
      %6222 = vmatprep.subr.bf16.mxu0 0
      %6223 = vmatpush1.bf16.msra.mxu0 0
      %6224 = vmatprep.subr.bf16.mxu0 0
      %6225 = vmatpush1.bf16.msra.mxu0 0
      %6226 = vmatprep.subr.bf16.mxu0 0
      %6227 = vmatpush1.bf16.msra.mxu0 0
      %6228 = vmatprep.mubr.bf16.mxu0 0
      %6229 = vmatmul.mubr.bf16.gmra.mrb[0].mxu0 %v6151
      %v6230 = vpop.f32.mrb[0].mxu0
      %v6231 = vadd.f32 %v6188, %v6230
      %v6232 = vpop.f32.mrb[0].mxu0
      %v6233 = vadd.f32 %v6190, %v6232
      %v6234 = vpop.f32.mrb[0].mxu0
      %v6235 = vadd.f32 %v6192, %v6234
      %v6236 = vpop.f32.mrb[0].mxu0
      %v6237 = vadd.f32 %v6194, %v6236
      %6238 = vdwg.mxu0
      %6239 = vst [vmem:[%s943] sm:$0xff] %v6231
      %6240 = vst [vmem:[%s943 + $0x8] sm:$0xff] %v6233
      %6241 = vst [vmem:[%s943 + $0x10] sm:$0xf] %v6235
      %6242 = vst [vmem:[%s943 + $0x18] sm:$0xf] %v6237
      %p6243 = scmp.lt.s32.totalorder %s73, 1
      %s6244 = scalar_select %p6243, %s73, 1
      %s6245 = smul.addr %s6244, 6
      %s6246 = smul.addr %s6245, 8
      %s6247 = scalar_lea.vmem %s59, %s6246
      %p6248 = scmp.lt.s32.totalorder %s73, 1
      %s6249 = scalar_select %p6248, %s73, 1
      %s6250 = smul.addr %s6249, 4
      %s6251 = smul.addr %s6250, 8
      %s6252 = scalar_lea.vmem %s61, %s6251
      // Predicated region
      $region137: #{tpu_custom_call.1} parent=135 // pred_check
        %p6253 = pneg %p705
      $region138: #{tpu_custom_call.1} parent=135 // pred_check_branch
        %6255 = sbr.rel (%p6253) target = $region140
      $region139: #{tpu_custom_call.1} parent=135 // pred_region
        _
      $region140: #{tpu_custom_call.1} parent=135 // pred_fallthru
        _
      // Predicated region
      $region141: #{tpu_custom_call.1} parent=135 // pred_check
        %p6256 = pneg %p731
      $region142: #{tpu_custom_call.1} parent=135 // pred_check_branch
        %6258 = sbr.rel (%p6256) target = $region144
      $region143: #{tpu_custom_call.1} parent=135 // pred_region
        _
      $region144: #{tpu_custom_call.1} parent=135 // pred_fallthru
        _
    $region136: #{tpu_custom_call.1} parent=5 // pred_fallthru
      _
    %p6259 = scmp.le.s32.totalorder 2, %s68
    // Predicated region
    $region145: #{tpu_custom_call.1} parent=5 // pred_check
      %p6260 = pneg %p6259
    $region146: #{tpu_custom_call.1} parent=5 // pred_check_branch
      %6262 = sbr.rel (%p6260) target = $region148
    $region147: #{tpu_custom_call.1} parent=5 // pred_region
      %s6263 = ssub.s32 %s68, 2
      // Predicated region
      $region149: #{tpu_custom_call.1} parent=147 // pred_check
        %p6264 = pneg %p711
      $region150: #{tpu_custom_call.1} parent=147 // pred_check_branch
        %6266 = sbr.rel (%p6264) target = $region152
      $region151: #{tpu_custom_call.1} parent=147 // pred_region
        %p6267 = scmp.lt.s32.totalorder %s74, 1
        %s6268 = scalar_select %p6267, %s74, 1
        %s6269 = smul.addr %s6268, 6
        %s6270 = smul.addr %s6269, 8
        %s6271 = scalar_lea.vmem %s59, %s6270
      $region152: #{tpu_custom_call.1} parent=147 // pred_fallthru
        _
      // Predicated region
      $region153: #{tpu_custom_call.1} parent=147 // pred_check
        %p6272 = pneg %p737
      $region154: #{tpu_custom_call.1} parent=147 // pred_check_branch
        %6274 = sbr.rel (%p6272) target = $region156
      $region155: #{tpu_custom_call.1} parent=147 // pred_region
        %p6275 = scmp.lt.s32.totalorder %s74, 1
        %s6276 = scalar_select %p6275, %s74, 1
        %s6277 = smul.addr %s6276, 4
        %s6278 = smul.addr %s6277, 8
        %s6279 = scalar_lea.vmem %s61, %s6278
      $region156: #{tpu_custom_call.1} parent=147 // pred_fallthru
        _
    $region148: #{tpu_custom_call.1} parent=5 // pred_fallthru
      _
  $region6: #{tpu_custom_call.1} parent=0 // loop_footer
    %s72 = sadd.s32 1, %s68
  $region7: #{tpu_custom_call.1} parent=0 // loop_footer_branch
    %67 = sbr.rel target = $region3
  $region8: #{tpu_custom_call.1} parent=0 // loop_exit
    _

</llo_original>
